<compile_context>
chip_gen: v7x
topology: tpu7x:2x2x1
jax: 0.10.0
libtpu: 0.0.40
codegen_flags: <defaults>
</compile_context>

<pallas_src>
import jax
import jax.numpy as jnp
from jax.experimental import pallas as pl
from jax.experimental.pallas import tpu as pltpu

HIDDEN_SIZE = 32
INPUT_SIZE = 768
OUTPUT_SIZE = 4096


def _round_up(n, m):
    return ((n + m - 1) // m) * m


def net_kernel(x_ref, w1_ref, b1_ref, w2_ref, b2_ref, ill_ref, o_ref):
    # Linear 1 + ReLU: (TB, 768) @ (768, 32) -> (TB, 32); tiny, stays on-chip.
    h = jnp.dot(
        x_ref[...], w1_ref[...],
        preferred_element_type=jnp.float32,
        precision=jax.lax.Precision.HIGHEST,
    )
    h = jnp.maximum(h + b1_ref[...], 0.0)          # (TB,32) + (1,32)
    # Linear 2: (TB, 32) @ (32, 4096) -> (TB, 4096).
    y = jnp.dot(
        h, w2_ref[...],
        preferred_element_type=jnp.float32,
        precision=jax.lax.Precision.HIGHEST,
    )
    y = y + b2_ref[...]                            # (TB,4096) + (1,4096)
    # Masked assignment: x[illegals == 1] = -1000000 (Python literal -> no
    # captured traced constant).
    o_ref[...] = jnp.where(ill_ref[...] == 1, -1000000.0, y)


def _pick_batch_tile(B, block_b):
    # Tile must be a multiple of 8 (f32/int32 sublane tiling); cap at block_b.
    tb = min(block_b, _round_up(B, 8))
    # For large batches keep >= 4 grid steps: shards across v7x's two
    # TensorCores ("parallel" axis) and keeps the double-buffer pipeline warm.
    if B >= 32 and pl.cdiv(B, tb) < 4:
        tb = min(tb, max(8, _round_up(pl.cdiv(B, 4), 8)))
    return tb


def net_forward(x, w1_t, b1, w2_t, b2, illegals, *, block_b=256):
    """x: (B, 768) f32, illegals: (B, 4096) int -> (B, 4096) f32."""
    B = x.shape[0]
    tb = _pick_batch_tile(B, block_b)
    # Ragged last block handled by Pallas (padded reads, masked OOB writes):
    # no jnp.pad / slice round-trips in HBM.
    grid = (pl.cdiv(B, tb),)

    batch_spec = lambda cols: pl.BlockSpec((tb, cols), lambda i: (i, 0))
    resident = lambda shape: pl.BlockSpec(shape, lambda i: (0, 0))  # VMEM-resident

    return pl.pallas_call(
        net_kernel,
        out_shape=jax.ShapeDtypeStruct((B, OUTPUT_SIZE), jnp.float32),
        grid=grid,
        in_specs=[
            batch_spec(INPUT_SIZE),                 # x            (tb, 768)
            resident((INPUT_SIZE, HIDDEN_SIZE)),    # W1^T         (768, 32)
            resident((1, HIDDEN_SIZE)),             # b1           (1, 32)
            resident((HIDDEN_SIZE, OUTPUT_SIZE)),   # W2^T         (32, 4096)
            resident((1, OUTPUT_SIZE)),             # b2           (1, 4096)
            batch_spec(OUTPUT_SIZE),                # illegals     (tb, 4096)
        ],
        out_specs=batch_spec(OUTPUT_SIZE),          # out          (tb, 4096)
        compiler_params=pltpu.CompilerParams(
            # Batch axis is independent -> megacore-shardable on v7x.
            dimension_semantics=("parallel",),
            # 256-row tiles (~19 MiB double-buffered with int32 mask) fit the
            # v6e/v7x default; raise v5e's 16 MiB default to the same 32 MiB.
            vmem_limit_bytes=32 << 20,
        ),
    )(x, w1_t, b1, w2_t, b2, illegals)


def init_params(key):
    # Deterministic uniform(-1, 1) init (mirrors the torch.manual_seed(42)
    # uniform_ init in shape/distribution; not a checkpoint load).
    k1, k2, k3, k4 = jax.random.split(key, 4)
    # Stored as (in, out) = Linear.weight.T so the kernel matmuls row-major.
    w1_t = jax.random.uniform(k1, (INPUT_SIZE, HIDDEN_SIZE), jnp.float32, -1.0, 1.0)
    b1 = jax.random.uniform(k2, (1, HIDDEN_SIZE), jnp.float32, -1.0, 1.0)
    w2_t = jax.random.uniform(k3, (HIDDEN_SIZE, OUTPUT_SIZE), jnp.float32, -1.0, 1.0)
    b2 = jax.random.uniform(k4, (1, OUTPUT_SIZE), jnp.float32, -1.0, 1.0)
    return w1_t, b1, w2_t, b2


if __name__ == "__main__":
    key = jax.random.PRNGKey(0)
    kp, kx, ki = jax.random.split(key, 3)

    B = 8  # small batch; kernel handles the single (ragged) tile directly
    w1_t, b1, w2_t, b2 = init_params(kp)
    x = jax.random.normal(kx, (B, INPUT_SIZE), jnp.float32)
    illegals = (jax.random.uniform(ki, (B, OUTPUT_SIZE)) < 0.5).astype(jnp.int32)

    out = net_forward(x, w1_t, b1, w2_t, b2, illegals)
    out = jax.block_until_ready(out)

    # Reference check in plain JAX (same precision for apples-to-apples).
    h_ref = jnp.maximum(
        jnp.dot(x, w1_t, precision=jax.lax.Precision.HIGHEST) + b1, 0.0)
    y_ref = jnp.dot(h_ref, w2_t, precision=jax.lax.Precision.HIGHEST) + b2
    y_ref = jnp.where(illegals == 1, -1000000.0, y_ref)
    assert out.shape == (B, OUTPUT_SIZE)
    assert jnp.allclose(out, y_ref, atol=1e-3, rtol=1e-3)

    print("KERNEL_OK")
</pallas_src>

<mosaic_0001>
module attributes {stable_mosaic.version = 11 : i64} {
  func.func @net_kernel(%arg0: i32, %arg1: memref<8x768xf32, #tpu.memory_space<vmem>>, %arg2: memref<768x32xf32, #tpu.memory_space<vmem>>, %arg3: memref<1x32xf32, #tpu.memory_space<vmem>>, %arg4: memref<32x4096xf32, #tpu.memory_space<vmem>>, %arg5: memref<1x4096xf32, #tpu.memory_space<vmem>>, %arg6: memref<8x4096xi32, #tpu.memory_space<vmem>>, %arg7: memref<8x4096xf32, #tpu.memory_space<vmem>>) attributes {dimension_semantics = [#tpu.dimension_semantics<parallel>], iteration_bounds = array<i64: 1>, scalar_prefetch = 0 : i64, scratch_operands = 0 : i64, tpu.core_type = #tpu.core_type<tc>, window_params = [{transform_indices = @transform_0, window_bounds = array<i64: 8, 768>}, {pipeline_mode = #tpu.pipeline_mode<synchronous>, transform_indices = @transform_1, window_bounds = array<i64: 768, 32>}, {pipeline_mode = #tpu.pipeline_mode<synchronous>, transform_indices = @transform_2, window_bounds = array<i64: 1, 32>}, {pipeline_mode = #tpu.pipeline_mode<synchronous>, transform_indices = @transform_3, window_bounds = array<i64: 32, 4096>}, {pipeline_mode = #tpu.pipeline_mode<synchronous>, transform_indices = @transform_4, window_bounds = array<i64: 1, 4096>}, {transform_indices = @transform_5, window_bounds = array<i64: 8, 4096>}, {transform_indices = @transform_6, window_bounds = array<i64: 8, 4096>}]} {
    %c0 = arith.constant 0 : index
    %c0_0 = arith.constant 0 : index
    %0 = vector.load %arg1[%c0, %c0_0] : memref<8x768xf32, #tpu.memory_space<vmem>>, vector<8x768xf32>
    %c0_1 = arith.constant 0 : index
    %c0_2 = arith.constant 0 : index
    %1 = vector.load %arg2[%c0_1, %c0_2] : memref<768x32xf32, #tpu.memory_space<vmem>>, vector<768x32xf32>
    %cst = arith.constant dense<0.000000e+00> : vector<8x32xf32>
    %2 = tpu.matmul %0, %1, %cst {dimension_numbers = #tpu.dot_dimension_numbers<[1], [0], [0], [1], [0, 0, 1, 1], [], []>, precision = #tpu.contract_precision<fp32>} : vector<8x768xf32>, vector<768x32xf32>, vector<8x32xf32> -> vector<8x32xf32>
    %c0_3 = arith.constant 0 : index
    %c0_4 = arith.constant 0 : index
    %3 = vector.load %arg3[%c0_3, %c0_4] : memref<1x32xf32, #tpu.memory_space<vmem>>, vector<1x32xf32>
    %4 = vector.broadcast %3 : vector<1x32xf32> to vector<8x32xf32>
    %5 = arith.addf %2, %4 : vector<8x32xf32>
    %cst_5 = arith.constant 0.000000e+00 : f32
    %6 = vector.broadcast %cst_5 : f32 to vector<8x32xf32>
    %7 = arith.maximumf %5, %6 : vector<8x32xf32>
    %c0_6 = arith.constant 0 : index
    %c0_7 = arith.constant 0 : index
    %8 = vector.load %arg4[%c0_6, %c0_7] : memref<32x4096xf32, #tpu.memory_space<vmem>>, vector<32x4096xf32>
    %cst_8 = arith.constant dense<0.000000e+00> : vector<8x4096xf32>
    %9 = tpu.matmul %7, %8, %cst_8 {dimension_numbers = #tpu.dot_dimension_numbers<[1], [0], [0], [1], [0, 0, 1, 1], [], []>, precision = #tpu.contract_precision<fp32>} : vector<8x32xf32>, vector<32x4096xf32>, vector<8x4096xf32> -> vector<8x4096xf32>
    %c0_9 = arith.constant 0 : index
    %c0_10 = arith.constant 0 : index
    %10 = vector.load %arg5[%c0_9, %c0_10] : memref<1x4096xf32, #tpu.memory_space<vmem>>, vector<1x4096xf32>
    %11 = vector.broadcast %10 : vector<1x4096xf32> to vector<8x4096xf32>
    %12 = arith.addf %9, %11 : vector<8x4096xf32>
    %c0_11 = arith.constant 0 : index
    %c0_12 = arith.constant 0 : index
    %13 = vector.load %arg6[%c0_11, %c0_12] : memref<8x4096xi32, #tpu.memory_space<vmem>>, vector<8x4096xi32>
    %c1_i32 = arith.constant 1 : i32
    %14 = vector.broadcast %c1_i32 : i32 to vector<8x4096xi32>
    %15 = arith.cmpi eq, %13, %14 : vector<8x4096xi32>
    %cst_13 = arith.constant -1.000000e+06 : f32
    %16 = vector.broadcast %cst_13 : f32 to vector<8x4096xf32>
    %17 = arith.select %15, %16, %12 : vector<8x4096xi1>, vector<8x4096xf32>
    %c0_14 = arith.constant 0 : index
    %c0_15 = arith.constant 0 : index
    %18 = vector.load %arg7[%c0_14, %c0_15] : memref<8x4096xf32, #tpu.memory_space<vmem>>, vector<8x4096xf32>
    tpu.vector_store %arg7[%c0_14, %c0_15], %17 {strides = array<i32>} : memref<8x4096xf32, #tpu.memory_space<vmem>>, vector<8x4096xf32>,
    return
  }
  func.func @transform_0(%arg0: i32) -> (i32, i32) {
    %c0_i32 = arith.constant 0 : i32
    %c0_i32_0 = arith.constant 0 : i32
    return %arg0, %c0_i32 : i32, i32
  }
  func.func @transform_1(%arg0: i32) -> (i32, i32) {
    %c0_i32 = arith.constant 0 : i32
    %c0_i32_0 = arith.constant 0 : i32
    %c0_i32_1 = arith.constant 0 : i32
    return %c0_i32, %c0_i32_0 : i32, i32
  }
  func.func @transform_2(%arg0: i32) -> (i32, i32) {
    %c0_i32 = arith.constant 0 : i32
    %c0_i32_0 = arith.constant 0 : i32
    %c0_i32_1 = arith.constant 0 : i32
    return %c0_i32, %c0_i32_0 : i32, i32
  }
  func.func @transform_3(%arg0: i32) -> (i32, i32) {
    %c0_i32 = arith.constant 0 : i32
    %c0_i32_0 = arith.constant 0 : i32
    %c0_i32_1 = arith.constant 0 : i32
    return %c0_i32, %c0_i32_0 : i32, i32
  }
  func.func @transform_4(%arg0: i32) -> (i32, i32) {
    %c0_i32 = arith.constant 0 : i32
    %c0_i32_0 = arith.constant 0 : i32
    %c0_i32_1 = arith.constant 0 : i32
    return %c0_i32, %c0_i32_0 : i32, i32
  }
  func.func @transform_5(%arg0: i32) -> (i32, i32) {
    %c0_i32 = arith.constant 0 : i32
    %c0_i32_0 = arith.constant 0 : i32
    return %arg0, %c0_i32 : i32, i32
  }
  func.func @transform_6(%arg0: i32) -> (i32, i32) {
    %c0_i32 = arith.constant 0 : i32
    %c0_i32_0 = arith.constant 0 : i32
    return %arg0, %c0_i32 : i32, i32
  }
}

</mosaic_0001>

<llo_original>
// kernel: tpu_custom_call.1
$region0: #{tpu_custom_call.1}
  #allocation0 [shape = 'u32[]', space=smem, size = 0x4, offset = 0x4, fixed_abs, tag = 'smem constant byte address 0x4 - core index']
  #allocation1 [shape = 'u32[144,128]{1,0:T(1,128)}', space=vmem, size = 0x12000, scoped, tag = 'internal scratch']
  %s0 = inlined_call_operand.vmem [shape: f32[8,768], index: 0, kind: input, shape index: {}]
  %s1 = inlined_call_operand.vmem [shape: f32[768,32], index: 1, kind: input, shape index: {}]
  %s2 = inlined_call_operand.vmem [shape: f32[1,32], index: 2, kind: input, shape index: {}]
  %s3 = inlined_call_operand.hbm [shape: f32[32,4096], index: 3, kind: input, shape index: {}]
  %s4 = inlined_call_operand.vmem [shape: f32[1,4096], index: 4, kind: input, shape index: {}]
  %s5 = inlined_call_operand.vmem [shape: s32[8,4096], index: 5, kind: input, shape index: {}]
  %s6 = inlined_call_operand.hbm [shape: f32[8,4096], index: 6, kind: output, shape index: {}]
  %s7 = sld [smem:[#allocation0]]
  $region38: #{tpu_custom_call.1} parent=0
    _
  %s9 = ssub.s32 1, %s7
  %s10 = scalar_select 0, %s9, %s7
  $region1: #{tpu_custom_call.1} parent=0
    #allocation2 [shape = 'u8[524288]{0}', space=vmem, size = 0x80000, scoped, tag = 'input window, operand 3, single buffered']
    #allocation3 [shape = 's32[1]{0}', space=sflag, size = 0x4, scoped, tag = 'scoped memory for tpu_custom_call.1']
    #allocation4 [shape = 's32[1]{0}', space=sflag, size = 0x4, scoped, tag = 'scoped memory for tpu_custom_call.1']
    #allocation5 [shape = 'u8[131072]{0}', space=vmem, size = 0x20000, scoped, tag = 'output window, operand 0, single buffered']
    %11 = vsyncpa [#allocation3], 0
    %12 = vsyncpa [#allocation4], 0
    // Predicated region
    $region2: #{tpu_custom_call.1} parent=1 // pred_check
      _
    $region3: #{tpu_custom_call.1} parent=1 // pred_check_branch
      %14 = sbr.rel (0) target = $region5
    $region4: #{tpu_custom_call.1} parent=1 // pred_region
      _
    $region5: #{tpu_custom_call.1} parent=1 // pred_fallthru
      _
    // Predicated region
    $region6: #{tpu_custom_call.1} parent=1 // pred_check
      _
    $region7: #{tpu_custom_call.1} parent=1 // pred_check_branch
      %16 = sbr.rel (0) target = $region9
    $region8: #{tpu_custom_call.1} parent=1 // pred_region
      _
    $region9: #{tpu_custom_call.1} parent=1 // pred_fallthru
      _
    // Predicated region
    $region10: #{tpu_custom_call.1} parent=1 // pred_check
      _
    $region11: #{tpu_custom_call.1} parent=1 // pred_check_branch
      %18 = sbr.rel (0) target = $region13
    $region12: #{tpu_custom_call.1} parent=1 // pred_region
      _
    $region13: #{tpu_custom_call.1} parent=1 // pred_fallthru
      _
    // Predicated region
    $region14: #{tpu_custom_call.1} parent=1 // pred_check
      _
    $region15: #{tpu_custom_call.1} parent=1 // pred_check_branch
      %20 = sbr.rel (0) target = $region17
    $region16: #{tpu_custom_call.1} parent=1 // pred_region
      %s22 = ssub.s32 16384, 16384
      %23 = vsyncadd [#allocation3], %s22
      %s24 = sshll.u32 [#allocation2], 4
      %s25 = int_to_ptr.vmem [resolvable:$true] %s24
      %30 = dma.hbm_to_vmem [thread:$0]  %s3, 16384, %s25, [#allocation3], 4096, 4096, 256
    $region17: #{tpu_custom_call.1} parent=1 // pred_fallthru
      _
    // Predicated region
    $region18: #{tpu_custom_call.1} parent=1 // pred_check
      _
    $region19: #{tpu_custom_call.1} parent=1 // pred_check_branch
      %32 = sbr.rel (0) target = $region21
    $region20: #{tpu_custom_call.1} parent=1 // pred_region
      _
    $region21: #{tpu_custom_call.1} parent=1 // pred_fallthru
      _
    // Predicated region
    $region22: #{tpu_custom_call.1} parent=1 // pred_check
      _
    $region23: #{tpu_custom_call.1} parent=1 // pred_check_branch
      %34 = sbr.rel (0) target = $region25
    $region24: #{tpu_custom_call.1} parent=1 // pred_region
      _
    $region25: #{tpu_custom_call.1} parent=1 // pred_fallthru
      _
    // Predicated region
    $region26: #{tpu_custom_call.1} parent=1 // pred_check
      _
    $region27: #{tpu_custom_call.1} parent=1 // pred_check_branch
      %36 = sbr.rel (0) target = $region29
    $region28: #{tpu_custom_call.1} parent=1 // pred_region
      %37 = dma.done [#allocation3], 16384
    $region29: #{tpu_custom_call.1} parent=1 // pred_fallthru
      _
    %v38 = vld [vmem:[%s0] sm:$0xff]
    %v39 = vld [vmem:[%s0 + $0x8] sm:$0xff]
    %v40 = vld [vmem:[%s0 + $0x10] sm:$0xff]
    %v41 = vld [vmem:[%s0 + $0x18] sm:$0xff]
    %v42 = vld [vmem:[%s0 + $0x20] sm:$0xff]
    %v43 = vld [vmem:[%s0 + $0x28] sm:$0xff]
    %v44 = vld [vmem:[%s1] sm:$0xff]
    %v45 = vld [vmem:[%s1 + $0x8] sm:$0xff]
    %v46 = vld [vmem:[%s1 + $0x10] sm:$0xff]
    %v47 = vld [vmem:[%s1 + $0x18] sm:$0xff]
    %v48 = vld [vmem:[%s1 + $0x20] sm:$0xff]
    %v49 = vld [vmem:[%s1 + $0x28] sm:$0xff]
    %v50 = vld [vmem:[%s1 + $0x30] sm:$0xff]
    %v51 = vld [vmem:[%s1 + $0x38] sm:$0xff]
    %v52 = vld [vmem:[%s1 + $0x40] sm:$0xff]
    %v53 = vld [vmem:[%s1 + $0x48] sm:$0xff]
    %v54 = vld [vmem:[%s1 + $0x50] sm:$0xff]
    %v55 = vld [vmem:[%s1 + $0x58] sm:$0xff]
    %v56 = vld [vmem:[%s1 + $0x60] sm:$0xff]
    %v57 = vld [vmem:[%s1 + $0x68] sm:$0xff]
    %v58 = vld [vmem:[%s1 + $0x70] sm:$0xff]
    %v59 = vld [vmem:[%s1 + $0x78] sm:$0xff]
    %v60 = vld [vmem:[%s1 + $0x80] sm:$0xff]
    %v61 = vld [vmem:[%s1 + $0x88] sm:$0xff]
    %v62 = vld [vmem:[%s1 + $0x90] sm:$0xff]
    %v63 = vld [vmem:[%s1 + $0x98] sm:$0xff]
    %v64 = vld [vmem:[%s1 + $0xa0] sm:$0xff]
    %v65 = vld [vmem:[%s1 + $0xa8] sm:$0xff]
    %v66 = vld [vmem:[%s1 + $0xb0] sm:$0xff]
    %v67 = vld [vmem:[%s1 + $0xb8] sm:$0xff]
    %v68 = vld [vmem:[%s1 + $0xc0] sm:$0xff]
    %v69 = vld [vmem:[%s1 + $0xc8] sm:$0xff]
    %v70 = vld [vmem:[%s1 + $0xd0] sm:$0xff]
    %v71 = vld [vmem:[%s1 + $0xd8] sm:$0xff]
    %v72 = vld [vmem:[%s1 + $0xe0] sm:$0xff]
    %v73 = vld [vmem:[%s1 + $0xe8] sm:$0xff]
    %v74 = vld [vmem:[%s1 + $0xf0] sm:$0xff]
    %v75 = vld [vmem:[%s1 + $0xf8] sm:$0xff]
    %v76 = vld [vmem:[%s1 + $0x100] sm:$0xff]
    %v77 = vld [vmem:[%s1 + $0x108] sm:$0xff]
    %v78 = vld [vmem:[%s1 + $0x110] sm:$0xff]
    %v79 = vld [vmem:[%s1 + $0x118] sm:$0xff]
    %v80 = vld [vmem:[%s1 + $0x120] sm:$0xff]
    %v81 = vld [vmem:[%s1 + $0x128] sm:$0xff]
    %v82 = vld [vmem:[%s1 + $0x130] sm:$0xff]
    %v83 = vld [vmem:[%s1 + $0x138] sm:$0xff]
    %v84 = vld [vmem:[%s1 + $0x140] sm:$0xff]
    %v85 = vld [vmem:[%s1 + $0x148] sm:$0xff]
    %v86 = vld [vmem:[%s1 + $0x150] sm:$0xff]
    %v87 = vld [vmem:[%s1 + $0x158] sm:$0xff]
    %v88 = vld [vmem:[%s1 + $0x160] sm:$0xff]
    %v89 = vld [vmem:[%s1 + $0x168] sm:$0xff]
    %v90 = vld [vmem:[%s1 + $0x170] sm:$0xff]
    %v91 = vld [vmem:[%s1 + $0x178] sm:$0xff]
    %v92 = vld [vmem:[%s1 + $0x180] sm:$0xff]
    %v93 = vld [vmem:[%s1 + $0x188] sm:$0xff]
    %v94 = vld [vmem:[%s1 + $0x190] sm:$0xff]
    %v95 = vld [vmem:[%s1 + $0x198] sm:$0xff]
    %v96 = vld [vmem:[%s1 + $0x1a0] sm:$0xff]
    %v97 = vld [vmem:[%s1 + $0x1a8] sm:$0xff]
    %v98 = vld [vmem:[%s1 + $0x1b0] sm:$0xff]
    %v99 = vld [vmem:[%s1 + $0x1b8] sm:$0xff]
    %v100 = vld [vmem:[%s1 + $0x1c0] sm:$0xff]
    %v101 = vld [vmem:[%s1 + $0x1c8] sm:$0xff]
    %v102 = vld [vmem:[%s1 + $0x1d0] sm:$0xff]
    %v103 = vld [vmem:[%s1 + $0x1d8] sm:$0xff]
    %v104 = vld [vmem:[%s1 + $0x1e0] sm:$0xff]
    %v105 = vld [vmem:[%s1 + $0x1e8] sm:$0xff]
    %v106 = vld [vmem:[%s1 + $0x1f0] sm:$0xff]
    %v107 = vld [vmem:[%s1 + $0x1f8] sm:$0xff]
    %v108 = vld [vmem:[%s1 + $0x200] sm:$0xff]
    %v109 = vld [vmem:[%s1 + $0x208] sm:$0xff]
    %v110 = vld [vmem:[%s1 + $0x210] sm:$0xff]
    %v111 = vld [vmem:[%s1 + $0x218] sm:$0xff]
    %v112 = vld [vmem:[%s1 + $0x220] sm:$0xff]
    %v113 = vld [vmem:[%s1 + $0x228] sm:$0xff]
    %v114 = vld [vmem:[%s1 + $0x230] sm:$0xff]
    %v115 = vld [vmem:[%s1 + $0x238] sm:$0xff]
    %v116 = vld [vmem:[%s1 + $0x240] sm:$0xff]
    %v117 = vld [vmem:[%s1 + $0x248] sm:$0xff]
    %v118 = vld [vmem:[%s1 + $0x250] sm:$0xff]
    %v119 = vld [vmem:[%s1 + $0x258] sm:$0xff]
    %v120 = vld [vmem:[%s1 + $0x260] sm:$0xff]
    %v121 = vld [vmem:[%s1 + $0x268] sm:$0xff]
    %v122 = vld [vmem:[%s1 + $0x270] sm:$0xff]
    %v123 = vld [vmem:[%s1 + $0x278] sm:$0xff]
    %v124 = vld [vmem:[%s1 + $0x280] sm:$0xff]
    %v125 = vld [vmem:[%s1 + $0x288] sm:$0xff]
    %v126 = vld [vmem:[%s1 + $0x290] sm:$0xff]
    %v127 = vld [vmem:[%s1 + $0x298] sm:$0xff]
    %v128 = vld [vmem:[%s1 + $0x2a0] sm:$0xff]
    %v129 = vld [vmem:[%s1 + $0x2a8] sm:$0xff]
    %v130 = vld [vmem:[%s1 + $0x2b0] sm:$0xff]
    %v131 = vld [vmem:[%s1 + $0x2b8] sm:$0xff]
    %v132 = vld [vmem:[%s1 + $0x2c0] sm:$0xff]
    %v133 = vld [vmem:[%s1 + $0x2c8] sm:$0xff]
    %v134 = vld [vmem:[%s1 + $0x2d0] sm:$0xff]
    %v135 = vld [vmem:[%s1 + $0x2d8] sm:$0xff]
    %v136 = vld [vmem:[%s1 + $0x2e0] sm:$0xff]
    %v137 = vld [vmem:[%s1 + $0x2e8] sm:$0xff]
    %v138 = vld [vmem:[%s1 + $0x2f0] sm:$0xff]
    %v139 = vld [vmem:[%s1 + $0x2f8] sm:$0xff]
    %v140 = vld [vmem:[%s2] sm:$0x1]
    %v142 = vlaneseq
    %v143 = vshrl.u32 %v142, 7
    %v144 = vsub.s32 0, %v143
    %v145 = vrot.slane %v140, %v144
    %147 = vmatprep.subr.mxu0 0.0
    %v148 = vand.u32 %v44, 4294901760
    %149 = vmatpush1.msra.mxu0 %v148
    %150 = vmatprep.subr.mxu0 0.0
    %v151 = vand.u32 %v45, 4294901760
    %152 = vmatpush1.msra.mxu0 %v151
    %153 = vmatprep.subr.mxu0 0.0
    %v154 = vand.u32 %v46, 4294901760
    %155 = vmatpush1.msra.mxu0 %v154
    %156 = vmatprep.subr.mxu0 0.0
    %v157 = vand.u32 %v47, 4294901760
    %158 = vmatpush1.msra.mxu0 %v157
    %159 = vmatprep.subr.mxu0 0.0
    %v160 = vand.u32 %v48, 4294901760
    %161 = vmatpush1.msra.mxu0 %v160
    %162 = vmatprep.subr.mxu0 0.0
    %v163 = vand.u32 %v49, 4294901760
    %164 = vmatpush1.msra.mxu0 %v163
    %165 = vmatprep.subr.mxu0 0.0
    %v166 = vand.u32 %v50, 4294901760
    %167 = vmatpush1.msra.mxu0 %v166
    %168 = vmatprep.subr.mxu0 0.0
    %v169 = vand.u32 %v51, 4294901760
    %170 = vmatpush1.msra.mxu0 %v169
    %171 = vmatprep.subr.mxu0 0.0
    %v172 = vand.u32 %v52, 4294901760
    %173 = vmatpush1.msra.mxu0 %v172
    %174 = vmatprep.subr.mxu0 0.0
    %v175 = vand.u32 %v53, 4294901760
    %176 = vmatpush1.msra.mxu0 %v175
    %177 = vmatprep.subr.mxu0 0.0
    %v178 = vand.u32 %v54, 4294901760
    %179 = vmatpush1.msra.mxu0 %v178
    %180 = vmatprep.subr.mxu0 0.0
    %v181 = vand.u32 %v55, 4294901760
    %182 = vmatpush1.msra.mxu0 %v181
    %183 = vmatprep.subr.mxu0 0.0
    %v184 = vand.u32 %v56, 4294901760
    %185 = vmatpush1.msra.mxu0 %v184
    %186 = vmatprep.subr.mxu0 0.0
    %v187 = vand.u32 %v57, 4294901760
    %188 = vmatpush1.msra.mxu0 %v187
    %189 = vmatprep.subr.mxu0 0.0
    %v190 = vand.u32 %v58, 4294901760
    %191 = vmatpush1.msra.mxu0 %v190
    %192 = vmatprep.subr.mxu0 0.0
    %v193 = vand.u32 %v59, 4294901760
    %194 = vmatpush1.msra.mxu0 %v193
    %195 = vmatprep.subr.mxu0 0.0
    %v196 = vand.u32 %v60, 4294901760
    %197 = vmatpush1.msra.mxu0 %v196
    %198 = vmatprep.subr.mxu0 0.0
    %v199 = vand.u32 %v61, 4294901760
    %200 = vmatpush1.msra.mxu0 %v199
    %201 = vmatprep.subr.mxu0 0.0
    %v202 = vand.u32 %v62, 4294901760
    %203 = vmatpush1.msra.mxu0 %v202
    %204 = vmatprep.subr.mxu0 0.0
    %v205 = vand.u32 %v63, 4294901760
    %206 = vmatpush1.msra.mxu0 %v205
    %207 = vmatprep.subr.mxu0 0.0
    %v208 = vand.u32 %v64, 4294901760
    %209 = vmatpush1.msra.mxu0 %v208
    %210 = vmatprep.subr.mxu0 0.0
    %v211 = vand.u32 %v65, 4294901760
    %212 = vmatpush1.msra.mxu0 %v211
    %213 = vmatprep.subr.mxu0 0.0
    %v214 = vand.u32 %v66, 4294901760
    %215 = vmatpush1.msra.mxu0 %v214
    %216 = vmatprep.subr.mxu0 0.0
    %v217 = vand.u32 %v67, 4294901760
    %218 = vmatpush1.msra.mxu0 %v217
    %219 = vmatprep.subr.mxu0 0.0
    %v220 = vand.u32 %v68, 4294901760
    %221 = vmatpush1.msra.mxu0 %v220
    %222 = vmatprep.subr.mxu0 0.0
    %v223 = vand.u32 %v69, 4294901760
    %224 = vmatpush1.msra.mxu0 %v223
    %225 = vmatprep.subr.mxu0 0.0
    %v226 = vand.u32 %v70, 4294901760
    %227 = vmatpush1.msra.mxu0 %v226
    %228 = vmatprep.subr.mxu0 0.0
    %v229 = vand.u32 %v71, 4294901760
    %230 = vmatpush1.msra.mxu0 %v229
    %231 = vmatprep.subr.mxu0 0.0
    %v232 = vand.u32 %v72, 4294901760
    %233 = vmatpush1.msra.mxu0 %v232
    %234 = vmatprep.subr.mxu0 0.0
    %v235 = vand.u32 %v73, 4294901760
    %236 = vmatpush1.msra.mxu0 %v235
    %237 = vmatprep.subr.mxu0 0.0
    %v238 = vand.u32 %v74, 4294901760
    %239 = vmatpush1.msra.mxu0 %v238
    %240 = vmatprep.subr.mxu0 0.0
    %v241 = vand.u32 %v75, 4294901760
    %242 = vmatpush1.msra.mxu0 %v241
    %v243 = vand.u32 %v39, 4294901760
    %v244 = vsub.f32 %v39, %v243
    %v245 = vand.u32 %v244, 4294901760
    %v246 = vsub.f32 %v244, %v245
    %v247 = vand.u32 %v246, 4294901760
    %248 = vmatprep.mubr.f32.mxu0 %v247
    %v249 = vand.u32 %v38, 4294901760
    %v250 = vsub.f32 %v38, %v249
    %v251 = vand.u32 %v250, 4294901760
    %v252 = vsub.f32 %v250, %v251
    %v253 = vand.u32 %v252, 4294901760
    %254 = vmatmul.mubr.f32.gmra.mrb[0].mxu0 %v253
    %v255 = vpop.f32.mrb[0].mxu0
    %v256 = vadd.f32 %v145, %v255
    %v257 = vpop.f32.mrb[0].mxu0
    %258 = vdwg.mxu0
    %259 = vmatprep.subr.mxu0 0.0
    %v260 = vand.u32 %v44, 4294901760
    %v261 = vsub.f32 %v44, %v260
    %v262 = vand.u32 %v261, 4294901760
    %v263 = vsub.f32 %v261, %v262
    %v264 = vand.u32 %v263, 4294901760
    %265 = vmatpush1.msra.mxu0 %v264
    %266 = vmatprep.subr.mxu0 0.0
    %v267 = vand.u32 %v45, 4294901760
    %v268 = vsub.f32 %v45, %v267
    %v269 = vand.u32 %v268, 4294901760
    %v270 = vsub.f32 %v268, %v269
    %v271 = vand.u32 %v270, 4294901760
    %272 = vmatpush1.msra.mxu0 %v271
    %273 = vmatprep.subr.mxu0 0.0
    %v274 = vand.u32 %v46, 4294901760
    %v275 = vsub.f32 %v46, %v274
    %v276 = vand.u32 %v275, 4294901760
    %v277 = vsub.f32 %v275, %v276
    %v278 = vand.u32 %v277, 4294901760
    %279 = vmatpush1.msra.mxu0 %v278
    %280 = vmatprep.subr.mxu0 0.0
    %v281 = vand.u32 %v47, 4294901760
    %v282 = vsub.f32 %v47, %v281
    %v283 = vand.u32 %v282, 4294901760
    %v284 = vsub.f32 %v282, %v283
    %v285 = vand.u32 %v284, 4294901760
    %286 = vmatpush1.msra.mxu0 %v285
    %287 = vmatprep.subr.mxu0 0.0
    %v288 = vand.u32 %v48, 4294901760
    %v289 = vsub.f32 %v48, %v288
    %v290 = vand.u32 %v289, 4294901760
    %v291 = vsub.f32 %v289, %v290
    %v292 = vand.u32 %v291, 4294901760
    %293 = vmatpush1.msra.mxu0 %v292
    %294 = vmatprep.subr.mxu0 0.0
    %v295 = vand.u32 %v49, 4294901760
    %v296 = vsub.f32 %v49, %v295
    %v297 = vand.u32 %v296, 4294901760
    %v298 = vsub.f32 %v296, %v297
    %v299 = vand.u32 %v298, 4294901760
    %300 = vmatpush1.msra.mxu0 %v299
    %301 = vmatprep.subr.mxu0 0.0
    %v302 = vand.u32 %v50, 4294901760
    %v303 = vsub.f32 %v50, %v302
    %v304 = vand.u32 %v303, 4294901760
    %v305 = vsub.f32 %v303, %v304
    %v306 = vand.u32 %v305, 4294901760
    %307 = vmatpush1.msra.mxu0 %v306
    %308 = vmatprep.subr.mxu0 0.0
    %v309 = vand.u32 %v51, 4294901760
    %v310 = vsub.f32 %v51, %v309
    %v311 = vand.u32 %v310, 4294901760
    %v312 = vsub.f32 %v310, %v311
    %v313 = vand.u32 %v312, 4294901760
    %314 = vmatpush1.msra.mxu0 %v313
    %315 = vmatprep.subr.mxu0 0.0
    %v316 = vand.u32 %v52, 4294901760
    %v317 = vsub.f32 %v52, %v316
    %v318 = vand.u32 %v317, 4294901760
    %v319 = vsub.f32 %v317, %v318
    %v320 = vand.u32 %v319, 4294901760
    %321 = vmatpush1.msra.mxu0 %v320
    %322 = vmatprep.subr.mxu0 0.0
    %v323 = vand.u32 %v53, 4294901760
    %v324 = vsub.f32 %v53, %v323
    %v325 = vand.u32 %v324, 4294901760
    %v326 = vsub.f32 %v324, %v325
    %v327 = vand.u32 %v326, 4294901760
    %328 = vmatpush1.msra.mxu0 %v327
    %329 = vmatprep.subr.mxu0 0.0
    %v330 = vand.u32 %v54, 4294901760
    %v331 = vsub.f32 %v54, %v330
    %v332 = vand.u32 %v331, 4294901760
    %v333 = vsub.f32 %v331, %v332
    %v334 = vand.u32 %v333, 4294901760
    %335 = vmatpush1.msra.mxu0 %v334
    %336 = vmatprep.subr.mxu0 0.0
    %v337 = vand.u32 %v55, 4294901760
    %v338 = vsub.f32 %v55, %v337
    %v339 = vand.u32 %v338, 4294901760
    %v340 = vsub.f32 %v338, %v339
    %v341 = vand.u32 %v340, 4294901760
    %342 = vmatpush1.msra.mxu0 %v341
    %343 = vmatprep.subr.mxu0 0.0
    %v344 = vand.u32 %v56, 4294901760
    %v345 = vsub.f32 %v56, %v344
    %v346 = vand.u32 %v345, 4294901760
    %v347 = vsub.f32 %v345, %v346
    %v348 = vand.u32 %v347, 4294901760
    %349 = vmatpush1.msra.mxu0 %v348
    %350 = vmatprep.subr.mxu0 0.0
    %v351 = vand.u32 %v57, 4294901760
    %v352 = vsub.f32 %v57, %v351
    %v353 = vand.u32 %v352, 4294901760
    %v354 = vsub.f32 %v352, %v353
    %v355 = vand.u32 %v354, 4294901760
    %356 = vmatpush1.msra.mxu0 %v355
    %357 = vmatprep.subr.mxu0 0.0
    %v358 = vand.u32 %v58, 4294901760
    %v359 = vsub.f32 %v58, %v358
    %v360 = vand.u32 %v359, 4294901760
    %v361 = vsub.f32 %v359, %v360
    %v362 = vand.u32 %v361, 4294901760
    %363 = vmatpush1.msra.mxu0 %v362
    %364 = vmatprep.subr.mxu0 0.0
    %v365 = vand.u32 %v59, 4294901760
    %v366 = vsub.f32 %v59, %v365
    %v367 = vand.u32 %v366, 4294901760
    %v368 = vsub.f32 %v366, %v367
    %v369 = vand.u32 %v368, 4294901760
    %370 = vmatpush1.msra.mxu0 %v369
    %371 = vmatprep.subr.mxu0 0.0
    %v372 = vand.u32 %v60, 4294901760
    %v373 = vsub.f32 %v60, %v372
    %v374 = vand.u32 %v373, 4294901760
    %v375 = vsub.f32 %v373, %v374
    %v376 = vand.u32 %v375, 4294901760
    %377 = vmatpush1.msra.mxu0 %v376
    %378 = vmatprep.subr.mxu0 0.0
    %v379 = vand.u32 %v61, 4294901760
    %v380 = vsub.f32 %v61, %v379
    %v381 = vand.u32 %v380, 4294901760
    %v382 = vsub.f32 %v380, %v381
    %v383 = vand.u32 %v382, 4294901760
    %384 = vmatpush1.msra.mxu0 %v383
    %385 = vmatprep.subr.mxu0 0.0
    %v386 = vand.u32 %v62, 4294901760
    %v387 = vsub.f32 %v62, %v386
    %v388 = vand.u32 %v387, 4294901760
    %v389 = vsub.f32 %v387, %v388
    %v390 = vand.u32 %v389, 4294901760
    %391 = vmatpush1.msra.mxu0 %v390
    %392 = vmatprep.subr.mxu0 0.0
    %v393 = vand.u32 %v63, 4294901760
    %v394 = vsub.f32 %v63, %v393
    %v395 = vand.u32 %v394, 4294901760
    %v396 = vsub.f32 %v394, %v395
    %v397 = vand.u32 %v396, 4294901760
    %398 = vmatpush1.msra.mxu0 %v397
    %399 = vmatprep.subr.mxu0 0.0
    %v400 = vand.u32 %v64, 4294901760
    %v401 = vsub.f32 %v64, %v400
    %v402 = vand.u32 %v401, 4294901760
    %v403 = vsub.f32 %v401, %v402
    %v404 = vand.u32 %v403, 4294901760
    %405 = vmatpush1.msra.mxu0 %v404
    %406 = vmatprep.subr.mxu0 0.0
    %v407 = vand.u32 %v65, 4294901760
    %v408 = vsub.f32 %v65, %v407
    %v409 = vand.u32 %v408, 4294901760
    %v410 = vsub.f32 %v408, %v409
    %v411 = vand.u32 %v410, 4294901760
    %412 = vmatpush1.msra.mxu0 %v411
    %413 = vmatprep.subr.mxu0 0.0
    %v414 = vand.u32 %v66, 4294901760
    %v415 = vsub.f32 %v66, %v414
    %v416 = vand.u32 %v415, 4294901760
    %v417 = vsub.f32 %v415, %v416
    %v418 = vand.u32 %v417, 4294901760
    %419 = vmatpush1.msra.mxu0 %v418
    %420 = vmatprep.subr.mxu0 0.0
    %v421 = vand.u32 %v67, 4294901760
    %v422 = vsub.f32 %v67, %v421
    %v423 = vand.u32 %v422, 4294901760
    %v424 = vsub.f32 %v422, %v423
    %v425 = vand.u32 %v424, 4294901760
    %426 = vmatpush1.msra.mxu0 %v425
    %427 = vmatprep.subr.mxu0 0.0
    %v428 = vand.u32 %v68, 4294901760
    %v429 = vsub.f32 %v68, %v428
    %v430 = vand.u32 %v429, 4294901760
    %v431 = vsub.f32 %v429, %v430
    %v432 = vand.u32 %v431, 4294901760
    %433 = vmatpush1.msra.mxu0 %v432
    %434 = vmatprep.subr.mxu0 0.0
    %v435 = vand.u32 %v69, 4294901760
    %v436 = vsub.f32 %v69, %v435
    %v437 = vand.u32 %v436, 4294901760
    %v438 = vsub.f32 %v436, %v437
    %v439 = vand.u32 %v438, 4294901760
    %440 = vmatpush1.msra.mxu0 %v439
    %441 = vmatprep.subr.mxu0 0.0
    %v442 = vand.u32 %v70, 4294901760
    %v443 = vsub.f32 %v70, %v442
    %v444 = vand.u32 %v443, 4294901760
    %v445 = vsub.f32 %v443, %v444
    %v446 = vand.u32 %v445, 4294901760
    %447 = vmatpush1.msra.mxu0 %v446
    %448 = vmatprep.subr.mxu0 0.0
    %v449 = vand.u32 %v71, 4294901760
    %v450 = vsub.f32 %v71, %v449
    %v451 = vand.u32 %v450, 4294901760
    %v452 = vsub.f32 %v450, %v451
    %v453 = vand.u32 %v452, 4294901760
    %454 = vmatpush1.msra.mxu0 %v453
    %455 = vmatprep.subr.mxu0 0.0
    %v456 = vand.u32 %v72, 4294901760
    %v457 = vsub.f32 %v72, %v456
    %v458 = vand.u32 %v457, 4294901760
    %v459 = vsub.f32 %v457, %v458
    %v460 = vand.u32 %v459, 4294901760
    %461 = vmatpush1.msra.mxu0 %v460
    %462 = vmatprep.subr.mxu0 0.0
    %v463 = vand.u32 %v73, 4294901760
    %v464 = vsub.f32 %v73, %v463
    %v465 = vand.u32 %v464, 4294901760
    %v466 = vsub.f32 %v464, %v465
    %v467 = vand.u32 %v466, 4294901760
    %468 = vmatpush1.msra.mxu0 %v467
    %469 = vmatprep.subr.mxu0 0.0
    %v470 = vand.u32 %v74, 4294901760
    %v471 = vsub.f32 %v74, %v470
    %v472 = vand.u32 %v471, 4294901760
    %v473 = vsub.f32 %v471, %v472
    %v474 = vand.u32 %v473, 4294901760
    %475 = vmatpush1.msra.mxu0 %v474
    %476 = vmatprep.subr.mxu0 0.0
    %v477 = vand.u32 %v75, 4294901760
    %v478 = vsub.f32 %v75, %v477
    %v479 = vand.u32 %v478, 4294901760
    %v480 = vsub.f32 %v478, %v479
    %v481 = vand.u32 %v480, 4294901760
    %482 = vmatpush1.msra.mxu0 %v481
    %v483 = vand.u32 %v39, 4294901760
    %484 = vmatprep.mubr.f32.mxu0 %v483
    %v485 = vand.u32 %v38, 4294901760
    %486 = vmatmul.mubr.f32.gmra.mrb[0].mxu0 %v485
    %v487 = vpop.f32.mrb[0].mxu0
    %v488 = vadd.f32 %v256, %v487
    %v489 = vpop.f32.mrb[0].mxu0
    %490 = vdwg.mxu0
    %491 = vmatprep.subr.mxu0 0.0
    %v492 = vand.u32 %v44, 4294901760
    %v493 = vsub.f32 %v44, %v492
    %494 = vmatpush1.msra.mxu0 %v493
    %495 = vmatprep.subr.mxu0 0.0
    %v496 = vand.u32 %v45, 4294901760
    %v497 = vsub.f32 %v45, %v496
    %498 = vmatpush1.msra.mxu0 %v497
    %499 = vmatprep.subr.mxu0 0.0
    %v500 = vand.u32 %v46, 4294901760
    %v501 = vsub.f32 %v46, %v500
    %502 = vmatpush1.msra.mxu0 %v501
    %503 = vmatprep.subr.mxu0 0.0
    %v504 = vand.u32 %v47, 4294901760
    %v505 = vsub.f32 %v47, %v504
    %506 = vmatpush1.msra.mxu0 %v505
    %507 = vmatprep.subr.mxu0 0.0
    %v508 = vand.u32 %v48, 4294901760
    %v509 = vsub.f32 %v48, %v508
    %510 = vmatpush1.msra.mxu0 %v509
    %511 = vmatprep.subr.mxu0 0.0
    %v512 = vand.u32 %v49, 4294901760
    %v513 = vsub.f32 %v49, %v512
    %514 = vmatpush1.msra.mxu0 %v513
    %515 = vmatprep.subr.mxu0 0.0
    %v516 = vand.u32 %v50, 4294901760
    %v517 = vsub.f32 %v50, %v516
    %518 = vmatpush1.msra.mxu0 %v517
    %519 = vmatprep.subr.mxu0 0.0
    %v520 = vand.u32 %v51, 4294901760
    %v521 = vsub.f32 %v51, %v520
    %522 = vmatpush1.msra.mxu0 %v521
    %523 = vmatprep.subr.mxu0 0.0
    %v524 = vand.u32 %v52, 4294901760
    %v525 = vsub.f32 %v52, %v524
    %526 = vmatpush1.msra.mxu0 %v525
    %527 = vmatprep.subr.mxu0 0.0
    %v528 = vand.u32 %v53, 4294901760
    %v529 = vsub.f32 %v53, %v528
    %530 = vmatpush1.msra.mxu0 %v529
    %531 = vmatprep.subr.mxu0 0.0
    %v532 = vand.u32 %v54, 4294901760
    %v533 = vsub.f32 %v54, %v532
    %534 = vmatpush1.msra.mxu0 %v533
    %535 = vmatprep.subr.mxu0 0.0
    %v536 = vand.u32 %v55, 4294901760
    %v537 = vsub.f32 %v55, %v536
    %538 = vmatpush1.msra.mxu0 %v537
    %539 = vmatprep.subr.mxu0 0.0
    %v540 = vand.u32 %v56, 4294901760
    %v541 = vsub.f32 %v56, %v540
    %542 = vmatpush1.msra.mxu0 %v541
    %543 = vmatprep.subr.mxu0 0.0
    %v544 = vand.u32 %v57, 4294901760
    %v545 = vsub.f32 %v57, %v544
    %546 = vmatpush1.msra.mxu0 %v545
    %547 = vmatprep.subr.mxu0 0.0
    %v548 = vand.u32 %v58, 4294901760
    %v549 = vsub.f32 %v58, %v548
    %550 = vmatpush1.msra.mxu0 %v549
    %551 = vmatprep.subr.mxu0 0.0
    %v552 = vand.u32 %v59, 4294901760
    %v553 = vsub.f32 %v59, %v552
    %554 = vmatpush1.msra.mxu0 %v553
    %555 = vmatprep.subr.mxu0 0.0
    %v556 = vand.u32 %v60, 4294901760
    %v557 = vsub.f32 %v60, %v556
    %558 = vmatpush1.msra.mxu0 %v557
    %559 = vmatprep.subr.mxu0 0.0
    %v560 = vand.u32 %v61, 4294901760
    %v561 = vsub.f32 %v61, %v560
    %562 = vmatpush1.msra.mxu0 %v561
    %563 = vmatprep.subr.mxu0 0.0
    %v564 = vand.u32 %v62, 4294901760
    %v565 = vsub.f32 %v62, %v564
    %566 = vmatpush1.msra.mxu0 %v565
    %567 = vmatprep.subr.mxu0 0.0
    %v568 = vand.u32 %v63, 4294901760
    %v569 = vsub.f32 %v63, %v568
    %570 = vmatpush1.msra.mxu0 %v569
    %571 = vmatprep.subr.mxu0 0.0
    %v572 = vand.u32 %v64, 4294901760
    %v573 = vsub.f32 %v64, %v572
    %574 = vmatpush1.msra.mxu0 %v573
    %575 = vmatprep.subr.mxu0 0.0
    %v576 = vand.u32 %v65, 4294901760
    %v577 = vsub.f32 %v65, %v576
    %578 = vmatpush1.msra.mxu0 %v577
    %579 = vmatprep.subr.mxu0 0.0
    %v580 = vand.u32 %v66, 4294901760
    %v581 = vsub.f32 %v66, %v580
    %582 = vmatpush1.msra.mxu0 %v581
    %583 = vmatprep.subr.mxu0 0.0
    %v584 = vand.u32 %v67, 4294901760
    %v585 = vsub.f32 %v67, %v584
    %586 = vmatpush1.msra.mxu0 %v585
    %587 = vmatprep.subr.mxu0 0.0
    %v588 = vand.u32 %v68, 4294901760
    %v589 = vsub.f32 %v68, %v588
    %590 = vmatpush1.msra.mxu0 %v589
    %591 = vmatprep.subr.mxu0 0.0
    %v592 = vand.u32 %v69, 4294901760
    %v593 = vsub.f32 %v69, %v592
    %594 = vmatpush1.msra.mxu0 %v593
    %595 = vmatprep.subr.mxu0 0.0
    %v596 = vand.u32 %v70, 4294901760
    %v597 = vsub.f32 %v70, %v596
    %598 = vmatpush1.msra.mxu0 %v597
    %599 = vmatprep.subr.mxu0 0.0
    %v600 = vand.u32 %v71, 4294901760
    %v601 = vsub.f32 %v71, %v600
    %602 = vmatpush1.msra.mxu0 %v601
    %603 = vmatprep.subr.mxu0 0.0
    %v604 = vand.u32 %v72, 4294901760
    %v605 = vsub.f32 %v72, %v604
    %606 = vmatpush1.msra.mxu0 %v605
    %607 = vmatprep.subr.mxu0 0.0
    %v608 = vand.u32 %v73, 4294901760
    %v609 = vsub.f32 %v73, %v608
    %610 = vmatpush1.msra.mxu0 %v609
    %611 = vmatprep.subr.mxu0 0.0
    %v612 = vand.u32 %v74, 4294901760
    %v613 = vsub.f32 %v74, %v612
    %614 = vmatpush1.msra.mxu0 %v613
    %615 = vmatprep.subr.mxu0 0.0
    %v616 = vand.u32 %v75, 4294901760
    %v617 = vsub.f32 %v75, %v616
    %618 = vmatpush1.msra.mxu0 %v617
    %v619 = vand.u32 %v39, 4294901760
    %v620 = vsub.f32 %v39, %v619
    %621 = vmatprep.mubr.f32.mxu0 %v620
    %v622 = vand.u32 %v38, 4294901760
    %v623 = vsub.f32 %v38, %v622
    %624 = vmatmul.mubr.f32.gmra.mrb[0].mxu0 %v623
    %v625 = vpop.f32.mrb[0].mxu0
    %v626 = vadd.f32 %v488, %v625
    %v627 = vpop.f32.mrb[0].mxu0
    %628 = vdwg.mxu0
    %629 = vmatprep.subr.mxu0 0.0
    %v630 = vand.u32 %v44, 4294901760
    %631 = vmatpush1.msra.mxu0 %v630
    %632 = vmatprep.subr.mxu0 0.0
    %v633 = vand.u32 %v45, 4294901760
    %634 = vmatpush1.msra.mxu0 %v633
    %635 = vmatprep.subr.mxu0 0.0
    %v636 = vand.u32 %v46, 4294901760
    %637 = vmatpush1.msra.mxu0 %v636
    %638 = vmatprep.subr.mxu0 0.0
    %v639 = vand.u32 %v47, 4294901760
    %640 = vmatpush1.msra.mxu0 %v639
    %641 = vmatprep.subr.mxu0 0.0
    %v642 = vand.u32 %v48, 4294901760
    %643 = vmatpush1.msra.mxu0 %v642
    %644 = vmatprep.subr.mxu0 0.0
    %v645 = vand.u32 %v49, 4294901760
    %646 = vmatpush1.msra.mxu0 %v645
    %647 = vmatprep.subr.mxu0 0.0
    %v648 = vand.u32 %v50, 4294901760
    %649 = vmatpush1.msra.mxu0 %v648
    %650 = vmatprep.subr.mxu0 0.0
    %v651 = vand.u32 %v51, 4294901760
    %652 = vmatpush1.msra.mxu0 %v651
    %653 = vmatprep.subr.mxu0 0.0
    %v654 = vand.u32 %v52, 4294901760
    %655 = vmatpush1.msra.mxu0 %v654
    %656 = vmatprep.subr.mxu0 0.0
    %v657 = vand.u32 %v53, 4294901760
    %658 = vmatpush1.msra.mxu0 %v657
    %659 = vmatprep.subr.mxu0 0.0
    %v660 = vand.u32 %v54, 4294901760
    %661 = vmatpush1.msra.mxu0 %v660
    %662 = vmatprep.subr.mxu0 0.0
    %v663 = vand.u32 %v55, 4294901760
    %664 = vmatpush1.msra.mxu0 %v663
    %665 = vmatprep.subr.mxu0 0.0
    %v666 = vand.u32 %v56, 4294901760
    %667 = vmatpush1.msra.mxu0 %v666
    %668 = vmatprep.subr.mxu0 0.0
    %v669 = vand.u32 %v57, 4294901760
    %670 = vmatpush1.msra.mxu0 %v669
    %671 = vmatprep.subr.mxu0 0.0
    %v672 = vand.u32 %v58, 4294901760
    %673 = vmatpush1.msra.mxu0 %v672
    %674 = vmatprep.subr.mxu0 0.0
    %v675 = vand.u32 %v59, 4294901760
    %676 = vmatpush1.msra.mxu0 %v675
    %677 = vmatprep.subr.mxu0 0.0
    %v678 = vand.u32 %v60, 4294901760
    %679 = vmatpush1.msra.mxu0 %v678
    %680 = vmatprep.subr.mxu0 0.0
    %v681 = vand.u32 %v61, 4294901760
    %682 = vmatpush1.msra.mxu0 %v681
    %683 = vmatprep.subr.mxu0 0.0
    %v684 = vand.u32 %v62, 4294901760
    %685 = vmatpush1.msra.mxu0 %v684
    %686 = vmatprep.subr.mxu0 0.0
    %v687 = vand.u32 %v63, 4294901760
    %688 = vmatpush1.msra.mxu0 %v687
    %689 = vmatprep.subr.mxu0 0.0
    %v690 = vand.u32 %v64, 4294901760
    %691 = vmatpush1.msra.mxu0 %v690
    %692 = vmatprep.subr.mxu0 0.0
    %v693 = vand.u32 %v65, 4294901760
    %694 = vmatpush1.msra.mxu0 %v693
    %695 = vmatprep.subr.mxu0 0.0
    %v696 = vand.u32 %v66, 4294901760
    %697 = vmatpush1.msra.mxu0 %v696
    %698 = vmatprep.subr.mxu0 0.0
    %v699 = vand.u32 %v67, 4294901760
    %700 = vmatpush1.msra.mxu0 %v699
    %701 = vmatprep.subr.mxu0 0.0
    %v702 = vand.u32 %v68, 4294901760
    %703 = vmatpush1.msra.mxu0 %v702
    %704 = vmatprep.subr.mxu0 0.0
    %v705 = vand.u32 %v69, 4294901760
    %706 = vmatpush1.msra.mxu0 %v705
    %707 = vmatprep.subr.mxu0 0.0
    %v708 = vand.u32 %v70, 4294901760
    %709 = vmatpush1.msra.mxu0 %v708
    %710 = vmatprep.subr.mxu0 0.0
    %v711 = vand.u32 %v71, 4294901760
    %712 = vmatpush1.msra.mxu0 %v711
    %713 = vmatprep.subr.mxu0 0.0
    %v714 = vand.u32 %v72, 4294901760
    %715 = vmatpush1.msra.mxu0 %v714
    %716 = vmatprep.subr.mxu0 0.0
    %v717 = vand.u32 %v73, 4294901760
    %718 = vmatpush1.msra.mxu0 %v717
    %719 = vmatprep.subr.mxu0 0.0
    %v720 = vand.u32 %v74, 4294901760
    %721 = vmatpush1.msra.mxu0 %v720
    %722 = vmatprep.subr.mxu0 0.0
    %v723 = vand.u32 %v75, 4294901760
    %724 = vmatpush1.msra.mxu0 %v723
    %v725 = vand.u32 %v39, 4294901760
    %v726 = vsub.f32 %v39, %v725
    %v727 = vand.u32 %v726, 4294901760
    %728 = vmatprep.mubr.f32.mxu0 %v727
    %v729 = vand.u32 %v38, 4294901760
    %v730 = vsub.f32 %v38, %v729
    %v731 = vand.u32 %v730, 4294901760
    %732 = vmatmul.mubr.f32.gmra.mrb[0].mxu0 %v731
    %v733 = vpop.f32.mrb[0].mxu0
    %v734 = vadd.f32 %v626, %v733
    %v735 = vpop.f32.mrb[0].mxu0
    %736 = vdwg.mxu0
    %737 = vmatprep.subr.mxu0 0.0
    %v738 = vand.u32 %v44, 4294901760
    %v739 = vsub.f32 %v44, %v738
    %v740 = vand.u32 %v739, 4294901760
    %741 = vmatpush1.msra.mxu0 %v740
    %742 = vmatprep.subr.mxu0 0.0
    %v743 = vand.u32 %v45, 4294901760
    %v744 = vsub.f32 %v45, %v743
    %v745 = vand.u32 %v744, 4294901760
    %746 = vmatpush1.msra.mxu0 %v745
    %747 = vmatprep.subr.mxu0 0.0
    %v748 = vand.u32 %v46, 4294901760
    %v749 = vsub.f32 %v46, %v748
    %v750 = vand.u32 %v749, 4294901760
    %751 = vmatpush1.msra.mxu0 %v750
    %752 = vmatprep.subr.mxu0 0.0
    %v753 = vand.u32 %v47, 4294901760
    %v754 = vsub.f32 %v47, %v753
    %v755 = vand.u32 %v754, 4294901760
    %756 = vmatpush1.msra.mxu0 %v755
    %757 = vmatprep.subr.mxu0 0.0
    %v758 = vand.u32 %v48, 4294901760
    %v759 = vsub.f32 %v48, %v758
    %v760 = vand.u32 %v759, 4294901760
    %761 = vmatpush1.msra.mxu0 %v760
    %762 = vmatprep.subr.mxu0 0.0
    %v763 = vand.u32 %v49, 4294901760
    %v764 = vsub.f32 %v49, %v763
    %v765 = vand.u32 %v764, 4294901760
    %766 = vmatpush1.msra.mxu0 %v765
    %767 = vmatprep.subr.mxu0 0.0
    %v768 = vand.u32 %v50, 4294901760
    %v769 = vsub.f32 %v50, %v768
    %v770 = vand.u32 %v769, 4294901760
    %771 = vmatpush1.msra.mxu0 %v770
    %772 = vmatprep.subr.mxu0 0.0
    %v773 = vand.u32 %v51, 4294901760
    %v774 = vsub.f32 %v51, %v773
    %v775 = vand.u32 %v774, 4294901760
    %776 = vmatpush1.msra.mxu0 %v775
    %777 = vmatprep.subr.mxu0 0.0
    %v778 = vand.u32 %v52, 4294901760
    %v779 = vsub.f32 %v52, %v778
    %v780 = vand.u32 %v779, 4294901760
    %781 = vmatpush1.msra.mxu0 %v780
    %782 = vmatprep.subr.mxu0 0.0
    %v783 = vand.u32 %v53, 4294901760
    %v784 = vsub.f32 %v53, %v783
    %v785 = vand.u32 %v784, 4294901760
    %786 = vmatpush1.msra.mxu0 %v785
    %787 = vmatprep.subr.mxu0 0.0
    %v788 = vand.u32 %v54, 4294901760
    %v789 = vsub.f32 %v54, %v788
    %v790 = vand.u32 %v789, 4294901760
    %791 = vmatpush1.msra.mxu0 %v790
    %792 = vmatprep.subr.mxu0 0.0
    %v793 = vand.u32 %v55, 4294901760
    %v794 = vsub.f32 %v55, %v793
    %v795 = vand.u32 %v794, 4294901760
    %796 = vmatpush1.msra.mxu0 %v795
    %797 = vmatprep.subr.mxu0 0.0
    %v798 = vand.u32 %v56, 4294901760
    %v799 = vsub.f32 %v56, %v798
    %v800 = vand.u32 %v799, 4294901760
    %801 = vmatpush1.msra.mxu0 %v800
    %802 = vmatprep.subr.mxu0 0.0
    %v803 = vand.u32 %v57, 4294901760
    %v804 = vsub.f32 %v57, %v803
    %v805 = vand.u32 %v804, 4294901760
    %806 = vmatpush1.msra.mxu0 %v805
    %807 = vmatprep.subr.mxu0 0.0
    %v808 = vand.u32 %v58, 4294901760
    %v809 = vsub.f32 %v58, %v808
    %v810 = vand.u32 %v809, 4294901760
    %811 = vmatpush1.msra.mxu0 %v810
    %812 = vmatprep.subr.mxu0 0.0
    %v813 = vand.u32 %v59, 4294901760
    %v814 = vsub.f32 %v59, %v813
    %v815 = vand.u32 %v814, 4294901760
    %816 = vmatpush1.msra.mxu0 %v815
    %817 = vmatprep.subr.mxu0 0.0
    %v818 = vand.u32 %v60, 4294901760
    %v819 = vsub.f32 %v60, %v818
    %v820 = vand.u32 %v819, 4294901760
    %821 = vmatpush1.msra.mxu0 %v820
    %822 = vmatprep.subr.mxu0 0.0
    %v823 = vand.u32 %v61, 4294901760
    %v824 = vsub.f32 %v61, %v823
    %v825 = vand.u32 %v824, 4294901760
    %826 = vmatpush1.msra.mxu0 %v825
    %827 = vmatprep.subr.mxu0 0.0
    %v828 = vand.u32 %v62, 4294901760
    %v829 = vsub.f32 %v62, %v828
    %v830 = vand.u32 %v829, 4294901760
    %831 = vmatpush1.msra.mxu0 %v830
    %832 = vmatprep.subr.mxu0 0.0
    %v833 = vand.u32 %v63, 4294901760
    %v834 = vsub.f32 %v63, %v833
    %v835 = vand.u32 %v834, 4294901760
    %836 = vmatpush1.msra.mxu0 %v835
    %837 = vmatprep.subr.mxu0 0.0
    %v838 = vand.u32 %v64, 4294901760
    %v839 = vsub.f32 %v64, %v838
    %v840 = vand.u32 %v839, 4294901760
    %841 = vmatpush1.msra.mxu0 %v840
    %842 = vmatprep.subr.mxu0 0.0
    %v843 = vand.u32 %v65, 4294901760
    %v844 = vsub.f32 %v65, %v843
    %v845 = vand.u32 %v844, 4294901760
    %846 = vmatpush1.msra.mxu0 %v845
    %847 = vmatprep.subr.mxu0 0.0
    %v848 = vand.u32 %v66, 4294901760
    %v849 = vsub.f32 %v66, %v848
    %v850 = vand.u32 %v849, 4294901760
    %851 = vmatpush1.msra.mxu0 %v850
    %852 = vmatprep.subr.mxu0 0.0
    %v853 = vand.u32 %v67, 4294901760
    %v854 = vsub.f32 %v67, %v853
    %v855 = vand.u32 %v854, 4294901760
    %856 = vmatpush1.msra.mxu0 %v855
    %857 = vmatprep.subr.mxu0 0.0
    %v858 = vand.u32 %v68, 4294901760
    %v859 = vsub.f32 %v68, %v858
    %v860 = vand.u32 %v859, 4294901760
    %861 = vmatpush1.msra.mxu0 %v860
    %862 = vmatprep.subr.mxu0 0.0
    %v863 = vand.u32 %v69, 4294901760
    %v864 = vsub.f32 %v69, %v863
    %v865 = vand.u32 %v864, 4294901760
    %866 = vmatpush1.msra.mxu0 %v865
    %867 = vmatprep.subr.mxu0 0.0
    %v868 = vand.u32 %v70, 4294901760
    %v869 = vsub.f32 %v70, %v868
    %v870 = vand.u32 %v869, 4294901760
    %871 = vmatpush1.msra.mxu0 %v870
    %872 = vmatprep.subr.mxu0 0.0
    %v873 = vand.u32 %v71, 4294901760
    %v874 = vsub.f32 %v71, %v873
    %v875 = vand.u32 %v874, 4294901760
    %876 = vmatpush1.msra.mxu0 %v875
    %877 = vmatprep.subr.mxu0 0.0
    %v878 = vand.u32 %v72, 4294901760
    %v879 = vsub.f32 %v72, %v878
    %v880 = vand.u32 %v879, 4294901760
    %881 = vmatpush1.msra.mxu0 %v880
    %882 = vmatprep.subr.mxu0 0.0
    %v883 = vand.u32 %v73, 4294901760
    %v884 = vsub.f32 %v73, %v883
    %v885 = vand.u32 %v884, 4294901760
    %886 = vmatpush1.msra.mxu0 %v885
    %887 = vmatprep.subr.mxu0 0.0
    %v888 = vand.u32 %v74, 4294901760
    %v889 = vsub.f32 %v74, %v888
    %v890 = vand.u32 %v889, 4294901760
    %891 = vmatpush1.msra.mxu0 %v890
    %892 = vmatprep.subr.mxu0 0.0
    %v893 = vand.u32 %v75, 4294901760
    %v894 = vsub.f32 %v75, %v893
    %v895 = vand.u32 %v894, 4294901760
    %896 = vmatpush1.msra.mxu0 %v895
    %v897 = vand.u32 %v39, 4294901760
    %898 = vmatprep.mubr.f32.mxu0 %v897
    %v899 = vand.u32 %v38, 4294901760
    %900 = vmatmul.mubr.f32.gmra.mrb[0].mxu0 %v899
    %v901 = vpop.f32.mrb[0].mxu0
    %v902 = vadd.f32 %v734, %v901
    %v903 = vpop.f32.mrb[0].mxu0
    %904 = vdwg.mxu0
    %905 = vmatprep.subr.mxu0 0.0
    %v906 = vand.u32 %v44, 4294901760
    %907 = vmatpush1.msra.mxu0 %v906
    %908 = vmatprep.subr.mxu0 0.0
    %v909 = vand.u32 %v45, 4294901760
    %910 = vmatpush1.msra.mxu0 %v909
    %911 = vmatprep.subr.mxu0 0.0
    %v912 = vand.u32 %v46, 4294901760
    %913 = vmatpush1.msra.mxu0 %v912
    %914 = vmatprep.subr.mxu0 0.0
    %v915 = vand.u32 %v47, 4294901760
    %916 = vmatpush1.msra.mxu0 %v915
    %917 = vmatprep.subr.mxu0 0.0
    %v918 = vand.u32 %v48, 4294901760
    %919 = vmatpush1.msra.mxu0 %v918
    %920 = vmatprep.subr.mxu0 0.0
    %v921 = vand.u32 %v49, 4294901760
    %922 = vmatpush1.msra.mxu0 %v921
    %923 = vmatprep.subr.mxu0 0.0
    %v924 = vand.u32 %v50, 4294901760
    %925 = vmatpush1.msra.mxu0 %v924
    %926 = vmatprep.subr.mxu0 0.0
    %v927 = vand.u32 %v51, 4294901760
    %928 = vmatpush1.msra.mxu0 %v927
    %929 = vmatprep.subr.mxu0 0.0
    %v930 = vand.u32 %v52, 4294901760
    %931 = vmatpush1.msra.mxu0 %v930
    %932 = vmatprep.subr.mxu0 0.0
    %v933 = vand.u32 %v53, 4294901760
    %934 = vmatpush1.msra.mxu0 %v933
    %935 = vmatprep.subr.mxu0 0.0
    %v936 = vand.u32 %v54, 4294901760
    %937 = vmatpush1.msra.mxu0 %v936
    %938 = vmatprep.subr.mxu0 0.0
    %v939 = vand.u32 %v55, 4294901760
    %940 = vmatpush1.msra.mxu0 %v939
    %941 = vmatprep.subr.mxu0 0.0
    %v942 = vand.u32 %v56, 4294901760
    %943 = vmatpush1.msra.mxu0 %v942
    %944 = vmatprep.subr.mxu0 0.0
    %v945 = vand.u32 %v57, 4294901760
    %946 = vmatpush1.msra.mxu0 %v945
    %947 = vmatprep.subr.mxu0 0.0
    %v948 = vand.u32 %v58, 4294901760
    %949 = vmatpush1.msra.mxu0 %v948
    %950 = vmatprep.subr.mxu0 0.0
    %v951 = vand.u32 %v59, 4294901760
    %952 = vmatpush1.msra.mxu0 %v951
    %953 = vmatprep.subr.mxu0 0.0
    %v954 = vand.u32 %v60, 4294901760
    %955 = vmatpush1.msra.mxu0 %v954
    %956 = vmatprep.subr.mxu0 0.0
    %v957 = vand.u32 %v61, 4294901760
    %958 = vmatpush1.msra.mxu0 %v957
    %959 = vmatprep.subr.mxu0 0.0
    %v960 = vand.u32 %v62, 4294901760
    %961 = vmatpush1.msra.mxu0 %v960
    %962 = vmatprep.subr.mxu0 0.0
    %v963 = vand.u32 %v63, 4294901760
    %964 = vmatpush1.msra.mxu0 %v963
    %965 = vmatprep.subr.mxu0 0.0
    %v966 = vand.u32 %v64, 4294901760
    %967 = vmatpush1.msra.mxu0 %v966
    %968 = vmatprep.subr.mxu0 0.0
    %v969 = vand.u32 %v65, 4294901760
    %970 = vmatpush1.msra.mxu0 %v969
    %971 = vmatprep.subr.mxu0 0.0
    %v972 = vand.u32 %v66, 4294901760
    %973 = vmatpush1.msra.mxu0 %v972
    %974 = vmatprep.subr.mxu0 0.0
    %v975 = vand.u32 %v67, 4294901760
    %976 = vmatpush1.msra.mxu0 %v975
    %977 = vmatprep.subr.mxu0 0.0
    %v978 = vand.u32 %v68, 4294901760
    %979 = vmatpush1.msra.mxu0 %v978
    %980 = vmatprep.subr.mxu0 0.0
    %v981 = vand.u32 %v69, 4294901760
    %982 = vmatpush1.msra.mxu0 %v981
    %983 = vmatprep.subr.mxu0 0.0
    %v984 = vand.u32 %v70, 4294901760
    %985 = vmatpush1.msra.mxu0 %v984
    %986 = vmatprep.subr.mxu0 0.0
    %v987 = vand.u32 %v71, 4294901760
    %988 = vmatpush1.msra.mxu0 %v987
    %989 = vmatprep.subr.mxu0 0.0
    %v990 = vand.u32 %v72, 4294901760
    %991 = vmatpush1.msra.mxu0 %v990
    %992 = vmatprep.subr.mxu0 0.0
    %v993 = vand.u32 %v73, 4294901760
    %994 = vmatpush1.msra.mxu0 %v993
    %995 = vmatprep.subr.mxu0 0.0
    %v996 = vand.u32 %v74, 4294901760
    %997 = vmatpush1.msra.mxu0 %v996
    %998 = vmatprep.subr.mxu0 0.0
    %v999 = vand.u32 %v75, 4294901760
    %1000 = vmatpush1.msra.mxu0 %v999
    %v1001 = vand.u32 %v39, 4294901760
    %1002 = vmatprep.mubr.f32.mxu0 %v1001
    %v1003 = vand.u32 %v38, 4294901760
    %1004 = vmatmul.mubr.f32.gmra.mrb[0].mxu0 %v1003
    %v1005 = vpop.f32.mrb[0].mxu0
    %v1006 = vadd.f32 %v902, %v1005
    %v1007 = vpop.f32.mrb[0].mxu0
    %1008 = vdwg.mxu0
    %1009 = vmatprep.subr.mxu0 0.0
    %v1010 = vand.u32 %v76, 4294901760
    %1011 = vmatpush1.msra.mxu0 %v1010
    %1012 = vmatprep.subr.mxu0 0.0
    %v1013 = vand.u32 %v77, 4294901760
    %1014 = vmatpush1.msra.mxu0 %v1013
    %1015 = vmatprep.subr.mxu0 0.0
    %v1016 = vand.u32 %v78, 4294901760
    %1017 = vmatpush1.msra.mxu0 %v1016
    %1018 = vmatprep.subr.mxu0 0.0
    %v1019 = vand.u32 %v79, 4294901760
    %1020 = vmatpush1.msra.mxu0 %v1019
    %1021 = vmatprep.subr.mxu0 0.0
    %v1022 = vand.u32 %v80, 4294901760
    %1023 = vmatpush1.msra.mxu0 %v1022
    %1024 = vmatprep.subr.mxu0 0.0
    %v1025 = vand.u32 %v81, 4294901760
    %1026 = vmatpush1.msra.mxu0 %v1025
    %1027 = vmatprep.subr.mxu0 0.0
    %v1028 = vand.u32 %v82, 4294901760
    %1029 = vmatpush1.msra.mxu0 %v1028
    %1030 = vmatprep.subr.mxu0 0.0
    %v1031 = vand.u32 %v83, 4294901760
    %1032 = vmatpush1.msra.mxu0 %v1031
    %1033 = vmatprep.subr.mxu0 0.0
    %v1034 = vand.u32 %v84, 4294901760
    %1035 = vmatpush1.msra.mxu0 %v1034
    %1036 = vmatprep.subr.mxu0 0.0
    %v1037 = vand.u32 %v85, 4294901760
    %1038 = vmatpush1.msra.mxu0 %v1037
    %1039 = vmatprep.subr.mxu0 0.0
    %v1040 = vand.u32 %v86, 4294901760
    %1041 = vmatpush1.msra.mxu0 %v1040
    %1042 = vmatprep.subr.mxu0 0.0
    %v1043 = vand.u32 %v87, 4294901760
    %1044 = vmatpush1.msra.mxu0 %v1043
    %1045 = vmatprep.subr.mxu0 0.0
    %v1046 = vand.u32 %v88, 4294901760
    %1047 = vmatpush1.msra.mxu0 %v1046
    %1048 = vmatprep.subr.mxu0 0.0
    %v1049 = vand.u32 %v89, 4294901760
    %1050 = vmatpush1.msra.mxu0 %v1049
    %1051 = vmatprep.subr.mxu0 0.0
    %v1052 = vand.u32 %v90, 4294901760
    %1053 = vmatpush1.msra.mxu0 %v1052
    %1054 = vmatprep.subr.mxu0 0.0
    %v1055 = vand.u32 %v91, 4294901760
    %1056 = vmatpush1.msra.mxu0 %v1055
    %1057 = vmatprep.subr.mxu0 0.0
    %v1058 = vand.u32 %v92, 4294901760
    %1059 = vmatpush1.msra.mxu0 %v1058
    %1060 = vmatprep.subr.mxu0 0.0
    %v1061 = vand.u32 %v93, 4294901760
    %1062 = vmatpush1.msra.mxu0 %v1061
    %1063 = vmatprep.subr.mxu0 0.0
    %v1064 = vand.u32 %v94, 4294901760
    %1065 = vmatpush1.msra.mxu0 %v1064
    %1066 = vmatprep.subr.mxu0 0.0
    %v1067 = vand.u32 %v95, 4294901760
    %1068 = vmatpush1.msra.mxu0 %v1067
    %1069 = vmatprep.subr.mxu0 0.0
    %v1070 = vand.u32 %v96, 4294901760
    %1071 = vmatpush1.msra.mxu0 %v1070
    %1072 = vmatprep.subr.mxu0 0.0
    %v1073 = vand.u32 %v97, 4294901760
    %1074 = vmatpush1.msra.mxu0 %v1073
    %1075 = vmatprep.subr.mxu0 0.0
    %v1076 = vand.u32 %v98, 4294901760
    %1077 = vmatpush1.msra.mxu0 %v1076
    %1078 = vmatprep.subr.mxu0 0.0
    %v1079 = vand.u32 %v99, 4294901760
    %1080 = vmatpush1.msra.mxu0 %v1079
    %1081 = vmatprep.subr.mxu0 0.0
    %v1082 = vand.u32 %v100, 4294901760
    %1083 = vmatpush1.msra.mxu0 %v1082
    %1084 = vmatprep.subr.mxu0 0.0
    %v1085 = vand.u32 %v101, 4294901760
    %1086 = vmatpush1.msra.mxu0 %v1085
    %1087 = vmatprep.subr.mxu0 0.0
    %v1088 = vand.u32 %v102, 4294901760
    %1089 = vmatpush1.msra.mxu0 %v1088
    %1090 = vmatprep.subr.mxu0 0.0
    %v1091 = vand.u32 %v103, 4294901760
    %1092 = vmatpush1.msra.mxu0 %v1091
    %1093 = vmatprep.subr.mxu0 0.0
    %v1094 = vand.u32 %v104, 4294901760
    %1095 = vmatpush1.msra.mxu0 %v1094
    %1096 = vmatprep.subr.mxu0 0.0
    %v1097 = vand.u32 %v105, 4294901760
    %1098 = vmatpush1.msra.mxu0 %v1097
    %1099 = vmatprep.subr.mxu0 0.0
    %v1100 = vand.u32 %v106, 4294901760
    %1101 = vmatpush1.msra.mxu0 %v1100
    %1102 = vmatprep.subr.mxu0 0.0
    %v1103 = vand.u32 %v107, 4294901760
    %1104 = vmatpush1.msra.mxu0 %v1103
    %v1105 = vand.u32 %v41, 4294901760
    %v1106 = vsub.f32 %v41, %v1105
    %v1107 = vand.u32 %v1106, 4294901760
    %v1108 = vsub.f32 %v1106, %v1107
    %v1109 = vand.u32 %v1108, 4294901760
    %1110 = vmatprep.mubr.f32.mxu0 %v1109
    %v1111 = vand.u32 %v40, 4294901760
    %v1112 = vsub.f32 %v40, %v1111
    %v1113 = vand.u32 %v1112, 4294901760
    %v1114 = vsub.f32 %v1112, %v1113
    %v1115 = vand.u32 %v1114, 4294901760
    %1116 = vmatmul.mubr.f32.gmra.mrb[0].mxu0 %v1115
    %v1117 = vpop.f32.mrb[0].mxu0
    %v1118 = vadd.f32 %v1006, %v1117
    %v1119 = vpop.f32.mrb[0].mxu0
    %1120 = vdwg.mxu0
    %1121 = vmatprep.subr.mxu0 0.0
    %v1122 = vand.u32 %v76, 4294901760
    %v1123 = vsub.f32 %v76, %v1122
    %v1124 = vand.u32 %v1123, 4294901760
    %v1125 = vsub.f32 %v1123, %v1124
    %v1126 = vand.u32 %v1125, 4294901760
    %1127 = vmatpush1.msra.mxu0 %v1126
    %1128 = vmatprep.subr.mxu0 0.0
    %v1129 = vand.u32 %v77, 4294901760
    %v1130 = vsub.f32 %v77, %v1129
    %v1131 = vand.u32 %v1130, 4294901760
    %v1132 = vsub.f32 %v1130, %v1131
    %v1133 = vand.u32 %v1132, 4294901760
    %1134 = vmatpush1.msra.mxu0 %v1133
    %1135 = vmatprep.subr.mxu0 0.0
    %v1136 = vand.u32 %v78, 4294901760
    %v1137 = vsub.f32 %v78, %v1136
    %v1138 = vand.u32 %v1137, 4294901760
    %v1139 = vsub.f32 %v1137, %v1138
    %v1140 = vand.u32 %v1139, 4294901760
    %1141 = vmatpush1.msra.mxu0 %v1140
    %1142 = vmatprep.subr.mxu0 0.0
    %v1143 = vand.u32 %v79, 4294901760
    %v1144 = vsub.f32 %v79, %v1143
    %v1145 = vand.u32 %v1144, 4294901760
    %v1146 = vsub.f32 %v1144, %v1145
    %v1147 = vand.u32 %v1146, 4294901760
    %1148 = vmatpush1.msra.mxu0 %v1147
    %1149 = vmatprep.subr.mxu0 0.0
    %v1150 = vand.u32 %v80, 4294901760
    %v1151 = vsub.f32 %v80, %v1150
    %v1152 = vand.u32 %v1151, 4294901760
    %v1153 = vsub.f32 %v1151, %v1152
    %v1154 = vand.u32 %v1153, 4294901760
    %1155 = vmatpush1.msra.mxu0 %v1154
    %1156 = vmatprep.subr.mxu0 0.0
    %v1157 = vand.u32 %v81, 4294901760
    %v1158 = vsub.f32 %v81, %v1157
    %v1159 = vand.u32 %v1158, 4294901760
    %v1160 = vsub.f32 %v1158, %v1159
    %v1161 = vand.u32 %v1160, 4294901760
    %1162 = vmatpush1.msra.mxu0 %v1161
    %1163 = vmatprep.subr.mxu0 0.0
    %v1164 = vand.u32 %v82, 4294901760
    %v1165 = vsub.f32 %v82, %v1164
    %v1166 = vand.u32 %v1165, 4294901760
    %v1167 = vsub.f32 %v1165, %v1166
    %v1168 = vand.u32 %v1167, 4294901760
    %1169 = vmatpush1.msra.mxu0 %v1168
    %1170 = vmatprep.subr.mxu0 0.0
    %v1171 = vand.u32 %v83, 4294901760
    %v1172 = vsub.f32 %v83, %v1171
    %v1173 = vand.u32 %v1172, 4294901760
    %v1174 = vsub.f32 %v1172, %v1173
    %v1175 = vand.u32 %v1174, 4294901760
    %1176 = vmatpush1.msra.mxu0 %v1175
    %1177 = vmatprep.subr.mxu0 0.0
    %v1178 = vand.u32 %v84, 4294901760
    %v1179 = vsub.f32 %v84, %v1178
    %v1180 = vand.u32 %v1179, 4294901760
    %v1181 = vsub.f32 %v1179, %v1180
    %v1182 = vand.u32 %v1181, 4294901760
    %1183 = vmatpush1.msra.mxu0 %v1182
    %1184 = vmatprep.subr.mxu0 0.0
    %v1185 = vand.u32 %v85, 4294901760
    %v1186 = vsub.f32 %v85, %v1185
    %v1187 = vand.u32 %v1186, 4294901760
    %v1188 = vsub.f32 %v1186, %v1187
    %v1189 = vand.u32 %v1188, 4294901760
    %1190 = vmatpush1.msra.mxu0 %v1189
    %1191 = vmatprep.subr.mxu0 0.0
    %v1192 = vand.u32 %v86, 4294901760
    %v1193 = vsub.f32 %v86, %v1192
    %v1194 = vand.u32 %v1193, 4294901760
    %v1195 = vsub.f32 %v1193, %v1194
    %v1196 = vand.u32 %v1195, 4294901760
    %1197 = vmatpush1.msra.mxu0 %v1196
    %1198 = vmatprep.subr.mxu0 0.0
    %v1199 = vand.u32 %v87, 4294901760
    %v1200 = vsub.f32 %v87, %v1199
    %v1201 = vand.u32 %v1200, 4294901760
    %v1202 = vsub.f32 %v1200, %v1201
    %v1203 = vand.u32 %v1202, 4294901760
    %1204 = vmatpush1.msra.mxu0 %v1203
    %1205 = vmatprep.subr.mxu0 0.0
    %v1206 = vand.u32 %v88, 4294901760
    %v1207 = vsub.f32 %v88, %v1206
    %v1208 = vand.u32 %v1207, 4294901760
    %v1209 = vsub.f32 %v1207, %v1208
    %v1210 = vand.u32 %v1209, 4294901760
    %1211 = vmatpush1.msra.mxu0 %v1210
    %1212 = vmatprep.subr.mxu0 0.0
    %v1213 = vand.u32 %v89, 4294901760
    %v1214 = vsub.f32 %v89, %v1213
    %v1215 = vand.u32 %v1214, 4294901760
    %v1216 = vsub.f32 %v1214, %v1215
    %v1217 = vand.u32 %v1216, 4294901760
    %1218 = vmatpush1.msra.mxu0 %v1217
    %1219 = vmatprep.subr.mxu0 0.0
    %v1220 = vand.u32 %v90, 4294901760
    %v1221 = vsub.f32 %v90, %v1220
    %v1222 = vand.u32 %v1221, 4294901760
    %v1223 = vsub.f32 %v1221, %v1222
    %v1224 = vand.u32 %v1223, 4294901760
    %1225 = vmatpush1.msra.mxu0 %v1224
    %1226 = vmatprep.subr.mxu0 0.0
    %v1227 = vand.u32 %v91, 4294901760
    %v1228 = vsub.f32 %v91, %v1227
    %v1229 = vand.u32 %v1228, 4294901760
    %v1230 = vsub.f32 %v1228, %v1229
    %v1231 = vand.u32 %v1230, 4294901760
    %1232 = vmatpush1.msra.mxu0 %v1231
    %1233 = vmatprep.subr.mxu0 0.0
    %v1234 = vand.u32 %v92, 4294901760
    %v1235 = vsub.f32 %v92, %v1234
    %v1236 = vand.u32 %v1235, 4294901760
    %v1237 = vsub.f32 %v1235, %v1236
    %v1238 = vand.u32 %v1237, 4294901760
    %1239 = vmatpush1.msra.mxu0 %v1238
    %1240 = vmatprep.subr.mxu0 0.0
    %v1241 = vand.u32 %v93, 4294901760
    %v1242 = vsub.f32 %v93, %v1241
    %v1243 = vand.u32 %v1242, 4294901760
    %v1244 = vsub.f32 %v1242, %v1243
    %v1245 = vand.u32 %v1244, 4294901760
    %1246 = vmatpush1.msra.mxu0 %v1245
    %1247 = vmatprep.subr.mxu0 0.0
    %v1248 = vand.u32 %v94, 4294901760
    %v1249 = vsub.f32 %v94, %v1248
    %v1250 = vand.u32 %v1249, 4294901760
    %v1251 = vsub.f32 %v1249, %v1250
    %v1252 = vand.u32 %v1251, 4294901760
    %1253 = vmatpush1.msra.mxu0 %v1252
    %1254 = vmatprep.subr.mxu0 0.0
    %v1255 = vand.u32 %v95, 4294901760
    %v1256 = vsub.f32 %v95, %v1255
    %v1257 = vand.u32 %v1256, 4294901760
    %v1258 = vsub.f32 %v1256, %v1257
    %v1259 = vand.u32 %v1258, 4294901760
    %1260 = vmatpush1.msra.mxu0 %v1259
    %1261 = vmatprep.subr.mxu0 0.0
    %v1262 = vand.u32 %v96, 4294901760
    %v1263 = vsub.f32 %v96, %v1262
    %v1264 = vand.u32 %v1263, 4294901760
    %v1265 = vsub.f32 %v1263, %v1264
    %v1266 = vand.u32 %v1265, 4294901760
    %1267 = vmatpush1.msra.mxu0 %v1266
    %1268 = vmatprep.subr.mxu0 0.0
    %v1269 = vand.u32 %v97, 4294901760
    %v1270 = vsub.f32 %v97, %v1269
    %v1271 = vand.u32 %v1270, 4294901760
    %v1272 = vsub.f32 %v1270, %v1271
    %v1273 = vand.u32 %v1272, 4294901760
    %1274 = vmatpush1.msra.mxu0 %v1273
    %1275 = vmatprep.subr.mxu0 0.0
    %v1276 = vand.u32 %v98, 4294901760
    %v1277 = vsub.f32 %v98, %v1276
    %v1278 = vand.u32 %v1277, 4294901760
    %v1279 = vsub.f32 %v1277, %v1278
    %v1280 = vand.u32 %v1279, 4294901760
    %1281 = vmatpush1.msra.mxu0 %v1280
    %1282 = vmatprep.subr.mxu0 0.0
    %v1283 = vand.u32 %v99, 4294901760
    %v1284 = vsub.f32 %v99, %v1283
    %v1285 = vand.u32 %v1284, 4294901760
    %v1286 = vsub.f32 %v1284, %v1285
    %v1287 = vand.u32 %v1286, 4294901760
    %1288 = vmatpush1.msra.mxu0 %v1287
    %1289 = vmatprep.subr.mxu0 0.0
    %v1290 = vand.u32 %v100, 4294901760
    %v1291 = vsub.f32 %v100, %v1290
    %v1292 = vand.u32 %v1291, 4294901760
    %v1293 = vsub.f32 %v1291, %v1292
    %v1294 = vand.u32 %v1293, 4294901760
    %1295 = vmatpush1.msra.mxu0 %v1294
    %1296 = vmatprep.subr.mxu0 0.0
    %v1297 = vand.u32 %v101, 4294901760
    %v1298 = vsub.f32 %v101, %v1297
    %v1299 = vand.u32 %v1298, 4294901760
    %v1300 = vsub.f32 %v1298, %v1299
    %v1301 = vand.u32 %v1300, 4294901760
    %1302 = vmatpush1.msra.mxu0 %v1301
    %1303 = vmatprep.subr.mxu0 0.0
    %v1304 = vand.u32 %v102, 4294901760
    %v1305 = vsub.f32 %v102, %v1304
    %v1306 = vand.u32 %v1305, 4294901760
    %v1307 = vsub.f32 %v1305, %v1306
    %v1308 = vand.u32 %v1307, 4294901760
    %1309 = vmatpush1.msra.mxu0 %v1308
    %1310 = vmatprep.subr.mxu0 0.0
    %v1311 = vand.u32 %v103, 4294901760
    %v1312 = vsub.f32 %v103, %v1311
    %v1313 = vand.u32 %v1312, 4294901760
    %v1314 = vsub.f32 %v1312, %v1313
    %v1315 = vand.u32 %v1314, 4294901760
    %1316 = vmatpush1.msra.mxu0 %v1315
    %1317 = vmatprep.subr.mxu0 0.0
    %v1318 = vand.u32 %v104, 4294901760
    %v1319 = vsub.f32 %v104, %v1318
    %v1320 = vand.u32 %v1319, 4294901760
    %v1321 = vsub.f32 %v1319, %v1320
    %v1322 = vand.u32 %v1321, 4294901760
    %1323 = vmatpush1.msra.mxu0 %v1322
    %1324 = vmatprep.subr.mxu0 0.0
    %v1325 = vand.u32 %v105, 4294901760
    %v1326 = vsub.f32 %v105, %v1325
    %v1327 = vand.u32 %v1326, 4294901760
    %v1328 = vsub.f32 %v1326, %v1327
    %v1329 = vand.u32 %v1328, 4294901760
    %1330 = vmatpush1.msra.mxu0 %v1329
    %1331 = vmatprep.subr.mxu0 0.0
    %v1332 = vand.u32 %v106, 4294901760
    %v1333 = vsub.f32 %v106, %v1332
    %v1334 = vand.u32 %v1333, 4294901760
    %v1335 = vsub.f32 %v1333, %v1334
    %v1336 = vand.u32 %v1335, 4294901760
    %1337 = vmatpush1.msra.mxu0 %v1336
    %1338 = vmatprep.subr.mxu0 0.0
    %v1339 = vand.u32 %v107, 4294901760
    %v1340 = vsub.f32 %v107, %v1339
    %v1341 = vand.u32 %v1340, 4294901760
    %v1342 = vsub.f32 %v1340, %v1341
    %v1343 = vand.u32 %v1342, 4294901760
    %1344 = vmatpush1.msra.mxu0 %v1343
    %v1345 = vand.u32 %v41, 4294901760
    %1346 = vmatprep.mubr.f32.mxu0 %v1345
    %v1347 = vand.u32 %v40, 4294901760
    %1348 = vmatmul.mubr.f32.gmra.mrb[0].mxu0 %v1347
    %v1349 = vpop.f32.mrb[0].mxu0
    %v1350 = vadd.f32 %v1118, %v1349
    %v1351 = vpop.f32.mrb[0].mxu0
    %1352 = vdwg.mxu0
    %1353 = vmatprep.subr.mxu0 0.0
    %v1354 = vand.u32 %v76, 4294901760
    %v1355 = vsub.f32 %v76, %v1354
    %1356 = vmatpush1.msra.mxu0 %v1355
    %1357 = vmatprep.subr.mxu0 0.0
    %v1358 = vand.u32 %v77, 4294901760
    %v1359 = vsub.f32 %v77, %v1358
    %1360 = vmatpush1.msra.mxu0 %v1359
    %1361 = vmatprep.subr.mxu0 0.0
    %v1362 = vand.u32 %v78, 4294901760
    %v1363 = vsub.f32 %v78, %v1362
    %1364 = vmatpush1.msra.mxu0 %v1363
    %1365 = vmatprep.subr.mxu0 0.0
    %v1366 = vand.u32 %v79, 4294901760
    %v1367 = vsub.f32 %v79, %v1366
    %1368 = vmatpush1.msra.mxu0 %v1367
    %1369 = vmatprep.subr.mxu0 0.0
    %v1370 = vand.u32 %v80, 4294901760
    %v1371 = vsub.f32 %v80, %v1370
    %1372 = vmatpush1.msra.mxu0 %v1371
    %1373 = vmatprep.subr.mxu0 0.0
    %v1374 = vand.u32 %v81, 4294901760
    %v1375 = vsub.f32 %v81, %v1374
    %1376 = vmatpush1.msra.mxu0 %v1375
    %1377 = vmatprep.subr.mxu0 0.0
    %v1378 = vand.u32 %v82, 4294901760
    %v1379 = vsub.f32 %v82, %v1378
    %1380 = vmatpush1.msra.mxu0 %v1379
    %1381 = vmatprep.subr.mxu0 0.0
    %v1382 = vand.u32 %v83, 4294901760
    %v1383 = vsub.f32 %v83, %v1382
    %1384 = vmatpush1.msra.mxu0 %v1383
    %1385 = vmatprep.subr.mxu0 0.0
    %v1386 = vand.u32 %v84, 4294901760
    %v1387 = vsub.f32 %v84, %v1386
    %1388 = vmatpush1.msra.mxu0 %v1387
    %1389 = vmatprep.subr.mxu0 0.0
    %v1390 = vand.u32 %v85, 4294901760
    %v1391 = vsub.f32 %v85, %v1390
    %1392 = vmatpush1.msra.mxu0 %v1391
    %1393 = vmatprep.subr.mxu0 0.0
    %v1394 = vand.u32 %v86, 4294901760
    %v1395 = vsub.f32 %v86, %v1394
    %1396 = vmatpush1.msra.mxu0 %v1395
    %1397 = vmatprep.subr.mxu0 0.0
    %v1398 = vand.u32 %v87, 4294901760
    %v1399 = vsub.f32 %v87, %v1398
    %1400 = vmatpush1.msra.mxu0 %v1399
    %1401 = vmatprep.subr.mxu0 0.0
    %v1402 = vand.u32 %v88, 4294901760
    %v1403 = vsub.f32 %v88, %v1402
    %1404 = vmatpush1.msra.mxu0 %v1403
    %1405 = vmatprep.subr.mxu0 0.0
    %v1406 = vand.u32 %v89, 4294901760
    %v1407 = vsub.f32 %v89, %v1406
    %1408 = vmatpush1.msra.mxu0 %v1407
    %1409 = vmatprep.subr.mxu0 0.0
    %v1410 = vand.u32 %v90, 4294901760
    %v1411 = vsub.f32 %v90, %v1410
    %1412 = vmatpush1.msra.mxu0 %v1411
    %1413 = vmatprep.subr.mxu0 0.0
    %v1414 = vand.u32 %v91, 4294901760
    %v1415 = vsub.f32 %v91, %v1414
    %1416 = vmatpush1.msra.mxu0 %v1415
    %1417 = vmatprep.subr.mxu0 0.0
    %v1418 = vand.u32 %v92, 4294901760
    %v1419 = vsub.f32 %v92, %v1418
    %1420 = vmatpush1.msra.mxu0 %v1419
    %1421 = vmatprep.subr.mxu0 0.0
    %v1422 = vand.u32 %v93, 4294901760
    %v1423 = vsub.f32 %v93, %v1422
    %1424 = vmatpush1.msra.mxu0 %v1423
    %1425 = vmatprep.subr.mxu0 0.0
    %v1426 = vand.u32 %v94, 4294901760
    %v1427 = vsub.f32 %v94, %v1426
    %1428 = vmatpush1.msra.mxu0 %v1427
    %1429 = vmatprep.subr.mxu0 0.0
    %v1430 = vand.u32 %v95, 4294901760
    %v1431 = vsub.f32 %v95, %v1430
    %1432 = vmatpush1.msra.mxu0 %v1431
    %1433 = vmatprep.subr.mxu0 0.0
    %v1434 = vand.u32 %v96, 4294901760
    %v1435 = vsub.f32 %v96, %v1434
    %1436 = vmatpush1.msra.mxu0 %v1435
    %1437 = vmatprep.subr.mxu0 0.0
    %v1438 = vand.u32 %v97, 4294901760
    %v1439 = vsub.f32 %v97, %v1438
    %1440 = vmatpush1.msra.mxu0 %v1439
    %1441 = vmatprep.subr.mxu0 0.0
    %v1442 = vand.u32 %v98, 4294901760
    %v1443 = vsub.f32 %v98, %v1442
    %1444 = vmatpush1.msra.mxu0 %v1443
    %1445 = vmatprep.subr.mxu0 0.0
    %v1446 = vand.u32 %v99, 4294901760
    %v1447 = vsub.f32 %v99, %v1446
    %1448 = vmatpush1.msra.mxu0 %v1447
    %1449 = vmatprep.subr.mxu0 0.0
    %v1450 = vand.u32 %v100, 4294901760
    %v1451 = vsub.f32 %v100, %v1450
    %1452 = vmatpush1.msra.mxu0 %v1451
    %1453 = vmatprep.subr.mxu0 0.0
    %v1454 = vand.u32 %v101, 4294901760
    %v1455 = vsub.f32 %v101, %v1454
    %1456 = vmatpush1.msra.mxu0 %v1455
    %1457 = vmatprep.subr.mxu0 0.0
    %v1458 = vand.u32 %v102, 4294901760
    %v1459 = vsub.f32 %v102, %v1458
    %1460 = vmatpush1.msra.mxu0 %v1459
    %1461 = vmatprep.subr.mxu0 0.0
    %v1462 = vand.u32 %v103, 4294901760
    %v1463 = vsub.f32 %v103, %v1462
    %1464 = vmatpush1.msra.mxu0 %v1463
    %1465 = vmatprep.subr.mxu0 0.0
    %v1466 = vand.u32 %v104, 4294901760
    %v1467 = vsub.f32 %v104, %v1466
    %1468 = vmatpush1.msra.mxu0 %v1467
    %1469 = vmatprep.subr.mxu0 0.0
    %v1470 = vand.u32 %v105, 4294901760
    %v1471 = vsub.f32 %v105, %v1470
    %1472 = vmatpush1.msra.mxu0 %v1471
    %1473 = vmatprep.subr.mxu0 0.0
    %v1474 = vand.u32 %v106, 4294901760
    %v1475 = vsub.f32 %v106, %v1474
    %1476 = vmatpush1.msra.mxu0 %v1475
    %1477 = vmatprep.subr.mxu0 0.0
    %v1478 = vand.u32 %v107, 4294901760
    %v1479 = vsub.f32 %v107, %v1478
    %1480 = vmatpush1.msra.mxu0 %v1479
    %v1481 = vand.u32 %v41, 4294901760
    %v1482 = vsub.f32 %v41, %v1481
    %1483 = vmatprep.mubr.f32.mxu0 %v1482
    %v1484 = vand.u32 %v40, 4294901760
    %v1485 = vsub.f32 %v40, %v1484
    %1486 = vmatmul.mubr.f32.gmra.mrb[0].mxu0 %v1485
    %v1487 = vpop.f32.mrb[0].mxu0
    %v1488 = vadd.f32 %v1350, %v1487
    %v1489 = vpop.f32.mrb[0].mxu0
    %1490 = vdwg.mxu0
    %1491 = vmatprep.subr.mxu0 0.0
    %v1492 = vand.u32 %v76, 4294901760
    %1493 = vmatpush1.msra.mxu0 %v1492
    %1494 = vmatprep.subr.mxu0 0.0
    %v1495 = vand.u32 %v77, 4294901760
    %1496 = vmatpush1.msra.mxu0 %v1495
    %1497 = vmatprep.subr.mxu0 0.0
    %v1498 = vand.u32 %v78, 4294901760
    %1499 = vmatpush1.msra.mxu0 %v1498
    %1500 = vmatprep.subr.mxu0 0.0
    %v1501 = vand.u32 %v79, 4294901760
    %1502 = vmatpush1.msra.mxu0 %v1501
    %1503 = vmatprep.subr.mxu0 0.0
    %v1504 = vand.u32 %v80, 4294901760
    %1505 = vmatpush1.msra.mxu0 %v1504
    %1506 = vmatprep.subr.mxu0 0.0
    %v1507 = vand.u32 %v81, 4294901760
    %1508 = vmatpush1.msra.mxu0 %v1507
    %1509 = vmatprep.subr.mxu0 0.0
    %v1510 = vand.u32 %v82, 4294901760
    %1511 = vmatpush1.msra.mxu0 %v1510
    %1512 = vmatprep.subr.mxu0 0.0
    %v1513 = vand.u32 %v83, 4294901760
    %1514 = vmatpush1.msra.mxu0 %v1513
    %1515 = vmatprep.subr.mxu0 0.0
    %v1516 = vand.u32 %v84, 4294901760
    %1517 = vmatpush1.msra.mxu0 %v1516
    %1518 = vmatprep.subr.mxu0 0.0
    %v1519 = vand.u32 %v85, 4294901760
    %1520 = vmatpush1.msra.mxu0 %v1519
    %1521 = vmatprep.subr.mxu0 0.0
    %v1522 = vand.u32 %v86, 4294901760
    %1523 = vmatpush1.msra.mxu0 %v1522
    %1524 = vmatprep.subr.mxu0 0.0
    %v1525 = vand.u32 %v87, 4294901760
    %1526 = vmatpush1.msra.mxu0 %v1525
    %1527 = vmatprep.subr.mxu0 0.0
    %v1528 = vand.u32 %v88, 4294901760
    %1529 = vmatpush1.msra.mxu0 %v1528
    %1530 = vmatprep.subr.mxu0 0.0
    %v1531 = vand.u32 %v89, 4294901760
    %1532 = vmatpush1.msra.mxu0 %v1531
    %1533 = vmatprep.subr.mxu0 0.0
    %v1534 = vand.u32 %v90, 4294901760
    %1535 = vmatpush1.msra.mxu0 %v1534
    %1536 = vmatprep.subr.mxu0 0.0
    %v1537 = vand.u32 %v91, 4294901760
    %1538 = vmatpush1.msra.mxu0 %v1537
    %1539 = vmatprep.subr.mxu0 0.0
    %v1540 = vand.u32 %v92, 4294901760
    %1541 = vmatpush1.msra.mxu0 %v1540
    %1542 = vmatprep.subr.mxu0 0.0
    %v1543 = vand.u32 %v93, 4294901760
    %1544 = vmatpush1.msra.mxu0 %v1543
    %1545 = vmatprep.subr.mxu0 0.0
    %v1546 = vand.u32 %v94, 4294901760
    %1547 = vmatpush1.msra.mxu0 %v1546
    %1548 = vmatprep.subr.mxu0 0.0
    %v1549 = vand.u32 %v95, 4294901760
    %1550 = vmatpush1.msra.mxu0 %v1549
    %1551 = vmatprep.subr.mxu0 0.0
    %v1552 = vand.u32 %v96, 4294901760
    %1553 = vmatpush1.msra.mxu0 %v1552
    %1554 = vmatprep.subr.mxu0 0.0
    %v1555 = vand.u32 %v97, 4294901760
    %1556 = vmatpush1.msra.mxu0 %v1555
    %1557 = vmatprep.subr.mxu0 0.0
    %v1558 = vand.u32 %v98, 4294901760
    %1559 = vmatpush1.msra.mxu0 %v1558
    %1560 = vmatprep.subr.mxu0 0.0
    %v1561 = vand.u32 %v99, 4294901760
    %1562 = vmatpush1.msra.mxu0 %v1561
    %1563 = vmatprep.subr.mxu0 0.0
    %v1564 = vand.u32 %v100, 4294901760
    %1565 = vmatpush1.msra.mxu0 %v1564
    %1566 = vmatprep.subr.mxu0 0.0
    %v1567 = vand.u32 %v101, 4294901760
    %1568 = vmatpush1.msra.mxu0 %v1567
    %1569 = vmatprep.subr.mxu0 0.0
    %v1570 = vand.u32 %v102, 4294901760
    %1571 = vmatpush1.msra.mxu0 %v1570
    %1572 = vmatprep.subr.mxu0 0.0
    %v1573 = vand.u32 %v103, 4294901760
    %1574 = vmatpush1.msra.mxu0 %v1573
    %1575 = vmatprep.subr.mxu0 0.0
    %v1576 = vand.u32 %v104, 4294901760
    %1577 = vmatpush1.msra.mxu0 %v1576
    %1578 = vmatprep.subr.mxu0 0.0
    %v1579 = vand.u32 %v105, 4294901760
    %1580 = vmatpush1.msra.mxu0 %v1579
    %1581 = vmatprep.subr.mxu0 0.0
    %v1582 = vand.u32 %v106, 4294901760
    %1583 = vmatpush1.msra.mxu0 %v1582
    %1584 = vmatprep.subr.mxu0 0.0
    %v1585 = vand.u32 %v107, 4294901760
    %1586 = vmatpush1.msra.mxu0 %v1585
    %v1587 = vand.u32 %v41, 4294901760
    %v1588 = vsub.f32 %v41, %v1587
    %v1589 = vand.u32 %v1588, 4294901760
    %1590 = vmatprep.mubr.f32.mxu0 %v1589
    %v1591 = vand.u32 %v40, 4294901760
    %v1592 = vsub.f32 %v40, %v1591
    %v1593 = vand.u32 %v1592, 4294901760
    %1594 = vmatmul.mubr.f32.gmra.mrb[0].mxu0 %v1593
    %v1595 = vpop.f32.mrb[0].mxu0
    %v1596 = vadd.f32 %v1488, %v1595
    %v1597 = vpop.f32.mrb[0].mxu0
    %1598 = vdwg.mxu0
    %1599 = vmatprep.subr.mxu0 0.0
    %v1600 = vand.u32 %v76, 4294901760
    %v1601 = vsub.f32 %v76, %v1600
    %v1602 = vand.u32 %v1601, 4294901760
    %1603 = vmatpush1.msra.mxu0 %v1602
    %1604 = vmatprep.subr.mxu0 0.0
    %v1605 = vand.u32 %v77, 4294901760
    %v1606 = vsub.f32 %v77, %v1605
    %v1607 = vand.u32 %v1606, 4294901760
    %1608 = vmatpush1.msra.mxu0 %v1607
    %1609 = vmatprep.subr.mxu0 0.0
    %v1610 = vand.u32 %v78, 4294901760
    %v1611 = vsub.f32 %v78, %v1610
    %v1612 = vand.u32 %v1611, 4294901760
    %1613 = vmatpush1.msra.mxu0 %v1612
    %1614 = vmatprep.subr.mxu0 0.0
    %v1615 = vand.u32 %v79, 4294901760
    %v1616 = vsub.f32 %v79, %v1615
    %v1617 = vand.u32 %v1616, 4294901760
    %1618 = vmatpush1.msra.mxu0 %v1617
    %1619 = vmatprep.subr.mxu0 0.0
    %v1620 = vand.u32 %v80, 4294901760
    %v1621 = vsub.f32 %v80, %v1620
    %v1622 = vand.u32 %v1621, 4294901760
    %1623 = vmatpush1.msra.mxu0 %v1622
    %1624 = vmatprep.subr.mxu0 0.0
    %v1625 = vand.u32 %v81, 4294901760
    %v1626 = vsub.f32 %v81, %v1625
    %v1627 = vand.u32 %v1626, 4294901760
    %1628 = vmatpush1.msra.mxu0 %v1627
    %1629 = vmatprep.subr.mxu0 0.0
    %v1630 = vand.u32 %v82, 4294901760
    %v1631 = vsub.f32 %v82, %v1630
    %v1632 = vand.u32 %v1631, 4294901760
    %1633 = vmatpush1.msra.mxu0 %v1632
    %1634 = vmatprep.subr.mxu0 0.0
    %v1635 = vand.u32 %v83, 4294901760
    %v1636 = vsub.f32 %v83, %v1635
    %v1637 = vand.u32 %v1636, 4294901760
    %1638 = vmatpush1.msra.mxu0 %v1637
    %1639 = vmatprep.subr.mxu0 0.0
    %v1640 = vand.u32 %v84, 4294901760
    %v1641 = vsub.f32 %v84, %v1640
    %v1642 = vand.u32 %v1641, 4294901760
    %1643 = vmatpush1.msra.mxu0 %v1642
    %1644 = vmatprep.subr.mxu0 0.0
    %v1645 = vand.u32 %v85, 4294901760
    %v1646 = vsub.f32 %v85, %v1645
    %v1647 = vand.u32 %v1646, 4294901760
    %1648 = vmatpush1.msra.mxu0 %v1647
    %1649 = vmatprep.subr.mxu0 0.0
    %v1650 = vand.u32 %v86, 4294901760
    %v1651 = vsub.f32 %v86, %v1650
    %v1652 = vand.u32 %v1651, 4294901760
    %1653 = vmatpush1.msra.mxu0 %v1652
    %1654 = vmatprep.subr.mxu0 0.0
    %v1655 = vand.u32 %v87, 4294901760
    %v1656 = vsub.f32 %v87, %v1655
    %v1657 = vand.u32 %v1656, 4294901760
    %1658 = vmatpush1.msra.mxu0 %v1657
    %1659 = vmatprep.subr.mxu0 0.0
    %v1660 = vand.u32 %v88, 4294901760
    %v1661 = vsub.f32 %v88, %v1660
    %v1662 = vand.u32 %v1661, 4294901760
    %1663 = vmatpush1.msra.mxu0 %v1662
    %1664 = vmatprep.subr.mxu0 0.0
    %v1665 = vand.u32 %v89, 4294901760
    %v1666 = vsub.f32 %v89, %v1665
    %v1667 = vand.u32 %v1666, 4294901760
    %1668 = vmatpush1.msra.mxu0 %v1667
    %1669 = vmatprep.subr.mxu0 0.0
    %v1670 = vand.u32 %v90, 4294901760
    %v1671 = vsub.f32 %v90, %v1670
    %v1672 = vand.u32 %v1671, 4294901760
    %1673 = vmatpush1.msra.mxu0 %v1672
    %1674 = vmatprep.subr.mxu0 0.0
    %v1675 = vand.u32 %v91, 4294901760
    %v1676 = vsub.f32 %v91, %v1675
    %v1677 = vand.u32 %v1676, 4294901760
    %1678 = vmatpush1.msra.mxu0 %v1677
    %1679 = vmatprep.subr.mxu0 0.0
    %v1680 = vand.u32 %v92, 4294901760
    %v1681 = vsub.f32 %v92, %v1680
    %v1682 = vand.u32 %v1681, 4294901760
    %1683 = vmatpush1.msra.mxu0 %v1682
    %1684 = vmatprep.subr.mxu0 0.0
    %v1685 = vand.u32 %v93, 4294901760
    %v1686 = vsub.f32 %v93, %v1685
    %v1687 = vand.u32 %v1686, 4294901760
    %1688 = vmatpush1.msra.mxu0 %v1687
    %1689 = vmatprep.subr.mxu0 0.0
    %v1690 = vand.u32 %v94, 4294901760
    %v1691 = vsub.f32 %v94, %v1690
    %v1692 = vand.u32 %v1691, 4294901760
    %1693 = vmatpush1.msra.mxu0 %v1692
    %1694 = vmatprep.subr.mxu0 0.0
    %v1695 = vand.u32 %v95, 4294901760
    %v1696 = vsub.f32 %v95, %v1695
    %v1697 = vand.u32 %v1696, 4294901760
    %1698 = vmatpush1.msra.mxu0 %v1697
    %1699 = vmatprep.subr.mxu0 0.0
    %v1700 = vand.u32 %v96, 4294901760
    %v1701 = vsub.f32 %v96, %v1700
    %v1702 = vand.u32 %v1701, 4294901760
    %1703 = vmatpush1.msra.mxu0 %v1702
    %1704 = vmatprep.subr.mxu0 0.0
    %v1705 = vand.u32 %v97, 4294901760
    %v1706 = vsub.f32 %v97, %v1705
    %v1707 = vand.u32 %v1706, 4294901760
    %1708 = vmatpush1.msra.mxu0 %v1707
    %1709 = vmatprep.subr.mxu0 0.0
    %v1710 = vand.u32 %v98, 4294901760
    %v1711 = vsub.f32 %v98, %v1710
    %v1712 = vand.u32 %v1711, 4294901760
    %1713 = vmatpush1.msra.mxu0 %v1712
    %1714 = vmatprep.subr.mxu0 0.0
    %v1715 = vand.u32 %v99, 4294901760
    %v1716 = vsub.f32 %v99, %v1715
    %v1717 = vand.u32 %v1716, 4294901760
    %1718 = vmatpush1.msra.mxu0 %v1717
    %1719 = vmatprep.subr.mxu0 0.0
    %v1720 = vand.u32 %v100, 4294901760
    %v1721 = vsub.f32 %v100, %v1720
    %v1722 = vand.u32 %v1721, 4294901760
    %1723 = vmatpush1.msra.mxu0 %v1722
    %1724 = vmatprep.subr.mxu0 0.0
    %v1725 = vand.u32 %v101, 4294901760
    %v1726 = vsub.f32 %v101, %v1725
    %v1727 = vand.u32 %v1726, 4294901760
    %1728 = vmatpush1.msra.mxu0 %v1727
    %1729 = vmatprep.subr.mxu0 0.0
    %v1730 = vand.u32 %v102, 4294901760
    %v1731 = vsub.f32 %v102, %v1730
    %v1732 = vand.u32 %v1731, 4294901760
    %1733 = vmatpush1.msra.mxu0 %v1732
    %1734 = vmatprep.subr.mxu0 0.0
    %v1735 = vand.u32 %v103, 4294901760
    %v1736 = vsub.f32 %v103, %v1735
    %v1737 = vand.u32 %v1736, 4294901760
    %1738 = vmatpush1.msra.mxu0 %v1737
    %1739 = vmatprep.subr.mxu0 0.0
    %v1740 = vand.u32 %v104, 4294901760
    %v1741 = vsub.f32 %v104, %v1740
    %v1742 = vand.u32 %v1741, 4294901760
    %1743 = vmatpush1.msra.mxu0 %v1742
    %1744 = vmatprep.subr.mxu0 0.0
    %v1745 = vand.u32 %v105, 4294901760
    %v1746 = vsub.f32 %v105, %v1745
    %v1747 = vand.u32 %v1746, 4294901760
    %1748 = vmatpush1.msra.mxu0 %v1747
    %1749 = vmatprep.subr.mxu0 0.0
    %v1750 = vand.u32 %v106, 4294901760
    %v1751 = vsub.f32 %v106, %v1750
    %v1752 = vand.u32 %v1751, 4294901760
    %1753 = vmatpush1.msra.mxu0 %v1752
    %1754 = vmatprep.subr.mxu0 0.0
    %v1755 = vand.u32 %v107, 4294901760
    %v1756 = vsub.f32 %v107, %v1755
    %v1757 = vand.u32 %v1756, 4294901760
    %1758 = vmatpush1.msra.mxu0 %v1757
    %v1759 = vand.u32 %v41, 4294901760
    %1760 = vmatprep.mubr.f32.mxu0 %v1759
    %v1761 = vand.u32 %v40, 4294901760
    %1762 = vmatmul.mubr.f32.gmra.mrb[0].mxu0 %v1761
    %v1763 = vpop.f32.mrb[0].mxu0
    %v1764 = vadd.f32 %v1596, %v1763
    %v1765 = vpop.f32.mrb[0].mxu0
    %1766 = vdwg.mxu0
    %1767 = vmatprep.subr.mxu0 0.0
    %v1768 = vand.u32 %v76, 4294901760
    %1769 = vmatpush1.msra.mxu0 %v1768
    %1770 = vmatprep.subr.mxu0 0.0
    %v1771 = vand.u32 %v77, 4294901760
    %1772 = vmatpush1.msra.mxu0 %v1771
    %1773 = vmatprep.subr.mxu0 0.0
    %v1774 = vand.u32 %v78, 4294901760
    %1775 = vmatpush1.msra.mxu0 %v1774
    %1776 = vmatprep.subr.mxu0 0.0
    %v1777 = vand.u32 %v79, 4294901760
    %1778 = vmatpush1.msra.mxu0 %v1777
    %1779 = vmatprep.subr.mxu0 0.0
    %v1780 = vand.u32 %v80, 4294901760
    %1781 = vmatpush1.msra.mxu0 %v1780
    %1782 = vmatprep.subr.mxu0 0.0
    %v1783 = vand.u32 %v81, 4294901760
    %1784 = vmatpush1.msra.mxu0 %v1783
    %1785 = vmatprep.subr.mxu0 0.0
    %v1786 = vand.u32 %v82, 4294901760
    %1787 = vmatpush1.msra.mxu0 %v1786
    %1788 = vmatprep.subr.mxu0 0.0
    %v1789 = vand.u32 %v83, 4294901760
    %1790 = vmatpush1.msra.mxu0 %v1789
    %1791 = vmatprep.subr.mxu0 0.0
    %v1792 = vand.u32 %v84, 4294901760
    %1793 = vmatpush1.msra.mxu0 %v1792
    %1794 = vmatprep.subr.mxu0 0.0
    %v1795 = vand.u32 %v85, 4294901760
    %1796 = vmatpush1.msra.mxu0 %v1795
    %1797 = vmatprep.subr.mxu0 0.0
    %v1798 = vand.u32 %v86, 4294901760
    %1799 = vmatpush1.msra.mxu0 %v1798
    %1800 = vmatprep.subr.mxu0 0.0
    %v1801 = vand.u32 %v87, 4294901760
    %1802 = vmatpush1.msra.mxu0 %v1801
    %1803 = vmatprep.subr.mxu0 0.0
    %v1804 = vand.u32 %v88, 4294901760
    %1805 = vmatpush1.msra.mxu0 %v1804
    %1806 = vmatprep.subr.mxu0 0.0
    %v1807 = vand.u32 %v89, 4294901760
    %1808 = vmatpush1.msra.mxu0 %v1807
    %1809 = vmatprep.subr.mxu0 0.0
    %v1810 = vand.u32 %v90, 4294901760
    %1811 = vmatpush1.msra.mxu0 %v1810
    %1812 = vmatprep.subr.mxu0 0.0
    %v1813 = vand.u32 %v91, 4294901760
    %1814 = vmatpush1.msra.mxu0 %v1813
    %1815 = vmatprep.subr.mxu0 0.0
    %v1816 = vand.u32 %v92, 4294901760
    %1817 = vmatpush1.msra.mxu0 %v1816
    %1818 = vmatprep.subr.mxu0 0.0
    %v1819 = vand.u32 %v93, 4294901760
    %1820 = vmatpush1.msra.mxu0 %v1819
    %1821 = vmatprep.subr.mxu0 0.0
    %v1822 = vand.u32 %v94, 4294901760
    %1823 = vmatpush1.msra.mxu0 %v1822
    %1824 = vmatprep.subr.mxu0 0.0
    %v1825 = vand.u32 %v95, 4294901760
    %1826 = vmatpush1.msra.mxu0 %v1825
    %1827 = vmatprep.subr.mxu0 0.0
    %v1828 = vand.u32 %v96, 4294901760
    %1829 = vmatpush1.msra.mxu0 %v1828
    %1830 = vmatprep.subr.mxu0 0.0
    %v1831 = vand.u32 %v97, 4294901760
    %1832 = vmatpush1.msra.mxu0 %v1831
    %1833 = vmatprep.subr.mxu0 0.0
    %v1834 = vand.u32 %v98, 4294901760
    %1835 = vmatpush1.msra.mxu0 %v1834
    %1836 = vmatprep.subr.mxu0 0.0
    %v1837 = vand.u32 %v99, 4294901760
    %1838 = vmatpush1.msra.mxu0 %v1837
    %1839 = vmatprep.subr.mxu0 0.0
    %v1840 = vand.u32 %v100, 4294901760
    %1841 = vmatpush1.msra.mxu0 %v1840
    %1842 = vmatprep.subr.mxu0 0.0
    %v1843 = vand.u32 %v101, 4294901760
    %1844 = vmatpush1.msra.mxu0 %v1843
    %1845 = vmatprep.subr.mxu0 0.0
    %v1846 = vand.u32 %v102, 4294901760
    %1847 = vmatpush1.msra.mxu0 %v1846
    %1848 = vmatprep.subr.mxu0 0.0
    %v1849 = vand.u32 %v103, 4294901760
    %1850 = vmatpush1.msra.mxu0 %v1849
    %1851 = vmatprep.subr.mxu0 0.0
    %v1852 = vand.u32 %v104, 4294901760
    %1853 = vmatpush1.msra.mxu0 %v1852
    %1854 = vmatprep.subr.mxu0 0.0
    %v1855 = vand.u32 %v105, 4294901760
    %1856 = vmatpush1.msra.mxu0 %v1855
    %1857 = vmatprep.subr.mxu0 0.0
    %v1858 = vand.u32 %v106, 4294901760
    %1859 = vmatpush1.msra.mxu0 %v1858
    %1860 = vmatprep.subr.mxu0 0.0
    %v1861 = vand.u32 %v107, 4294901760
    %1862 = vmatpush1.msra.mxu0 %v1861
    %v1863 = vand.u32 %v41, 4294901760
    %1864 = vmatprep.mubr.f32.mxu0 %v1863
    %v1865 = vand.u32 %v40, 4294901760
    %1866 = vmatmul.mubr.f32.gmra.mrb[0].mxu0 %v1865
    %v1867 = vpop.f32.mrb[0].mxu0
    %v1868 = vadd.f32 %v1764, %v1867
    %v1869 = vpop.f32.mrb[0].mxu0
    %1870 = vdwg.mxu0
    %1871 = vmatprep.subr.mxu0 0.0
    %v1872 = vand.u32 %v108, 4294901760
    %1873 = vmatpush1.msra.mxu0 %v1872
    %1874 = vmatprep.subr.mxu0 0.0
    %v1875 = vand.u32 %v109, 4294901760
    %1876 = vmatpush1.msra.mxu0 %v1875
    %1877 = vmatprep.subr.mxu0 0.0
    %v1878 = vand.u32 %v110, 4294901760
    %1879 = vmatpush1.msra.mxu0 %v1878
    %1880 = vmatprep.subr.mxu0 0.0
    %v1881 = vand.u32 %v111, 4294901760
    %1882 = vmatpush1.msra.mxu0 %v1881
    %1883 = vmatprep.subr.mxu0 0.0
    %v1884 = vand.u32 %v112, 4294901760
    %1885 = vmatpush1.msra.mxu0 %v1884
    %1886 = vmatprep.subr.mxu0 0.0
    %v1887 = vand.u32 %v113, 4294901760
    %1888 = vmatpush1.msra.mxu0 %v1887
    %1889 = vmatprep.subr.mxu0 0.0
    %v1890 = vand.u32 %v114, 4294901760
    %1891 = vmatpush1.msra.mxu0 %v1890
    %1892 = vmatprep.subr.mxu0 0.0
    %v1893 = vand.u32 %v115, 4294901760
    %1894 = vmatpush1.msra.mxu0 %v1893
    %1895 = vmatprep.subr.mxu0 0.0
    %v1896 = vand.u32 %v116, 4294901760
    %1897 = vmatpush1.msra.mxu0 %v1896
    %1898 = vmatprep.subr.mxu0 0.0
    %v1899 = vand.u32 %v117, 4294901760
    %1900 = vmatpush1.msra.mxu0 %v1899
    %1901 = vmatprep.subr.mxu0 0.0
    %v1902 = vand.u32 %v118, 4294901760
    %1903 = vmatpush1.msra.mxu0 %v1902
    %1904 = vmatprep.subr.mxu0 0.0
    %v1905 = vand.u32 %v119, 4294901760
    %1906 = vmatpush1.msra.mxu0 %v1905
    %1907 = vmatprep.subr.mxu0 0.0
    %v1908 = vand.u32 %v120, 4294901760
    %1909 = vmatpush1.msra.mxu0 %v1908
    %1910 = vmatprep.subr.mxu0 0.0
    %v1911 = vand.u32 %v121, 4294901760
    %1912 = vmatpush1.msra.mxu0 %v1911
    %1913 = vmatprep.subr.mxu0 0.0
    %v1914 = vand.u32 %v122, 4294901760
    %1915 = vmatpush1.msra.mxu0 %v1914
    %1916 = vmatprep.subr.mxu0 0.0
    %v1917 = vand.u32 %v123, 4294901760
    %1918 = vmatpush1.msra.mxu0 %v1917
    %1919 = vmatprep.subr.mxu0 0.0
    %v1920 = vand.u32 %v124, 4294901760
    %1921 = vmatpush1.msra.mxu0 %v1920
    %1922 = vmatprep.subr.mxu0 0.0
    %v1923 = vand.u32 %v125, 4294901760
    %1924 = vmatpush1.msra.mxu0 %v1923
    %1925 = vmatprep.subr.mxu0 0.0
    %v1926 = vand.u32 %v126, 4294901760
    %1927 = vmatpush1.msra.mxu0 %v1926
    %1928 = vmatprep.subr.mxu0 0.0
    %v1929 = vand.u32 %v127, 4294901760
    %1930 = vmatpush1.msra.mxu0 %v1929
    %1931 = vmatprep.subr.mxu0 0.0
    %v1932 = vand.u32 %v128, 4294901760
    %1933 = vmatpush1.msra.mxu0 %v1932
    %1934 = vmatprep.subr.mxu0 0.0
    %v1935 = vand.u32 %v129, 4294901760
    %1936 = vmatpush1.msra.mxu0 %v1935
    %1937 = vmatprep.subr.mxu0 0.0
    %v1938 = vand.u32 %v130, 4294901760
    %1939 = vmatpush1.msra.mxu0 %v1938
    %1940 = vmatprep.subr.mxu0 0.0
    %v1941 = vand.u32 %v131, 4294901760
    %1942 = vmatpush1.msra.mxu0 %v1941
    %1943 = vmatprep.subr.mxu0 0.0
    %v1944 = vand.u32 %v132, 4294901760
    %1945 = vmatpush1.msra.mxu0 %v1944
    %1946 = vmatprep.subr.mxu0 0.0
    %v1947 = vand.u32 %v133, 4294901760
    %1948 = vmatpush1.msra.mxu0 %v1947
    %1949 = vmatprep.subr.mxu0 0.0
    %v1950 = vand.u32 %v134, 4294901760
    %1951 = vmatpush1.msra.mxu0 %v1950
    %1952 = vmatprep.subr.mxu0 0.0
    %v1953 = vand.u32 %v135, 4294901760
    %1954 = vmatpush1.msra.mxu0 %v1953
    %1955 = vmatprep.subr.mxu0 0.0
    %v1956 = vand.u32 %v136, 4294901760
    %1957 = vmatpush1.msra.mxu0 %v1956
    %1958 = vmatprep.subr.mxu0 0.0
    %v1959 = vand.u32 %v137, 4294901760
    %1960 = vmatpush1.msra.mxu0 %v1959
    %1961 = vmatprep.subr.mxu0 0.0
    %v1962 = vand.u32 %v138, 4294901760
    %1963 = vmatpush1.msra.mxu0 %v1962
    %1964 = vmatprep.subr.mxu0 0.0
    %v1965 = vand.u32 %v139, 4294901760
    %1966 = vmatpush1.msra.mxu0 %v1965
    %v1967 = vand.u32 %v43, 4294901760
    %v1968 = vsub.f32 %v43, %v1967
    %v1969 = vand.u32 %v1968, 4294901760
    %v1970 = vsub.f32 %v1968, %v1969
    %v1971 = vand.u32 %v1970, 4294901760
    %1972 = vmatprep.mubr.f32.mxu0 %v1971
    %v1973 = vand.u32 %v42, 4294901760
    %v1974 = vsub.f32 %v42, %v1973
    %v1975 = vand.u32 %v1974, 4294901760
    %v1976 = vsub.f32 %v1974, %v1975
    %v1977 = vand.u32 %v1976, 4294901760
    %1978 = vmatmul.mubr.f32.gmra.mrb[0].mxu0 %v1977
    %v1979 = vpop.f32.mrb[0].mxu0
    %v1980 = vadd.f32 %v1868, %v1979
    %v1981 = vpop.f32.mrb[0].mxu0
    %1982 = vdwg.mxu0
    %1983 = vmatprep.subr.mxu0 0.0
    %v1984 = vand.u32 %v108, 4294901760
    %v1985 = vsub.f32 %v108, %v1984
    %v1986 = vand.u32 %v1985, 4294901760
    %v1987 = vsub.f32 %v1985, %v1986
    %v1988 = vand.u32 %v1987, 4294901760
    %1989 = vmatpush1.msra.mxu0 %v1988
    %1990 = vmatprep.subr.mxu0 0.0
    %v1991 = vand.u32 %v109, 4294901760
    %v1992 = vsub.f32 %v109, %v1991
    %v1993 = vand.u32 %v1992, 4294901760
    %v1994 = vsub.f32 %v1992, %v1993
    %v1995 = vand.u32 %v1994, 4294901760
    %1996 = vmatpush1.msra.mxu0 %v1995
    %1997 = vmatprep.subr.mxu0 0.0
    %v1998 = vand.u32 %v110, 4294901760
    %v1999 = vsub.f32 %v110, %v1998
    %v2000 = vand.u32 %v1999, 4294901760
    %v2001 = vsub.f32 %v1999, %v2000
    %v2002 = vand.u32 %v2001, 4294901760
    %2003 = vmatpush1.msra.mxu0 %v2002
    %2004 = vmatprep.subr.mxu0 0.0
    %v2005 = vand.u32 %v111, 4294901760
    %v2006 = vsub.f32 %v111, %v2005
    %v2007 = vand.u32 %v2006, 4294901760
    %v2008 = vsub.f32 %v2006, %v2007
    %v2009 = vand.u32 %v2008, 4294901760
    %2010 = vmatpush1.msra.mxu0 %v2009
    %2011 = vmatprep.subr.mxu0 0.0
    %v2012 = vand.u32 %v112, 4294901760
    %v2013 = vsub.f32 %v112, %v2012
    %v2014 = vand.u32 %v2013, 4294901760
    %v2015 = vsub.f32 %v2013, %v2014
    %v2016 = vand.u32 %v2015, 4294901760
    %2017 = vmatpush1.msra.mxu0 %v2016
    %2018 = vmatprep.subr.mxu0 0.0
    %v2019 = vand.u32 %v113, 4294901760
    %v2020 = vsub.f32 %v113, %v2019
    %v2021 = vand.u32 %v2020, 4294901760
    %v2022 = vsub.f32 %v2020, %v2021
    %v2023 = vand.u32 %v2022, 4294901760
    %2024 = vmatpush1.msra.mxu0 %v2023
    %2025 = vmatprep.subr.mxu0 0.0
    %v2026 = vand.u32 %v114, 4294901760
    %v2027 = vsub.f32 %v114, %v2026
    %v2028 = vand.u32 %v2027, 4294901760
    %v2029 = vsub.f32 %v2027, %v2028
    %v2030 = vand.u32 %v2029, 4294901760
    %2031 = vmatpush1.msra.mxu0 %v2030
    %2032 = vmatprep.subr.mxu0 0.0
    %v2033 = vand.u32 %v115, 4294901760
    %v2034 = vsub.f32 %v115, %v2033
    %v2035 = vand.u32 %v2034, 4294901760
    %v2036 = vsub.f32 %v2034, %v2035
    %v2037 = vand.u32 %v2036, 4294901760
    %2038 = vmatpush1.msra.mxu0 %v2037
    %2039 = vmatprep.subr.mxu0 0.0
    %v2040 = vand.u32 %v116, 4294901760
    %v2041 = vsub.f32 %v116, %v2040
    %v2042 = vand.u32 %v2041, 4294901760
    %v2043 = vsub.f32 %v2041, %v2042
    %v2044 = vand.u32 %v2043, 4294901760
    %2045 = vmatpush1.msra.mxu0 %v2044
    %2046 = vmatprep.subr.mxu0 0.0
    %v2047 = vand.u32 %v117, 4294901760
    %v2048 = vsub.f32 %v117, %v2047
    %v2049 = vand.u32 %v2048, 4294901760
    %v2050 = vsub.f32 %v2048, %v2049
    %v2051 = vand.u32 %v2050, 4294901760
    %2052 = vmatpush1.msra.mxu0 %v2051
    %2053 = vmatprep.subr.mxu0 0.0
    %v2054 = vand.u32 %v118, 4294901760
    %v2055 = vsub.f32 %v118, %v2054
    %v2056 = vand.u32 %v2055, 4294901760
    %v2057 = vsub.f32 %v2055, %v2056
    %v2058 = vand.u32 %v2057, 4294901760
    %2059 = vmatpush1.msra.mxu0 %v2058
    %2060 = vmatprep.subr.mxu0 0.0
    %v2061 = vand.u32 %v119, 4294901760
    %v2062 = vsub.f32 %v119, %v2061
    %v2063 = vand.u32 %v2062, 4294901760
    %v2064 = vsub.f32 %v2062, %v2063
    %v2065 = vand.u32 %v2064, 4294901760
    %2066 = vmatpush1.msra.mxu0 %v2065
    %2067 = vmatprep.subr.mxu0 0.0
    %v2068 = vand.u32 %v120, 4294901760
    %v2069 = vsub.f32 %v120, %v2068
    %v2070 = vand.u32 %v2069, 4294901760
    %v2071 = vsub.f32 %v2069, %v2070
    %v2072 = vand.u32 %v2071, 4294901760
    %2073 = vmatpush1.msra.mxu0 %v2072
    %2074 = vmatprep.subr.mxu0 0.0
    %v2075 = vand.u32 %v121, 4294901760
    %v2076 = vsub.f32 %v121, %v2075
    %v2077 = vand.u32 %v2076, 4294901760
    %v2078 = vsub.f32 %v2076, %v2077
    %v2079 = vand.u32 %v2078, 4294901760
    %2080 = vmatpush1.msra.mxu0 %v2079
    %2081 = vmatprep.subr.mxu0 0.0
    %v2082 = vand.u32 %v122, 4294901760
    %v2083 = vsub.f32 %v122, %v2082
    %v2084 = vand.u32 %v2083, 4294901760
    %v2085 = vsub.f32 %v2083, %v2084
    %v2086 = vand.u32 %v2085, 4294901760
    %2087 = vmatpush1.msra.mxu0 %v2086
    %2088 = vmatprep.subr.mxu0 0.0
    %v2089 = vand.u32 %v123, 4294901760
    %v2090 = vsub.f32 %v123, %v2089
    %v2091 = vand.u32 %v2090, 4294901760
    %v2092 = vsub.f32 %v2090, %v2091
    %v2093 = vand.u32 %v2092, 4294901760
    %2094 = vmatpush1.msra.mxu0 %v2093
    %2095 = vmatprep.subr.mxu0 0.0
    %v2096 = vand.u32 %v124, 4294901760
    %v2097 = vsub.f32 %v124, %v2096
    %v2098 = vand.u32 %v2097, 4294901760
    %v2099 = vsub.f32 %v2097, %v2098
    %v2100 = vand.u32 %v2099, 4294901760
    %2101 = vmatpush1.msra.mxu0 %v2100
    %2102 = vmatprep.subr.mxu0 0.0
    %v2103 = vand.u32 %v125, 4294901760
    %v2104 = vsub.f32 %v125, %v2103
    %v2105 = vand.u32 %v2104, 4294901760
    %v2106 = vsub.f32 %v2104, %v2105
    %v2107 = vand.u32 %v2106, 4294901760
    %2108 = vmatpush1.msra.mxu0 %v2107
    %2109 = vmatprep.subr.mxu0 0.0
    %v2110 = vand.u32 %v126, 4294901760
    %v2111 = vsub.f32 %v126, %v2110
    %v2112 = vand.u32 %v2111, 4294901760
    %v2113 = vsub.f32 %v2111, %v2112
    %v2114 = vand.u32 %v2113, 4294901760
    %2115 = vmatpush1.msra.mxu0 %v2114
    %2116 = vmatprep.subr.mxu0 0.0
    %v2117 = vand.u32 %v127, 4294901760
    %v2118 = vsub.f32 %v127, %v2117
    %v2119 = vand.u32 %v2118, 4294901760
    %v2120 = vsub.f32 %v2118, %v2119
    %v2121 = vand.u32 %v2120, 4294901760
    %2122 = vmatpush1.msra.mxu0 %v2121
    %2123 = vmatprep.subr.mxu0 0.0
    %v2124 = vand.u32 %v128, 4294901760
    %v2125 = vsub.f32 %v128, %v2124
    %v2126 = vand.u32 %v2125, 4294901760
    %v2127 = vsub.f32 %v2125, %v2126
    %v2128 = vand.u32 %v2127, 4294901760
    %2129 = vmatpush1.msra.mxu0 %v2128
    %2130 = vmatprep.subr.mxu0 0.0
    %v2131 = vand.u32 %v129, 4294901760
    %v2132 = vsub.f32 %v129, %v2131
    %v2133 = vand.u32 %v2132, 4294901760
    %v2134 = vsub.f32 %v2132, %v2133
    %v2135 = vand.u32 %v2134, 4294901760
    %2136 = vmatpush1.msra.mxu0 %v2135
    %2137 = vmatprep.subr.mxu0 0.0
    %v2138 = vand.u32 %v130, 4294901760
    %v2139 = vsub.f32 %v130, %v2138
    %v2140 = vand.u32 %v2139, 4294901760
    %v2141 = vsub.f32 %v2139, %v2140
    %v2142 = vand.u32 %v2141, 4294901760
    %2143 = vmatpush1.msra.mxu0 %v2142
    %2144 = vmatprep.subr.mxu0 0.0
    %v2145 = vand.u32 %v131, 4294901760
    %v2146 = vsub.f32 %v131, %v2145
    %v2147 = vand.u32 %v2146, 4294901760
    %v2148 = vsub.f32 %v2146, %v2147
    %v2149 = vand.u32 %v2148, 4294901760
    %2150 = vmatpush1.msra.mxu0 %v2149
    %2151 = vmatprep.subr.mxu0 0.0
    %v2152 = vand.u32 %v132, 4294901760
    %v2153 = vsub.f32 %v132, %v2152
    %v2154 = vand.u32 %v2153, 4294901760
    %v2155 = vsub.f32 %v2153, %v2154
    %v2156 = vand.u32 %v2155, 4294901760
    %2157 = vmatpush1.msra.mxu0 %v2156
    %2158 = vmatprep.subr.mxu0 0.0
    %v2159 = vand.u32 %v133, 4294901760
    %v2160 = vsub.f32 %v133, %v2159
    %v2161 = vand.u32 %v2160, 4294901760
    %v2162 = vsub.f32 %v2160, %v2161
    %v2163 = vand.u32 %v2162, 4294901760
    %2164 = vmatpush1.msra.mxu0 %v2163
    %2165 = vmatprep.subr.mxu0 0.0
    %v2166 = vand.u32 %v134, 4294901760
    %v2167 = vsub.f32 %v134, %v2166
    %v2168 = vand.u32 %v2167, 4294901760
    %v2169 = vsub.f32 %v2167, %v2168
    %v2170 = vand.u32 %v2169, 4294901760
    %2171 = vmatpush1.msra.mxu0 %v2170
    %2172 = vmatprep.subr.mxu0 0.0
    %v2173 = vand.u32 %v135, 4294901760
    %v2174 = vsub.f32 %v135, %v2173
    %v2175 = vand.u32 %v2174, 4294901760
    %v2176 = vsub.f32 %v2174, %v2175
    %v2177 = vand.u32 %v2176, 4294901760
    %2178 = vmatpush1.msra.mxu0 %v2177
    %2179 = vmatprep.subr.mxu0 0.0
    %v2180 = vand.u32 %v136, 4294901760
    %v2181 = vsub.f32 %v136, %v2180
    %v2182 = vand.u32 %v2181, 4294901760
    %v2183 = vsub.f32 %v2181, %v2182
    %v2184 = vand.u32 %v2183, 4294901760
    %2185 = vmatpush1.msra.mxu0 %v2184
    %2186 = vmatprep.subr.mxu0 0.0
    %v2187 = vand.u32 %v137, 4294901760
    %v2188 = vsub.f32 %v137, %v2187
    %v2189 = vand.u32 %v2188, 4294901760
    %v2190 = vsub.f32 %v2188, %v2189
    %v2191 = vand.u32 %v2190, 4294901760
    %2192 = vmatpush1.msra.mxu0 %v2191
    %2193 = vmatprep.subr.mxu0 0.0
    %v2194 = vand.u32 %v138, 4294901760
    %v2195 = vsub.f32 %v138, %v2194
    %v2196 = vand.u32 %v2195, 4294901760
    %v2197 = vsub.f32 %v2195, %v2196
    %v2198 = vand.u32 %v2197, 4294901760
    %2199 = vmatpush1.msra.mxu0 %v2198
    %2200 = vmatprep.subr.mxu0 0.0
    %v2201 = vand.u32 %v139, 4294901760
    %v2202 = vsub.f32 %v139, %v2201
    %v2203 = vand.u32 %v2202, 4294901760
    %v2204 = vsub.f32 %v2202, %v2203
    %v2205 = vand.u32 %v2204, 4294901760
    %2206 = vmatpush1.msra.mxu0 %v2205
    %v2207 = vand.u32 %v43, 4294901760
    %2208 = vmatprep.mubr.f32.mxu0 %v2207
    %v2209 = vand.u32 %v42, 4294901760
    %2210 = vmatmul.mubr.f32.gmra.mrb[0].mxu0 %v2209
    %v2211 = vpop.f32.mrb[0].mxu0
    %v2212 = vadd.f32 %v1980, %v2211
    %v2213 = vpop.f32.mrb[0].mxu0
    %2214 = vdwg.mxu0
    %2215 = vmatprep.subr.mxu0 0.0
    %v2216 = vand.u32 %v108, 4294901760
    %v2217 = vsub.f32 %v108, %v2216
    %2218 = vmatpush1.msra.mxu0 %v2217
    %2219 = vmatprep.subr.mxu0 0.0
    %v2220 = vand.u32 %v109, 4294901760
    %v2221 = vsub.f32 %v109, %v2220
    %2222 = vmatpush1.msra.mxu0 %v2221
    %2223 = vmatprep.subr.mxu0 0.0
    %v2224 = vand.u32 %v110, 4294901760
    %v2225 = vsub.f32 %v110, %v2224
    %2226 = vmatpush1.msra.mxu0 %v2225
    %2227 = vmatprep.subr.mxu0 0.0
    %v2228 = vand.u32 %v111, 4294901760
    %v2229 = vsub.f32 %v111, %v2228
    %2230 = vmatpush1.msra.mxu0 %v2229
    %2231 = vmatprep.subr.mxu0 0.0
    %v2232 = vand.u32 %v112, 4294901760
    %v2233 = vsub.f32 %v112, %v2232
    %2234 = vmatpush1.msra.mxu0 %v2233
    %2235 = vmatprep.subr.mxu0 0.0
    %v2236 = vand.u32 %v113, 4294901760
    %v2237 = vsub.f32 %v113, %v2236
    %2238 = vmatpush1.msra.mxu0 %v2237
    %2239 = vmatprep.subr.mxu0 0.0
    %v2240 = vand.u32 %v114, 4294901760
    %v2241 = vsub.f32 %v114, %v2240
    %2242 = vmatpush1.msra.mxu0 %v2241
    %2243 = vmatprep.subr.mxu0 0.0
    %v2244 = vand.u32 %v115, 4294901760
    %v2245 = vsub.f32 %v115, %v2244
    %2246 = vmatpush1.msra.mxu0 %v2245
    %2247 = vmatprep.subr.mxu0 0.0
    %v2248 = vand.u32 %v116, 4294901760
    %v2249 = vsub.f32 %v116, %v2248
    %2250 = vmatpush1.msra.mxu0 %v2249
    %2251 = vmatprep.subr.mxu0 0.0
    %v2252 = vand.u32 %v117, 4294901760
    %v2253 = vsub.f32 %v117, %v2252
    %2254 = vmatpush1.msra.mxu0 %v2253
    %2255 = vmatprep.subr.mxu0 0.0
    %v2256 = vand.u32 %v118, 4294901760
    %v2257 = vsub.f32 %v118, %v2256
    %2258 = vmatpush1.msra.mxu0 %v2257
    %2259 = vmatprep.subr.mxu0 0.0
    %v2260 = vand.u32 %v119, 4294901760
    %v2261 = vsub.f32 %v119, %v2260
    %2262 = vmatpush1.msra.mxu0 %v2261
    %2263 = vmatprep.subr.mxu0 0.0
    %v2264 = vand.u32 %v120, 4294901760
    %v2265 = vsub.f32 %v120, %v2264
    %2266 = vmatpush1.msra.mxu0 %v2265
    %2267 = vmatprep.subr.mxu0 0.0
    %v2268 = vand.u32 %v121, 4294901760
    %v2269 = vsub.f32 %v121, %v2268
    %2270 = vmatpush1.msra.mxu0 %v2269
    %2271 = vmatprep.subr.mxu0 0.0
    %v2272 = vand.u32 %v122, 4294901760
    %v2273 = vsub.f32 %v122, %v2272
    %2274 = vmatpush1.msra.mxu0 %v2273
    %2275 = vmatprep.subr.mxu0 0.0
    %v2276 = vand.u32 %v123, 4294901760
    %v2277 = vsub.f32 %v123, %v2276
    %2278 = vmatpush1.msra.mxu0 %v2277
    %2279 = vmatprep.subr.mxu0 0.0
    %v2280 = vand.u32 %v124, 4294901760
    %v2281 = vsub.f32 %v124, %v2280
    %2282 = vmatpush1.msra.mxu0 %v2281
    %2283 = vmatprep.subr.mxu0 0.0
    %v2284 = vand.u32 %v125, 4294901760
    %v2285 = vsub.f32 %v125, %v2284
    %2286 = vmatpush1.msra.mxu0 %v2285
    %2287 = vmatprep.subr.mxu0 0.0
    %v2288 = vand.u32 %v126, 4294901760
    %v2289 = vsub.f32 %v126, %v2288
    %2290 = vmatpush1.msra.mxu0 %v2289
    %2291 = vmatprep.subr.mxu0 0.0
    %v2292 = vand.u32 %v127, 4294901760
    %v2293 = vsub.f32 %v127, %v2292
    %2294 = vmatpush1.msra.mxu0 %v2293
    %2295 = vmatprep.subr.mxu0 0.0
    %v2296 = vand.u32 %v128, 4294901760
    %v2297 = vsub.f32 %v128, %v2296
    %2298 = vmatpush1.msra.mxu0 %v2297
    %2299 = vmatprep.subr.mxu0 0.0
    %v2300 = vand.u32 %v129, 4294901760
    %v2301 = vsub.f32 %v129, %v2300
    %2302 = vmatpush1.msra.mxu0 %v2301
    %2303 = vmatprep.subr.mxu0 0.0
    %v2304 = vand.u32 %v130, 4294901760
    %v2305 = vsub.f32 %v130, %v2304
    %2306 = vmatpush1.msra.mxu0 %v2305
    %2307 = vmatprep.subr.mxu0 0.0
    %v2308 = vand.u32 %v131, 4294901760
    %v2309 = vsub.f32 %v131, %v2308
    %2310 = vmatpush1.msra.mxu0 %v2309
    %2311 = vmatprep.subr.mxu0 0.0
    %v2312 = vand.u32 %v132, 4294901760
    %v2313 = vsub.f32 %v132, %v2312
    %2314 = vmatpush1.msra.mxu0 %v2313
    %2315 = vmatprep.subr.mxu0 0.0
    %v2316 = vand.u32 %v133, 4294901760
    %v2317 = vsub.f32 %v133, %v2316
    %2318 = vmatpush1.msra.mxu0 %v2317
    %2319 = vmatprep.subr.mxu0 0.0
    %v2320 = vand.u32 %v134, 4294901760
    %v2321 = vsub.f32 %v134, %v2320
    %2322 = vmatpush1.msra.mxu0 %v2321
    %2323 = vmatprep.subr.mxu0 0.0
    %v2324 = vand.u32 %v135, 4294901760
    %v2325 = vsub.f32 %v135, %v2324
    %2326 = vmatpush1.msra.mxu0 %v2325
    %2327 = vmatprep.subr.mxu0 0.0
    %v2328 = vand.u32 %v136, 4294901760
    %v2329 = vsub.f32 %v136, %v2328
    %2330 = vmatpush1.msra.mxu0 %v2329
    %2331 = vmatprep.subr.mxu0 0.0
    %v2332 = vand.u32 %v137, 4294901760
    %v2333 = vsub.f32 %v137, %v2332
    %2334 = vmatpush1.msra.mxu0 %v2333
    %2335 = vmatprep.subr.mxu0 0.0
    %v2336 = vand.u32 %v138, 4294901760
    %v2337 = vsub.f32 %v138, %v2336
    %2338 = vmatpush1.msra.mxu0 %v2337
    %2339 = vmatprep.subr.mxu0 0.0
    %v2340 = vand.u32 %v139, 4294901760
    %v2341 = vsub.f32 %v139, %v2340
    %2342 = vmatpush1.msra.mxu0 %v2341
    %v2343 = vand.u32 %v43, 4294901760
    %v2344 = vsub.f32 %v43, %v2343
    %2345 = vmatprep.mubr.f32.mxu0 %v2344
    %v2346 = vand.u32 %v42, 4294901760
    %v2347 = vsub.f32 %v42, %v2346
    %2348 = vmatmul.mubr.f32.gmra.mrb[0].mxu0 %v2347
    %v2349 = vpop.f32.mrb[0].mxu0
    %v2350 = vadd.f32 %v2212, %v2349
    %v2351 = vpop.f32.mrb[0].mxu0
    %2352 = vdwg.mxu0
    %2353 = vmatprep.subr.mxu0 0.0
    %v2354 = vand.u32 %v108, 4294901760
    %2355 = vmatpush1.msra.mxu0 %v2354
    %2356 = vmatprep.subr.mxu0 0.0
    %v2357 = vand.u32 %v109, 4294901760
    %2358 = vmatpush1.msra.mxu0 %v2357
    %2359 = vmatprep.subr.mxu0 0.0
    %v2360 = vand.u32 %v110, 4294901760
    %2361 = vmatpush1.msra.mxu0 %v2360
    %2362 = vmatprep.subr.mxu0 0.0
    %v2363 = vand.u32 %v111, 4294901760
    %2364 = vmatpush1.msra.mxu0 %v2363
    %2365 = vmatprep.subr.mxu0 0.0
    %v2366 = vand.u32 %v112, 4294901760
    %2367 = vmatpush1.msra.mxu0 %v2366
    %2368 = vmatprep.subr.mxu0 0.0
    %v2369 = vand.u32 %v113, 4294901760
    %2370 = vmatpush1.msra.mxu0 %v2369
    %2371 = vmatprep.subr.mxu0 0.0
    %v2372 = vand.u32 %v114, 4294901760
    %2373 = vmatpush1.msra.mxu0 %v2372
    %2374 = vmatprep.subr.mxu0 0.0
    %v2375 = vand.u32 %v115, 4294901760
    %2376 = vmatpush1.msra.mxu0 %v2375
    %2377 = vmatprep.subr.mxu0 0.0
    %v2378 = vand.u32 %v116, 4294901760
    %2379 = vmatpush1.msra.mxu0 %v2378
    %2380 = vmatprep.subr.mxu0 0.0
    %v2381 = vand.u32 %v117, 4294901760
    %2382 = vmatpush1.msra.mxu0 %v2381
    %2383 = vmatprep.subr.mxu0 0.0
    %v2384 = vand.u32 %v118, 4294901760
    %2385 = vmatpush1.msra.mxu0 %v2384
    %2386 = vmatprep.subr.mxu0 0.0
    %v2387 = vand.u32 %v119, 4294901760
    %2388 = vmatpush1.msra.mxu0 %v2387
    %2389 = vmatprep.subr.mxu0 0.0
    %v2390 = vand.u32 %v120, 4294901760
    %2391 = vmatpush1.msra.mxu0 %v2390
    %2392 = vmatprep.subr.mxu0 0.0
    %v2393 = vand.u32 %v121, 4294901760
    %2394 = vmatpush1.msra.mxu0 %v2393
    %2395 = vmatprep.subr.mxu0 0.0
    %v2396 = vand.u32 %v122, 4294901760
    %2397 = vmatpush1.msra.mxu0 %v2396
    %2398 = vmatprep.subr.mxu0 0.0
    %v2399 = vand.u32 %v123, 4294901760
    %2400 = vmatpush1.msra.mxu0 %v2399
    %2401 = vmatprep.subr.mxu0 0.0
    %v2402 = vand.u32 %v124, 4294901760
    %2403 = vmatpush1.msra.mxu0 %v2402
    %2404 = vmatprep.subr.mxu0 0.0
    %v2405 = vand.u32 %v125, 4294901760
    %2406 = vmatpush1.msra.mxu0 %v2405
    %2407 = vmatprep.subr.mxu0 0.0
    %v2408 = vand.u32 %v126, 4294901760
    %2409 = vmatpush1.msra.mxu0 %v2408
    %2410 = vmatprep.subr.mxu0 0.0
    %v2411 = vand.u32 %v127, 4294901760
    %2412 = vmatpush1.msra.mxu0 %v2411
    %2413 = vmatprep.subr.mxu0 0.0
    %v2414 = vand.u32 %v128, 4294901760
    %2415 = vmatpush1.msra.mxu0 %v2414
    %2416 = vmatprep.subr.mxu0 0.0
    %v2417 = vand.u32 %v129, 4294901760
    %2418 = vmatpush1.msra.mxu0 %v2417
    %2419 = vmatprep.subr.mxu0 0.0
    %v2420 = vand.u32 %v130, 4294901760
    %2421 = vmatpush1.msra.mxu0 %v2420
    %2422 = vmatprep.subr.mxu0 0.0
    %v2423 = vand.u32 %v131, 4294901760
    %2424 = vmatpush1.msra.mxu0 %v2423
    %2425 = vmatprep.subr.mxu0 0.0
    %v2426 = vand.u32 %v132, 4294901760
    %2427 = vmatpush1.msra.mxu0 %v2426
    %2428 = vmatprep.subr.mxu0 0.0
    %v2429 = vand.u32 %v133, 4294901760
    %2430 = vmatpush1.msra.mxu0 %v2429
    %2431 = vmatprep.subr.mxu0 0.0
    %v2432 = vand.u32 %v134, 4294901760
    %2433 = vmatpush1.msra.mxu0 %v2432
    %2434 = vmatprep.subr.mxu0 0.0
    %v2435 = vand.u32 %v135, 4294901760
    %2436 = vmatpush1.msra.mxu0 %v2435
    %2437 = vmatprep.subr.mxu0 0.0
    %v2438 = vand.u32 %v136, 4294901760
    %2439 = vmatpush1.msra.mxu0 %v2438
    %2440 = vmatprep.subr.mxu0 0.0
    %v2441 = vand.u32 %v137, 4294901760
    %2442 = vmatpush1.msra.mxu0 %v2441
    %2443 = vmatprep.subr.mxu0 0.0
    %v2444 = vand.u32 %v138, 4294901760
    %2445 = vmatpush1.msra.mxu0 %v2444
    %2446 = vmatprep.subr.mxu0 0.0
    %v2447 = vand.u32 %v139, 4294901760
    %2448 = vmatpush1.msra.mxu0 %v2447
    %v2449 = vand.u32 %v43, 4294901760
    %v2450 = vsub.f32 %v43, %v2449
    %v2451 = vand.u32 %v2450, 4294901760
    %2452 = vmatprep.mubr.f32.mxu0 %v2451
    %v2453 = vand.u32 %v42, 4294901760
    %v2454 = vsub.f32 %v42, %v2453
    %v2455 = vand.u32 %v2454, 4294901760
    %2456 = vmatmul.mubr.f32.gmra.mrb[0].mxu0 %v2455
    %v2457 = vpop.f32.mrb[0].mxu0
    %v2458 = vadd.f32 %v2350, %v2457
    %v2459 = vpop.f32.mrb[0].mxu0
    %2460 = vdwg.mxu0
    %2461 = vmatprep.subr.mxu0 0.0
    %v2462 = vand.u32 %v108, 4294901760
    %v2463 = vsub.f32 %v108, %v2462
    %v2464 = vand.u32 %v2463, 4294901760
    %2465 = vmatpush1.msra.mxu0 %v2464
    %2466 = vmatprep.subr.mxu0 0.0
    %v2467 = vand.u32 %v109, 4294901760
    %v2468 = vsub.f32 %v109, %v2467
    %v2469 = vand.u32 %v2468, 4294901760
    %2470 = vmatpush1.msra.mxu0 %v2469
    %2471 = vmatprep.subr.mxu0 0.0
    %v2472 = vand.u32 %v110, 4294901760
    %v2473 = vsub.f32 %v110, %v2472
    %v2474 = vand.u32 %v2473, 4294901760
    %2475 = vmatpush1.msra.mxu0 %v2474
    %2476 = vmatprep.subr.mxu0 0.0
    %v2477 = vand.u32 %v111, 4294901760
    %v2478 = vsub.f32 %v111, %v2477
    %v2479 = vand.u32 %v2478, 4294901760
    %2480 = vmatpush1.msra.mxu0 %v2479
    %2481 = vmatprep.subr.mxu0 0.0
    %v2482 = vand.u32 %v112, 4294901760
    %v2483 = vsub.f32 %v112, %v2482
    %v2484 = vand.u32 %v2483, 4294901760
    %2485 = vmatpush1.msra.mxu0 %v2484
    %2486 = vmatprep.subr.mxu0 0.0
    %v2487 = vand.u32 %v113, 4294901760
    %v2488 = vsub.f32 %v113, %v2487
    %v2489 = vand.u32 %v2488, 4294901760
    %2490 = vmatpush1.msra.mxu0 %v2489
    %2491 = vmatprep.subr.mxu0 0.0
    %v2492 = vand.u32 %v114, 4294901760
    %v2493 = vsub.f32 %v114, %v2492
    %v2494 = vand.u32 %v2493, 4294901760
    %2495 = vmatpush1.msra.mxu0 %v2494
    %2496 = vmatprep.subr.mxu0 0.0
    %v2497 = vand.u32 %v115, 4294901760
    %v2498 = vsub.f32 %v115, %v2497
    %v2499 = vand.u32 %v2498, 4294901760
    %2500 = vmatpush1.msra.mxu0 %v2499
    %2501 = vmatprep.subr.mxu0 0.0
    %v2502 = vand.u32 %v116, 4294901760
    %v2503 = vsub.f32 %v116, %v2502
    %v2504 = vand.u32 %v2503, 4294901760
    %2505 = vmatpush1.msra.mxu0 %v2504
    %2506 = vmatprep.subr.mxu0 0.0
    %v2507 = vand.u32 %v117, 4294901760
    %v2508 = vsub.f32 %v117, %v2507
    %v2509 = vand.u32 %v2508, 4294901760
    %2510 = vmatpush1.msra.mxu0 %v2509
    %2511 = vmatprep.subr.mxu0 0.0
    %v2512 = vand.u32 %v118, 4294901760
    %v2513 = vsub.f32 %v118, %v2512
    %v2514 = vand.u32 %v2513, 4294901760
    %2515 = vmatpush1.msra.mxu0 %v2514
    %2516 = vmatprep.subr.mxu0 0.0
    %v2517 = vand.u32 %v119, 4294901760
    %v2518 = vsub.f32 %v119, %v2517
    %v2519 = vand.u32 %v2518, 4294901760
    %2520 = vmatpush1.msra.mxu0 %v2519
    %2521 = vmatprep.subr.mxu0 0.0
    %v2522 = vand.u32 %v120, 4294901760
    %v2523 = vsub.f32 %v120, %v2522
    %v2524 = vand.u32 %v2523, 4294901760
    %2525 = vmatpush1.msra.mxu0 %v2524
    %2526 = vmatprep.subr.mxu0 0.0
    %v2527 = vand.u32 %v121, 4294901760
    %v2528 = vsub.f32 %v121, %v2527
    %v2529 = vand.u32 %v2528, 4294901760
    %2530 = vmatpush1.msra.mxu0 %v2529
    %2531 = vmatprep.subr.mxu0 0.0
    %v2532 = vand.u32 %v122, 4294901760
    %v2533 = vsub.f32 %v122, %v2532
    %v2534 = vand.u32 %v2533, 4294901760
    %2535 = vmatpush1.msra.mxu0 %v2534
    %2536 = vmatprep.subr.mxu0 0.0
    %v2537 = vand.u32 %v123, 4294901760
    %v2538 = vsub.f32 %v123, %v2537
    %v2539 = vand.u32 %v2538, 4294901760
    %2540 = vmatpush1.msra.mxu0 %v2539
    %2541 = vmatprep.subr.mxu0 0.0
    %v2542 = vand.u32 %v124, 4294901760
    %v2543 = vsub.f32 %v124, %v2542
    %v2544 = vand.u32 %v2543, 4294901760
    %2545 = vmatpush1.msra.mxu0 %v2544
    %2546 = vmatprep.subr.mxu0 0.0
    %v2547 = vand.u32 %v125, 4294901760
    %v2548 = vsub.f32 %v125, %v2547
    %v2549 = vand.u32 %v2548, 4294901760
    %2550 = vmatpush1.msra.mxu0 %v2549
    %2551 = vmatprep.subr.mxu0 0.0
    %v2552 = vand.u32 %v126, 4294901760
    %v2553 = vsub.f32 %v126, %v2552
    %v2554 = vand.u32 %v2553, 4294901760
    %2555 = vmatpush1.msra.mxu0 %v2554
    %2556 = vmatprep.subr.mxu0 0.0
    %v2557 = vand.u32 %v127, 4294901760
    %v2558 = vsub.f32 %v127, %v2557
    %v2559 = vand.u32 %v2558, 4294901760
    %2560 = vmatpush1.msra.mxu0 %v2559
    %2561 = vmatprep.subr.mxu0 0.0
    %v2562 = vand.u32 %v128, 4294901760
    %v2563 = vsub.f32 %v128, %v2562
    %v2564 = vand.u32 %v2563, 4294901760
    %2565 = vmatpush1.msra.mxu0 %v2564
    %2566 = vmatprep.subr.mxu0 0.0
    %v2567 = vand.u32 %v129, 4294901760
    %v2568 = vsub.f32 %v129, %v2567
    %v2569 = vand.u32 %v2568, 4294901760
    %2570 = vmatpush1.msra.mxu0 %v2569
    %2571 = vmatprep.subr.mxu0 0.0
    %v2572 = vand.u32 %v130, 4294901760
    %v2573 = vsub.f32 %v130, %v2572
    %v2574 = vand.u32 %v2573, 4294901760
    %2575 = vmatpush1.msra.mxu0 %v2574
    %2576 = vmatprep.subr.mxu0 0.0
    %v2577 = vand.u32 %v131, 4294901760
    %v2578 = vsub.f32 %v131, %v2577
    %v2579 = vand.u32 %v2578, 4294901760
    %2580 = vmatpush1.msra.mxu0 %v2579
    %2581 = vmatprep.subr.mxu0 0.0
    %v2582 = vand.u32 %v132, 4294901760
    %v2583 = vsub.f32 %v132, %v2582
    %v2584 = vand.u32 %v2583, 4294901760
    %2585 = vmatpush1.msra.mxu0 %v2584
    %2586 = vmatprep.subr.mxu0 0.0
    %v2587 = vand.u32 %v133, 4294901760
    %v2588 = vsub.f32 %v133, %v2587
    %v2589 = vand.u32 %v2588, 4294901760
    %2590 = vmatpush1.msra.mxu0 %v2589
    %2591 = vmatprep.subr.mxu0 0.0
    %v2592 = vand.u32 %v134, 4294901760
    %v2593 = vsub.f32 %v134, %v2592
    %v2594 = vand.u32 %v2593, 4294901760
    %2595 = vmatpush1.msra.mxu0 %v2594
    %2596 = vmatprep.subr.mxu0 0.0
    %v2597 = vand.u32 %v135, 4294901760
    %v2598 = vsub.f32 %v135, %v2597
    %v2599 = vand.u32 %v2598, 4294901760
    %2600 = vmatpush1.msra.mxu0 %v2599
    %2601 = vmatprep.subr.mxu0 0.0
    %v2602 = vand.u32 %v136, 4294901760
    %v2603 = vsub.f32 %v136, %v2602
    %v2604 = vand.u32 %v2603, 4294901760
    %2605 = vmatpush1.msra.mxu0 %v2604
    %2606 = vmatprep.subr.mxu0 0.0
    %v2607 = vand.u32 %v137, 4294901760
    %v2608 = vsub.f32 %v137, %v2607
    %v2609 = vand.u32 %v2608, 4294901760
    %2610 = vmatpush1.msra.mxu0 %v2609
    %2611 = vmatprep.subr.mxu0 0.0
    %v2612 = vand.u32 %v138, 4294901760
    %v2613 = vsub.f32 %v138, %v2612
    %v2614 = vand.u32 %v2613, 4294901760
    %2615 = vmatpush1.msra.mxu0 %v2614
    %2616 = vmatprep.subr.mxu0 0.0
    %v2617 = vand.u32 %v139, 4294901760
    %v2618 = vsub.f32 %v139, %v2617
    %v2619 = vand.u32 %v2618, 4294901760
    %2620 = vmatpush1.msra.mxu0 %v2619
    %v2621 = vand.u32 %v43, 4294901760
    %2622 = vmatprep.mubr.f32.mxu0 %v2621
    %v2623 = vand.u32 %v42, 4294901760
    %2624 = vmatmul.mubr.f32.gmra.mrb[0].mxu0 %v2623
    %v2625 = vpop.f32.mrb[0].mxu0
    %v2626 = vadd.f32 %v2458, %v2625
    %v2627 = vpop.f32.mrb[0].mxu0
    %2628 = vdwg.mxu0
    %2629 = vmatprep.subr.mxu0 0.0
    %v2630 = vand.u32 %v108, 4294901760
    %2631 = vmatpush1.msra.mxu0 %v2630
    %2632 = vmatprep.subr.mxu0 0.0
    %v2633 = vand.u32 %v109, 4294901760
    %2634 = vmatpush1.msra.mxu0 %v2633
    %2635 = vmatprep.subr.mxu0 0.0
    %v2636 = vand.u32 %v110, 4294901760
    %2637 = vmatpush1.msra.mxu0 %v2636
    %2638 = vmatprep.subr.mxu0 0.0
    %v2639 = vand.u32 %v111, 4294901760
    %2640 = vmatpush1.msra.mxu0 %v2639
    %2641 = vmatprep.subr.mxu0 0.0
    %v2642 = vand.u32 %v112, 4294901760
    %2643 = vmatpush1.msra.mxu0 %v2642
    %2644 = vmatprep.subr.mxu0 0.0
    %v2645 = vand.u32 %v113, 4294901760
    %2646 = vmatpush1.msra.mxu0 %v2645
    %2647 = vmatprep.subr.mxu0 0.0
    %v2648 = vand.u32 %v114, 4294901760
    %2649 = vmatpush1.msra.mxu0 %v2648
    %2650 = vmatprep.subr.mxu0 0.0
    %v2651 = vand.u32 %v115, 4294901760
    %2652 = vmatpush1.msra.mxu0 %v2651
    %2653 = vmatprep.subr.mxu0 0.0
    %v2654 = vand.u32 %v116, 4294901760
    %2655 = vmatpush1.msra.mxu0 %v2654
    %2656 = vmatprep.subr.mxu0 0.0
    %v2657 = vand.u32 %v117, 4294901760
    %2658 = vmatpush1.msra.mxu0 %v2657
    %2659 = vmatprep.subr.mxu0 0.0
    %v2660 = vand.u32 %v118, 4294901760
    %2661 = vmatpush1.msra.mxu0 %v2660
    %2662 = vmatprep.subr.mxu0 0.0
    %v2663 = vand.u32 %v119, 4294901760
    %2664 = vmatpush1.msra.mxu0 %v2663
    %2665 = vmatprep.subr.mxu0 0.0
    %v2666 = vand.u32 %v120, 4294901760
    %2667 = vmatpush1.msra.mxu0 %v2666
    %2668 = vmatprep.subr.mxu0 0.0
    %v2669 = vand.u32 %v121, 4294901760
    %2670 = vmatpush1.msra.mxu0 %v2669
    %2671 = vmatprep.subr.mxu0 0.0
    %v2672 = vand.u32 %v122, 4294901760
    %2673 = vmatpush1.msra.mxu0 %v2672
    %2674 = vmatprep.subr.mxu0 0.0
    %v2675 = vand.u32 %v123, 4294901760
    %2676 = vmatpush1.msra.mxu0 %v2675
    %2677 = vmatprep.subr.mxu0 0.0
    %v2678 = vand.u32 %v124, 4294901760
    %2679 = vmatpush1.msra.mxu0 %v2678
    %2680 = vmatprep.subr.mxu0 0.0
    %v2681 = vand.u32 %v125, 4294901760
    %2682 = vmatpush1.msra.mxu0 %v2681
    %2683 = vmatprep.subr.mxu0 0.0
    %v2684 = vand.u32 %v126, 4294901760
    %2685 = vmatpush1.msra.mxu0 %v2684
    %2686 = vmatprep.subr.mxu0 0.0
    %v2687 = vand.u32 %v127, 4294901760
    %2688 = vmatpush1.msra.mxu0 %v2687
    %2689 = vmatprep.subr.mxu0 0.0
    %v2690 = vand.u32 %v128, 4294901760
    %2691 = vmatpush1.msra.mxu0 %v2690
    %2692 = vmatprep.subr.mxu0 0.0
    %v2693 = vand.u32 %v129, 4294901760
    %2694 = vmatpush1.msra.mxu0 %v2693
    %2695 = vmatprep.subr.mxu0 0.0
    %v2696 = vand.u32 %v130, 4294901760
    %2697 = vmatpush1.msra.mxu0 %v2696
    %2698 = vmatprep.subr.mxu0 0.0
    %v2699 = vand.u32 %v131, 4294901760
    %2700 = vmatpush1.msra.mxu0 %v2699
    %2701 = vmatprep.subr.mxu0 0.0
    %v2702 = vand.u32 %v132, 4294901760
    %2703 = vmatpush1.msra.mxu0 %v2702
    %2704 = vmatprep.subr.mxu0 0.0
    %v2705 = vand.u32 %v133, 4294901760
    %2706 = vmatpush1.msra.mxu0 %v2705
    %2707 = vmatprep.subr.mxu0 0.0
    %v2708 = vand.u32 %v134, 4294901760
    %2709 = vmatpush1.msra.mxu0 %v2708
    %2710 = vmatprep.subr.mxu0 0.0
    %v2711 = vand.u32 %v135, 4294901760
    %2712 = vmatpush1.msra.mxu0 %v2711
    %2713 = vmatprep.subr.mxu0 0.0
    %v2714 = vand.u32 %v136, 4294901760
    %2715 = vmatpush1.msra.mxu0 %v2714
    %2716 = vmatprep.subr.mxu0 0.0
    %v2717 = vand.u32 %v137, 4294901760
    %2718 = vmatpush1.msra.mxu0 %v2717
    %2719 = vmatprep.subr.mxu0 0.0
    %v2720 = vand.u32 %v138, 4294901760
    %2721 = vmatpush1.msra.mxu0 %v2720
    %2722 = vmatprep.subr.mxu0 0.0
    %v2723 = vand.u32 %v139, 4294901760
    %2724 = vmatpush1.msra.mxu0 %v2723
    %v2725 = vand.u32 %v43, 4294901760
    %2726 = vmatprep.mubr.f32.mxu0 %v2725
    %v2727 = vand.u32 %v42, 4294901760
    %2728 = vmatmul.mubr.f32.gmra.mrb[0].mxu0 %v2727
    %v2729 = vpop.f32.mrb[0].mxu0
    %v2730 = vadd.f32 %v2626, %v2729
    %v2731 = vpop.f32.mrb[0].mxu0
    %2732 = vdwg.mxu0
    %v2733 = vmax.f32 %v2730, 0.0
    %v2734 = vld [vmem:[#allocation2] sm:$0xff]
    %v2735 = vld [vmem:[#allocation2 + $0x8] sm:$0xff]
    %v2736 = vld [vmem:[#allocation2 + $0x10] sm:$0xff]
    %v2737 = vld [vmem:[#allocation2 + $0x18] sm:$0xff]
    %v2738 = vld [vmem:[#allocation2 + $0x20] sm:$0xff]
    %v2739 = vld [vmem:[#allocation2 + $0x28] sm:$0xff]
    %v2740 = vld [vmem:[#allocation2 + $0x30] sm:$0xff]
    %v2741 = vld [vmem:[#allocation2 + $0x38] sm:$0xff]
    %v2742 = vld [vmem:[#allocation2 + $0x40] sm:$0xff]
    %v2743 = vld [vmem:[#allocation2 + $0x48] sm:$0xff]
    %v2744 = vld [vmem:[#allocation2 + $0x50] sm:$0xff]
    %v2745 = vld [vmem:[#allocation2 + $0x58] sm:$0xff]
    %v2746 = vld [vmem:[#allocation2 + $0x60] sm:$0xff]
    %v2747 = vld [vmem:[#allocation2 + $0x68] sm:$0xff]
    %v2748 = vld [vmem:[#allocation2 + $0x70] sm:$0xff]
    %v2749 = vld [vmem:[#allocation2 + $0x78] sm:$0xff]
    %v2750 = vld [vmem:[#allocation2 + $0x80] sm:$0xff]
    %v2751 = vld [vmem:[#allocation2 + $0x88] sm:$0xff]
    %v2752 = vld [vmem:[#allocation2 + $0x90] sm:$0xff]
    %v2753 = vld [vmem:[#allocation2 + $0x98] sm:$0xff]
    %v2754 = vld [vmem:[#allocation2 + $0xa0] sm:$0xff]
    %v2755 = vld [vmem:[#allocation2 + $0xa8] sm:$0xff]
    %v2756 = vld [vmem:[#allocation2 + $0xb0] sm:$0xff]
    %v2757 = vld [vmem:[#allocation2 + $0xb8] sm:$0xff]
    %v2758 = vld [vmem:[#allocation2 + $0xc0] sm:$0xff]
    %v2759 = vld [vmem:[#allocation2 + $0xc8] sm:$0xff]
    %v2760 = vld [vmem:[#allocation2 + $0xd0] sm:$0xff]
    %v2761 = vld [vmem:[#allocation2 + $0xd8] sm:$0xff]
    %v2762 = vld [vmem:[#allocation2 + $0xe0] sm:$0xff]
    %v2763 = vld [vmem:[#allocation2 + $0xe8] sm:$0xff]
    %v2764 = vld [vmem:[#allocation2 + $0xf0] sm:$0xff]
    %v2765 = vld [vmem:[#allocation2 + $0xf8] sm:$0xff]
    %v2766 = vld [vmem:[#allocation2 + $0x100] sm:$0xff]
    %v2767 = vld [vmem:[#allocation2 + $0x108] sm:$0xff]
    %v2768 = vld [vmem:[#allocation2 + $0x110] sm:$0xff]
    %v2769 = vld [vmem:[#allocation2 + $0x118] sm:$0xff]
    %v2770 = vld [vmem:[#allocation2 + $0x120] sm:$0xff]
    %v2771 = vld [vmem:[#allocation2 + $0x128] sm:$0xff]
    %v2772 = vld [vmem:[#allocation2 + $0x130] sm:$0xff]
    %v2773 = vld [vmem:[#allocation2 + $0x138] sm:$0xff]
    %v2774 = vld [vmem:[#allocation2 + $0x140] sm:$0xff]
    %v2775 = vld [vmem:[#allocation2 + $0x148] sm:$0xff]
    %v2776 = vld [vmem:[#allocation2 + $0x150] sm:$0xff]
    %v2777 = vld [vmem:[#allocation2 + $0x158] sm:$0xff]
    %v2778 = vld [vmem:[#allocation2 + $0x160] sm:$0xff]
    %v2779 = vld [vmem:[#allocation2 + $0x168] sm:$0xff]
    %v2780 = vld [vmem:[#allocation2 + $0x170] sm:$0xff]
    %v2781 = vld [vmem:[#allocation2 + $0x178] sm:$0xff]
    %v2782 = vld [vmem:[#allocation2 + $0x180] sm:$0xff]
    %v2783 = vld [vmem:[#allocation2 + $0x188] sm:$0xff]
    %v2784 = vld [vmem:[#allocation2 + $0x190] sm:$0xff]
    %v2785 = vld [vmem:[#allocation2 + $0x198] sm:$0xff]
    %v2786 = vld [vmem:[#allocation2 + $0x1a0] sm:$0xff]
    %v2787 = vld [vmem:[#allocation2 + $0x1a8] sm:$0xff]
    %v2788 = vld [vmem:[#allocation2 + $0x1b0] sm:$0xff]
    %v2789 = vld [vmem:[#allocation2 + $0x1b8] sm:$0xff]
    %v2790 = vld [vmem:[#allocation2 + $0x1c0] sm:$0xff]
    %v2791 = vld [vmem:[#allocation2 + $0x1c8] sm:$0xff]
    %v2792 = vld [vmem:[#allocation2 + $0x1d0] sm:$0xff]
    %v2793 = vld [vmem:[#allocation2 + $0x1d8] sm:$0xff]
    %v2794 = vld [vmem:[#allocation2 + $0x1e0] sm:$0xff]
    %v2795 = vld [vmem:[#allocation2 + $0x1e8] sm:$0xff]
    %v2796 = vld [vmem:[#allocation2 + $0x1f0] sm:$0xff]
    %v2797 = vld [vmem:[#allocation2 + $0x1f8] sm:$0xff]
    %v2798 = vld [vmem:[#allocation2 + $0x200] sm:$0xff]
    %v2799 = vld [vmem:[#allocation2 + $0x208] sm:$0xff]
    %v2800 = vld [vmem:[#allocation2 + $0x210] sm:$0xff]
    %v2801 = vld [vmem:[#allocation2 + $0x218] sm:$0xff]
    %v2802 = vld [vmem:[#allocation2 + $0x220] sm:$0xff]
    %v2803 = vld [vmem:[#allocation2 + $0x228] sm:$0xff]
    %v2804 = vld [vmem:[#allocation2 + $0x230] sm:$0xff]
    %v2805 = vld [vmem:[#allocation2 + $0x238] sm:$0xff]
    %v2806 = vld [vmem:[#allocation2 + $0x240] sm:$0xff]
    %v2807 = vld [vmem:[#allocation2 + $0x248] sm:$0xff]
    %v2808 = vld [vmem:[#allocation2 + $0x250] sm:$0xff]
    %v2809 = vld [vmem:[#allocation2 + $0x258] sm:$0xff]
    %v2810 = vld [vmem:[#allocation2 + $0x260] sm:$0xff]
    %v2811 = vld [vmem:[#allocation2 + $0x268] sm:$0xff]
    %v2812 = vld [vmem:[#allocation2 + $0x270] sm:$0xff]
    %v2813 = vld [vmem:[#allocation2 + $0x278] sm:$0xff]
    %v2814 = vld [vmem:[#allocation2 + $0x280] sm:$0xff]
    %v2815 = vld [vmem:[#allocation2 + $0x288] sm:$0xff]
    %v2816 = vld [vmem:[#allocation2 + $0x290] sm:$0xff]
    %v2817 = vld [vmem:[#allocation2 + $0x298] sm:$0xff]
    %v2818 = vld [vmem:[#allocation2 + $0x2a0] sm:$0xff]
    %v2819 = vld [vmem:[#allocation2 + $0x2a8] sm:$0xff]
    %v2820 = vld [vmem:[#allocation2 + $0x2b0] sm:$0xff]
    %v2821 = vld [vmem:[#allocation2 + $0x2b8] sm:$0xff]
    %v2822 = vld [vmem:[#allocation2 + $0x2c0] sm:$0xff]
    %v2823 = vld [vmem:[#allocation2 + $0x2c8] sm:$0xff]
    %v2824 = vld [vmem:[#allocation2 + $0x2d0] sm:$0xff]
    %v2825 = vld [vmem:[#allocation2 + $0x2d8] sm:$0xff]
    %v2826 = vld [vmem:[#allocation2 + $0x2e0] sm:$0xff]
    %v2827 = vld [vmem:[#allocation2 + $0x2e8] sm:$0xff]
    %v2828 = vld [vmem:[#allocation2 + $0x2f0] sm:$0xff]
    %v2829 = vld [vmem:[#allocation2 + $0x2f8] sm:$0xff]
    %v2830 = vld [vmem:[#allocation2 + $0x300] sm:$0xff]
    %v2831 = vld [vmem:[#allocation2 + $0x308] sm:$0xff]
    %v2832 = vld [vmem:[#allocation2 + $0x310] sm:$0xff]
    %v2833 = vld [vmem:[#allocation2 + $0x318] sm:$0xff]
    %v2834 = vld [vmem:[#allocation2 + $0x320] sm:$0xff]
    %v2835 = vld [vmem:[#allocation2 + $0x328] sm:$0xff]
    %v2836 = vld [vmem:[#allocation2 + $0x330] sm:$0xff]
    %v2837 = vld [vmem:[#allocation2 + $0x338] sm:$0xff]
    %v2838 = vld [vmem:[#allocation2 + $0x340] sm:$0xff]
    %v2839 = vld [vmem:[#allocation2 + $0x348] sm:$0xff]
    %v2840 = vld [vmem:[#allocation2 + $0x350] sm:$0xff]
    %v2841 = vld [vmem:[#allocation2 + $0x358] sm:$0xff]
    %v2842 = vld [vmem:[#allocation2 + $0x360] sm:$0xff]
    %v2843 = vld [vmem:[#allocation2 + $0x368] sm:$0xff]
    %v2844 = vld [vmem:[#allocation2 + $0x370] sm:$0xff]
    %v2845 = vld [vmem:[#allocation2 + $0x378] sm:$0xff]
    %v2846 = vld [vmem:[#allocation2 + $0x380] sm:$0xff]
    %v2847 = vld [vmem:[#allocation2 + $0x388] sm:$0xff]
    %v2848 = vld [vmem:[#allocation2 + $0x390] sm:$0xff]
    %v2849 = vld [vmem:[#allocation2 + $0x398] sm:$0xff]
    %v2850 = vld [vmem:[#allocation2 + $0x3a0] sm:$0xff]
    %v2851 = vld [vmem:[#allocation2 + $0x3a8] sm:$0xff]
    %v2852 = vld [vmem:[#allocation2 + $0x3b0] sm:$0xff]
    %v2853 = vld [vmem:[#allocation2 + $0x3b8] sm:$0xff]
    %v2854 = vld [vmem:[#allocation2 + $0x3c0] sm:$0xff]
    %v2855 = vld [vmem:[#allocation2 + $0x3c8] sm:$0xff]
    %v2856 = vld [vmem:[#allocation2 + $0x3d0] sm:$0xff]
    %v2857 = vld [vmem:[#allocation2 + $0x3d8] sm:$0xff]
    %v2858 = vld [vmem:[#allocation2 + $0x3e0] sm:$0xff]
    %v2859 = vld [vmem:[#allocation2 + $0x3e8] sm:$0xff]
    %v2860 = vld [vmem:[#allocation2 + $0x3f0] sm:$0xff]
    %v2861 = vld [vmem:[#allocation2 + $0x3f8] sm:$0xff]
    %v2862 = vld [vmem:[%s4] sm:$0xff]
    %v2863 = vld [vmem:[%s4 + $0x8] sm:$0xff]
    %v2864 = vld [vmem:[%s4 + $0x10] sm:$0xff]
    %v2865 = vld [vmem:[%s4 + $0x18] sm:$0xff]
    %v2870 = vlaneseq
    %v2871 = vshrl.u32 %v2870, 7
    %v2872 = vsub.s32 0, %v2871
    %v2873 = vrot.slane %v2862, %v2872
    %v2874 = vlaneseq
    %v2875 = vshrl.u32 %v2874, 7
    %v2876 = vsub.s32 1, %v2875
    %v2877 = vrot.slane %v2862, %v2876
    %v2878 = vlaneseq
    %v2879 = vshrl.u32 %v2878, 7
    %v2880 = vsub.s32 2, %v2879
    %v2881 = vrot.slane %v2862, %v2880
    %v2882 = vlaneseq
    %v2883 = vshrl.u32 %v2882, 7
    %v2884 = vsub.s32 3, %v2883
    %v2885 = vrot.slane %v2862, %v2884
    %v2886 = vlaneseq
    %v2887 = vshrl.u32 %v2886, 7
    %v2888 = vsub.s32 4, %v2887
    %v2889 = vrot.slane %v2862, %v2888
    %v2890 = vlaneseq
    %v2891 = vshrl.u32 %v2890, 7
    %v2892 = vsub.s32 5, %v2891
    %v2893 = vrot.slane %v2862, %v2892
    %v2894 = vlaneseq
    %v2895 = vshrl.u32 %v2894, 7
    %v2896 = vsub.s32 6, %v2895
    %v2897 = vrot.slane %v2862, %v2896
    %v2898 = vlaneseq
    %v2899 = vshrl.u32 %v2898, 7
    %v2900 = vsub.s32 7, %v2899
    %v2901 = vrot.slane %v2862, %v2900
    %v2902 = vlaneseq
    %v2903 = vshrl.u32 %v2902, 7
    %v2904 = vsub.s32 0, %v2903
    %v2905 = vrot.slane %v2863, %v2904
    %v2906 = vlaneseq
    %v2907 = vshrl.u32 %v2906, 7
    %v2908 = vsub.s32 1, %v2907
    %v2909 = vrot.slane %v2863, %v2908
    %v2910 = vlaneseq
    %v2911 = vshrl.u32 %v2910, 7
    %v2912 = vsub.s32 2, %v2911
    %v2913 = vrot.slane %v2863, %v2912
    %v2914 = vlaneseq
    %v2915 = vshrl.u32 %v2914, 7
    %v2916 = vsub.s32 3, %v2915
    %v2917 = vrot.slane %v2863, %v2916
    %v2918 = vlaneseq
    %v2919 = vshrl.u32 %v2918, 7
    %v2920 = vsub.s32 4, %v2919
    %v2921 = vrot.slane %v2863, %v2920
    %v2922 = vlaneseq
    %v2923 = vshrl.u32 %v2922, 7
    %v2924 = vsub.s32 5, %v2923
    %v2925 = vrot.slane %v2863, %v2924
    %v2926 = vlaneseq
    %v2927 = vshrl.u32 %v2926, 7
    %v2928 = vsub.s32 6, %v2927
    %v2929 = vrot.slane %v2863, %v2928
    %v2930 = vlaneseq
    %v2931 = vshrl.u32 %v2930, 7
    %v2932 = vsub.s32 7, %v2931
    %v2933 = vrot.slane %v2863, %v2932
    %v2934 = vlaneseq
    %v2935 = vshrl.u32 %v2934, 7
    %v2936 = vsub.s32 0, %v2935
    %v2937 = vrot.slane %v2864, %v2936
    %v2938 = vlaneseq
    %v2939 = vshrl.u32 %v2938, 7
    %v2940 = vsub.s32 1, %v2939
    %v2941 = vrot.slane %v2864, %v2940
    %v2942 = vlaneseq
    %v2943 = vshrl.u32 %v2942, 7
    %v2944 = vsub.s32 2, %v2943
    %v2945 = vrot.slane %v2864, %v2944
    %v2946 = vlaneseq
    %v2947 = vshrl.u32 %v2946, 7
    %v2948 = vsub.s32 3, %v2947
    %v2949 = vrot.slane %v2864, %v2948
    %v2950 = vlaneseq
    %v2951 = vshrl.u32 %v2950, 7
    %v2952 = vsub.s32 4, %v2951
    %v2953 = vrot.slane %v2864, %v2952
    %v2954 = vlaneseq
    %v2955 = vshrl.u32 %v2954, 7
    %v2956 = vsub.s32 5, %v2955
    %v2957 = vrot.slane %v2864, %v2956
    %v2958 = vlaneseq
    %v2959 = vshrl.u32 %v2958, 7
    %v2960 = vsub.s32 6, %v2959
    %v2961 = vrot.slane %v2864, %v2960
    %v2962 = vlaneseq
    %v2963 = vshrl.u32 %v2962, 7
    %v2964 = vsub.s32 7, %v2963
    %v2965 = vrot.slane %v2864, %v2964
    %v2966 = vlaneseq
    %v2967 = vshrl.u32 %v2966, 7
    %v2968 = vsub.s32 0, %v2967
    %v2969 = vrot.slane %v2865, %v2968
    %v2970 = vlaneseq
    %v2971 = vshrl.u32 %v2970, 7
    %v2972 = vsub.s32 1, %v2971
    %v2973 = vrot.slane %v2865, %v2972
    %v2974 = vlaneseq
    %v2975 = vshrl.u32 %v2974, 7
    %v2976 = vsub.s32 2, %v2975
    %v2977 = vrot.slane %v2865, %v2976
    %v2978 = vlaneseq
    %v2979 = vshrl.u32 %v2978, 7
    %v2980 = vsub.s32 3, %v2979
    %v2981 = vrot.slane %v2865, %v2980
    %v2982 = vlaneseq
    %v2983 = vshrl.u32 %v2982, 7
    %v2984 = vsub.s32 4, %v2983
    %v2985 = vrot.slane %v2865, %v2984
    %v2986 = vlaneseq
    %v2987 = vshrl.u32 %v2986, 7
    %v2988 = vsub.s32 5, %v2987
    %v2989 = vrot.slane %v2865, %v2988
    %v2990 = vlaneseq
    %v2991 = vshrl.u32 %v2990, 7
    %v2992 = vsub.s32 6, %v2991
    %v2993 = vrot.slane %v2865, %v2992
    %v2994 = vlaneseq
    %v2995 = vshrl.u32 %v2994, 7
    %v2996 = vsub.s32 7, %v2995
    %v2997 = vrot.slane %v2865, %v2996
    %vm3030 = vcmask 261120
    %v3032 = vsel %vm3030, %v2733, 0
    %v3034 = vand.u32 %v2735, 4294901760
    %3035 = vmatprep.subr.mxu0 %v3034
    %v3036 = vand.u32 %v2734, 4294901760
    %3037 = vmatpush1.msra.mxu0 %v3036
    %v3038 = vand.u32 %v2767, 4294901760
    %3039 = vmatprep.subr.mxu0 %v3038
    %v3040 = vand.u32 %v2766, 4294901760
    %3041 = vmatpush1.msra.mxu0 %v3040
    %v3042 = vand.u32 %v2799, 4294901760
    %3043 = vmatprep.subr.mxu0 %v3042
    %v3044 = vand.u32 %v2798, 4294901760
    %3045 = vmatpush1.msra.mxu0 %v3044
    %v3046 = vand.u32 %v2831, 4294901760
    %3047 = vmatprep.subr.mxu0 %v3046
    %v3048 = vand.u32 %v2830, 4294901760
    %3049 = vmatpush1.msra.mxu0 %v3048
    %3050 = vmatprep.subr.mxu0 0.0
    %3051 = vmatpush1.msra.mxu0 0.0
    %3052 = vmatprep.subr.mxu0 0.0
    %3053 = vmatpush1.msra.mxu0 0.0
    %3054 = vmatprep.subr.mxu0 0.0
    %3055 = vmatpush1.msra.mxu0 0.0
    %3056 = vmatprep.subr.mxu0 0.0
    %3057 = vmatpush1.msra.mxu0 0.0
    %3058 = vmatprep.subr.mxu0 0.0
    %3059 = vmatpush1.msra.mxu0 0.0
    %3060 = vmatprep.subr.mxu0 0.0
    %3061 = vmatpush1.msra.mxu0 0.0
    %3062 = vmatprep.subr.mxu0 0.0
    %3063 = vmatpush1.msra.mxu0 0.0
    %3064 = vmatprep.subr.mxu0 0.0
    %3065 = vmatpush1.msra.mxu0 0.0
    %3066 = vmatprep.subr.mxu0 0.0
    %3067 = vmatpush1.msra.mxu0 0.0
    %3068 = vmatprep.subr.mxu0 0.0
    %3069 = vmatpush1.msra.mxu0 0.0
    %3070 = vmatprep.subr.mxu0 0.0
    %3071 = vmatpush1.msra.mxu0 0.0
    %3072 = vmatprep.subr.mxu0 0.0
    %3073 = vmatpush1.msra.mxu0 0.0
    %3074 = vmatprep.subr.mxu0 0.0
    %3075 = vmatpush1.msra.mxu0 0.0
    %3076 = vmatprep.subr.mxu0 0.0
    %3077 = vmatpush1.msra.mxu0 0.0
    %3078 = vmatprep.subr.mxu0 0.0
    %3079 = vmatpush1.msra.mxu0 0.0
    %3080 = vmatprep.subr.mxu0 0.0
    %3081 = vmatpush1.msra.mxu0 0.0
    %3082 = vmatprep.subr.mxu0 0.0
    %3083 = vmatpush1.msra.mxu0 0.0
    %3084 = vmatprep.subr.mxu0 0.0
    %3085 = vmatpush1.msra.mxu0 0.0
    %3086 = vmatprep.subr.mxu0 0.0
    %3087 = vmatpush1.msra.mxu0 0.0
    %3088 = vmatprep.subr.mxu0 0.0
    %3089 = vmatpush1.msra.mxu0 0.0
    %3090 = vmatprep.subr.mxu0 0.0
    %3091 = vmatpush1.msra.mxu0 0.0
    %3092 = vmatprep.subr.mxu0 0.0
    %3093 = vmatpush1.msra.mxu0 0.0
    %3094 = vmatprep.subr.mxu0 0.0
    %3095 = vmatpush1.msra.mxu0 0.0
    %3096 = vmatprep.subr.mxu0 0.0
    %3097 = vmatpush1.msra.mxu0 0.0
    %3098 = vmatprep.subr.mxu0 0.0
    %3099 = vmatpush1.msra.mxu0 0.0
    %3100 = vmatprep.subr.mxu0 0.0
    %3101 = vmatpush1.msra.mxu0 0.0
    %3102 = vmatprep.subr.mxu0 0.0
    %3103 = vmatpush1.msra.mxu0 0.0
    %3104 = vmatprep.subr.mxu0 0.0
    %3105 = vmatpush1.msra.mxu0 0.0
    %3106 = vmatprep.mubr.f32.mxu0 0.0
    %v3107 = vand.u32 %v3032, 4294901760
    %v3108 = vsub.f32 %v3032, %v3107
    %v3109 = vand.u32 %v3108, 4294901760
    %v3110 = vsub.f32 %v3108, %v3109
    %v3111 = vand.u32 %v3110, 4294901760
    %3112 = vmatmul.mubr.f32.gmra.mrb[0].mxu0 %v3111
    %v3113 = vpop.f32.mrb[0].mxu0
    %v3114 = vadd.f32 %v2873, %v3113
    %v3115 = vpop.f32.mrb[0].mxu0
    %v3116 = vadd.f32 %v2877, %v3115
    %3117 = vdwg.mxu0
    %v3118 = vand.u32 %v2735, 4294901760
    %v3119 = vsub.f32 %v2735, %v3118
    %v3120 = vand.u32 %v3119, 4294901760
    %v3121 = vsub.f32 %v3119, %v3120
    %v3122 = vand.u32 %v3121, 4294901760
    %3123 = vmatprep.subr.mxu0 %v3122
    %v3124 = vand.u32 %v2734, 4294901760
    %v3125 = vsub.f32 %v2734, %v3124
    %v3126 = vand.u32 %v3125, 4294901760
    %v3127 = vsub.f32 %v3125, %v3126
    %v3128 = vand.u32 %v3127, 4294901760
    %3129 = vmatpush1.msra.mxu0 %v3128
    %v3130 = vand.u32 %v2767, 4294901760
    %v3131 = vsub.f32 %v2767, %v3130
    %v3132 = vand.u32 %v3131, 4294901760
    %v3133 = vsub.f32 %v3131, %v3132
    %v3134 = vand.u32 %v3133, 4294901760
    %3135 = vmatprep.subr.mxu0 %v3134
    %v3136 = vand.u32 %v2766, 4294901760
    %v3137 = vsub.f32 %v2766, %v3136
    %v3138 = vand.u32 %v3137, 4294901760
    %v3139 = vsub.f32 %v3137, %v3138
    %v3140 = vand.u32 %v3139, 4294901760
    %3141 = vmatpush1.msra.mxu0 %v3140
    %v3142 = vand.u32 %v2799, 4294901760
    %v3143 = vsub.f32 %v2799, %v3142
    %v3144 = vand.u32 %v3143, 4294901760
    %v3145 = vsub.f32 %v3143, %v3144
    %v3146 = vand.u32 %v3145, 4294901760
    %3147 = vmatprep.subr.mxu0 %v3146
    %v3148 = vand.u32 %v2798, 4294901760
    %v3149 = vsub.f32 %v2798, %v3148
    %v3150 = vand.u32 %v3149, 4294901760
    %v3151 = vsub.f32 %v3149, %v3150
    %v3152 = vand.u32 %v3151, 4294901760
    %3153 = vmatpush1.msra.mxu0 %v3152
    %v3154 = vand.u32 %v2831, 4294901760
    %v3155 = vsub.f32 %v2831, %v3154
    %v3156 = vand.u32 %v3155, 4294901760
    %v3157 = vsub.f32 %v3155, %v3156
    %v3158 = vand.u32 %v3157, 4294901760
    %3159 = vmatprep.subr.mxu0 %v3158
    %v3160 = vand.u32 %v2830, 4294901760
    %v3161 = vsub.f32 %v2830, %v3160
    %v3162 = vand.u32 %v3161, 4294901760
    %v3163 = vsub.f32 %v3161, %v3162
    %v3164 = vand.u32 %v3163, 4294901760
    %3165 = vmatpush1.msra.mxu0 %v3164
    %3166 = vmatprep.subr.mxu0 0.0
    %3167 = vmatpush1.msra.mxu0 0.0
    %3168 = vmatprep.subr.mxu0 0.0
    %3169 = vmatpush1.msra.mxu0 0.0
    %3170 = vmatprep.subr.mxu0 0.0
    %3171 = vmatpush1.msra.mxu0 0.0
    %3172 = vmatprep.subr.mxu0 0.0
    %3173 = vmatpush1.msra.mxu0 0.0
    %3174 = vmatprep.subr.mxu0 0.0
    %3175 = vmatpush1.msra.mxu0 0.0
    %3176 = vmatprep.subr.mxu0 0.0
    %3177 = vmatpush1.msra.mxu0 0.0
    %3178 = vmatprep.subr.mxu0 0.0
    %3179 = vmatpush1.msra.mxu0 0.0
    %3180 = vmatprep.subr.mxu0 0.0
    %3181 = vmatpush1.msra.mxu0 0.0
    %3182 = vmatprep.subr.mxu0 0.0
    %3183 = vmatpush1.msra.mxu0 0.0
    %3184 = vmatprep.subr.mxu0 0.0
    %3185 = vmatpush1.msra.mxu0 0.0
    %3186 = vmatprep.subr.mxu0 0.0
    %3187 = vmatpush1.msra.mxu0 0.0
    %3188 = vmatprep.subr.mxu0 0.0
    %3189 = vmatpush1.msra.mxu0 0.0
    %3190 = vmatprep.subr.mxu0 0.0
    %3191 = vmatpush1.msra.mxu0 0.0
    %3192 = vmatprep.subr.mxu0 0.0
    %3193 = vmatpush1.msra.mxu0 0.0
    %3194 = vmatprep.subr.mxu0 0.0
    %3195 = vmatpush1.msra.mxu0 0.0
    %3196 = vmatprep.subr.mxu0 0.0
    %3197 = vmatpush1.msra.mxu0 0.0
    %3198 = vmatprep.subr.mxu0 0.0
    %3199 = vmatpush1.msra.mxu0 0.0
    %3200 = vmatprep.subr.mxu0 0.0
    %3201 = vmatpush1.msra.mxu0 0.0
    %3202 = vmatprep.subr.mxu0 0.0
    %3203 = vmatpush1.msra.mxu0 0.0
    %3204 = vmatprep.subr.mxu0 0.0
    %3205 = vmatpush1.msra.mxu0 0.0
    %3206 = vmatprep.subr.mxu0 0.0
    %3207 = vmatpush1.msra.mxu0 0.0
    %3208 = vmatprep.subr.mxu0 0.0
    %3209 = vmatpush1.msra.mxu0 0.0
    %3210 = vmatprep.subr.mxu0 0.0
    %3211 = vmatpush1.msra.mxu0 0.0
    %3212 = vmatprep.subr.mxu0 0.0
    %3213 = vmatpush1.msra.mxu0 0.0
    %3214 = vmatprep.subr.mxu0 0.0
    %3215 = vmatpush1.msra.mxu0 0.0
    %3216 = vmatprep.subr.mxu0 0.0
    %3217 = vmatpush1.msra.mxu0 0.0
    %3218 = vmatprep.subr.mxu0 0.0
    %3219 = vmatpush1.msra.mxu0 0.0
    %3220 = vmatprep.subr.mxu0 0.0
    %3221 = vmatpush1.msra.mxu0 0.0
    %3222 = vmatprep.mubr.f32.mxu0 0.0
    %v3223 = vand.u32 %v3032, 4294901760
    %3224 = vmatmul.mubr.f32.gmra.mrb[0].mxu0 %v3223
    %v3225 = vpop.f32.mrb[0].mxu0
    %v3226 = vadd.f32 %v3114, %v3225
    %v3227 = vpop.f32.mrb[0].mxu0
    %v3228 = vadd.f32 %v3116, %v3227
    %3229 = vdwg.mxu0
    %v3230 = vand.u32 %v2735, 4294901760
    %v3231 = vsub.f32 %v2735, %v3230
    %3232 = vmatprep.subr.mxu0 %v3231
    %v3233 = vand.u32 %v2734, 4294901760
    %v3234 = vsub.f32 %v2734, %v3233
    %3235 = vmatpush1.msra.mxu0 %v3234
    %v3236 = vand.u32 %v2767, 4294901760
    %v3237 = vsub.f32 %v2767, %v3236
    %3238 = vmatprep.subr.mxu0 %v3237
    %v3239 = vand.u32 %v2766, 4294901760
    %v3240 = vsub.f32 %v2766, %v3239
    %3241 = vmatpush1.msra.mxu0 %v3240
    %v3242 = vand.u32 %v2799, 4294901760
    %v3243 = vsub.f32 %v2799, %v3242
    %3244 = vmatprep.subr.mxu0 %v3243
    %v3245 = vand.u32 %v2798, 4294901760
    %v3246 = vsub.f32 %v2798, %v3245
    %3247 = vmatpush1.msra.mxu0 %v3246
    %v3248 = vand.u32 %v2831, 4294901760
    %v3249 = vsub.f32 %v2831, %v3248
    %3250 = vmatprep.subr.mxu0 %v3249
    %v3251 = vand.u32 %v2830, 4294901760
    %v3252 = vsub.f32 %v2830, %v3251
    %3253 = vmatpush1.msra.mxu0 %v3252
    %3254 = vmatprep.subr.mxu0 0.0
    %3255 = vmatpush1.msra.mxu0 0.0
    %3256 = vmatprep.subr.mxu0 0.0
    %3257 = vmatpush1.msra.mxu0 0.0
    %3258 = vmatprep.subr.mxu0 0.0
    %3259 = vmatpush1.msra.mxu0 0.0
    %3260 = vmatprep.subr.mxu0 0.0
    %3261 = vmatpush1.msra.mxu0 0.0
    %3262 = vmatprep.subr.mxu0 0.0
    %3263 = vmatpush1.msra.mxu0 0.0
    %3264 = vmatprep.subr.mxu0 0.0
    %3265 = vmatpush1.msra.mxu0 0.0
    %3266 = vmatprep.subr.mxu0 0.0
    %3267 = vmatpush1.msra.mxu0 0.0
    %3268 = vmatprep.subr.mxu0 0.0
    %3269 = vmatpush1.msra.mxu0 0.0
    %3270 = vmatprep.subr.mxu0 0.0
    %3271 = vmatpush1.msra.mxu0 0.0
    %3272 = vmatprep.subr.mxu0 0.0
    %3273 = vmatpush1.msra.mxu0 0.0
    %3274 = vmatprep.subr.mxu0 0.0
    %3275 = vmatpush1.msra.mxu0 0.0
    %3276 = vmatprep.subr.mxu0 0.0
    %3277 = vmatpush1.msra.mxu0 0.0
    %3278 = vmatprep.subr.mxu0 0.0
    %3279 = vmatpush1.msra.mxu0 0.0
    %3280 = vmatprep.subr.mxu0 0.0
    %3281 = vmatpush1.msra.mxu0 0.0
    %3282 = vmatprep.subr.mxu0 0.0
    %3283 = vmatpush1.msra.mxu0 0.0
    %3284 = vmatprep.subr.mxu0 0.0
    %3285 = vmatpush1.msra.mxu0 0.0
    %3286 = vmatprep.subr.mxu0 0.0
    %3287 = vmatpush1.msra.mxu0 0.0
    %3288 = vmatprep.subr.mxu0 0.0
    %3289 = vmatpush1.msra.mxu0 0.0
    %3290 = vmatprep.subr.mxu0 0.0
    %3291 = vmatpush1.msra.mxu0 0.0
    %3292 = vmatprep.subr.mxu0 0.0
    %3293 = vmatpush1.msra.mxu0 0.0
    %3294 = vmatprep.subr.mxu0 0.0
    %3295 = vmatpush1.msra.mxu0 0.0
    %3296 = vmatprep.subr.mxu0 0.0
    %3297 = vmatpush1.msra.mxu0 0.0
    %3298 = vmatprep.subr.mxu0 0.0
    %3299 = vmatpush1.msra.mxu0 0.0
    %3300 = vmatprep.subr.mxu0 0.0
    %3301 = vmatpush1.msra.mxu0 0.0
    %3302 = vmatprep.subr.mxu0 0.0
    %3303 = vmatpush1.msra.mxu0 0.0
    %3304 = vmatprep.subr.mxu0 0.0
    %3305 = vmatpush1.msra.mxu0 0.0
    %3306 = vmatprep.subr.mxu0 0.0
    %3307 = vmatpush1.msra.mxu0 0.0
    %3308 = vmatprep.subr.mxu0 0.0
    %3309 = vmatpush1.msra.mxu0 0.0
    %3310 = vmatprep.mubr.f32.mxu0 0.0
    %v3311 = vand.u32 %v3032, 4294901760
    %v3312 = vsub.f32 %v3032, %v3311
    %3313 = vmatmul.mubr.f32.gmra.mrb[0].mxu0 %v3312
    %v3314 = vpop.f32.mrb[0].mxu0
    %v3315 = vadd.f32 %v3226, %v3314
    %v3316 = vpop.f32.mrb[0].mxu0
    %v3317 = vadd.f32 %v3228, %v3316
    %3318 = vdwg.mxu0
    %v3319 = vand.u32 %v2735, 4294901760
    %3320 = vmatprep.subr.mxu0 %v3319
    %v3321 = vand.u32 %v2734, 4294901760
    %3322 = vmatpush1.msra.mxu0 %v3321
    %v3323 = vand.u32 %v2767, 4294901760
    %3324 = vmatprep.subr.mxu0 %v3323
    %v3325 = vand.u32 %v2766, 4294901760
    %3326 = vmatpush1.msra.mxu0 %v3325
    %v3327 = vand.u32 %v2799, 4294901760
    %3328 = vmatprep.subr.mxu0 %v3327
    %v3329 = vand.u32 %v2798, 4294901760
    %3330 = vmatpush1.msra.mxu0 %v3329
    %v3331 = vand.u32 %v2831, 4294901760
    %3332 = vmatprep.subr.mxu0 %v3331
    %v3333 = vand.u32 %v2830, 4294901760
    %3334 = vmatpush1.msra.mxu0 %v3333
    %3335 = vmatprep.subr.mxu0 0.0
    %3336 = vmatpush1.msra.mxu0 0.0
    %3337 = vmatprep.subr.mxu0 0.0
    %3338 = vmatpush1.msra.mxu0 0.0
    %3339 = vmatprep.subr.mxu0 0.0
    %3340 = vmatpush1.msra.mxu0 0.0
    %3341 = vmatprep.subr.mxu0 0.0
    %3342 = vmatpush1.msra.mxu0 0.0
    %3343 = vmatprep.subr.mxu0 0.0
    %3344 = vmatpush1.msra.mxu0 0.0
    %3345 = vmatprep.subr.mxu0 0.0
    %3346 = vmatpush1.msra.mxu0 0.0
    %3347 = vmatprep.subr.mxu0 0.0
    %3348 = vmatpush1.msra.mxu0 0.0
    %3349 = vmatprep.subr.mxu0 0.0
    %3350 = vmatpush1.msra.mxu0 0.0
    %3351 = vmatprep.subr.mxu0 0.0
    %3352 = vmatpush1.msra.mxu0 0.0
    %3353 = vmatprep.subr.mxu0 0.0
    %3354 = vmatpush1.msra.mxu0 0.0
    %3355 = vmatprep.subr.mxu0 0.0
    %3356 = vmatpush1.msra.mxu0 0.0
    %3357 = vmatprep.subr.mxu0 0.0
    %3358 = vmatpush1.msra.mxu0 0.0
    %3359 = vmatprep.subr.mxu0 0.0
    %3360 = vmatpush1.msra.mxu0 0.0
    %3361 = vmatprep.subr.mxu0 0.0
    %3362 = vmatpush1.msra.mxu0 0.0
    %3363 = vmatprep.subr.mxu0 0.0
    %3364 = vmatpush1.msra.mxu0 0.0
    %3365 = vmatprep.subr.mxu0 0.0
    %3366 = vmatpush1.msra.mxu0 0.0
    %3367 = vmatprep.subr.mxu0 0.0
    %3368 = vmatpush1.msra.mxu0 0.0
    %3369 = vmatprep.subr.mxu0 0.0
    %3370 = vmatpush1.msra.mxu0 0.0
    %3371 = vmatprep.subr.mxu0 0.0
    %3372 = vmatpush1.msra.mxu0 0.0
    %3373 = vmatprep.subr.mxu0 0.0
    %3374 = vmatpush1.msra.mxu0 0.0
    %3375 = vmatprep.subr.mxu0 0.0
    %3376 = vmatpush1.msra.mxu0 0.0
    %3377 = vmatprep.subr.mxu0 0.0
    %3378 = vmatpush1.msra.mxu0 0.0
    %3379 = vmatprep.subr.mxu0 0.0
    %3380 = vmatpush1.msra.mxu0 0.0
    %3381 = vmatprep.subr.mxu0 0.0
    %3382 = vmatpush1.msra.mxu0 0.0
    %3383 = vmatprep.subr.mxu0 0.0
    %3384 = vmatpush1.msra.mxu0 0.0
    %3385 = vmatprep.subr.mxu0 0.0
    %3386 = vmatpush1.msra.mxu0 0.0
    %3387 = vmatprep.subr.mxu0 0.0
    %3388 = vmatpush1.msra.mxu0 0.0
    %3389 = vmatprep.subr.mxu0 0.0
    %3390 = vmatpush1.msra.mxu0 0.0
    %3391 = vmatprep.mubr.f32.mxu0 0.0
    %v3392 = vand.u32 %v3032, 4294901760
    %v3393 = vsub.f32 %v3032, %v3392
    %v3394 = vand.u32 %v3393, 4294901760
    %3395 = vmatmul.mubr.f32.gmra.mrb[0].mxu0 %v3394
    %v3396 = vpop.f32.mrb[0].mxu0
    %v3397 = vadd.f32 %v3315, %v3396
    %v3398 = vpop.f32.mrb[0].mxu0
    %v3399 = vadd.f32 %v3317, %v3398
    %3400 = vdwg.mxu0
    %v3401 = vand.u32 %v2735, 4294901760
    %v3402 = vsub.f32 %v2735, %v3401
    %v3403 = vand.u32 %v3402, 4294901760
    %3404 = vmatprep.subr.mxu0 %v3403
    %v3405 = vand.u32 %v2734, 4294901760
    %v3406 = vsub.f32 %v2734, %v3405
    %v3407 = vand.u32 %v3406, 4294901760
    %3408 = vmatpush1.msra.mxu0 %v3407
    %v3409 = vand.u32 %v2767, 4294901760
    %v3410 = vsub.f32 %v2767, %v3409
    %v3411 = vand.u32 %v3410, 4294901760
    %3412 = vmatprep.subr.mxu0 %v3411
    %v3413 = vand.u32 %v2766, 4294901760
    %v3414 = vsub.f32 %v2766, %v3413
    %v3415 = vand.u32 %v3414, 4294901760
    %3416 = vmatpush1.msra.mxu0 %v3415
    %v3417 = vand.u32 %v2799, 4294901760
    %v3418 = vsub.f32 %v2799, %v3417
    %v3419 = vand.u32 %v3418, 4294901760
    %3420 = vmatprep.subr.mxu0 %v3419
    %v3421 = vand.u32 %v2798, 4294901760
    %v3422 = vsub.f32 %v2798, %v3421
    %v3423 = vand.u32 %v3422, 4294901760
    %3424 = vmatpush1.msra.mxu0 %v3423
    %v3425 = vand.u32 %v2831, 4294901760
    %v3426 = vsub.f32 %v2831, %v3425
    %v3427 = vand.u32 %v3426, 4294901760
    %3428 = vmatprep.subr.mxu0 %v3427
    %v3429 = vand.u32 %v2830, 4294901760
    %v3430 = vsub.f32 %v2830, %v3429
    %v3431 = vand.u32 %v3430, 4294901760
    %3432 = vmatpush1.msra.mxu0 %v3431
    %3433 = vmatprep.subr.mxu0 0.0
    %3434 = vmatpush1.msra.mxu0 0.0
    %3435 = vmatprep.subr.mxu0 0.0
    %3436 = vmatpush1.msra.mxu0 0.0
    %3437 = vmatprep.subr.mxu0 0.0
    %3438 = vmatpush1.msra.mxu0 0.0
    %3439 = vmatprep.subr.mxu0 0.0
    %3440 = vmatpush1.msra.mxu0 0.0
    %3441 = vmatprep.subr.mxu0 0.0
    %3442 = vmatpush1.msra.mxu0 0.0
    %3443 = vmatprep.subr.mxu0 0.0
    %3444 = vmatpush1.msra.mxu0 0.0
    %3445 = vmatprep.subr.mxu0 0.0
    %3446 = vmatpush1.msra.mxu0 0.0
    %3447 = vmatprep.subr.mxu0 0.0
    %3448 = vmatpush1.msra.mxu0 0.0
    %3449 = vmatprep.subr.mxu0 0.0
    %3450 = vmatpush1.msra.mxu0 0.0
    %3451 = vmatprep.subr.mxu0 0.0
    %3452 = vmatpush1.msra.mxu0 0.0
    %3453 = vmatprep.subr.mxu0 0.0
    %3454 = vmatpush1.msra.mxu0 0.0
    %3455 = vmatprep.subr.mxu0 0.0
    %3456 = vmatpush1.msra.mxu0 0.0
    %3457 = vmatprep.subr.mxu0 0.0
    %3458 = vmatpush1.msra.mxu0 0.0
    %3459 = vmatprep.subr.mxu0 0.0
    %3460 = vmatpush1.msra.mxu0 0.0
    %3461 = vmatprep.subr.mxu0 0.0
    %3462 = vmatpush1.msra.mxu0 0.0
    %3463 = vmatprep.subr.mxu0 0.0
    %3464 = vmatpush1.msra.mxu0 0.0
    %3465 = vmatprep.subr.mxu0 0.0
    %3466 = vmatpush1.msra.mxu0 0.0
    %3467 = vmatprep.subr.mxu0 0.0
    %3468 = vmatpush1.msra.mxu0 0.0
    %3469 = vmatprep.subr.mxu0 0.0
    %3470 = vmatpush1.msra.mxu0 0.0
    %3471 = vmatprep.subr.mxu0 0.0
    %3472 = vmatpush1.msra.mxu0 0.0
    %3473 = vmatprep.subr.mxu0 0.0
    %3474 = vmatpush1.msra.mxu0 0.0
    %3475 = vmatprep.subr.mxu0 0.0
    %3476 = vmatpush1.msra.mxu0 0.0
    %3477 = vmatprep.subr.mxu0 0.0
    %3478 = vmatpush1.msra.mxu0 0.0
    %3479 = vmatprep.subr.mxu0 0.0
    %3480 = vmatpush1.msra.mxu0 0.0
    %3481 = vmatprep.subr.mxu0 0.0
    %3482 = vmatpush1.msra.mxu0 0.0
    %3483 = vmatprep.subr.mxu0 0.0
    %3484 = vmatpush1.msra.mxu0 0.0
    %3485 = vmatprep.subr.mxu0 0.0
    %3486 = vmatpush1.msra.mxu0 0.0
    %3487 = vmatprep.subr.mxu0 0.0
    %3488 = vmatpush1.msra.mxu0 0.0
    %3489 = vmatprep.mubr.f32.mxu0 0.0
    %v3490 = vand.u32 %v3032, 4294901760
    %3491 = vmatmul.mubr.f32.gmra.mrb[0].mxu0 %v3490
    %v3492 = vpop.f32.mrb[0].mxu0
    %v3493 = vadd.f32 %v3397, %v3492
    %v3494 = vpop.f32.mrb[0].mxu0
    %v3495 = vadd.f32 %v3399, %v3494
    %3496 = vdwg.mxu0
    %v3497 = vand.u32 %v2735, 4294901760
    %3498 = vmatprep.subr.mxu0 %v3497
    %v3499 = vand.u32 %v2734, 4294901760
    %3500 = vmatpush1.msra.mxu0 %v3499
    %v3501 = vand.u32 %v2767, 4294901760
    %3502 = vmatprep.subr.mxu0 %v3501
    %v3503 = vand.u32 %v2766, 4294901760
    %3504 = vmatpush1.msra.mxu0 %v3503
    %v3505 = vand.u32 %v2799, 4294901760
    %3506 = vmatprep.subr.mxu0 %v3505
    %v3507 = vand.u32 %v2798, 4294901760
    %3508 = vmatpush1.msra.mxu0 %v3507
    %v3509 = vand.u32 %v2831, 4294901760
    %3510 = vmatprep.subr.mxu0 %v3509
    %v3511 = vand.u32 %v2830, 4294901760
    %3512 = vmatpush1.msra.mxu0 %v3511
    %3513 = vmatprep.subr.mxu0 0.0
    %3514 = vmatpush1.msra.mxu0 0.0
    %3515 = vmatprep.subr.mxu0 0.0
    %3516 = vmatpush1.msra.mxu0 0.0
    %3517 = vmatprep.subr.mxu0 0.0
    %3518 = vmatpush1.msra.mxu0 0.0
    %3519 = vmatprep.subr.mxu0 0.0
    %3520 = vmatpush1.msra.mxu0 0.0
    %3521 = vmatprep.subr.mxu0 0.0
    %3522 = vmatpush1.msra.mxu0 0.0
    %3523 = vmatprep.subr.mxu0 0.0
    %3524 = vmatpush1.msra.mxu0 0.0
    %3525 = vmatprep.subr.mxu0 0.0
    %3526 = vmatpush1.msra.mxu0 0.0
    %3527 = vmatprep.subr.mxu0 0.0
    %3528 = vmatpush1.msra.mxu0 0.0
    %3529 = vmatprep.subr.mxu0 0.0
    %3530 = vmatpush1.msra.mxu0 0.0
    %3531 = vmatprep.subr.mxu0 0.0
    %3532 = vmatpush1.msra.mxu0 0.0
    %3533 = vmatprep.subr.mxu0 0.0
    %3534 = vmatpush1.msra.mxu0 0.0
    %3535 = vmatprep.subr.mxu0 0.0
    %3536 = vmatpush1.msra.mxu0 0.0
    %3537 = vmatprep.subr.mxu0 0.0
    %3538 = vmatpush1.msra.mxu0 0.0
    %3539 = vmatprep.subr.mxu0 0.0
    %3540 = vmatpush1.msra.mxu0 0.0
    %3541 = vmatprep.subr.mxu0 0.0
    %3542 = vmatpush1.msra.mxu0 0.0
    %3543 = vmatprep.subr.mxu0 0.0
    %3544 = vmatpush1.msra.mxu0 0.0
    %3545 = vmatprep.subr.mxu0 0.0
    %3546 = vmatpush1.msra.mxu0 0.0
    %3547 = vmatprep.subr.mxu0 0.0
    %3548 = vmatpush1.msra.mxu0 0.0
    %3549 = vmatprep.subr.mxu0 0.0
    %3550 = vmatpush1.msra.mxu0 0.0
    %3551 = vmatprep.subr.mxu0 0.0
    %3552 = vmatpush1.msra.mxu0 0.0
    %3553 = vmatprep.subr.mxu0 0.0
    %3554 = vmatpush1.msra.mxu0 0.0
    %3555 = vmatprep.subr.mxu0 0.0
    %3556 = vmatpush1.msra.mxu0 0.0
    %3557 = vmatprep.subr.mxu0 0.0
    %3558 = vmatpush1.msra.mxu0 0.0
    %3559 = vmatprep.subr.mxu0 0.0
    %3560 = vmatpush1.msra.mxu0 0.0
    %3561 = vmatprep.subr.mxu0 0.0
    %3562 = vmatpush1.msra.mxu0 0.0
    %3563 = vmatprep.subr.mxu0 0.0
    %3564 = vmatpush1.msra.mxu0 0.0
    %3565 = vmatprep.subr.mxu0 0.0
    %3566 = vmatpush1.msra.mxu0 0.0
    %3567 = vmatprep.subr.mxu0 0.0
    %3568 = vmatpush1.msra.mxu0 0.0
    %3569 = vmatprep.mubr.f32.mxu0 0.0
    %v3570 = vand.u32 %v3032, 4294901760
    %3571 = vmatmul.mubr.f32.gmra.mrb[0].mxu0 %v3570
    %v3572 = vpop.f32.mrb[0].mxu0
    %v3573 = vadd.f32 %v3493, %v3572
    %v3574 = vpop.f32.mrb[0].mxu0
    %v3575 = vadd.f32 %v3495, %v3574
    %3576 = vdwg.mxu0
    %v3577 = vand.u32 %v2737, 4294901760
    %3578 = vmatprep.subr.mxu0 %v3577
    %v3579 = vand.u32 %v2736, 4294901760
    %3580 = vmatpush1.msra.mxu0 %v3579
    %v3581 = vand.u32 %v2769, 4294901760
    %3582 = vmatprep.subr.mxu0 %v3581
    %v3583 = vand.u32 %v2768, 4294901760
    %3584 = vmatpush1.msra.mxu0 %v3583
    %v3585 = vand.u32 %v2801, 4294901760
    %3586 = vmatprep.subr.mxu0 %v3585
    %v3587 = vand.u32 %v2800, 4294901760
    %3588 = vmatpush1.msra.mxu0 %v3587
    %v3589 = vand.u32 %v2833, 4294901760
    %3590 = vmatprep.subr.mxu0 %v3589
    %v3591 = vand.u32 %v2832, 4294901760
    %3592 = vmatpush1.msra.mxu0 %v3591
    %3593 = vmatprep.subr.mxu0 0.0
    %3594 = vmatpush1.msra.mxu0 0.0
    %3595 = vmatprep.subr.mxu0 0.0
    %3596 = vmatpush1.msra.mxu0 0.0
    %3597 = vmatprep.subr.mxu0 0.0
    %3598 = vmatpush1.msra.mxu0 0.0
    %3599 = vmatprep.subr.mxu0 0.0
    %3600 = vmatpush1.msra.mxu0 0.0
    %3601 = vmatprep.subr.mxu0 0.0
    %3602 = vmatpush1.msra.mxu0 0.0
    %3603 = vmatprep.subr.mxu0 0.0
    %3604 = vmatpush1.msra.mxu0 0.0
    %3605 = vmatprep.subr.mxu0 0.0
    %3606 = vmatpush1.msra.mxu0 0.0
    %3607 = vmatprep.subr.mxu0 0.0
    %3608 = vmatpush1.msra.mxu0 0.0
    %3609 = vmatprep.subr.mxu0 0.0
    %3610 = vmatpush1.msra.mxu0 0.0
    %3611 = vmatprep.subr.mxu0 0.0
    %3612 = vmatpush1.msra.mxu0 0.0
    %3613 = vmatprep.subr.mxu0 0.0
    %3614 = vmatpush1.msra.mxu0 0.0
    %3615 = vmatprep.subr.mxu0 0.0
    %3616 = vmatpush1.msra.mxu0 0.0
    %3617 = vmatprep.subr.mxu0 0.0
    %3618 = vmatpush1.msra.mxu0 0.0
    %3619 = vmatprep.subr.mxu0 0.0
    %3620 = vmatpush1.msra.mxu0 0.0
    %3621 = vmatprep.subr.mxu0 0.0
    %3622 = vmatpush1.msra.mxu0 0.0
    %3623 = vmatprep.subr.mxu0 0.0
    %3624 = vmatpush1.msra.mxu0 0.0
    %3625 = vmatprep.subr.mxu0 0.0
    %3626 = vmatpush1.msra.mxu0 0.0
    %3627 = vmatprep.subr.mxu0 0.0
    %3628 = vmatpush1.msra.mxu0 0.0
    %3629 = vmatprep.subr.mxu0 0.0
    %3630 = vmatpush1.msra.mxu0 0.0
    %3631 = vmatprep.subr.mxu0 0.0
    %3632 = vmatpush1.msra.mxu0 0.0
    %3633 = vmatprep.subr.mxu0 0.0
    %3634 = vmatpush1.msra.mxu0 0.0
    %3635 = vmatprep.subr.mxu0 0.0
    %3636 = vmatpush1.msra.mxu0 0.0
    %3637 = vmatprep.subr.mxu0 0.0
    %3638 = vmatpush1.msra.mxu0 0.0
    %3639 = vmatprep.subr.mxu0 0.0
    %3640 = vmatpush1.msra.mxu0 0.0
    %3641 = vmatprep.subr.mxu0 0.0
    %3642 = vmatpush1.msra.mxu0 0.0
    %3643 = vmatprep.subr.mxu0 0.0
    %3644 = vmatpush1.msra.mxu0 0.0
    %3645 = vmatprep.subr.mxu0 0.0
    %3646 = vmatpush1.msra.mxu0 0.0
    %3647 = vmatprep.subr.mxu0 0.0
    %3648 = vmatpush1.msra.mxu0 0.0
    %3649 = vmatprep.mubr.f32.mxu0 0.0
    %v3650 = vand.u32 %v3032, 4294901760
    %v3651 = vsub.f32 %v3032, %v3650
    %v3652 = vand.u32 %v3651, 4294901760
    %v3653 = vsub.f32 %v3651, %v3652
    %v3654 = vand.u32 %v3653, 4294901760
    %3655 = vmatmul.mubr.f32.gmra.mrb[0].mxu0 %v3654
    %v3656 = vpop.f32.mrb[0].mxu0
    %v3657 = vadd.f32 %v2881, %v3656
    %v3658 = vpop.f32.mrb[0].mxu0
    %v3659 = vadd.f32 %v2885, %v3658
    %3660 = vdwg.mxu0
    %v3661 = vand.u32 %v2737, 4294901760
    %v3662 = vsub.f32 %v2737, %v3661
    %v3663 = vand.u32 %v3662, 4294901760
    %v3664 = vsub.f32 %v3662, %v3663
    %v3665 = vand.u32 %v3664, 4294901760
    %3666 = vmatprep.subr.mxu0 %v3665
    %v3667 = vand.u32 %v2736, 4294901760
    %v3668 = vsub.f32 %v2736, %v3667
    %v3669 = vand.u32 %v3668, 4294901760
    %v3670 = vsub.f32 %v3668, %v3669
    %v3671 = vand.u32 %v3670, 4294901760
    %3672 = vmatpush1.msra.mxu0 %v3671
    %v3673 = vand.u32 %v2769, 4294901760
    %v3674 = vsub.f32 %v2769, %v3673
    %v3675 = vand.u32 %v3674, 4294901760
    %v3676 = vsub.f32 %v3674, %v3675
    %v3677 = vand.u32 %v3676, 4294901760
    %3678 = vmatprep.subr.mxu0 %v3677
    %v3679 = vand.u32 %v2768, 4294901760
    %v3680 = vsub.f32 %v2768, %v3679
    %v3681 = vand.u32 %v3680, 4294901760
    %v3682 = vsub.f32 %v3680, %v3681
    %v3683 = vand.u32 %v3682, 4294901760
    %3684 = vmatpush1.msra.mxu0 %v3683
    %v3685 = vand.u32 %v2801, 4294901760
    %v3686 = vsub.f32 %v2801, %v3685
    %v3687 = vand.u32 %v3686, 4294901760
    %v3688 = vsub.f32 %v3686, %v3687
    %v3689 = vand.u32 %v3688, 4294901760
    %3690 = vmatprep.subr.mxu0 %v3689
    %v3691 = vand.u32 %v2800, 4294901760
    %v3692 = vsub.f32 %v2800, %v3691
    %v3693 = vand.u32 %v3692, 4294901760
    %v3694 = vsub.f32 %v3692, %v3693
    %v3695 = vand.u32 %v3694, 4294901760
    %3696 = vmatpush1.msra.mxu0 %v3695
    %v3697 = vand.u32 %v2833, 4294901760
    %v3698 = vsub.f32 %v2833, %v3697
    %v3699 = vand.u32 %v3698, 4294901760
    %v3700 = vsub.f32 %v3698, %v3699
    %v3701 = vand.u32 %v3700, 4294901760
    %3702 = vmatprep.subr.mxu0 %v3701
    %v3703 = vand.u32 %v2832, 4294901760
    %v3704 = vsub.f32 %v2832, %v3703
    %v3705 = vand.u32 %v3704, 4294901760
    %v3706 = vsub.f32 %v3704, %v3705
    %v3707 = vand.u32 %v3706, 4294901760
    %3708 = vmatpush1.msra.mxu0 %v3707
    %3709 = vmatprep.subr.mxu0 0.0
    %3710 = vmatpush1.msra.mxu0 0.0
    %3711 = vmatprep.subr.mxu0 0.0
    %3712 = vmatpush1.msra.mxu0 0.0
    %3713 = vmatprep.subr.mxu0 0.0
    %3714 = vmatpush1.msra.mxu0 0.0
    %3715 = vmatprep.subr.mxu0 0.0
    %3716 = vmatpush1.msra.mxu0 0.0
    %3717 = vmatprep.subr.mxu0 0.0
    %3718 = vmatpush1.msra.mxu0 0.0
    %3719 = vmatprep.subr.mxu0 0.0
    %3720 = vmatpush1.msra.mxu0 0.0
    %3721 = vmatprep.subr.mxu0 0.0
    %3722 = vmatpush1.msra.mxu0 0.0
    %3723 = vmatprep.subr.mxu0 0.0
    %3724 = vmatpush1.msra.mxu0 0.0
    %3725 = vmatprep.subr.mxu0 0.0
    %3726 = vmatpush1.msra.mxu0 0.0
    %3727 = vmatprep.subr.mxu0 0.0
    %3728 = vmatpush1.msra.mxu0 0.0
    %3729 = vmatprep.subr.mxu0 0.0
    %3730 = vmatpush1.msra.mxu0 0.0
    %3731 = vmatprep.subr.mxu0 0.0
    %3732 = vmatpush1.msra.mxu0 0.0
    %3733 = vmatprep.subr.mxu0 0.0
    %3734 = vmatpush1.msra.mxu0 0.0
    %3735 = vmatprep.subr.mxu0 0.0
    %3736 = vmatpush1.msra.mxu0 0.0
    %3737 = vmatprep.subr.mxu0 0.0
    %3738 = vmatpush1.msra.mxu0 0.0
    %3739 = vmatprep.subr.mxu0 0.0
    %3740 = vmatpush1.msra.mxu0 0.0
    %3741 = vmatprep.subr.mxu0 0.0
    %3742 = vmatpush1.msra.mxu0 0.0
    %3743 = vmatprep.subr.mxu0 0.0
    %3744 = vmatpush1.msra.mxu0 0.0
    %3745 = vmatprep.subr.mxu0 0.0
    %3746 = vmatpush1.msra.mxu0 0.0
    %3747 = vmatprep.subr.mxu0 0.0
    %3748 = vmatpush1.msra.mxu0 0.0
    %3749 = vmatprep.subr.mxu0 0.0
    %3750 = vmatpush1.msra.mxu0 0.0
    %3751 = vmatprep.subr.mxu0 0.0
    %3752 = vmatpush1.msra.mxu0 0.0
    %3753 = vmatprep.subr.mxu0 0.0
    %3754 = vmatpush1.msra.mxu0 0.0
    %3755 = vmatprep.subr.mxu0 0.0
    %3756 = vmatpush1.msra.mxu0 0.0
    %3757 = vmatprep.subr.mxu0 0.0
    %3758 = vmatpush1.msra.mxu0 0.0
    %3759 = vmatprep.subr.mxu0 0.0
    %3760 = vmatpush1.msra.mxu0 0.0
    %3761 = vmatprep.subr.mxu0 0.0
    %3762 = vmatpush1.msra.mxu0 0.0
    %3763 = vmatprep.subr.mxu0 0.0
    %3764 = vmatpush1.msra.mxu0 0.0
    %3765 = vmatprep.mubr.f32.mxu0 0.0
    %v3766 = vand.u32 %v3032, 4294901760
    %3767 = vmatmul.mubr.f32.gmra.mrb[0].mxu0 %v3766
    %v3768 = vpop.f32.mrb[0].mxu0
    %v3769 = vadd.f32 %v3657, %v3768
    %v3770 = vpop.f32.mrb[0].mxu0
    %v3771 = vadd.f32 %v3659, %v3770
    %3772 = vdwg.mxu0
    %v3773 = vand.u32 %v2737, 4294901760
    %v3774 = vsub.f32 %v2737, %v3773
    %3775 = vmatprep.subr.mxu0 %v3774
    %v3776 = vand.u32 %v2736, 4294901760
    %v3777 = vsub.f32 %v2736, %v3776
    %3778 = vmatpush1.msra.mxu0 %v3777
    %v3779 = vand.u32 %v2769, 4294901760
    %v3780 = vsub.f32 %v2769, %v3779
    %3781 = vmatprep.subr.mxu0 %v3780
    %v3782 = vand.u32 %v2768, 4294901760
    %v3783 = vsub.f32 %v2768, %v3782
    %3784 = vmatpush1.msra.mxu0 %v3783
    %v3785 = vand.u32 %v2801, 4294901760
    %v3786 = vsub.f32 %v2801, %v3785
    %3787 = vmatprep.subr.mxu0 %v3786
    %v3788 = vand.u32 %v2800, 4294901760
    %v3789 = vsub.f32 %v2800, %v3788
    %3790 = vmatpush1.msra.mxu0 %v3789
    %v3791 = vand.u32 %v2833, 4294901760
    %v3792 = vsub.f32 %v2833, %v3791
    %3793 = vmatprep.subr.mxu0 %v3792
    %v3794 = vand.u32 %v2832, 4294901760
    %v3795 = vsub.f32 %v2832, %v3794
    %3796 = vmatpush1.msra.mxu0 %v3795
    %3797 = vmatprep.subr.mxu0 0.0
    %3798 = vmatpush1.msra.mxu0 0.0
    %3799 = vmatprep.subr.mxu0 0.0
    %3800 = vmatpush1.msra.mxu0 0.0
    %3801 = vmatprep.subr.mxu0 0.0
    %3802 = vmatpush1.msra.mxu0 0.0
    %3803 = vmatprep.subr.mxu0 0.0
    %3804 = vmatpush1.msra.mxu0 0.0
    %3805 = vmatprep.subr.mxu0 0.0
    %3806 = vmatpush1.msra.mxu0 0.0
    %3807 = vmatprep.subr.mxu0 0.0
    %3808 = vmatpush1.msra.mxu0 0.0
    %3809 = vmatprep.subr.mxu0 0.0
    %3810 = vmatpush1.msra.mxu0 0.0
    %3811 = vmatprep.subr.mxu0 0.0
    %3812 = vmatpush1.msra.mxu0 0.0
    %3813 = vmatprep.subr.mxu0 0.0
    %3814 = vmatpush1.msra.mxu0 0.0
    %3815 = vmatprep.subr.mxu0 0.0
    %3816 = vmatpush1.msra.mxu0 0.0
    %3817 = vmatprep.subr.mxu0 0.0
    %3818 = vmatpush1.msra.mxu0 0.0
    %3819 = vmatprep.subr.mxu0 0.0
    %3820 = vmatpush1.msra.mxu0 0.0
    %3821 = vmatprep.subr.mxu0 0.0
    %3822 = vmatpush1.msra.mxu0 0.0
    %3823 = vmatprep.subr.mxu0 0.0
    %3824 = vmatpush1.msra.mxu0 0.0
    %3825 = vmatprep.subr.mxu0 0.0
    %3826 = vmatpush1.msra.mxu0 0.0
    %3827 = vmatprep.subr.mxu0 0.0
    %3828 = vmatpush1.msra.mxu0 0.0
    %3829 = vmatprep.subr.mxu0 0.0
    %3830 = vmatpush1.msra.mxu0 0.0
    %3831 = vmatprep.subr.mxu0 0.0
    %3832 = vmatpush1.msra.mxu0 0.0
    %3833 = vmatprep.subr.mxu0 0.0
    %3834 = vmatpush1.msra.mxu0 0.0
    %3835 = vmatprep.subr.mxu0 0.0
    %3836 = vmatpush1.msra.mxu0 0.0
    %3837 = vmatprep.subr.mxu0 0.0
    %3838 = vmatpush1.msra.mxu0 0.0
    %3839 = vmatprep.subr.mxu0 0.0
    %3840 = vmatpush1.msra.mxu0 0.0
    %3841 = vmatprep.subr.mxu0 0.0
    %3842 = vmatpush1.msra.mxu0 0.0
    %3843 = vmatprep.subr.mxu0 0.0
    %3844 = vmatpush1.msra.mxu0 0.0
    %3845 = vmatprep.subr.mxu0 0.0
    %3846 = vmatpush1.msra.mxu0 0.0
    %3847 = vmatprep.subr.mxu0 0.0
    %3848 = vmatpush1.msra.mxu0 0.0
    %3849 = vmatprep.subr.mxu0 0.0
    %3850 = vmatpush1.msra.mxu0 0.0
    %3851 = vmatprep.subr.mxu0 0.0
    %3852 = vmatpush1.msra.mxu0 0.0
    %3853 = vmatprep.mubr.f32.mxu0 0.0
    %v3854 = vand.u32 %v3032, 4294901760
    %v3855 = vsub.f32 %v3032, %v3854
    %3856 = vmatmul.mubr.f32.gmra.mrb[0].mxu0 %v3855
    %v3857 = vpop.f32.mrb[0].mxu0
    %v3858 = vadd.f32 %v3769, %v3857
    %v3859 = vpop.f32.mrb[0].mxu0
    %v3860 = vadd.f32 %v3771, %v3859
    %3861 = vdwg.mxu0
    %v3862 = vand.u32 %v2737, 4294901760
    %3863 = vmatprep.subr.mxu0 %v3862
    %v3864 = vand.u32 %v2736, 4294901760
    %3865 = vmatpush1.msra.mxu0 %v3864
    %v3866 = vand.u32 %v2769, 4294901760
    %3867 = vmatprep.subr.mxu0 %v3866
    %v3868 = vand.u32 %v2768, 4294901760
    %3869 = vmatpush1.msra.mxu0 %v3868
    %v3870 = vand.u32 %v2801, 4294901760
    %3871 = vmatprep.subr.mxu0 %v3870
    %v3872 = vand.u32 %v2800, 4294901760
    %3873 = vmatpush1.msra.mxu0 %v3872
    %v3874 = vand.u32 %v2833, 4294901760
    %3875 = vmatprep.subr.mxu0 %v3874
    %v3876 = vand.u32 %v2832, 4294901760
    %3877 = vmatpush1.msra.mxu0 %v3876
    %3878 = vmatprep.subr.mxu0 0.0
    %3879 = vmatpush1.msra.mxu0 0.0
    %3880 = vmatprep.subr.mxu0 0.0
    %3881 = vmatpush1.msra.mxu0 0.0
    %3882 = vmatprep.subr.mxu0 0.0
    %3883 = vmatpush1.msra.mxu0 0.0
    %3884 = vmatprep.subr.mxu0 0.0
    %3885 = vmatpush1.msra.mxu0 0.0
    %3886 = vmatprep.subr.mxu0 0.0
    %3887 = vmatpush1.msra.mxu0 0.0
    %3888 = vmatprep.subr.mxu0 0.0
    %3889 = vmatpush1.msra.mxu0 0.0
    %3890 = vmatprep.subr.mxu0 0.0
    %3891 = vmatpush1.msra.mxu0 0.0
    %3892 = vmatprep.subr.mxu0 0.0
    %3893 = vmatpush1.msra.mxu0 0.0
    %3894 = vmatprep.subr.mxu0 0.0
    %3895 = vmatpush1.msra.mxu0 0.0
    %3896 = vmatprep.subr.mxu0 0.0
    %3897 = vmatpush1.msra.mxu0 0.0
    %3898 = vmatprep.subr.mxu0 0.0
    %3899 = vmatpush1.msra.mxu0 0.0
    %3900 = vmatprep.subr.mxu0 0.0
    %3901 = vmatpush1.msra.mxu0 0.0
    %3902 = vmatprep.subr.mxu0 0.0
    %3903 = vmatpush1.msra.mxu0 0.0
    %3904 = vmatprep.subr.mxu0 0.0
    %3905 = vmatpush1.msra.mxu0 0.0
    %3906 = vmatprep.subr.mxu0 0.0
    %3907 = vmatpush1.msra.mxu0 0.0
    %3908 = vmatprep.subr.mxu0 0.0
    %3909 = vmatpush1.msra.mxu0 0.0
    %3910 = vmatprep.subr.mxu0 0.0
    %3911 = vmatpush1.msra.mxu0 0.0
    %3912 = vmatprep.subr.mxu0 0.0
    %3913 = vmatpush1.msra.mxu0 0.0
    %3914 = vmatprep.subr.mxu0 0.0
    %3915 = vmatpush1.msra.mxu0 0.0
    %3916 = vmatprep.subr.mxu0 0.0
    %3917 = vmatpush1.msra.mxu0 0.0
    %3918 = vmatprep.subr.mxu0 0.0
    %3919 = vmatpush1.msra.mxu0 0.0
    %3920 = vmatprep.subr.mxu0 0.0
    %3921 = vmatpush1.msra.mxu0 0.0
    %3922 = vmatprep.subr.mxu0 0.0
    %3923 = vmatpush1.msra.mxu0 0.0
    %3924 = vmatprep.subr.mxu0 0.0
    %3925 = vmatpush1.msra.mxu0 0.0
    %3926 = vmatprep.subr.mxu0 0.0
    %3927 = vmatpush1.msra.mxu0 0.0
    %3928 = vmatprep.subr.mxu0 0.0
    %3929 = vmatpush1.msra.mxu0 0.0
    %3930 = vmatprep.subr.mxu0 0.0
    %3931 = vmatpush1.msra.mxu0 0.0
    %3932 = vmatprep.subr.mxu0 0.0
    %3933 = vmatpush1.msra.mxu0 0.0
    %3934 = vmatprep.mubr.f32.mxu0 0.0
    %v3935 = vand.u32 %v3032, 4294901760
    %v3936 = vsub.f32 %v3032, %v3935
    %v3937 = vand.u32 %v3936, 4294901760
    %3938 = vmatmul.mubr.f32.gmra.mrb[0].mxu0 %v3937
    %v3939 = vpop.f32.mrb[0].mxu0
    %v3940 = vadd.f32 %v3858, %v3939
    %v3941 = vpop.f32.mrb[0].mxu0
    %v3942 = vadd.f32 %v3860, %v3941
    %3943 = vdwg.mxu0
    %v3944 = vand.u32 %v2737, 4294901760
    %v3945 = vsub.f32 %v2737, %v3944
    %v3946 = vand.u32 %v3945, 4294901760
    %3947 = vmatprep.subr.mxu0 %v3946
    %v3948 = vand.u32 %v2736, 4294901760
    %v3949 = vsub.f32 %v2736, %v3948
    %v3950 = vand.u32 %v3949, 4294901760
    %3951 = vmatpush1.msra.mxu0 %v3950
    %v3952 = vand.u32 %v2769, 4294901760
    %v3953 = vsub.f32 %v2769, %v3952
    %v3954 = vand.u32 %v3953, 4294901760
    %3955 = vmatprep.subr.mxu0 %v3954
    %v3956 = vand.u32 %v2768, 4294901760
    %v3957 = vsub.f32 %v2768, %v3956
    %v3958 = vand.u32 %v3957, 4294901760
    %3959 = vmatpush1.msra.mxu0 %v3958
    %v3960 = vand.u32 %v2801, 4294901760
    %v3961 = vsub.f32 %v2801, %v3960
    %v3962 = vand.u32 %v3961, 4294901760
    %3963 = vmatprep.subr.mxu0 %v3962
    %v3964 = vand.u32 %v2800, 4294901760
    %v3965 = vsub.f32 %v2800, %v3964
    %v3966 = vand.u32 %v3965, 4294901760
    %3967 = vmatpush1.msra.mxu0 %v3966
    %v3968 = vand.u32 %v2833, 4294901760
    %v3969 = vsub.f32 %v2833, %v3968
    %v3970 = vand.u32 %v3969, 4294901760
    %3971 = vmatprep.subr.mxu0 %v3970
    %v3972 = vand.u32 %v2832, 4294901760
    %v3973 = vsub.f32 %v2832, %v3972
    %v3974 = vand.u32 %v3973, 4294901760
    %3975 = vmatpush1.msra.mxu0 %v3974
    %3976 = vmatprep.subr.mxu0 0.0
    %3977 = vmatpush1.msra.mxu0 0.0
    %3978 = vmatprep.subr.mxu0 0.0
    %3979 = vmatpush1.msra.mxu0 0.0
    %3980 = vmatprep.subr.mxu0 0.0
    %3981 = vmatpush1.msra.mxu0 0.0
    %3982 = vmatprep.subr.mxu0 0.0
    %3983 = vmatpush1.msra.mxu0 0.0
    %3984 = vmatprep.subr.mxu0 0.0
    %3985 = vmatpush1.msra.mxu0 0.0
    %3986 = vmatprep.subr.mxu0 0.0
    %3987 = vmatpush1.msra.mxu0 0.0
    %3988 = vmatprep.subr.mxu0 0.0
    %3989 = vmatpush1.msra.mxu0 0.0
    %3990 = vmatprep.subr.mxu0 0.0
    %3991 = vmatpush1.msra.mxu0 0.0
    %3992 = vmatprep.subr.mxu0 0.0
    %3993 = vmatpush1.msra.mxu0 0.0
    %3994 = vmatprep.subr.mxu0 0.0
    %3995 = vmatpush1.msra.mxu0 0.0
    %3996 = vmatprep.subr.mxu0 0.0
    %3997 = vmatpush1.msra.mxu0 0.0
    %3998 = vmatprep.subr.mxu0 0.0
    %3999 = vmatpush1.msra.mxu0 0.0
    %4000 = vmatprep.subr.mxu0 0.0
    %4001 = vmatpush1.msra.mxu0 0.0
    %4002 = vmatprep.subr.mxu0 0.0
    %4003 = vmatpush1.msra.mxu0 0.0
    %4004 = vmatprep.subr.mxu0 0.0
    %4005 = vmatpush1.msra.mxu0 0.0
    %4006 = vmatprep.subr.mxu0 0.0
    %4007 = vmatpush1.msra.mxu0 0.0
    %4008 = vmatprep.subr.mxu0 0.0
    %4009 = vmatpush1.msra.mxu0 0.0
    %4010 = vmatprep.subr.mxu0 0.0
    %4011 = vmatpush1.msra.mxu0 0.0
    %4012 = vmatprep.subr.mxu0 0.0
    %4013 = vmatpush1.msra.mxu0 0.0
    %4014 = vmatprep.subr.mxu0 0.0
    %4015 = vmatpush1.msra.mxu0 0.0
    %4016 = vmatprep.subr.mxu0 0.0
    %4017 = vmatpush1.msra.mxu0 0.0
    %4018 = vmatprep.subr.mxu0 0.0
    %4019 = vmatpush1.msra.mxu0 0.0
    %4020 = vmatprep.subr.mxu0 0.0
    %4021 = vmatpush1.msra.mxu0 0.0
    %4022 = vmatprep.subr.mxu0 0.0
    %4023 = vmatpush1.msra.mxu0 0.0
    %4024 = vmatprep.subr.mxu0 0.0
    %4025 = vmatpush1.msra.mxu0 0.0
    %4026 = vmatprep.subr.mxu0 0.0
    %4027 = vmatpush1.msra.mxu0 0.0
    %4028 = vmatprep.subr.mxu0 0.0
    %4029 = vmatpush1.msra.mxu0 0.0
    %4030 = vmatprep.subr.mxu0 0.0
    %4031 = vmatpush1.msra.mxu0 0.0
    %4032 = vmatprep.mubr.f32.mxu0 0.0
    %v4033 = vand.u32 %v3032, 4294901760
    %4034 = vmatmul.mubr.f32.gmra.mrb[0].mxu0 %v4033
    %v4035 = vpop.f32.mrb[0].mxu0
    %v4036 = vadd.f32 %v3940, %v4035
    %v4037 = vpop.f32.mrb[0].mxu0
    %v4038 = vadd.f32 %v3942, %v4037
    %4039 = vdwg.mxu0
    %v4040 = vand.u32 %v2737, 4294901760
    %4041 = vmatprep.subr.mxu0 %v4040
    %v4042 = vand.u32 %v2736, 4294901760
    %4043 = vmatpush1.msra.mxu0 %v4042
    %v4044 = vand.u32 %v2769, 4294901760
    %4045 = vmatprep.subr.mxu0 %v4044
    %v4046 = vand.u32 %v2768, 4294901760
    %4047 = vmatpush1.msra.mxu0 %v4046
    %v4048 = vand.u32 %v2801, 4294901760
    %4049 = vmatprep.subr.mxu0 %v4048
    %v4050 = vand.u32 %v2800, 4294901760
    %4051 = vmatpush1.msra.mxu0 %v4050
    %v4052 = vand.u32 %v2833, 4294901760
    %4053 = vmatprep.subr.mxu0 %v4052
    %v4054 = vand.u32 %v2832, 4294901760
    %4055 = vmatpush1.msra.mxu0 %v4054
    %4056 = vmatprep.subr.mxu0 0.0
    %4057 = vmatpush1.msra.mxu0 0.0
    %4058 = vmatprep.subr.mxu0 0.0
    %4059 = vmatpush1.msra.mxu0 0.0
    %4060 = vmatprep.subr.mxu0 0.0
    %4061 = vmatpush1.msra.mxu0 0.0
    %4062 = vmatprep.subr.mxu0 0.0
    %4063 = vmatpush1.msra.mxu0 0.0
    %4064 = vmatprep.subr.mxu0 0.0
    %4065 = vmatpush1.msra.mxu0 0.0
    %4066 = vmatprep.subr.mxu0 0.0
    %4067 = vmatpush1.msra.mxu0 0.0
    %4068 = vmatprep.subr.mxu0 0.0
    %4069 = vmatpush1.msra.mxu0 0.0
    %4070 = vmatprep.subr.mxu0 0.0
    %4071 = vmatpush1.msra.mxu0 0.0
    %4072 = vmatprep.subr.mxu0 0.0
    %4073 = vmatpush1.msra.mxu0 0.0
    %4074 = vmatprep.subr.mxu0 0.0
    %4075 = vmatpush1.msra.mxu0 0.0
    %4076 = vmatprep.subr.mxu0 0.0
    %4077 = vmatpush1.msra.mxu0 0.0
    %4078 = vmatprep.subr.mxu0 0.0
    %4079 = vmatpush1.msra.mxu0 0.0
    %4080 = vmatprep.subr.mxu0 0.0
    %4081 = vmatpush1.msra.mxu0 0.0
    %4082 = vmatprep.subr.mxu0 0.0
    %4083 = vmatpush1.msra.mxu0 0.0
    %4084 = vmatprep.subr.mxu0 0.0
    %4085 = vmatpush1.msra.mxu0 0.0
    %4086 = vmatprep.subr.mxu0 0.0
    %4087 = vmatpush1.msra.mxu0 0.0
    %4088 = vmatprep.subr.mxu0 0.0
    %4089 = vmatpush1.msra.mxu0 0.0
    %4090 = vmatprep.subr.mxu0 0.0
    %4091 = vmatpush1.msra.mxu0 0.0
    %4092 = vmatprep.subr.mxu0 0.0
    %4093 = vmatpush1.msra.mxu0 0.0
    %4094 = vmatprep.subr.mxu0 0.0
    %4095 = vmatpush1.msra.mxu0 0.0
    %4096 = vmatprep.subr.mxu0 0.0
    %4097 = vmatpush1.msra.mxu0 0.0
    %4098 = vmatprep.subr.mxu0 0.0
    %4099 = vmatpush1.msra.mxu0 0.0
    %4100 = vmatprep.subr.mxu0 0.0
    %4101 = vmatpush1.msra.mxu0 0.0
    %4102 = vmatprep.subr.mxu0 0.0
    %4103 = vmatpush1.msra.mxu0 0.0
    %4104 = vmatprep.subr.mxu0 0.0
    %4105 = vmatpush1.msra.mxu0 0.0
    %4106 = vmatprep.subr.mxu0 0.0
    %4107 = vmatpush1.msra.mxu0 0.0
    %4108 = vmatprep.subr.mxu0 0.0
    %4109 = vmatpush1.msra.mxu0 0.0
    %4110 = vmatprep.subr.mxu0 0.0
    %4111 = vmatpush1.msra.mxu0 0.0
    %4112 = vmatprep.mubr.f32.mxu0 0.0
    %v4113 = vand.u32 %v3032, 4294901760
    %4114 = vmatmul.mubr.f32.gmra.mrb[0].mxu0 %v4113
    %v4115 = vpop.f32.mrb[0].mxu0
    %v4116 = vadd.f32 %v4036, %v4115
    %v4117 = vpop.f32.mrb[0].mxu0
    %v4118 = vadd.f32 %v4038, %v4117
    %4119 = vdwg.mxu0
    %v4120 = vand.u32 %v2739, 4294901760
    %4121 = vmatprep.subr.mxu0 %v4120
    %v4122 = vand.u32 %v2738, 4294901760
    %4123 = vmatpush1.msra.mxu0 %v4122
    %v4124 = vand.u32 %v2771, 4294901760
    %4125 = vmatprep.subr.mxu0 %v4124
    %v4126 = vand.u32 %v2770, 4294901760
    %4127 = vmatpush1.msra.mxu0 %v4126
    %v4128 = vand.u32 %v2803, 4294901760
    %4129 = vmatprep.subr.mxu0 %v4128
    %v4130 = vand.u32 %v2802, 4294901760
    %4131 = vmatpush1.msra.mxu0 %v4130
    %v4132 = vand.u32 %v2835, 4294901760
    %4133 = vmatprep.subr.mxu0 %v4132
    %v4134 = vand.u32 %v2834, 4294901760
    %4135 = vmatpush1.msra.mxu0 %v4134
    %4136 = vmatprep.subr.mxu0 0.0
    %4137 = vmatpush1.msra.mxu0 0.0
    %4138 = vmatprep.subr.mxu0 0.0
    %4139 = vmatpush1.msra.mxu0 0.0
    %4140 = vmatprep.subr.mxu0 0.0
    %4141 = vmatpush1.msra.mxu0 0.0
    %4142 = vmatprep.subr.mxu0 0.0
    %4143 = vmatpush1.msra.mxu0 0.0
    %4144 = vmatprep.subr.mxu0 0.0
    %4145 = vmatpush1.msra.mxu0 0.0
    %4146 = vmatprep.subr.mxu0 0.0
    %4147 = vmatpush1.msra.mxu0 0.0
    %4148 = vmatprep.subr.mxu0 0.0
    %4149 = vmatpush1.msra.mxu0 0.0
    %4150 = vmatprep.subr.mxu0 0.0
    %4151 = vmatpush1.msra.mxu0 0.0
    %4152 = vmatprep.subr.mxu0 0.0
    %4153 = vmatpush1.msra.mxu0 0.0
    %4154 = vmatprep.subr.mxu0 0.0
    %4155 = vmatpush1.msra.mxu0 0.0
    %4156 = vmatprep.subr.mxu0 0.0
    %4157 = vmatpush1.msra.mxu0 0.0
    %4158 = vmatprep.subr.mxu0 0.0
    %4159 = vmatpush1.msra.mxu0 0.0
    %4160 = vmatprep.subr.mxu0 0.0
    %4161 = vmatpush1.msra.mxu0 0.0
    %4162 = vmatprep.subr.mxu0 0.0
    %4163 = vmatpush1.msra.mxu0 0.0
    %4164 = vmatprep.subr.mxu0 0.0
    %4165 = vmatpush1.msra.mxu0 0.0
    %4166 = vmatprep.subr.mxu0 0.0
    %4167 = vmatpush1.msra.mxu0 0.0
    %4168 = vmatprep.subr.mxu0 0.0
    %4169 = vmatpush1.msra.mxu0 0.0
    %4170 = vmatprep.subr.mxu0 0.0
    %4171 = vmatpush1.msra.mxu0 0.0
    %4172 = vmatprep.subr.mxu0 0.0
    %4173 = vmatpush1.msra.mxu0 0.0
    %4174 = vmatprep.subr.mxu0 0.0
    %4175 = vmatpush1.msra.mxu0 0.0
    %4176 = vmatprep.subr.mxu0 0.0
    %4177 = vmatpush1.msra.mxu0 0.0
    %4178 = vmatprep.subr.mxu0 0.0
    %4179 = vmatpush1.msra.mxu0 0.0
    %4180 = vmatprep.subr.mxu0 0.0
    %4181 = vmatpush1.msra.mxu0 0.0
    %4182 = vmatprep.subr.mxu0 0.0
    %4183 = vmatpush1.msra.mxu0 0.0
    %4184 = vmatprep.subr.mxu0 0.0
    %4185 = vmatpush1.msra.mxu0 0.0
    %4186 = vmatprep.subr.mxu0 0.0
    %4187 = vmatpush1.msra.mxu0 0.0
    %4188 = vmatprep.subr.mxu0 0.0
    %4189 = vmatpush1.msra.mxu0 0.0
    %4190 = vmatprep.subr.mxu0 0.0
    %4191 = vmatpush1.msra.mxu0 0.0
    %4192 = vmatprep.mubr.f32.mxu0 0.0
    %v4193 = vand.u32 %v3032, 4294901760
    %v4194 = vsub.f32 %v3032, %v4193
    %v4195 = vand.u32 %v4194, 4294901760
    %v4196 = vsub.f32 %v4194, %v4195
    %v4197 = vand.u32 %v4196, 4294901760
    %4198 = vmatmul.mubr.f32.gmra.mrb[0].mxu0 %v4197
    %v4199 = vpop.f32.mrb[0].mxu0
    %v4200 = vadd.f32 %v2889, %v4199
    %v4201 = vpop.f32.mrb[0].mxu0
    %v4202 = vadd.f32 %v2893, %v4201
    %4203 = vdwg.mxu0
    %v4204 = vand.u32 %v2739, 4294901760
    %v4205 = vsub.f32 %v2739, %v4204
    %v4206 = vand.u32 %v4205, 4294901760
    %v4207 = vsub.f32 %v4205, %v4206
    %v4208 = vand.u32 %v4207, 4294901760
    %4209 = vmatprep.subr.mxu0 %v4208
    %v4210 = vand.u32 %v2738, 4294901760
    %v4211 = vsub.f32 %v2738, %v4210
    %v4212 = vand.u32 %v4211, 4294901760
    %v4213 = vsub.f32 %v4211, %v4212
    %v4214 = vand.u32 %v4213, 4294901760
    %4215 = vmatpush1.msra.mxu0 %v4214
    %v4216 = vand.u32 %v2771, 4294901760
    %v4217 = vsub.f32 %v2771, %v4216
    %v4218 = vand.u32 %v4217, 4294901760
    %v4219 = vsub.f32 %v4217, %v4218
    %v4220 = vand.u32 %v4219, 4294901760
    %4221 = vmatprep.subr.mxu0 %v4220
    %v4222 = vand.u32 %v2770, 4294901760
    %v4223 = vsub.f32 %v2770, %v4222
    %v4224 = vand.u32 %v4223, 4294901760
    %v4225 = vsub.f32 %v4223, %v4224
    %v4226 = vand.u32 %v4225, 4294901760
    %4227 = vmatpush1.msra.mxu0 %v4226
    %v4228 = vand.u32 %v2803, 4294901760
    %v4229 = vsub.f32 %v2803, %v4228
    %v4230 = vand.u32 %v4229, 4294901760
    %v4231 = vsub.f32 %v4229, %v4230
    %v4232 = vand.u32 %v4231, 4294901760
    %4233 = vmatprep.subr.mxu0 %v4232
    %v4234 = vand.u32 %v2802, 4294901760
    %v4235 = vsub.f32 %v2802, %v4234
    %v4236 = vand.u32 %v4235, 4294901760
    %v4237 = vsub.f32 %v4235, %v4236
    %v4238 = vand.u32 %v4237, 4294901760
    %4239 = vmatpush1.msra.mxu0 %v4238
    %v4240 = vand.u32 %v2835, 4294901760
    %v4241 = vsub.f32 %v2835, %v4240
    %v4242 = vand.u32 %v4241, 4294901760
    %v4243 = vsub.f32 %v4241, %v4242
    %v4244 = vand.u32 %v4243, 4294901760
    %4245 = vmatprep.subr.mxu0 %v4244
    %v4246 = vand.u32 %v2834, 4294901760
    %v4247 = vsub.f32 %v2834, %v4246
    %v4248 = vand.u32 %v4247, 4294901760
    %v4249 = vsub.f32 %v4247, %v4248
    %v4250 = vand.u32 %v4249, 4294901760
    %4251 = vmatpush1.msra.mxu0 %v4250
    %4252 = vmatprep.subr.mxu0 0.0
    %4253 = vmatpush1.msra.mxu0 0.0
    %4254 = vmatprep.subr.mxu0 0.0
    %4255 = vmatpush1.msra.mxu0 0.0
    %4256 = vmatprep.subr.mxu0 0.0
    %4257 = vmatpush1.msra.mxu0 0.0
    %4258 = vmatprep.subr.mxu0 0.0
    %4259 = vmatpush1.msra.mxu0 0.0
    %4260 = vmatprep.subr.mxu0 0.0
    %4261 = vmatpush1.msra.mxu0 0.0
    %4262 = vmatprep.subr.mxu0 0.0
    %4263 = vmatpush1.msra.mxu0 0.0
    %4264 = vmatprep.subr.mxu0 0.0
    %4265 = vmatpush1.msra.mxu0 0.0
    %4266 = vmatprep.subr.mxu0 0.0
    %4267 = vmatpush1.msra.mxu0 0.0
    %4268 = vmatprep.subr.mxu0 0.0
    %4269 = vmatpush1.msra.mxu0 0.0
    %4270 = vmatprep.subr.mxu0 0.0
    %4271 = vmatpush1.msra.mxu0 0.0
    %4272 = vmatprep.subr.mxu0 0.0
    %4273 = vmatpush1.msra.mxu0 0.0
    %4274 = vmatprep.subr.mxu0 0.0
    %4275 = vmatpush1.msra.mxu0 0.0
    %4276 = vmatprep.subr.mxu0 0.0
    %4277 = vmatpush1.msra.mxu0 0.0
    %4278 = vmatprep.subr.mxu0 0.0
    %4279 = vmatpush1.msra.mxu0 0.0
    %4280 = vmatprep.subr.mxu0 0.0
    %4281 = vmatpush1.msra.mxu0 0.0
    %4282 = vmatprep.subr.mxu0 0.0
    %4283 = vmatpush1.msra.mxu0 0.0
    %4284 = vmatprep.subr.mxu0 0.0
    %4285 = vmatpush1.msra.mxu0 0.0
    %4286 = vmatprep.subr.mxu0 0.0
    %4287 = vmatpush1.msra.mxu0 0.0
    %4288 = vmatprep.subr.mxu0 0.0
    %4289 = vmatpush1.msra.mxu0 0.0
    %4290 = vmatprep.subr.mxu0 0.0
    %4291 = vmatpush1.msra.mxu0 0.0
    %4292 = vmatprep.subr.mxu0 0.0
    %4293 = vmatpush1.msra.mxu0 0.0
    %4294 = vmatprep.subr.mxu0 0.0
    %4295 = vmatpush1.msra.mxu0 0.0
    %4296 = vmatprep.subr.mxu0 0.0
    %4297 = vmatpush1.msra.mxu0 0.0
    %4298 = vmatprep.subr.mxu0 0.0
    %4299 = vmatpush1.msra.mxu0 0.0
    %4300 = vmatprep.subr.mxu0 0.0
    %4301 = vmatpush1.msra.mxu0 0.0
    %4302 = vmatprep.subr.mxu0 0.0
    %4303 = vmatpush1.msra.mxu0 0.0
    %4304 = vmatprep.subr.mxu0 0.0
    %4305 = vmatpush1.msra.mxu0 0.0
    %4306 = vmatprep.subr.mxu0 0.0
    %4307 = vmatpush1.msra.mxu0 0.0
    %4308 = vmatprep.mubr.f32.mxu0 0.0
    %v4309 = vand.u32 %v3032, 4294901760
    %4310 = vmatmul.mubr.f32.gmra.mrb[0].mxu0 %v4309
    %v4311 = vpop.f32.mrb[0].mxu0
    %v4312 = vadd.f32 %v4200, %v4311
    %v4313 = vpop.f32.mrb[0].mxu0
    %v4314 = vadd.f32 %v4202, %v4313
    %4315 = vdwg.mxu0
    %v4316 = vand.u32 %v2739, 4294901760
    %v4317 = vsub.f32 %v2739, %v4316
    %4318 = vmatprep.subr.mxu0 %v4317
    %v4319 = vand.u32 %v2738, 4294901760
    %v4320 = vsub.f32 %v2738, %v4319
    %4321 = vmatpush1.msra.mxu0 %v4320
    %v4322 = vand.u32 %v2771, 4294901760
    %v4323 = vsub.f32 %v2771, %v4322
    %4324 = vmatprep.subr.mxu0 %v4323
    %v4325 = vand.u32 %v2770, 4294901760
    %v4326 = vsub.f32 %v2770, %v4325
    %4327 = vmatpush1.msra.mxu0 %v4326
    %v4328 = vand.u32 %v2803, 4294901760
    %v4329 = vsub.f32 %v2803, %v4328
    %4330 = vmatprep.subr.mxu0 %v4329
    %v4331 = vand.u32 %v2802, 4294901760
    %v4332 = vsub.f32 %v2802, %v4331
    %4333 = vmatpush1.msra.mxu0 %v4332
    %v4334 = vand.u32 %v2835, 4294901760
    %v4335 = vsub.f32 %v2835, %v4334
    %4336 = vmatprep.subr.mxu0 %v4335
    %v4337 = vand.u32 %v2834, 4294901760
    %v4338 = vsub.f32 %v2834, %v4337
    %4339 = vmatpush1.msra.mxu0 %v4338
    %4340 = vmatprep.subr.mxu0 0.0
    %4341 = vmatpush1.msra.mxu0 0.0
    %4342 = vmatprep.subr.mxu0 0.0
    %4343 = vmatpush1.msra.mxu0 0.0
    %4344 = vmatprep.subr.mxu0 0.0
    %4345 = vmatpush1.msra.mxu0 0.0
    %4346 = vmatprep.subr.mxu0 0.0
    %4347 = vmatpush1.msra.mxu0 0.0
    %4348 = vmatprep.subr.mxu0 0.0
    %4349 = vmatpush1.msra.mxu0 0.0
    %4350 = vmatprep.subr.mxu0 0.0
    %4351 = vmatpush1.msra.mxu0 0.0
    %4352 = vmatprep.subr.mxu0 0.0
    %4353 = vmatpush1.msra.mxu0 0.0
    %4354 = vmatprep.subr.mxu0 0.0
    %4355 = vmatpush1.msra.mxu0 0.0
    %4356 = vmatprep.subr.mxu0 0.0
    %4357 = vmatpush1.msra.mxu0 0.0
    %4358 = vmatprep.subr.mxu0 0.0
    %4359 = vmatpush1.msra.mxu0 0.0
    %4360 = vmatprep.subr.mxu0 0.0
    %4361 = vmatpush1.msra.mxu0 0.0
    %4362 = vmatprep.subr.mxu0 0.0
    %4363 = vmatpush1.msra.mxu0 0.0
    %4364 = vmatprep.subr.mxu0 0.0
    %4365 = vmatpush1.msra.mxu0 0.0
    %4366 = vmatprep.subr.mxu0 0.0
    %4367 = vmatpush1.msra.mxu0 0.0
    %4368 = vmatprep.subr.mxu0 0.0
    %4369 = vmatpush1.msra.mxu0 0.0
    %4370 = vmatprep.subr.mxu0 0.0
    %4371 = vmatpush1.msra.mxu0 0.0
    %4372 = vmatprep.subr.mxu0 0.0
    %4373 = vmatpush1.msra.mxu0 0.0
    %4374 = vmatprep.subr.mxu0 0.0
    %4375 = vmatpush1.msra.mxu0 0.0
    %4376 = vmatprep.subr.mxu0 0.0
    %4377 = vmatpush1.msra.mxu0 0.0
    %4378 = vmatprep.subr.mxu0 0.0
    %4379 = vmatpush1.msra.mxu0 0.0
    %4380 = vmatprep.subr.mxu0 0.0
    %4381 = vmatpush1.msra.mxu0 0.0
    %4382 = vmatprep.subr.mxu0 0.0
    %4383 = vmatpush1.msra.mxu0 0.0
    %4384 = vmatprep.subr.mxu0 0.0
    %4385 = vmatpush1.msra.mxu0 0.0
    %4386 = vmatprep.subr.mxu0 0.0
    %4387 = vmatpush1.msra.mxu0 0.0
    %4388 = vmatprep.subr.mxu0 0.0
    %4389 = vmatpush1.msra.mxu0 0.0
    %4390 = vmatprep.subr.mxu0 0.0
    %4391 = vmatpush1.msra.mxu0 0.0
    %4392 = vmatprep.subr.mxu0 0.0
    %4393 = vmatpush1.msra.mxu0 0.0
    %4394 = vmatprep.subr.mxu0 0.0
    %4395 = vmatpush1.msra.mxu0 0.0
    %4396 = vmatprep.mubr.f32.mxu0 0.0
    %v4397 = vand.u32 %v3032, 4294901760
    %v4398 = vsub.f32 %v3032, %v4397
    %4399 = vmatmul.mubr.f32.gmra.mrb[0].mxu0 %v4398
    %v4400 = vpop.f32.mrb[0].mxu0
    %v4401 = vadd.f32 %v4312, %v4400
    %v4402 = vpop.f32.mrb[0].mxu0
    %v4403 = vadd.f32 %v4314, %v4402
    %4404 = vdwg.mxu0
    %v4405 = vand.u32 %v2739, 4294901760
    %4406 = vmatprep.subr.mxu0 %v4405
    %v4407 = vand.u32 %v2738, 4294901760
    %4408 = vmatpush1.msra.mxu0 %v4407
    %v4409 = vand.u32 %v2771, 4294901760
    %4410 = vmatprep.subr.mxu0 %v4409
    %v4411 = vand.u32 %v2770, 4294901760
    %4412 = vmatpush1.msra.mxu0 %v4411
    %v4413 = vand.u32 %v2803, 4294901760
    %4414 = vmatprep.subr.mxu0 %v4413
    %v4415 = vand.u32 %v2802, 4294901760
    %4416 = vmatpush1.msra.mxu0 %v4415
    %v4417 = vand.u32 %v2835, 4294901760
    %4418 = vmatprep.subr.mxu0 %v4417
    %v4419 = vand.u32 %v2834, 4294901760
    %4420 = vmatpush1.msra.mxu0 %v4419
    %4421 = vmatprep.subr.mxu0 0.0
    %4422 = vmatpush1.msra.mxu0 0.0
    %4423 = vmatprep.subr.mxu0 0.0
    %4424 = vmatpush1.msra.mxu0 0.0
    %4425 = vmatprep.subr.mxu0 0.0
    %4426 = vmatpush1.msra.mxu0 0.0
    %4427 = vmatprep.subr.mxu0 0.0
    %4428 = vmatpush1.msra.mxu0 0.0
    %4429 = vmatprep.subr.mxu0 0.0
    %4430 = vmatpush1.msra.mxu0 0.0
    %4431 = vmatprep.subr.mxu0 0.0
    %4432 = vmatpush1.msra.mxu0 0.0
    %4433 = vmatprep.subr.mxu0 0.0
    %4434 = vmatpush1.msra.mxu0 0.0
    %4435 = vmatprep.subr.mxu0 0.0
    %4436 = vmatpush1.msra.mxu0 0.0
    %4437 = vmatprep.subr.mxu0 0.0
    %4438 = vmatpush1.msra.mxu0 0.0
    %4439 = vmatprep.subr.mxu0 0.0
    %4440 = vmatpush1.msra.mxu0 0.0
    %4441 = vmatprep.subr.mxu0 0.0
    %4442 = vmatpush1.msra.mxu0 0.0
    %4443 = vmatprep.subr.mxu0 0.0
    %4444 = vmatpush1.msra.mxu0 0.0
    %4445 = vmatprep.subr.mxu0 0.0
    %4446 = vmatpush1.msra.mxu0 0.0
    %4447 = vmatprep.subr.mxu0 0.0
    %4448 = vmatpush1.msra.mxu0 0.0
    %4449 = vmatprep.subr.mxu0 0.0
    %4450 = vmatpush1.msra.mxu0 0.0
    %4451 = vmatprep.subr.mxu0 0.0
    %4452 = vmatpush1.msra.mxu0 0.0
    %4453 = vmatprep.subr.mxu0 0.0
    %4454 = vmatpush1.msra.mxu0 0.0
    %4455 = vmatprep.subr.mxu0 0.0
    %4456 = vmatpush1.msra.mxu0 0.0
    %4457 = vmatprep.subr.mxu0 0.0
    %4458 = vmatpush1.msra.mxu0 0.0
    %4459 = vmatprep.subr.mxu0 0.0
    %4460 = vmatpush1.msra.mxu0 0.0
    %4461 = vmatprep.subr.mxu0 0.0
    %4462 = vmatpush1.msra.mxu0 0.0
    %4463 = vmatprep.subr.mxu0 0.0
    %4464 = vmatpush1.msra.mxu0 0.0
    %4465 = vmatprep.subr.mxu0 0.0
    %4466 = vmatpush1.msra.mxu0 0.0
    %4467 = vmatprep.subr.mxu0 0.0
    %4468 = vmatpush1.msra.mxu0 0.0
    %4469 = vmatprep.subr.mxu0 0.0
    %4470 = vmatpush1.msra.mxu0 0.0
    %4471 = vmatprep.subr.mxu0 0.0
    %4472 = vmatpush1.msra.mxu0 0.0
    %4473 = vmatprep.subr.mxu0 0.0
    %4474 = vmatpush1.msra.mxu0 0.0
    %4475 = vmatprep.subr.mxu0 0.0
    %4476 = vmatpush1.msra.mxu0 0.0
    %4477 = vmatprep.mubr.f32.mxu0 0.0
    %v4478 = vand.u32 %v3032, 4294901760
    %v4479 = vsub.f32 %v3032, %v4478
    %v4480 = vand.u32 %v4479, 4294901760
    %4481 = vmatmul.mubr.f32.gmra.mrb[0].mxu0 %v4480
    %v4482 = vpop.f32.mrb[0].mxu0
    %v4483 = vadd.f32 %v4401, %v4482
    %v4484 = vpop.f32.mrb[0].mxu0
    %v4485 = vadd.f32 %v4403, %v4484
    %4486 = vdwg.mxu0
    %v4487 = vand.u32 %v2739, 4294901760
    %v4488 = vsub.f32 %v2739, %v4487
    %v4489 = vand.u32 %v4488, 4294901760
    %4490 = vmatprep.subr.mxu0 %v4489
    %v4491 = vand.u32 %v2738, 4294901760
    %v4492 = vsub.f32 %v2738, %v4491
    %v4493 = vand.u32 %v4492, 4294901760
    %4494 = vmatpush1.msra.mxu0 %v4493
    %v4495 = vand.u32 %v2771, 4294901760
    %v4496 = vsub.f32 %v2771, %v4495
    %v4497 = vand.u32 %v4496, 4294901760
    %4498 = vmatprep.subr.mxu0 %v4497
    %v4499 = vand.u32 %v2770, 4294901760
    %v4500 = vsub.f32 %v2770, %v4499
    %v4501 = vand.u32 %v4500, 4294901760
    %4502 = vmatpush1.msra.mxu0 %v4501
    %v4503 = vand.u32 %v2803, 4294901760
    %v4504 = vsub.f32 %v2803, %v4503
    %v4505 = vand.u32 %v4504, 4294901760
    %4506 = vmatprep.subr.mxu0 %v4505
    %v4507 = vand.u32 %v2802, 4294901760
    %v4508 = vsub.f32 %v2802, %v4507
    %v4509 = vand.u32 %v4508, 4294901760
    %4510 = vmatpush1.msra.mxu0 %v4509
    %v4511 = vand.u32 %v2835, 4294901760
    %v4512 = vsub.f32 %v2835, %v4511
    %v4513 = vand.u32 %v4512, 4294901760
    %4514 = vmatprep.subr.mxu0 %v4513
    %v4515 = vand.u32 %v2834, 4294901760
    %v4516 = vsub.f32 %v2834, %v4515
    %v4517 = vand.u32 %v4516, 4294901760
    %4518 = vmatpush1.msra.mxu0 %v4517
    %4519 = vmatprep.subr.mxu0 0.0
    %4520 = vmatpush1.msra.mxu0 0.0
    %4521 = vmatprep.subr.mxu0 0.0
    %4522 = vmatpush1.msra.mxu0 0.0
    %4523 = vmatprep.subr.mxu0 0.0
    %4524 = vmatpush1.msra.mxu0 0.0
    %4525 = vmatprep.subr.mxu0 0.0
    %4526 = vmatpush1.msra.mxu0 0.0
    %4527 = vmatprep.subr.mxu0 0.0
    %4528 = vmatpush1.msra.mxu0 0.0
    %4529 = vmatprep.subr.mxu0 0.0
    %4530 = vmatpush1.msra.mxu0 0.0
    %4531 = vmatprep.subr.mxu0 0.0
    %4532 = vmatpush1.msra.mxu0 0.0
    %4533 = vmatprep.subr.mxu0 0.0
    %4534 = vmatpush1.msra.mxu0 0.0
    %4535 = vmatprep.subr.mxu0 0.0
    %4536 = vmatpush1.msra.mxu0 0.0
    %4537 = vmatprep.subr.mxu0 0.0
    %4538 = vmatpush1.msra.mxu0 0.0
    %4539 = vmatprep.subr.mxu0 0.0
    %4540 = vmatpush1.msra.mxu0 0.0
    %4541 = vmatprep.subr.mxu0 0.0
    %4542 = vmatpush1.msra.mxu0 0.0
    %4543 = vmatprep.subr.mxu0 0.0
    %4544 = vmatpush1.msra.mxu0 0.0
    %4545 = vmatprep.subr.mxu0 0.0
    %4546 = vmatpush1.msra.mxu0 0.0
    %4547 = vmatprep.subr.mxu0 0.0
    %4548 = vmatpush1.msra.mxu0 0.0
    %4549 = vmatprep.subr.mxu0 0.0
    %4550 = vmatpush1.msra.mxu0 0.0
    %4551 = vmatprep.subr.mxu0 0.0
    %4552 = vmatpush1.msra.mxu0 0.0
    %4553 = vmatprep.subr.mxu0 0.0
    %4554 = vmatpush1.msra.mxu0 0.0
    %4555 = vmatprep.subr.mxu0 0.0
    %4556 = vmatpush1.msra.mxu0 0.0
    %4557 = vmatprep.subr.mxu0 0.0
    %4558 = vmatpush1.msra.mxu0 0.0
    %4559 = vmatprep.subr.mxu0 0.0
    %4560 = vmatpush1.msra.mxu0 0.0
    %4561 = vmatprep.subr.mxu0 0.0
    %4562 = vmatpush1.msra.mxu0 0.0
    %4563 = vmatprep.subr.mxu0 0.0
    %4564 = vmatpush1.msra.mxu0 0.0
    %4565 = vmatprep.subr.mxu0 0.0
    %4566 = vmatpush1.msra.mxu0 0.0
    %4567 = vmatprep.subr.mxu0 0.0
    %4568 = vmatpush1.msra.mxu0 0.0
    %4569 = vmatprep.subr.mxu0 0.0
    %4570 = vmatpush1.msra.mxu0 0.0
    %4571 = vmatprep.subr.mxu0 0.0
    %4572 = vmatpush1.msra.mxu0 0.0
    %4573 = vmatprep.subr.mxu0 0.0
    %4574 = vmatpush1.msra.mxu0 0.0
    %4575 = vmatprep.mubr.f32.mxu0 0.0
    %v4576 = vand.u32 %v3032, 4294901760
    %4577 = vmatmul.mubr.f32.gmra.mrb[0].mxu0 %v4576
    %v4578 = vpop.f32.mrb[0].mxu0
    %v4579 = vadd.f32 %v4483, %v4578
    %v4580 = vpop.f32.mrb[0].mxu0
    %v4581 = vadd.f32 %v4485, %v4580
    %4582 = vdwg.mxu0
    %v4583 = vand.u32 %v2739, 4294901760
    %4584 = vmatprep.subr.mxu0 %v4583
    %v4585 = vand.u32 %v2738, 4294901760
    %4586 = vmatpush1.msra.mxu0 %v4585
    %v4587 = vand.u32 %v2771, 4294901760
    %4588 = vmatprep.subr.mxu0 %v4587
    %v4589 = vand.u32 %v2770, 4294901760
    %4590 = vmatpush1.msra.mxu0 %v4589
    %v4591 = vand.u32 %v2803, 4294901760
    %4592 = vmatprep.subr.mxu0 %v4591
    %v4593 = vand.u32 %v2802, 4294901760
    %4594 = vmatpush1.msra.mxu0 %v4593
    %v4595 = vand.u32 %v2835, 4294901760
    %4596 = vmatprep.subr.mxu0 %v4595
    %v4597 = vand.u32 %v2834, 4294901760
    %4598 = vmatpush1.msra.mxu0 %v4597
    %4599 = vmatprep.subr.mxu0 0.0
    %4600 = vmatpush1.msra.mxu0 0.0
    %4601 = vmatprep.subr.mxu0 0.0
    %4602 = vmatpush1.msra.mxu0 0.0
    %4603 = vmatprep.subr.mxu0 0.0
    %4604 = vmatpush1.msra.mxu0 0.0
    %4605 = vmatprep.subr.mxu0 0.0
    %4606 = vmatpush1.msra.mxu0 0.0
    %4607 = vmatprep.subr.mxu0 0.0
    %4608 = vmatpush1.msra.mxu0 0.0
    %4609 = vmatprep.subr.mxu0 0.0
    %4610 = vmatpush1.msra.mxu0 0.0
    %4611 = vmatprep.subr.mxu0 0.0
    %4612 = vmatpush1.msra.mxu0 0.0
    %4613 = vmatprep.subr.mxu0 0.0
    %4614 = vmatpush1.msra.mxu0 0.0
    %4615 = vmatprep.subr.mxu0 0.0
    %4616 = vmatpush1.msra.mxu0 0.0
    %4617 = vmatprep.subr.mxu0 0.0
    %4618 = vmatpush1.msra.mxu0 0.0
    %4619 = vmatprep.subr.mxu0 0.0
    %4620 = vmatpush1.msra.mxu0 0.0
    %4621 = vmatprep.subr.mxu0 0.0
    %4622 = vmatpush1.msra.mxu0 0.0
    %4623 = vmatprep.subr.mxu0 0.0
    %4624 = vmatpush1.msra.mxu0 0.0
    %4625 = vmatprep.subr.mxu0 0.0
    %4626 = vmatpush1.msra.mxu0 0.0
    %4627 = vmatprep.subr.mxu0 0.0
    %4628 = vmatpush1.msra.mxu0 0.0
    %4629 = vmatprep.subr.mxu0 0.0
    %4630 = vmatpush1.msra.mxu0 0.0
    %4631 = vmatprep.subr.mxu0 0.0
    %4632 = vmatpush1.msra.mxu0 0.0
    %4633 = vmatprep.subr.mxu0 0.0
    %4634 = vmatpush1.msra.mxu0 0.0
    %4635 = vmatprep.subr.mxu0 0.0
    %4636 = vmatpush1.msra.mxu0 0.0
    %4637 = vmatprep.subr.mxu0 0.0
    %4638 = vmatpush1.msra.mxu0 0.0
    %4639 = vmatprep.subr.mxu0 0.0
    %4640 = vmatpush1.msra.mxu0 0.0
    %4641 = vmatprep.subr.mxu0 0.0
    %4642 = vmatpush1.msra.mxu0 0.0
    %4643 = vmatprep.subr.mxu0 0.0
    %4644 = vmatpush1.msra.mxu0 0.0
    %4645 = vmatprep.subr.mxu0 0.0
    %4646 = vmatpush1.msra.mxu0 0.0
    %4647 = vmatprep.subr.mxu0 0.0
    %4648 = vmatpush1.msra.mxu0 0.0
    %4649 = vmatprep.subr.mxu0 0.0
    %4650 = vmatpush1.msra.mxu0 0.0
    %4651 = vmatprep.subr.mxu0 0.0
    %4652 = vmatpush1.msra.mxu0 0.0
    %4653 = vmatprep.subr.mxu0 0.0
    %4654 = vmatpush1.msra.mxu0 0.0
    %4655 = vmatprep.mubr.f32.mxu0 0.0
    %v4656 = vand.u32 %v3032, 4294901760
    %4657 = vmatmul.mubr.f32.gmra.mrb[0].mxu0 %v4656
    %v4658 = vpop.f32.mrb[0].mxu0
    %v4659 = vadd.f32 %v4579, %v4658
    %v4660 = vpop.f32.mrb[0].mxu0
    %v4661 = vadd.f32 %v4581, %v4660
    %4662 = vdwg.mxu0
    %v4663 = vand.u32 %v2741, 4294901760
    %4664 = vmatprep.subr.mxu0 %v4663
    %v4665 = vand.u32 %v2740, 4294901760
    %4666 = vmatpush1.msra.mxu0 %v4665
    %v4667 = vand.u32 %v2773, 4294901760
    %4668 = vmatprep.subr.mxu0 %v4667
    %v4669 = vand.u32 %v2772, 4294901760
    %4670 = vmatpush1.msra.mxu0 %v4669
    %v4671 = vand.u32 %v2805, 4294901760
    %4672 = vmatprep.subr.mxu0 %v4671
    %v4673 = vand.u32 %v2804, 4294901760
    %4674 = vmatpush1.msra.mxu0 %v4673
    %v4675 = vand.u32 %v2837, 4294901760
    %4676 = vmatprep.subr.mxu0 %v4675
    %v4677 = vand.u32 %v2836, 4294901760
    %4678 = vmatpush1.msra.mxu0 %v4677
    %4679 = vmatprep.subr.mxu0 0.0
    %4680 = vmatpush1.msra.mxu0 0.0
    %4681 = vmatprep.subr.mxu0 0.0
    %4682 = vmatpush1.msra.mxu0 0.0
    %4683 = vmatprep.subr.mxu0 0.0
    %4684 = vmatpush1.msra.mxu0 0.0
    %4685 = vmatprep.subr.mxu0 0.0
    %4686 = vmatpush1.msra.mxu0 0.0
    %4687 = vmatprep.subr.mxu0 0.0
    %4688 = vmatpush1.msra.mxu0 0.0
    %4689 = vmatprep.subr.mxu0 0.0
    %4690 = vmatpush1.msra.mxu0 0.0
    %4691 = vmatprep.subr.mxu0 0.0
    %4692 = vmatpush1.msra.mxu0 0.0
    %4693 = vmatprep.subr.mxu0 0.0
    %4694 = vmatpush1.msra.mxu0 0.0
    %4695 = vmatprep.subr.mxu0 0.0
    %4696 = vmatpush1.msra.mxu0 0.0
    %4697 = vmatprep.subr.mxu0 0.0
    %4698 = vmatpush1.msra.mxu0 0.0
    %4699 = vmatprep.subr.mxu0 0.0
    %4700 = vmatpush1.msra.mxu0 0.0
    %4701 = vmatprep.subr.mxu0 0.0
    %4702 = vmatpush1.msra.mxu0 0.0
    %4703 = vmatprep.subr.mxu0 0.0
    %4704 = vmatpush1.msra.mxu0 0.0
    %4705 = vmatprep.subr.mxu0 0.0
    %4706 = vmatpush1.msra.mxu0 0.0
    %4707 = vmatprep.subr.mxu0 0.0
    %4708 = vmatpush1.msra.mxu0 0.0
    %4709 = vmatprep.subr.mxu0 0.0
    %4710 = vmatpush1.msra.mxu0 0.0
    %4711 = vmatprep.subr.mxu0 0.0
    %4712 = vmatpush1.msra.mxu0 0.0
    %4713 = vmatprep.subr.mxu0 0.0
    %4714 = vmatpush1.msra.mxu0 0.0
    %4715 = vmatprep.subr.mxu0 0.0
    %4716 = vmatpush1.msra.mxu0 0.0
    %4717 = vmatprep.subr.mxu0 0.0
    %4718 = vmatpush1.msra.mxu0 0.0
    %4719 = vmatprep.subr.mxu0 0.0
    %4720 = vmatpush1.msra.mxu0 0.0
    %4721 = vmatprep.subr.mxu0 0.0
    %4722 = vmatpush1.msra.mxu0 0.0
    %4723 = vmatprep.subr.mxu0 0.0
    %4724 = vmatpush1.msra.mxu0 0.0
    %4725 = vmatprep.subr.mxu0 0.0
    %4726 = vmatpush1.msra.mxu0 0.0
    %4727 = vmatprep.subr.mxu0 0.0
    %4728 = vmatpush1.msra.mxu0 0.0
    %4729 = vmatprep.subr.mxu0 0.0
    %4730 = vmatpush1.msra.mxu0 0.0
    %4731 = vmatprep.subr.mxu0 0.0
    %4732 = vmatpush1.msra.mxu0 0.0
    %4733 = vmatprep.subr.mxu0 0.0
    %4734 = vmatpush1.msra.mxu0 0.0
    %4735 = vmatprep.mubr.f32.mxu0 0.0
    %v4736 = vand.u32 %v3032, 4294901760
    %v4737 = vsub.f32 %v3032, %v4736
    %v4738 = vand.u32 %v4737, 4294901760
    %v4739 = vsub.f32 %v4737, %v4738
    %v4740 = vand.u32 %v4739, 4294901760
    %4741 = vmatmul.mubr.f32.gmra.mrb[0].mxu0 %v4740
    %v4742 = vpop.f32.mrb[0].mxu0
    %v4743 = vadd.f32 %v2897, %v4742
    %v4744 = vpop.f32.mrb[0].mxu0
    %v4745 = vadd.f32 %v2901, %v4744
    %4746 = vdwg.mxu0
    %v4747 = vand.u32 %v2741, 4294901760
    %v4748 = vsub.f32 %v2741, %v4747
    %v4749 = vand.u32 %v4748, 4294901760
    %v4750 = vsub.f32 %v4748, %v4749
    %v4751 = vand.u32 %v4750, 4294901760
    %4752 = vmatprep.subr.mxu0 %v4751
    %v4753 = vand.u32 %v2740, 4294901760
    %v4754 = vsub.f32 %v2740, %v4753
    %v4755 = vand.u32 %v4754, 4294901760
    %v4756 = vsub.f32 %v4754, %v4755
    %v4757 = vand.u32 %v4756, 4294901760
    %4758 = vmatpush1.msra.mxu0 %v4757
    %v4759 = vand.u32 %v2773, 4294901760
    %v4760 = vsub.f32 %v2773, %v4759
    %v4761 = vand.u32 %v4760, 4294901760
    %v4762 = vsub.f32 %v4760, %v4761
    %v4763 = vand.u32 %v4762, 4294901760
    %4764 = vmatprep.subr.mxu0 %v4763
    %v4765 = vand.u32 %v2772, 4294901760
    %v4766 = vsub.f32 %v2772, %v4765
    %v4767 = vand.u32 %v4766, 4294901760
    %v4768 = vsub.f32 %v4766, %v4767
    %v4769 = vand.u32 %v4768, 4294901760
    %4770 = vmatpush1.msra.mxu0 %v4769
    %v4771 = vand.u32 %v2805, 4294901760
    %v4772 = vsub.f32 %v2805, %v4771
    %v4773 = vand.u32 %v4772, 4294901760
    %v4774 = vsub.f32 %v4772, %v4773
    %v4775 = vand.u32 %v4774, 4294901760
    %4776 = vmatprep.subr.mxu0 %v4775
    %v4777 = vand.u32 %v2804, 4294901760
    %v4778 = vsub.f32 %v2804, %v4777
    %v4779 = vand.u32 %v4778, 4294901760
    %v4780 = vsub.f32 %v4778, %v4779
    %v4781 = vand.u32 %v4780, 4294901760
    %4782 = vmatpush1.msra.mxu0 %v4781
    %v4783 = vand.u32 %v2837, 4294901760
    %v4784 = vsub.f32 %v2837, %v4783
    %v4785 = vand.u32 %v4784, 4294901760
    %v4786 = vsub.f32 %v4784, %v4785
    %v4787 = vand.u32 %v4786, 4294901760
    %4788 = vmatprep.subr.mxu0 %v4787
    %v4789 = vand.u32 %v2836, 4294901760
    %v4790 = vsub.f32 %v2836, %v4789
    %v4791 = vand.u32 %v4790, 4294901760
    %v4792 = vsub.f32 %v4790, %v4791
    %v4793 = vand.u32 %v4792, 4294901760
    %4794 = vmatpush1.msra.mxu0 %v4793
    %4795 = vmatprep.subr.mxu0 0.0
    %4796 = vmatpush1.msra.mxu0 0.0
    %4797 = vmatprep.subr.mxu0 0.0
    %4798 = vmatpush1.msra.mxu0 0.0
    %4799 = vmatprep.subr.mxu0 0.0
    %4800 = vmatpush1.msra.mxu0 0.0
    %4801 = vmatprep.subr.mxu0 0.0
    %4802 = vmatpush1.msra.mxu0 0.0
    %4803 = vmatprep.subr.mxu0 0.0
    %4804 = vmatpush1.msra.mxu0 0.0
    %4805 = vmatprep.subr.mxu0 0.0
    %4806 = vmatpush1.msra.mxu0 0.0
    %4807 = vmatprep.subr.mxu0 0.0
    %4808 = vmatpush1.msra.mxu0 0.0
    %4809 = vmatprep.subr.mxu0 0.0
    %4810 = vmatpush1.msra.mxu0 0.0
    %4811 = vmatprep.subr.mxu0 0.0
    %4812 = vmatpush1.msra.mxu0 0.0
    %4813 = vmatprep.subr.mxu0 0.0
    %4814 = vmatpush1.msra.mxu0 0.0
    %4815 = vmatprep.subr.mxu0 0.0
    %4816 = vmatpush1.msra.mxu0 0.0
    %4817 = vmatprep.subr.mxu0 0.0
    %4818 = vmatpush1.msra.mxu0 0.0
    %4819 = vmatprep.subr.mxu0 0.0
    %4820 = vmatpush1.msra.mxu0 0.0
    %4821 = vmatprep.subr.mxu0 0.0
    %4822 = vmatpush1.msra.mxu0 0.0
    %4823 = vmatprep.subr.mxu0 0.0
    %4824 = vmatpush1.msra.mxu0 0.0
    %4825 = vmatprep.subr.mxu0 0.0
    %4826 = vmatpush1.msra.mxu0 0.0
    %4827 = vmatprep.subr.mxu0 0.0
    %4828 = vmatpush1.msra.mxu0 0.0
    %4829 = vmatprep.subr.mxu0 0.0
    %4830 = vmatpush1.msra.mxu0 0.0
    %4831 = vmatprep.subr.mxu0 0.0
    %4832 = vmatpush1.msra.mxu0 0.0
    %4833 = vmatprep.subr.mxu0 0.0
    %4834 = vmatpush1.msra.mxu0 0.0
    %4835 = vmatprep.subr.mxu0 0.0
    %4836 = vmatpush1.msra.mxu0 0.0
    %4837 = vmatprep.subr.mxu0 0.0
    %4838 = vmatpush1.msra.mxu0 0.0
    %4839 = vmatprep.subr.mxu0 0.0
    %4840 = vmatpush1.msra.mxu0 0.0
    %4841 = vmatprep.subr.mxu0 0.0
    %4842 = vmatpush1.msra.mxu0 0.0
    %4843 = vmatprep.subr.mxu0 0.0
    %4844 = vmatpush1.msra.mxu0 0.0
    %4845 = vmatprep.subr.mxu0 0.0
    %4846 = vmatpush1.msra.mxu0 0.0
    %4847 = vmatprep.subr.mxu0 0.0
    %4848 = vmatpush1.msra.mxu0 0.0
    %4849 = vmatprep.subr.mxu0 0.0
    %4850 = vmatpush1.msra.mxu0 0.0
    %4851 = vmatprep.mubr.f32.mxu0 0.0
    %v4852 = vand.u32 %v3032, 4294901760
    %4853 = vmatmul.mubr.f32.gmra.mrb[0].mxu0 %v4852
    %v4854 = vpop.f32.mrb[0].mxu0
    %v4855 = vadd.f32 %v4743, %v4854
    %v4856 = vpop.f32.mrb[0].mxu0
    %v4857 = vadd.f32 %v4745, %v4856
    %4858 = vdwg.mxu0
    %v4859 = vand.u32 %v2741, 4294901760
    %v4860 = vsub.f32 %v2741, %v4859
    %4861 = vmatprep.subr.mxu0 %v4860
    %v4862 = vand.u32 %v2740, 4294901760
    %v4863 = vsub.f32 %v2740, %v4862
    %4864 = vmatpush1.msra.mxu0 %v4863
    %v4865 = vand.u32 %v2773, 4294901760
    %v4866 = vsub.f32 %v2773, %v4865
    %4867 = vmatprep.subr.mxu0 %v4866
    %v4868 = vand.u32 %v2772, 4294901760
    %v4869 = vsub.f32 %v2772, %v4868
    %4870 = vmatpush1.msra.mxu0 %v4869
    %v4871 = vand.u32 %v2805, 4294901760
    %v4872 = vsub.f32 %v2805, %v4871
    %4873 = vmatprep.subr.mxu0 %v4872
    %v4874 = vand.u32 %v2804, 4294901760
    %v4875 = vsub.f32 %v2804, %v4874
    %4876 = vmatpush1.msra.mxu0 %v4875
    %v4877 = vand.u32 %v2837, 4294901760
    %v4878 = vsub.f32 %v2837, %v4877
    %4879 = vmatprep.subr.mxu0 %v4878
    %v4880 = vand.u32 %v2836, 4294901760
    %v4881 = vsub.f32 %v2836, %v4880
    %4882 = vmatpush1.msra.mxu0 %v4881
    %4883 = vmatprep.subr.mxu0 0.0
    %4884 = vmatpush1.msra.mxu0 0.0
    %4885 = vmatprep.subr.mxu0 0.0
    %4886 = vmatpush1.msra.mxu0 0.0
    %4887 = vmatprep.subr.mxu0 0.0
    %4888 = vmatpush1.msra.mxu0 0.0
    %4889 = vmatprep.subr.mxu0 0.0
    %4890 = vmatpush1.msra.mxu0 0.0
    %4891 = vmatprep.subr.mxu0 0.0
    %4892 = vmatpush1.msra.mxu0 0.0
    %4893 = vmatprep.subr.mxu0 0.0
    %4894 = vmatpush1.msra.mxu0 0.0
    %4895 = vmatprep.subr.mxu0 0.0
    %4896 = vmatpush1.msra.mxu0 0.0
    %4897 = vmatprep.subr.mxu0 0.0
    %4898 = vmatpush1.msra.mxu0 0.0
    %4899 = vmatprep.subr.mxu0 0.0
    %4900 = vmatpush1.msra.mxu0 0.0
    %4901 = vmatprep.subr.mxu0 0.0
    %4902 = vmatpush1.msra.mxu0 0.0
    %4903 = vmatprep.subr.mxu0 0.0
    %4904 = vmatpush1.msra.mxu0 0.0
    %4905 = vmatprep.subr.mxu0 0.0
    %4906 = vmatpush1.msra.mxu0 0.0
    %4907 = vmatprep.subr.mxu0 0.0
    %4908 = vmatpush1.msra.mxu0 0.0
    %4909 = vmatprep.subr.mxu0 0.0
    %4910 = vmatpush1.msra.mxu0 0.0
    %4911 = vmatprep.subr.mxu0 0.0
    %4912 = vmatpush1.msra.mxu0 0.0
    %4913 = vmatprep.subr.mxu0 0.0
    %4914 = vmatpush1.msra.mxu0 0.0
    %4915 = vmatprep.subr.mxu0 0.0
    %4916 = vmatpush1.msra.mxu0 0.0
    %4917 = vmatprep.subr.mxu0 0.0
    %4918 = vmatpush1.msra.mxu0 0.0
    %4919 = vmatprep.subr.mxu0 0.0
    %4920 = vmatpush1.msra.mxu0 0.0
    %4921 = vmatprep.subr.mxu0 0.0
    %4922 = vmatpush1.msra.mxu0 0.0
    %4923 = vmatprep.subr.mxu0 0.0
    %4924 = vmatpush1.msra.mxu0 0.0
    %4925 = vmatprep.subr.mxu0 0.0
    %4926 = vmatpush1.msra.mxu0 0.0
    %4927 = vmatprep.subr.mxu0 0.0
    %4928 = vmatpush1.msra.mxu0 0.0
    %4929 = vmatprep.subr.mxu0 0.0
    %4930 = vmatpush1.msra.mxu0 0.0
    %4931 = vmatprep.subr.mxu0 0.0
    %4932 = vmatpush1.msra.mxu0 0.0
    %4933 = vmatprep.subr.mxu0 0.0
    %4934 = vmatpush1.msra.mxu0 0.0
    %4935 = vmatprep.subr.mxu0 0.0
    %4936 = vmatpush1.msra.mxu0 0.0
    %4937 = vmatprep.subr.mxu0 0.0
    %4938 = vmatpush1.msra.mxu0 0.0
    %4939 = vmatprep.mubr.f32.mxu0 0.0
    %v4940 = vand.u32 %v3032, 4294901760
    %v4941 = vsub.f32 %v3032, %v4940
    %4942 = vmatmul.mubr.f32.gmra.mrb[0].mxu0 %v4941
    %v4943 = vpop.f32.mrb[0].mxu0
    %v4944 = vadd.f32 %v4855, %v4943
    %v4945 = vpop.f32.mrb[0].mxu0
    %v4946 = vadd.f32 %v4857, %v4945
    %4947 = vdwg.mxu0
    %v4948 = vand.u32 %v2741, 4294901760
    %4949 = vmatprep.subr.mxu0 %v4948
    %v4950 = vand.u32 %v2740, 4294901760
    %4951 = vmatpush1.msra.mxu0 %v4950
    %v4952 = vand.u32 %v2773, 4294901760
    %4953 = vmatprep.subr.mxu0 %v4952
    %v4954 = vand.u32 %v2772, 4294901760
    %4955 = vmatpush1.msra.mxu0 %v4954
    %v4956 = vand.u32 %v2805, 4294901760
    %4957 = vmatprep.subr.mxu0 %v4956
    %v4958 = vand.u32 %v2804, 4294901760
    %4959 = vmatpush1.msra.mxu0 %v4958
    %v4960 = vand.u32 %v2837, 4294901760
    %4961 = vmatprep.subr.mxu0 %v4960
    %v4962 = vand.u32 %v2836, 4294901760
    %4963 = vmatpush1.msra.mxu0 %v4962
    %4964 = vmatprep.subr.mxu0 0.0
    %4965 = vmatpush1.msra.mxu0 0.0
    %4966 = vmatprep.subr.mxu0 0.0
    %4967 = vmatpush1.msra.mxu0 0.0
    %4968 = vmatprep.subr.mxu0 0.0
    %4969 = vmatpush1.msra.mxu0 0.0
    %4970 = vmatprep.subr.mxu0 0.0
    %4971 = vmatpush1.msra.mxu0 0.0
    %4972 = vmatprep.subr.mxu0 0.0
    %4973 = vmatpush1.msra.mxu0 0.0
    %4974 = vmatprep.subr.mxu0 0.0
    %4975 = vmatpush1.msra.mxu0 0.0
    %4976 = vmatprep.subr.mxu0 0.0
    %4977 = vmatpush1.msra.mxu0 0.0
    %4978 = vmatprep.subr.mxu0 0.0
    %4979 = vmatpush1.msra.mxu0 0.0
    %4980 = vmatprep.subr.mxu0 0.0
    %4981 = vmatpush1.msra.mxu0 0.0
    %4982 = vmatprep.subr.mxu0 0.0
    %4983 = vmatpush1.msra.mxu0 0.0
    %4984 = vmatprep.subr.mxu0 0.0
    %4985 = vmatpush1.msra.mxu0 0.0
    %4986 = vmatprep.subr.mxu0 0.0
    %4987 = vmatpush1.msra.mxu0 0.0
    %4988 = vmatprep.subr.mxu0 0.0
    %4989 = vmatpush1.msra.mxu0 0.0
    %4990 = vmatprep.subr.mxu0 0.0
    %4991 = vmatpush1.msra.mxu0 0.0
    %4992 = vmatprep.subr.mxu0 0.0
    %4993 = vmatpush1.msra.mxu0 0.0
    %4994 = vmatprep.subr.mxu0 0.0
    %4995 = vmatpush1.msra.mxu0 0.0
    %4996 = vmatprep.subr.mxu0 0.0
    %4997 = vmatpush1.msra.mxu0 0.0
    %4998 = vmatprep.subr.mxu0 0.0
    %4999 = vmatpush1.msra.mxu0 0.0
    %5000 = vmatprep.subr.mxu0 0.0
    %5001 = vmatpush1.msra.mxu0 0.0
    %5002 = vmatprep.subr.mxu0 0.0
    %5003 = vmatpush1.msra.mxu0 0.0
    %5004 = vmatprep.subr.mxu0 0.0
    %5005 = vmatpush1.msra.mxu0 0.0
    %5006 = vmatprep.subr.mxu0 0.0
    %5007 = vmatpush1.msra.mxu0 0.0
    %5008 = vmatprep.subr.mxu0 0.0
    %5009 = vmatpush1.msra.mxu0 0.0
    %5010 = vmatprep.subr.mxu0 0.0
    %5011 = vmatpush1.msra.mxu0 0.0
    %5012 = vmatprep.subr.mxu0 0.0
    %5013 = vmatpush1.msra.mxu0 0.0
    %5014 = vmatprep.subr.mxu0 0.0
    %5015 = vmatpush1.msra.mxu0 0.0
    %5016 = vmatprep.subr.mxu0 0.0
    %5017 = vmatpush1.msra.mxu0 0.0
    %5018 = vmatprep.subr.mxu0 0.0
    %5019 = vmatpush1.msra.mxu0 0.0
    %5020 = vmatprep.mubr.f32.mxu0 0.0
    %v5021 = vand.u32 %v3032, 4294901760
    %v5022 = vsub.f32 %v3032, %v5021
    %v5023 = vand.u32 %v5022, 4294901760
    %5024 = vmatmul.mubr.f32.gmra.mrb[0].mxu0 %v5023
    %v5025 = vpop.f32.mrb[0].mxu0
    %v5026 = vadd.f32 %v4944, %v5025
    %v5027 = vpop.f32.mrb[0].mxu0
    %v5028 = vadd.f32 %v4946, %v5027
    %5029 = vdwg.mxu0
    %v5030 = vand.u32 %v2741, 4294901760
    %v5031 = vsub.f32 %v2741, %v5030
    %v5032 = vand.u32 %v5031, 4294901760
    %5033 = vmatprep.subr.mxu0 %v5032
    %v5034 = vand.u32 %v2740, 4294901760
    %v5035 = vsub.f32 %v2740, %v5034
    %v5036 = vand.u32 %v5035, 4294901760
    %5037 = vmatpush1.msra.mxu0 %v5036
    %v5038 = vand.u32 %v2773, 4294901760
    %v5039 = vsub.f32 %v2773, %v5038
    %v5040 = vand.u32 %v5039, 4294901760
    %5041 = vmatprep.subr.mxu0 %v5040
    %v5042 = vand.u32 %v2772, 4294901760
    %v5043 = vsub.f32 %v2772, %v5042
    %v5044 = vand.u32 %v5043, 4294901760
    %5045 = vmatpush1.msra.mxu0 %v5044
    %v5046 = vand.u32 %v2805, 4294901760
    %v5047 = vsub.f32 %v2805, %v5046
    %v5048 = vand.u32 %v5047, 4294901760
    %5049 = vmatprep.subr.mxu0 %v5048
    %v5050 = vand.u32 %v2804, 4294901760
    %v5051 = vsub.f32 %v2804, %v5050
    %v5052 = vand.u32 %v5051, 4294901760
    %5053 = vmatpush1.msra.mxu0 %v5052
    %v5054 = vand.u32 %v2837, 4294901760
    %v5055 = vsub.f32 %v2837, %v5054
    %v5056 = vand.u32 %v5055, 4294901760
    %5057 = vmatprep.subr.mxu0 %v5056
    %v5058 = vand.u32 %v2836, 4294901760
    %v5059 = vsub.f32 %v2836, %v5058
    %v5060 = vand.u32 %v5059, 4294901760
    %5061 = vmatpush1.msra.mxu0 %v5060
    %5062 = vmatprep.subr.mxu0 0.0
    %5063 = vmatpush1.msra.mxu0 0.0
    %5064 = vmatprep.subr.mxu0 0.0
    %5065 = vmatpush1.msra.mxu0 0.0
    %5066 = vmatprep.subr.mxu0 0.0
    %5067 = vmatpush1.msra.mxu0 0.0
    %5068 = vmatprep.subr.mxu0 0.0
    %5069 = vmatpush1.msra.mxu0 0.0
    %5070 = vmatprep.subr.mxu0 0.0
    %5071 = vmatpush1.msra.mxu0 0.0
    %5072 = vmatprep.subr.mxu0 0.0
    %5073 = vmatpush1.msra.mxu0 0.0
    %5074 = vmatprep.subr.mxu0 0.0
    %5075 = vmatpush1.msra.mxu0 0.0
    %5076 = vmatprep.subr.mxu0 0.0
    %5077 = vmatpush1.msra.mxu0 0.0
    %5078 = vmatprep.subr.mxu0 0.0
    %5079 = vmatpush1.msra.mxu0 0.0
    %5080 = vmatprep.subr.mxu0 0.0
    %5081 = vmatpush1.msra.mxu0 0.0
    %5082 = vmatprep.subr.mxu0 0.0
    %5083 = vmatpush1.msra.mxu0 0.0
    %5084 = vmatprep.subr.mxu0 0.0
    %5085 = vmatpush1.msra.mxu0 0.0
    %5086 = vmatprep.subr.mxu0 0.0
    %5087 = vmatpush1.msra.mxu0 0.0
    %5088 = vmatprep.subr.mxu0 0.0
    %5089 = vmatpush1.msra.mxu0 0.0
    %5090 = vmatprep.subr.mxu0 0.0
    %5091 = vmatpush1.msra.mxu0 0.0
    %5092 = vmatprep.subr.mxu0 0.0
    %5093 = vmatpush1.msra.mxu0 0.0
    %5094 = vmatprep.subr.mxu0 0.0
    %5095 = vmatpush1.msra.mxu0 0.0
    %5096 = vmatprep.subr.mxu0 0.0
    %5097 = vmatpush1.msra.mxu0 0.0
    %5098 = vmatprep.subr.mxu0 0.0
    %5099 = vmatpush1.msra.mxu0 0.0
    %5100 = vmatprep.subr.mxu0 0.0
    %5101 = vmatpush1.msra.mxu0 0.0
    %5102 = vmatprep.subr.mxu0 0.0
    %5103 = vmatpush1.msra.mxu0 0.0
    %5104 = vmatprep.subr.mxu0 0.0
    %5105 = vmatpush1.msra.mxu0 0.0
    %5106 = vmatprep.subr.mxu0 0.0
    %5107 = vmatpush1.msra.mxu0 0.0
    %5108 = vmatprep.subr.mxu0 0.0
    %5109 = vmatpush1.msra.mxu0 0.0
    %5110 = vmatprep.subr.mxu0 0.0
    %5111 = vmatpush1.msra.mxu0 0.0
    %5112 = vmatprep.subr.mxu0 0.0
    %5113 = vmatpush1.msra.mxu0 0.0
    %5114 = vmatprep.subr.mxu0 0.0
    %5115 = vmatpush1.msra.mxu0 0.0
    %5116 = vmatprep.subr.mxu0 0.0
    %5117 = vmatpush1.msra.mxu0 0.0
    %5118 = vmatprep.mubr.f32.mxu0 0.0
    %v5119 = vand.u32 %v3032, 4294901760
    %5120 = vmatmul.mubr.f32.gmra.mrb[0].mxu0 %v5119
    %v5121 = vpop.f32.mrb[0].mxu0
    %v5122 = vadd.f32 %v5026, %v5121
    %v5123 = vpop.f32.mrb[0].mxu0
    %v5124 = vadd.f32 %v5028, %v5123
    %5125 = vdwg.mxu0
    %v5126 = vand.u32 %v2741, 4294901760
    %5127 = vmatprep.subr.mxu0 %v5126
    %v5128 = vand.u32 %v2740, 4294901760
    %5129 = vmatpush1.msra.mxu0 %v5128
    %v5130 = vand.u32 %v2773, 4294901760
    %5131 = vmatprep.subr.mxu0 %v5130
    %v5132 = vand.u32 %v2772, 4294901760
    %5133 = vmatpush1.msra.mxu0 %v5132
    %v5134 = vand.u32 %v2805, 4294901760
    %5135 = vmatprep.subr.mxu0 %v5134
    %v5136 = vand.u32 %v2804, 4294901760
    %5137 = vmatpush1.msra.mxu0 %v5136
    %v5138 = vand.u32 %v2837, 4294901760
    %5139 = vmatprep.subr.mxu0 %v5138
    %v5140 = vand.u32 %v2836, 4294901760
    %5141 = vmatpush1.msra.mxu0 %v5140
    %5142 = vmatprep.subr.mxu0 0.0
    %5143 = vmatpush1.msra.mxu0 0.0
    %5144 = vmatprep.subr.mxu0 0.0
    %5145 = vmatpush1.msra.mxu0 0.0
    %5146 = vmatprep.subr.mxu0 0.0
    %5147 = vmatpush1.msra.mxu0 0.0
    %5148 = vmatprep.subr.mxu0 0.0
    %5149 = vmatpush1.msra.mxu0 0.0
    %5150 = vmatprep.subr.mxu0 0.0
    %5151 = vmatpush1.msra.mxu0 0.0
    %5152 = vmatprep.subr.mxu0 0.0
    %5153 = vmatpush1.msra.mxu0 0.0
    %5154 = vmatprep.subr.mxu0 0.0
    %5155 = vmatpush1.msra.mxu0 0.0
    %5156 = vmatprep.subr.mxu0 0.0
    %5157 = vmatpush1.msra.mxu0 0.0
    %5158 = vmatprep.subr.mxu0 0.0
    %5159 = vmatpush1.msra.mxu0 0.0
    %5160 = vmatprep.subr.mxu0 0.0
    %5161 = vmatpush1.msra.mxu0 0.0
    %5162 = vmatprep.subr.mxu0 0.0
    %5163 = vmatpush1.msra.mxu0 0.0
    %5164 = vmatprep.subr.mxu0 0.0
    %5165 = vmatpush1.msra.mxu0 0.0
    %5166 = vmatprep.subr.mxu0 0.0
    %5167 = vmatpush1.msra.mxu0 0.0
    %5168 = vmatprep.subr.mxu0 0.0
    %5169 = vmatpush1.msra.mxu0 0.0
    %5170 = vmatprep.subr.mxu0 0.0
    %5171 = vmatpush1.msra.mxu0 0.0
    %5172 = vmatprep.subr.mxu0 0.0
    %5173 = vmatpush1.msra.mxu0 0.0
    %5174 = vmatprep.subr.mxu0 0.0
    %5175 = vmatpush1.msra.mxu0 0.0
    %5176 = vmatprep.subr.mxu0 0.0
    %5177 = vmatpush1.msra.mxu0 0.0
    %5178 = vmatprep.subr.mxu0 0.0
    %5179 = vmatpush1.msra.mxu0 0.0
    %5180 = vmatprep.subr.mxu0 0.0
    %5181 = vmatpush1.msra.mxu0 0.0
    %5182 = vmatprep.subr.mxu0 0.0
    %5183 = vmatpush1.msra.mxu0 0.0
    %5184 = vmatprep.subr.mxu0 0.0
    %5185 = vmatpush1.msra.mxu0 0.0
    %5186 = vmatprep.subr.mxu0 0.0
    %5187 = vmatpush1.msra.mxu0 0.0
    %5188 = vmatprep.subr.mxu0 0.0
    %5189 = vmatpush1.msra.mxu0 0.0
    %5190 = vmatprep.subr.mxu0 0.0
    %5191 = vmatpush1.msra.mxu0 0.0
    %5192 = vmatprep.subr.mxu0 0.0
    %5193 = vmatpush1.msra.mxu0 0.0
    %5194 = vmatprep.subr.mxu0 0.0
    %5195 = vmatpush1.msra.mxu0 0.0
    %5196 = vmatprep.subr.mxu0 0.0
    %5197 = vmatpush1.msra.mxu0 0.0
    %5198 = vmatprep.mubr.f32.mxu0 0.0
    %v5199 = vand.u32 %v3032, 4294901760
    %5200 = vmatmul.mubr.f32.gmra.mrb[0].mxu0 %v5199
    %v5201 = vpop.f32.mrb[0].mxu0
    %v5202 = vadd.f32 %v5122, %v5201
    %v5203 = vpop.f32.mrb[0].mxu0
    %v5204 = vadd.f32 %v5124, %v5203
    %5205 = vdwg.mxu0
    %v5206 = vand.u32 %v2743, 4294901760
    %5207 = vmatprep.subr.mxu0 %v5206
    %v5208 = vand.u32 %v2742, 4294901760
    %5209 = vmatpush1.msra.mxu0 %v5208
    %v5210 = vand.u32 %v2775, 4294901760
    %5211 = vmatprep.subr.mxu0 %v5210
    %v5212 = vand.u32 %v2774, 4294901760
    %5213 = vmatpush1.msra.mxu0 %v5212
    %v5214 = vand.u32 %v2807, 4294901760
    %5215 = vmatprep.subr.mxu0 %v5214
    %v5216 = vand.u32 %v2806, 4294901760
    %5217 = vmatpush1.msra.mxu0 %v5216
    %v5218 = vand.u32 %v2839, 4294901760
    %5219 = vmatprep.subr.mxu0 %v5218
    %v5220 = vand.u32 %v2838, 4294901760
    %5221 = vmatpush1.msra.mxu0 %v5220
    %5222 = vmatprep.subr.mxu0 0.0
    %5223 = vmatpush1.msra.mxu0 0.0
    %5224 = vmatprep.subr.mxu0 0.0
    %5225 = vmatpush1.msra.mxu0 0.0
    %5226 = vmatprep.subr.mxu0 0.0
    %5227 = vmatpush1.msra.mxu0 0.0
    %5228 = vmatprep.subr.mxu0 0.0
    %5229 = vmatpush1.msra.mxu0 0.0
    %5230 = vmatprep.subr.mxu0 0.0
    %5231 = vmatpush1.msra.mxu0 0.0
    %5232 = vmatprep.subr.mxu0 0.0
    %5233 = vmatpush1.msra.mxu0 0.0
    %5234 = vmatprep.subr.mxu0 0.0
    %5235 = vmatpush1.msra.mxu0 0.0
    %5236 = vmatprep.subr.mxu0 0.0
    %5237 = vmatpush1.msra.mxu0 0.0
    %5238 = vmatprep.subr.mxu0 0.0
    %5239 = vmatpush1.msra.mxu0 0.0
    %5240 = vmatprep.subr.mxu0 0.0
    %5241 = vmatpush1.msra.mxu0 0.0
    %5242 = vmatprep.subr.mxu0 0.0
    %5243 = vmatpush1.msra.mxu0 0.0
    %5244 = vmatprep.subr.mxu0 0.0
    %5245 = vmatpush1.msra.mxu0 0.0
    %5246 = vmatprep.subr.mxu0 0.0
    %5247 = vmatpush1.msra.mxu0 0.0
    %5248 = vmatprep.subr.mxu0 0.0
    %5249 = vmatpush1.msra.mxu0 0.0
    %5250 = vmatprep.subr.mxu0 0.0
    %5251 = vmatpush1.msra.mxu0 0.0
    %5252 = vmatprep.subr.mxu0 0.0
    %5253 = vmatpush1.msra.mxu0 0.0
    %5254 = vmatprep.subr.mxu0 0.0
    %5255 = vmatpush1.msra.mxu0 0.0
    %5256 = vmatprep.subr.mxu0 0.0
    %5257 = vmatpush1.msra.mxu0 0.0
    %5258 = vmatprep.subr.mxu0 0.0
    %5259 = vmatpush1.msra.mxu0 0.0
    %5260 = vmatprep.subr.mxu0 0.0
    %5261 = vmatpush1.msra.mxu0 0.0
    %5262 = vmatprep.subr.mxu0 0.0
    %5263 = vmatpush1.msra.mxu0 0.0
    %5264 = vmatprep.subr.mxu0 0.0
    %5265 = vmatpush1.msra.mxu0 0.0
    %5266 = vmatprep.subr.mxu0 0.0
    %5267 = vmatpush1.msra.mxu0 0.0
    %5268 = vmatprep.subr.mxu0 0.0
    %5269 = vmatpush1.msra.mxu0 0.0
    %5270 = vmatprep.subr.mxu0 0.0
    %5271 = vmatpush1.msra.mxu0 0.0
    %5272 = vmatprep.subr.mxu0 0.0
    %5273 = vmatpush1.msra.mxu0 0.0
    %5274 = vmatprep.subr.mxu0 0.0
    %5275 = vmatpush1.msra.mxu0 0.0
    %5276 = vmatprep.subr.mxu0 0.0
    %5277 = vmatpush1.msra.mxu0 0.0
    %5278 = vmatprep.mubr.f32.mxu0 0.0
    %v5279 = vand.u32 %v3032, 4294901760
    %v5280 = vsub.f32 %v3032, %v5279
    %v5281 = vand.u32 %v5280, 4294901760
    %v5282 = vsub.f32 %v5280, %v5281
    %v5283 = vand.u32 %v5282, 4294901760
    %5284 = vmatmul.mubr.f32.gmra.mrb[0].mxu0 %v5283
    %v5285 = vpop.f32.mrb[0].mxu0
    %v5286 = vadd.f32 %v2905, %v5285
    %v5287 = vpop.f32.mrb[0].mxu0
    %v5288 = vadd.f32 %v2909, %v5287
    %5289 = vdwg.mxu0
    %v5290 = vand.u32 %v2743, 4294901760
    %v5291 = vsub.f32 %v2743, %v5290
    %v5292 = vand.u32 %v5291, 4294901760
    %v5293 = vsub.f32 %v5291, %v5292
    %v5294 = vand.u32 %v5293, 4294901760
    %5295 = vmatprep.subr.mxu0 %v5294
    %v5296 = vand.u32 %v2742, 4294901760
    %v5297 = vsub.f32 %v2742, %v5296
    %v5298 = vand.u32 %v5297, 4294901760
    %v5299 = vsub.f32 %v5297, %v5298
    %v5300 = vand.u32 %v5299, 4294901760
    %5301 = vmatpush1.msra.mxu0 %v5300
    %v5302 = vand.u32 %v2775, 4294901760
    %v5303 = vsub.f32 %v2775, %v5302
    %v5304 = vand.u32 %v5303, 4294901760
    %v5305 = vsub.f32 %v5303, %v5304
    %v5306 = vand.u32 %v5305, 4294901760
    %5307 = vmatprep.subr.mxu0 %v5306
    %v5308 = vand.u32 %v2774, 4294901760
    %v5309 = vsub.f32 %v2774, %v5308
    %v5310 = vand.u32 %v5309, 4294901760
    %v5311 = vsub.f32 %v5309, %v5310
    %v5312 = vand.u32 %v5311, 4294901760
    %5313 = vmatpush1.msra.mxu0 %v5312
    %v5314 = vand.u32 %v2807, 4294901760
    %v5315 = vsub.f32 %v2807, %v5314
    %v5316 = vand.u32 %v5315, 4294901760
    %v5317 = vsub.f32 %v5315, %v5316
    %v5318 = vand.u32 %v5317, 4294901760
    %5319 = vmatprep.subr.mxu0 %v5318
    %v5320 = vand.u32 %v2806, 4294901760
    %v5321 = vsub.f32 %v2806, %v5320
    %v5322 = vand.u32 %v5321, 4294901760
    %v5323 = vsub.f32 %v5321, %v5322
    %v5324 = vand.u32 %v5323, 4294901760
    %5325 = vmatpush1.msra.mxu0 %v5324
    %v5326 = vand.u32 %v2839, 4294901760
    %v5327 = vsub.f32 %v2839, %v5326
    %v5328 = vand.u32 %v5327, 4294901760
    %v5329 = vsub.f32 %v5327, %v5328
    %v5330 = vand.u32 %v5329, 4294901760
    %5331 = vmatprep.subr.mxu0 %v5330
    %v5332 = vand.u32 %v2838, 4294901760
    %v5333 = vsub.f32 %v2838, %v5332
    %v5334 = vand.u32 %v5333, 4294901760
    %v5335 = vsub.f32 %v5333, %v5334
    %v5336 = vand.u32 %v5335, 4294901760
    %5337 = vmatpush1.msra.mxu0 %v5336
    %5338 = vmatprep.subr.mxu0 0.0
    %5339 = vmatpush1.msra.mxu0 0.0
    %5340 = vmatprep.subr.mxu0 0.0
    %5341 = vmatpush1.msra.mxu0 0.0
    %5342 = vmatprep.subr.mxu0 0.0
    %5343 = vmatpush1.msra.mxu0 0.0
    %5344 = vmatprep.subr.mxu0 0.0
    %5345 = vmatpush1.msra.mxu0 0.0
    %5346 = vmatprep.subr.mxu0 0.0
    %5347 = vmatpush1.msra.mxu0 0.0
    %5348 = vmatprep.subr.mxu0 0.0
    %5349 = vmatpush1.msra.mxu0 0.0
    %5350 = vmatprep.subr.mxu0 0.0
    %5351 = vmatpush1.msra.mxu0 0.0
    %5352 = vmatprep.subr.mxu0 0.0
    %5353 = vmatpush1.msra.mxu0 0.0
    %5354 = vmatprep.subr.mxu0 0.0
    %5355 = vmatpush1.msra.mxu0 0.0
    %5356 = vmatprep.subr.mxu0 0.0
    %5357 = vmatpush1.msra.mxu0 0.0
    %5358 = vmatprep.subr.mxu0 0.0
    %5359 = vmatpush1.msra.mxu0 0.0
    %5360 = vmatprep.subr.mxu0 0.0
    %5361 = vmatpush1.msra.mxu0 0.0
    %5362 = vmatprep.subr.mxu0 0.0
    %5363 = vmatpush1.msra.mxu0 0.0
    %5364 = vmatprep.subr.mxu0 0.0
    %5365 = vmatpush1.msra.mxu0 0.0
    %5366 = vmatprep.subr.mxu0 0.0
    %5367 = vmatpush1.msra.mxu0 0.0
    %5368 = vmatprep.subr.mxu0 0.0
    %5369 = vmatpush1.msra.mxu0 0.0
    %5370 = vmatprep.subr.mxu0 0.0
    %5371 = vmatpush1.msra.mxu0 0.0
    %5372 = vmatprep.subr.mxu0 0.0
    %5373 = vmatpush1.msra.mxu0 0.0
    %5374 = vmatprep.subr.mxu0 0.0
    %5375 = vmatpush1.msra.mxu0 0.0
    %5376 = vmatprep.subr.mxu0 0.0
    %5377 = vmatpush1.msra.mxu0 0.0
    %5378 = vmatprep.subr.mxu0 0.0
    %5379 = vmatpush1.msra.mxu0 0.0
    %5380 = vmatprep.subr.mxu0 0.0
    %5381 = vmatpush1.msra.mxu0 0.0
    %5382 = vmatprep.subr.mxu0 0.0
    %5383 = vmatpush1.msra.mxu0 0.0
    %5384 = vmatprep.subr.mxu0 0.0
    %5385 = vmatpush1.msra.mxu0 0.0
    %5386 = vmatprep.subr.mxu0 0.0
    %5387 = vmatpush1.msra.mxu0 0.0
    %5388 = vmatprep.subr.mxu0 0.0
    %5389 = vmatpush1.msra.mxu0 0.0
    %5390 = vmatprep.subr.mxu0 0.0
    %5391 = vmatpush1.msra.mxu0 0.0
    %5392 = vmatprep.subr.mxu0 0.0
    %5393 = vmatpush1.msra.mxu0 0.0
    %5394 = vmatprep.mubr.f32.mxu0 0.0
    %v5395 = vand.u32 %v3032, 4294901760
    %5396 = vmatmul.mubr.f32.gmra.mrb[0].mxu0 %v5395
    %v5397 = vpop.f32.mrb[0].mxu0
    %v5398 = vadd.f32 %v5286, %v5397
    %v5399 = vpop.f32.mrb[0].mxu0
    %v5400 = vadd.f32 %v5288, %v5399
    %5401 = vdwg.mxu0
    %v5402 = vand.u32 %v2743, 4294901760
    %v5403 = vsub.f32 %v2743, %v5402
    %5404 = vmatprep.subr.mxu0 %v5403
    %v5405 = vand.u32 %v2742, 4294901760
    %v5406 = vsub.f32 %v2742, %v5405
    %5407 = vmatpush1.msra.mxu0 %v5406
    %v5408 = vand.u32 %v2775, 4294901760
    %v5409 = vsub.f32 %v2775, %v5408
    %5410 = vmatprep.subr.mxu0 %v5409
    %v5411 = vand.u32 %v2774, 4294901760
    %v5412 = vsub.f32 %v2774, %v5411
    %5413 = vmatpush1.msra.mxu0 %v5412
    %v5414 = vand.u32 %v2807, 4294901760
    %v5415 = vsub.f32 %v2807, %v5414
    %5416 = vmatprep.subr.mxu0 %v5415
    %v5417 = vand.u32 %v2806, 4294901760
    %v5418 = vsub.f32 %v2806, %v5417
    %5419 = vmatpush1.msra.mxu0 %v5418
    %v5420 = vand.u32 %v2839, 4294901760
    %v5421 = vsub.f32 %v2839, %v5420
    %5422 = vmatprep.subr.mxu0 %v5421
    %v5423 = vand.u32 %v2838, 4294901760
    %v5424 = vsub.f32 %v2838, %v5423
    %5425 = vmatpush1.msra.mxu0 %v5424
    %5426 = vmatprep.subr.mxu0 0.0
    %5427 = vmatpush1.msra.mxu0 0.0
    %5428 = vmatprep.subr.mxu0 0.0
    %5429 = vmatpush1.msra.mxu0 0.0
    %5430 = vmatprep.subr.mxu0 0.0
    %5431 = vmatpush1.msra.mxu0 0.0
    %5432 = vmatprep.subr.mxu0 0.0
    %5433 = vmatpush1.msra.mxu0 0.0
    %5434 = vmatprep.subr.mxu0 0.0
    %5435 = vmatpush1.msra.mxu0 0.0
    %5436 = vmatprep.subr.mxu0 0.0
    %5437 = vmatpush1.msra.mxu0 0.0
    %5438 = vmatprep.subr.mxu0 0.0
    %5439 = vmatpush1.msra.mxu0 0.0
    %5440 = vmatprep.subr.mxu0 0.0
    %5441 = vmatpush1.msra.mxu0 0.0
    %5442 = vmatprep.subr.mxu0 0.0
    %5443 = vmatpush1.msra.mxu0 0.0
    %5444 = vmatprep.subr.mxu0 0.0
    %5445 = vmatpush1.msra.mxu0 0.0
    %5446 = vmatprep.subr.mxu0 0.0
    %5447 = vmatpush1.msra.mxu0 0.0
    %5448 = vmatprep.subr.mxu0 0.0
    %5449 = vmatpush1.msra.mxu0 0.0
    %5450 = vmatprep.subr.mxu0 0.0
    %5451 = vmatpush1.msra.mxu0 0.0
    %5452 = vmatprep.subr.mxu0 0.0
    %5453 = vmatpush1.msra.mxu0 0.0
    %5454 = vmatprep.subr.mxu0 0.0
    %5455 = vmatpush1.msra.mxu0 0.0
    %5456 = vmatprep.subr.mxu0 0.0
    %5457 = vmatpush1.msra.mxu0 0.0
    %5458 = vmatprep.subr.mxu0 0.0
    %5459 = vmatpush1.msra.mxu0 0.0
    %5460 = vmatprep.subr.mxu0 0.0
    %5461 = vmatpush1.msra.mxu0 0.0
    %5462 = vmatprep.subr.mxu0 0.0
    %5463 = vmatpush1.msra.mxu0 0.0
    %5464 = vmatprep.subr.mxu0 0.0
    %5465 = vmatpush1.msra.mxu0 0.0
    %5466 = vmatprep.subr.mxu0 0.0
    %5467 = vmatpush1.msra.mxu0 0.0
    %5468 = vmatprep.subr.mxu0 0.0
    %5469 = vmatpush1.msra.mxu0 0.0
    %5470 = vmatprep.subr.mxu0 0.0
    %5471 = vmatpush1.msra.mxu0 0.0
    %5472 = vmatprep.subr.mxu0 0.0
    %5473 = vmatpush1.msra.mxu0 0.0
    %5474 = vmatprep.subr.mxu0 0.0
    %5475 = vmatpush1.msra.mxu0 0.0
    %5476 = vmatprep.subr.mxu0 0.0
    %5477 = vmatpush1.msra.mxu0 0.0
    %5478 = vmatprep.subr.mxu0 0.0
    %5479 = vmatpush1.msra.mxu0 0.0
    %5480 = vmatprep.subr.mxu0 0.0
    %5481 = vmatpush1.msra.mxu0 0.0
    %5482 = vmatprep.mubr.f32.mxu0 0.0
    %v5483 = vand.u32 %v3032, 4294901760
    %v5484 = vsub.f32 %v3032, %v5483
    %5485 = vmatmul.mubr.f32.gmra.mrb[0].mxu0 %v5484
    %v5486 = vpop.f32.mrb[0].mxu0
    %v5487 = vadd.f32 %v5398, %v5486
    %v5488 = vpop.f32.mrb[0].mxu0
    %v5489 = vadd.f32 %v5400, %v5488
    %5490 = vdwg.mxu0
    %v5491 = vand.u32 %v2743, 4294901760
    %5492 = vmatprep.subr.mxu0 %v5491
    %v5493 = vand.u32 %v2742, 4294901760
    %5494 = vmatpush1.msra.mxu0 %v5493
    %v5495 = vand.u32 %v2775, 4294901760
    %5496 = vmatprep.subr.mxu0 %v5495
    %v5497 = vand.u32 %v2774, 4294901760
    %5498 = vmatpush1.msra.mxu0 %v5497
    %v5499 = vand.u32 %v2807, 4294901760
    %5500 = vmatprep.subr.mxu0 %v5499
    %v5501 = vand.u32 %v2806, 4294901760
    %5502 = vmatpush1.msra.mxu0 %v5501
    %v5503 = vand.u32 %v2839, 4294901760
    %5504 = vmatprep.subr.mxu0 %v5503
    %v5505 = vand.u32 %v2838, 4294901760
    %5506 = vmatpush1.msra.mxu0 %v5505
    %5507 = vmatprep.subr.mxu0 0.0
    %5508 = vmatpush1.msra.mxu0 0.0
    %5509 = vmatprep.subr.mxu0 0.0
    %5510 = vmatpush1.msra.mxu0 0.0
    %5511 = vmatprep.subr.mxu0 0.0
    %5512 = vmatpush1.msra.mxu0 0.0
    %5513 = vmatprep.subr.mxu0 0.0
    %5514 = vmatpush1.msra.mxu0 0.0
    %5515 = vmatprep.subr.mxu0 0.0
    %5516 = vmatpush1.msra.mxu0 0.0
    %5517 = vmatprep.subr.mxu0 0.0
    %5518 = vmatpush1.msra.mxu0 0.0
    %5519 = vmatprep.subr.mxu0 0.0
    %5520 = vmatpush1.msra.mxu0 0.0
    %5521 = vmatprep.subr.mxu0 0.0
    %5522 = vmatpush1.msra.mxu0 0.0
    %5523 = vmatprep.subr.mxu0 0.0
    %5524 = vmatpush1.msra.mxu0 0.0
    %5525 = vmatprep.subr.mxu0 0.0
    %5526 = vmatpush1.msra.mxu0 0.0
    %5527 = vmatprep.subr.mxu0 0.0
    %5528 = vmatpush1.msra.mxu0 0.0
    %5529 = vmatprep.subr.mxu0 0.0
    %5530 = vmatpush1.msra.mxu0 0.0
    %5531 = vmatprep.subr.mxu0 0.0
    %5532 = vmatpush1.msra.mxu0 0.0
    %5533 = vmatprep.subr.mxu0 0.0
    %5534 = vmatpush1.msra.mxu0 0.0
    %5535 = vmatprep.subr.mxu0 0.0
    %5536 = vmatpush1.msra.mxu0 0.0
    %5537 = vmatprep.subr.mxu0 0.0
    %5538 = vmatpush1.msra.mxu0 0.0
    %5539 = vmatprep.subr.mxu0 0.0
    %5540 = vmatpush1.msra.mxu0 0.0
    %5541 = vmatprep.subr.mxu0 0.0
    %5542 = vmatpush1.msra.mxu0 0.0
    %5543 = vmatprep.subr.mxu0 0.0
    %5544 = vmatpush1.msra.mxu0 0.0
    %5545 = vmatprep.subr.mxu0 0.0
    %5546 = vmatpush1.msra.mxu0 0.0
    %5547 = vmatprep.subr.mxu0 0.0
    %5548 = vmatpush1.msra.mxu0 0.0
    %5549 = vmatprep.subr.mxu0 0.0
    %5550 = vmatpush1.msra.mxu0 0.0
    %5551 = vmatprep.subr.mxu0 0.0
    %5552 = vmatpush1.msra.mxu0 0.0
    %5553 = vmatprep.subr.mxu0 0.0
    %5554 = vmatpush1.msra.mxu0 0.0
    %5555 = vmatprep.subr.mxu0 0.0
    %5556 = vmatpush1.msra.mxu0 0.0
    %5557 = vmatprep.subr.mxu0 0.0
    %5558 = vmatpush1.msra.mxu0 0.0
    %5559 = vmatprep.subr.mxu0 0.0
    %5560 = vmatpush1.msra.mxu0 0.0
    %5561 = vmatprep.subr.mxu0 0.0
    %5562 = vmatpush1.msra.mxu0 0.0
    %5563 = vmatprep.mubr.f32.mxu0 0.0
    %v5564 = vand.u32 %v3032, 4294901760
    %v5565 = vsub.f32 %v3032, %v5564
    %v5566 = vand.u32 %v5565, 4294901760
    %5567 = vmatmul.mubr.f32.gmra.mrb[0].mxu0 %v5566
    %v5568 = vpop.f32.mrb[0].mxu0
    %v5569 = vadd.f32 %v5487, %v5568
    %v5570 = vpop.f32.mrb[0].mxu0
    %v5571 = vadd.f32 %v5489, %v5570
    %5572 = vdwg.mxu0
    %v5573 = vand.u32 %v2743, 4294901760
    %v5574 = vsub.f32 %v2743, %v5573
    %v5575 = vand.u32 %v5574, 4294901760
    %5576 = vmatprep.subr.mxu0 %v5575
    %v5577 = vand.u32 %v2742, 4294901760
    %v5578 = vsub.f32 %v2742, %v5577
    %v5579 = vand.u32 %v5578, 4294901760
    %5580 = vmatpush1.msra.mxu0 %v5579
    %v5581 = vand.u32 %v2775, 4294901760
    %v5582 = vsub.f32 %v2775, %v5581
    %v5583 = vand.u32 %v5582, 4294901760
    %5584 = vmatprep.subr.mxu0 %v5583
    %v5585 = vand.u32 %v2774, 4294901760
    %v5586 = vsub.f32 %v2774, %v5585
    %v5587 = vand.u32 %v5586, 4294901760
    %5588 = vmatpush1.msra.mxu0 %v5587
    %v5589 = vand.u32 %v2807, 4294901760
    %v5590 = vsub.f32 %v2807, %v5589
    %v5591 = vand.u32 %v5590, 4294901760
    %5592 = vmatprep.subr.mxu0 %v5591
    %v5593 = vand.u32 %v2806, 4294901760
    %v5594 = vsub.f32 %v2806, %v5593
    %v5595 = vand.u32 %v5594, 4294901760
    %5596 = vmatpush1.msra.mxu0 %v5595
    %v5597 = vand.u32 %v2839, 4294901760
    %v5598 = vsub.f32 %v2839, %v5597
    %v5599 = vand.u32 %v5598, 4294901760
    %5600 = vmatprep.subr.mxu0 %v5599
    %v5601 = vand.u32 %v2838, 4294901760
    %v5602 = vsub.f32 %v2838, %v5601
    %v5603 = vand.u32 %v5602, 4294901760
    %5604 = vmatpush1.msra.mxu0 %v5603
    %5605 = vmatprep.subr.mxu0 0.0
    %5606 = vmatpush1.msra.mxu0 0.0
    %5607 = vmatprep.subr.mxu0 0.0
    %5608 = vmatpush1.msra.mxu0 0.0
    %5609 = vmatprep.subr.mxu0 0.0
    %5610 = vmatpush1.msra.mxu0 0.0
    %5611 = vmatprep.subr.mxu0 0.0
    %5612 = vmatpush1.msra.mxu0 0.0
    %5613 = vmatprep.subr.mxu0 0.0
    %5614 = vmatpush1.msra.mxu0 0.0
    %5615 = vmatprep.subr.mxu0 0.0
    %5616 = vmatpush1.msra.mxu0 0.0
    %5617 = vmatprep.subr.mxu0 0.0
    %5618 = vmatpush1.msra.mxu0 0.0
    %5619 = vmatprep.subr.mxu0 0.0
    %5620 = vmatpush1.msra.mxu0 0.0
    %5621 = vmatprep.subr.mxu0 0.0
    %5622 = vmatpush1.msra.mxu0 0.0
    %5623 = vmatprep.subr.mxu0 0.0
    %5624 = vmatpush1.msra.mxu0 0.0
    %5625 = vmatprep.subr.mxu0 0.0
    %5626 = vmatpush1.msra.mxu0 0.0
    %5627 = vmatprep.subr.mxu0 0.0
    %5628 = vmatpush1.msra.mxu0 0.0
    %5629 = vmatprep.subr.mxu0 0.0
    %5630 = vmatpush1.msra.mxu0 0.0
    %5631 = vmatprep.subr.mxu0 0.0
    %5632 = vmatpush1.msra.mxu0 0.0
    %5633 = vmatprep.subr.mxu0 0.0
    %5634 = vmatpush1.msra.mxu0 0.0
    %5635 = vmatprep.subr.mxu0 0.0
    %5636 = vmatpush1.msra.mxu0 0.0
    %5637 = vmatprep.subr.mxu0 0.0
    %5638 = vmatpush1.msra.mxu0 0.0
    %5639 = vmatprep.subr.mxu0 0.0
    %5640 = vmatpush1.msra.mxu0 0.0
    %5641 = vmatprep.subr.mxu0 0.0
    %5642 = vmatpush1.msra.mxu0 0.0
    %5643 = vmatprep.subr.mxu0 0.0
    %5644 = vmatpush1.msra.mxu0 0.0
    %5645 = vmatprep.subr.mxu0 0.0
    %5646 = vmatpush1.msra.mxu0 0.0
    %5647 = vmatprep.subr.mxu0 0.0
    %5648 = vmatpush1.msra.mxu0 0.0
    %5649 = vmatprep.subr.mxu0 0.0
    %5650 = vmatpush1.msra.mxu0 0.0
    %5651 = vmatprep.subr.mxu0 0.0
    %5652 = vmatpush1.msra.mxu0 0.0
    %5653 = vmatprep.subr.mxu0 0.0
    %5654 = vmatpush1.msra.mxu0 0.0
    %5655 = vmatprep.subr.mxu0 0.0
    %5656 = vmatpush1.msra.mxu0 0.0
    %5657 = vmatprep.subr.mxu0 0.0
    %5658 = vmatpush1.msra.mxu0 0.0
    %5659 = vmatprep.subr.mxu0 0.0
    %5660 = vmatpush1.msra.mxu0 0.0
    %5661 = vmatprep.mubr.f32.mxu0 0.0
    %v5662 = vand.u32 %v3032, 4294901760
    %5663 = vmatmul.mubr.f32.gmra.mrb[0].mxu0 %v5662
    %v5664 = vpop.f32.mrb[0].mxu0
    %v5665 = vadd.f32 %v5569, %v5664
    %v5666 = vpop.f32.mrb[0].mxu0
    %v5667 = vadd.f32 %v5571, %v5666
    %5668 = vdwg.mxu0
    %v5669 = vand.u32 %v2743, 4294901760
    %5670 = vmatprep.subr.mxu0 %v5669
    %v5671 = vand.u32 %v2742, 4294901760
    %5672 = vmatpush1.msra.mxu0 %v5671
    %v5673 = vand.u32 %v2775, 4294901760
    %5674 = vmatprep.subr.mxu0 %v5673
    %v5675 = vand.u32 %v2774, 4294901760
    %5676 = vmatpush1.msra.mxu0 %v5675
    %v5677 = vand.u32 %v2807, 4294901760
    %5678 = vmatprep.subr.mxu0 %v5677
    %v5679 = vand.u32 %v2806, 4294901760
    %5680 = vmatpush1.msra.mxu0 %v5679
    %v5681 = vand.u32 %v2839, 4294901760
    %5682 = vmatprep.subr.mxu0 %v5681
    %v5683 = vand.u32 %v2838, 4294901760
    %5684 = vmatpush1.msra.mxu0 %v5683
    %5685 = vmatprep.subr.mxu0 0.0
    %5686 = vmatpush1.msra.mxu0 0.0
    %5687 = vmatprep.subr.mxu0 0.0
    %5688 = vmatpush1.msra.mxu0 0.0
    %5689 = vmatprep.subr.mxu0 0.0
    %5690 = vmatpush1.msra.mxu0 0.0
    %5691 = vmatprep.subr.mxu0 0.0
    %5692 = vmatpush1.msra.mxu0 0.0
    %5693 = vmatprep.subr.mxu0 0.0
    %5694 = vmatpush1.msra.mxu0 0.0
    %5695 = vmatprep.subr.mxu0 0.0
    %5696 = vmatpush1.msra.mxu0 0.0
    %5697 = vmatprep.subr.mxu0 0.0
    %5698 = vmatpush1.msra.mxu0 0.0
    %5699 = vmatprep.subr.mxu0 0.0
    %5700 = vmatpush1.msra.mxu0 0.0
    %5701 = vmatprep.subr.mxu0 0.0
    %5702 = vmatpush1.msra.mxu0 0.0
    %5703 = vmatprep.subr.mxu0 0.0
    %5704 = vmatpush1.msra.mxu0 0.0
    %5705 = vmatprep.subr.mxu0 0.0
    %5706 = vmatpush1.msra.mxu0 0.0
    %5707 = vmatprep.subr.mxu0 0.0
    %5708 = vmatpush1.msra.mxu0 0.0
    %5709 = vmatprep.subr.mxu0 0.0
    %5710 = vmatpush1.msra.mxu0 0.0
    %5711 = vmatprep.subr.mxu0 0.0
    %5712 = vmatpush1.msra.mxu0 0.0
    %5713 = vmatprep.subr.mxu0 0.0
    %5714 = vmatpush1.msra.mxu0 0.0
    %5715 = vmatprep.subr.mxu0 0.0
    %5716 = vmatpush1.msra.mxu0 0.0
    %5717 = vmatprep.subr.mxu0 0.0
    %5718 = vmatpush1.msra.mxu0 0.0
    %5719 = vmatprep.subr.mxu0 0.0
    %5720 = vmatpush1.msra.mxu0 0.0
    %5721 = vmatprep.subr.mxu0 0.0
    %5722 = vmatpush1.msra.mxu0 0.0
    %5723 = vmatprep.subr.mxu0 0.0
    %5724 = vmatpush1.msra.mxu0 0.0
    %5725 = vmatprep.subr.mxu0 0.0
    %5726 = vmatpush1.msra.mxu0 0.0
    %5727 = vmatprep.subr.mxu0 0.0
    %5728 = vmatpush1.msra.mxu0 0.0
    %5729 = vmatprep.subr.mxu0 0.0
    %5730 = vmatpush1.msra.mxu0 0.0
    %5731 = vmatprep.subr.mxu0 0.0
    %5732 = vmatpush1.msra.mxu0 0.0
    %5733 = vmatprep.subr.mxu0 0.0
    %5734 = vmatpush1.msra.mxu0 0.0
    %5735 = vmatprep.subr.mxu0 0.0
    %5736 = vmatpush1.msra.mxu0 0.0
    %5737 = vmatprep.subr.mxu0 0.0
    %5738 = vmatpush1.msra.mxu0 0.0
    %5739 = vmatprep.subr.mxu0 0.0
    %5740 = vmatpush1.msra.mxu0 0.0
    %5741 = vmatprep.mubr.f32.mxu0 0.0
    %v5742 = vand.u32 %v3032, 4294901760
    %5743 = vmatmul.mubr.f32.gmra.mrb[0].mxu0 %v5742
    %v5744 = vpop.f32.mrb[0].mxu0
    %v5745 = vadd.f32 %v5665, %v5744
    %v5746 = vpop.f32.mrb[0].mxu0
    %v5747 = vadd.f32 %v5667, %v5746
    %5748 = vdwg.mxu0
    %v5749 = vand.u32 %v2745, 4294901760
    %5750 = vmatprep.subr.mxu0 %v5749
    %v5751 = vand.u32 %v2744, 4294901760
    %5752 = vmatpush1.msra.mxu0 %v5751
    %v5753 = vand.u32 %v2777, 4294901760
    %5754 = vmatprep.subr.mxu0 %v5753
    %v5755 = vand.u32 %v2776, 4294901760
    %5756 = vmatpush1.msra.mxu0 %v5755
    %v5757 = vand.u32 %v2809, 4294901760
    %5758 = vmatprep.subr.mxu0 %v5757
    %v5759 = vand.u32 %v2808, 4294901760
    %5760 = vmatpush1.msra.mxu0 %v5759
    %v5761 = vand.u32 %v2841, 4294901760
    %5762 = vmatprep.subr.mxu0 %v5761
    %v5763 = vand.u32 %v2840, 4294901760
    %5764 = vmatpush1.msra.mxu0 %v5763
    %5765 = vmatprep.subr.mxu0 0.0
    %5766 = vmatpush1.msra.mxu0 0.0
    %5767 = vmatprep.subr.mxu0 0.0
    %5768 = vmatpush1.msra.mxu0 0.0
    %5769 = vmatprep.subr.mxu0 0.0
    %5770 = vmatpush1.msra.mxu0 0.0
    %5771 = vmatprep.subr.mxu0 0.0
    %5772 = vmatpush1.msra.mxu0 0.0
    %5773 = vmatprep.subr.mxu0 0.0
    %5774 = vmatpush1.msra.mxu0 0.0
    %5775 = vmatprep.subr.mxu0 0.0
    %5776 = vmatpush1.msra.mxu0 0.0
    %5777 = vmatprep.subr.mxu0 0.0
    %5778 = vmatpush1.msra.mxu0 0.0
    %5779 = vmatprep.subr.mxu0 0.0
    %5780 = vmatpush1.msra.mxu0 0.0
    %5781 = vmatprep.subr.mxu0 0.0
    %5782 = vmatpush1.msra.mxu0 0.0
    %5783 = vmatprep.subr.mxu0 0.0
    %5784 = vmatpush1.msra.mxu0 0.0
    %5785 = vmatprep.subr.mxu0 0.0
    %5786 = vmatpush1.msra.mxu0 0.0
    %5787 = vmatprep.subr.mxu0 0.0
    %5788 = vmatpush1.msra.mxu0 0.0
    %5789 = vmatprep.subr.mxu0 0.0
    %5790 = vmatpush1.msra.mxu0 0.0
    %5791 = vmatprep.subr.mxu0 0.0
    %5792 = vmatpush1.msra.mxu0 0.0
    %5793 = vmatprep.subr.mxu0 0.0
    %5794 = vmatpush1.msra.mxu0 0.0
    %5795 = vmatprep.subr.mxu0 0.0
    %5796 = vmatpush1.msra.mxu0 0.0
    %5797 = vmatprep.subr.mxu0 0.0
    %5798 = vmatpush1.msra.mxu0 0.0
    %5799 = vmatprep.subr.mxu0 0.0
    %5800 = vmatpush1.msra.mxu0 0.0
    %5801 = vmatprep.subr.mxu0 0.0
    %5802 = vmatpush1.msra.mxu0 0.0
    %5803 = vmatprep.subr.mxu0 0.0
    %5804 = vmatpush1.msra.mxu0 0.0
    %5805 = vmatprep.subr.mxu0 0.0
    %5806 = vmatpush1.msra.mxu0 0.0
    %5807 = vmatprep.subr.mxu0 0.0
    %5808 = vmatpush1.msra.mxu0 0.0
    %5809 = vmatprep.subr.mxu0 0.0
    %5810 = vmatpush1.msra.mxu0 0.0
    %5811 = vmatprep.subr.mxu0 0.0
    %5812 = vmatpush1.msra.mxu0 0.0
    %5813 = vmatprep.subr.mxu0 0.0
    %5814 = vmatpush1.msra.mxu0 0.0
    %5815 = vmatprep.subr.mxu0 0.0
    %5816 = vmatpush1.msra.mxu0 0.0
    %5817 = vmatprep.subr.mxu0 0.0
    %5818 = vmatpush1.msra.mxu0 0.0
    %5819 = vmatprep.subr.mxu0 0.0
    %5820 = vmatpush1.msra.mxu0 0.0
    %5821 = vmatprep.mubr.f32.mxu0 0.0
    %v5822 = vand.u32 %v3032, 4294901760
    %v5823 = vsub.f32 %v3032, %v5822
    %v5824 = vand.u32 %v5823, 4294901760
    %v5825 = vsub.f32 %v5823, %v5824
    %v5826 = vand.u32 %v5825, 4294901760
    %5827 = vmatmul.mubr.f32.gmra.mrb[0].mxu0 %v5826
    %v5828 = vpop.f32.mrb[0].mxu0
    %v5829 = vadd.f32 %v2913, %v5828
    %v5830 = vpop.f32.mrb[0].mxu0
    %v5831 = vadd.f32 %v2917, %v5830
    %5832 = vdwg.mxu0
    %v5833 = vand.u32 %v2745, 4294901760
    %v5834 = vsub.f32 %v2745, %v5833
    %v5835 = vand.u32 %v5834, 4294901760
    %v5836 = vsub.f32 %v5834, %v5835
    %v5837 = vand.u32 %v5836, 4294901760
    %5838 = vmatprep.subr.mxu0 %v5837
    %v5839 = vand.u32 %v2744, 4294901760
    %v5840 = vsub.f32 %v2744, %v5839
    %v5841 = vand.u32 %v5840, 4294901760
    %v5842 = vsub.f32 %v5840, %v5841
    %v5843 = vand.u32 %v5842, 4294901760
    %5844 = vmatpush1.msra.mxu0 %v5843
    %v5845 = vand.u32 %v2777, 4294901760
    %v5846 = vsub.f32 %v2777, %v5845
    %v5847 = vand.u32 %v5846, 4294901760
    %v5848 = vsub.f32 %v5846, %v5847
    %v5849 = vand.u32 %v5848, 4294901760
    %5850 = vmatprep.subr.mxu0 %v5849
    %v5851 = vand.u32 %v2776, 4294901760
    %v5852 = vsub.f32 %v2776, %v5851
    %v5853 = vand.u32 %v5852, 4294901760
    %v5854 = vsub.f32 %v5852, %v5853
    %v5855 = vand.u32 %v5854, 4294901760
    %5856 = vmatpush1.msra.mxu0 %v5855
    %v5857 = vand.u32 %v2809, 4294901760
    %v5858 = vsub.f32 %v2809, %v5857
    %v5859 = vand.u32 %v5858, 4294901760
    %v5860 = vsub.f32 %v5858, %v5859
    %v5861 = vand.u32 %v5860, 4294901760
    %5862 = vmatprep.subr.mxu0 %v5861
    %v5863 = vand.u32 %v2808, 4294901760
    %v5864 = vsub.f32 %v2808, %v5863
    %v5865 = vand.u32 %v5864, 4294901760
    %v5866 = vsub.f32 %v5864, %v5865
    %v5867 = vand.u32 %v5866, 4294901760
    %5868 = vmatpush1.msra.mxu0 %v5867
    %v5869 = vand.u32 %v2841, 4294901760
    %v5870 = vsub.f32 %v2841, %v5869
    %v5871 = vand.u32 %v5870, 4294901760
    %v5872 = vsub.f32 %v5870, %v5871
    %v5873 = vand.u32 %v5872, 4294901760
    %5874 = vmatprep.subr.mxu0 %v5873
    %v5875 = vand.u32 %v2840, 4294901760
    %v5876 = vsub.f32 %v2840, %v5875
    %v5877 = vand.u32 %v5876, 4294901760
    %v5878 = vsub.f32 %v5876, %v5877
    %v5879 = vand.u32 %v5878, 4294901760
    %5880 = vmatpush1.msra.mxu0 %v5879
    %5881 = vmatprep.subr.mxu0 0.0
    %5882 = vmatpush1.msra.mxu0 0.0
    %5883 = vmatprep.subr.mxu0 0.0
    %5884 = vmatpush1.msra.mxu0 0.0
    %5885 = vmatprep.subr.mxu0 0.0
    %5886 = vmatpush1.msra.mxu0 0.0
    %5887 = vmatprep.subr.mxu0 0.0
    %5888 = vmatpush1.msra.mxu0 0.0
    %5889 = vmatprep.subr.mxu0 0.0
    %5890 = vmatpush1.msra.mxu0 0.0
    %5891 = vmatprep.subr.mxu0 0.0
    %5892 = vmatpush1.msra.mxu0 0.0
    %5893 = vmatprep.subr.mxu0 0.0
    %5894 = vmatpush1.msra.mxu0 0.0
    %5895 = vmatprep.subr.mxu0 0.0
    %5896 = vmatpush1.msra.mxu0 0.0
    %5897 = vmatprep.subr.mxu0 0.0
    %5898 = vmatpush1.msra.mxu0 0.0
    %5899 = vmatprep.subr.mxu0 0.0
    %5900 = vmatpush1.msra.mxu0 0.0
    %5901 = vmatprep.subr.mxu0 0.0
    %5902 = vmatpush1.msra.mxu0 0.0
    %5903 = vmatprep.subr.mxu0 0.0
    %5904 = vmatpush1.msra.mxu0 0.0
    %5905 = vmatprep.subr.mxu0 0.0
    %5906 = vmatpush1.msra.mxu0 0.0
    %5907 = vmatprep.subr.mxu0 0.0
    %5908 = vmatpush1.msra.mxu0 0.0
    %5909 = vmatprep.subr.mxu0 0.0
    %5910 = vmatpush1.msra.mxu0 0.0
    %5911 = vmatprep.subr.mxu0 0.0
    %5912 = vmatpush1.msra.mxu0 0.0
    %5913 = vmatprep.subr.mxu0 0.0
    %5914 = vmatpush1.msra.mxu0 0.0
    %5915 = vmatprep.subr.mxu0 0.0
    %5916 = vmatpush1.msra.mxu0 0.0
    %5917 = vmatprep.subr.mxu0 0.0
    %5918 = vmatpush1.msra.mxu0 0.0
    %5919 = vmatprep.subr.mxu0 0.0
    %5920 = vmatpush1.msra.mxu0 0.0
    %5921 = vmatprep.subr.mxu0 0.0
    %5922 = vmatpush1.msra.mxu0 0.0
    %5923 = vmatprep.subr.mxu0 0.0
    %5924 = vmatpush1.msra.mxu0 0.0
    %5925 = vmatprep.subr.mxu0 0.0
    %5926 = vmatpush1.msra.mxu0 0.0
    %5927 = vmatprep.subr.mxu0 0.0
    %5928 = vmatpush1.msra.mxu0 0.0
    %5929 = vmatprep.subr.mxu0 0.0
    %5930 = vmatpush1.msra.mxu0 0.0
    %5931 = vmatprep.subr.mxu0 0.0
    %5932 = vmatpush1.msra.mxu0 0.0
    %5933 = vmatprep.subr.mxu0 0.0
    %5934 = vmatpush1.msra.mxu0 0.0
    %5935 = vmatprep.subr.mxu0 0.0
    %5936 = vmatpush1.msra.mxu0 0.0
    %5937 = vmatprep.mubr.f32.mxu0 0.0
    %v5938 = vand.u32 %v3032, 4294901760
    %5939 = vmatmul.mubr.f32.gmra.mrb[0].mxu0 %v5938
    %v5940 = vpop.f32.mrb[0].mxu0
    %v5941 = vadd.f32 %v5829, %v5940
    %v5942 = vpop.f32.mrb[0].mxu0
    %v5943 = vadd.f32 %v5831, %v5942
    %5944 = vdwg.mxu0
    %v5945 = vand.u32 %v2745, 4294901760
    %v5946 = vsub.f32 %v2745, %v5945
    %5947 = vmatprep.subr.mxu0 %v5946
    %v5948 = vand.u32 %v2744, 4294901760
    %v5949 = vsub.f32 %v2744, %v5948
    %5950 = vmatpush1.msra.mxu0 %v5949
    %v5951 = vand.u32 %v2777, 4294901760
    %v5952 = vsub.f32 %v2777, %v5951
    %5953 = vmatprep.subr.mxu0 %v5952
    %v5954 = vand.u32 %v2776, 4294901760
    %v5955 = vsub.f32 %v2776, %v5954
    %5956 = vmatpush1.msra.mxu0 %v5955
    %v5957 = vand.u32 %v2809, 4294901760
    %v5958 = vsub.f32 %v2809, %v5957
    %5959 = vmatprep.subr.mxu0 %v5958
    %v5960 = vand.u32 %v2808, 4294901760
    %v5961 = vsub.f32 %v2808, %v5960
    %5962 = vmatpush1.msra.mxu0 %v5961
    %v5963 = vand.u32 %v2841, 4294901760
    %v5964 = vsub.f32 %v2841, %v5963
    %5965 = vmatprep.subr.mxu0 %v5964
    %v5966 = vand.u32 %v2840, 4294901760
    %v5967 = vsub.f32 %v2840, %v5966
    %5968 = vmatpush1.msra.mxu0 %v5967
    %5969 = vmatprep.subr.mxu0 0.0
    %5970 = vmatpush1.msra.mxu0 0.0
    %5971 = vmatprep.subr.mxu0 0.0
    %5972 = vmatpush1.msra.mxu0 0.0
    %5973 = vmatprep.subr.mxu0 0.0
    %5974 = vmatpush1.msra.mxu0 0.0
    %5975 = vmatprep.subr.mxu0 0.0
    %5976 = vmatpush1.msra.mxu0 0.0
    %5977 = vmatprep.subr.mxu0 0.0
    %5978 = vmatpush1.msra.mxu0 0.0
    %5979 = vmatprep.subr.mxu0 0.0
    %5980 = vmatpush1.msra.mxu0 0.0
    %5981 = vmatprep.subr.mxu0 0.0
    %5982 = vmatpush1.msra.mxu0 0.0
    %5983 = vmatprep.subr.mxu0 0.0
    %5984 = vmatpush1.msra.mxu0 0.0
    %5985 = vmatprep.subr.mxu0 0.0
    %5986 = vmatpush1.msra.mxu0 0.0
    %5987 = vmatprep.subr.mxu0 0.0
    %5988 = vmatpush1.msra.mxu0 0.0
    %5989 = vmatprep.subr.mxu0 0.0
    %5990 = vmatpush1.msra.mxu0 0.0
    %5991 = vmatprep.subr.mxu0 0.0
    %5992 = vmatpush1.msra.mxu0 0.0
    %5993 = vmatprep.subr.mxu0 0.0
    %5994 = vmatpush1.msra.mxu0 0.0
    %5995 = vmatprep.subr.mxu0 0.0
    %5996 = vmatpush1.msra.mxu0 0.0
    %5997 = vmatprep.subr.mxu0 0.0
    %5998 = vmatpush1.msra.mxu0 0.0
    %5999 = vmatprep.subr.mxu0 0.0
    %6000 = vmatpush1.msra.mxu0 0.0
    %6001 = vmatprep.subr.mxu0 0.0
    %6002 = vmatpush1.msra.mxu0 0.0
    %6003 = vmatprep.subr.mxu0 0.0
    %6004 = vmatpush1.msra.mxu0 0.0
    %6005 = vmatprep.subr.mxu0 0.0
    %6006 = vmatpush1.msra.mxu0 0.0
    %6007 = vmatprep.subr.mxu0 0.0
    %6008 = vmatpush1.msra.mxu0 0.0
    %6009 = vmatprep.subr.mxu0 0.0
    %6010 = vmatpush1.msra.mxu0 0.0
    %6011 = vmatprep.subr.mxu0 0.0
    %6012 = vmatpush1.msra.mxu0 0.0
    %6013 = vmatprep.subr.mxu0 0.0
    %6014 = vmatpush1.msra.mxu0 0.0
    %6015 = vmatprep.subr.mxu0 0.0
    %6016 = vmatpush1.msra.mxu0 0.0
    %6017 = vmatprep.subr.mxu0 0.0
    %6018 = vmatpush1.msra.mxu0 0.0
    %6019 = vmatprep.subr.mxu0 0.0
    %6020 = vmatpush1.msra.mxu0 0.0
    %6021 = vmatprep.subr.mxu0 0.0
    %6022 = vmatpush1.msra.mxu0 0.0
    %6023 = vmatprep.subr.mxu0 0.0
    %6024 = vmatpush1.msra.mxu0 0.0
    %6025 = vmatprep.mubr.f32.mxu0 0.0
    %v6026 = vand.u32 %v3032, 4294901760
    %v6027 = vsub.f32 %v3032, %v6026
    %6028 = vmatmul.mubr.f32.gmra.mrb[0].mxu0 %v6027
    %v6029 = vpop.f32.mrb[0].mxu0
    %v6030 = vadd.f32 %v5941, %v6029
    %v6031 = vpop.f32.mrb[0].mxu0
    %v6032 = vadd.f32 %v5943, %v6031
    %6033 = vdwg.mxu0
    %v6034 = vand.u32 %v2745, 4294901760
    %6035 = vmatprep.subr.mxu0 %v6034
    %v6036 = vand.u32 %v2744, 4294901760
    %6037 = vmatpush1.msra.mxu0 %v6036
    %v6038 = vand.u32 %v2777, 4294901760
    %6039 = vmatprep.subr.mxu0 %v6038
    %v6040 = vand.u32 %v2776, 4294901760
    %6041 = vmatpush1.msra.mxu0 %v6040
    %v6042 = vand.u32 %v2809, 4294901760
    %6043 = vmatprep.subr.mxu0 %v6042
    %v6044 = vand.u32 %v2808, 4294901760
    %6045 = vmatpush1.msra.mxu0 %v6044
    %v6046 = vand.u32 %v2841, 4294901760
    %6047 = vmatprep.subr.mxu0 %v6046
    %v6048 = vand.u32 %v2840, 4294901760
    %6049 = vmatpush1.msra.mxu0 %v6048
    %6050 = vmatprep.subr.mxu0 0.0
    %6051 = vmatpush1.msra.mxu0 0.0
    %6052 = vmatprep.subr.mxu0 0.0
    %6053 = vmatpush1.msra.mxu0 0.0
    %6054 = vmatprep.subr.mxu0 0.0
    %6055 = vmatpush1.msra.mxu0 0.0
    %6056 = vmatprep.subr.mxu0 0.0
    %6057 = vmatpush1.msra.mxu0 0.0
    %6058 = vmatprep.subr.mxu0 0.0
    %6059 = vmatpush1.msra.mxu0 0.0
    %6060 = vmatprep.subr.mxu0 0.0
    %6061 = vmatpush1.msra.mxu0 0.0
    %6062 = vmatprep.subr.mxu0 0.0
    %6063 = vmatpush1.msra.mxu0 0.0
    %6064 = vmatprep.subr.mxu0 0.0
    %6065 = vmatpush1.msra.mxu0 0.0
    %6066 = vmatprep.subr.mxu0 0.0
    %6067 = vmatpush1.msra.mxu0 0.0
    %6068 = vmatprep.subr.mxu0 0.0
    %6069 = vmatpush1.msra.mxu0 0.0
    %6070 = vmatprep.subr.mxu0 0.0
    %6071 = vmatpush1.msra.mxu0 0.0
    %6072 = vmatprep.subr.mxu0 0.0
    %6073 = vmatpush1.msra.mxu0 0.0
    %6074 = vmatprep.subr.mxu0 0.0
    %6075 = vmatpush1.msra.mxu0 0.0
    %6076 = vmatprep.subr.mxu0 0.0
    %6077 = vmatpush1.msra.mxu0 0.0
    %6078 = vmatprep.subr.mxu0 0.0
    %6079 = vmatpush1.msra.mxu0 0.0
    %6080 = vmatprep.subr.mxu0 0.0
    %6081 = vmatpush1.msra.mxu0 0.0
    %6082 = vmatprep.subr.mxu0 0.0
    %6083 = vmatpush1.msra.mxu0 0.0
    %6084 = vmatprep.subr.mxu0 0.0
    %6085 = vmatpush1.msra.mxu0 0.0
    %6086 = vmatprep.subr.mxu0 0.0
    %6087 = vmatpush1.msra.mxu0 0.0
    %6088 = vmatprep.subr.mxu0 0.0
    %6089 = vmatpush1.msra.mxu0 0.0
    %6090 = vmatprep.subr.mxu0 0.0
    %6091 = vmatpush1.msra.mxu0 0.0
    %6092 = vmatprep.subr.mxu0 0.0
    %6093 = vmatpush1.msra.mxu0 0.0
    %6094 = vmatprep.subr.mxu0 0.0
    %6095 = vmatpush1.msra.mxu0 0.0
    %6096 = vmatprep.subr.mxu0 0.0
    %6097 = vmatpush1.msra.mxu0 0.0
    %6098 = vmatprep.subr.mxu0 0.0
    %6099 = vmatpush1.msra.mxu0 0.0
    %6100 = vmatprep.subr.mxu0 0.0
    %6101 = vmatpush1.msra.mxu0 0.0
    %6102 = vmatprep.subr.mxu0 0.0
    %6103 = vmatpush1.msra.mxu0 0.0
    %6104 = vmatprep.subr.mxu0 0.0
    %6105 = vmatpush1.msra.mxu0 0.0
    %6106 = vmatprep.mubr.f32.mxu0 0.0
    %v6107 = vand.u32 %v3032, 4294901760
    %v6108 = vsub.f32 %v3032, %v6107
    %v6109 = vand.u32 %v6108, 4294901760
    %6110 = vmatmul.mubr.f32.gmra.mrb[0].mxu0 %v6109
    %v6111 = vpop.f32.mrb[0].mxu0
    %v6112 = vadd.f32 %v6030, %v6111
    %v6113 = vpop.f32.mrb[0].mxu0
    %v6114 = vadd.f32 %v6032, %v6113
    %6115 = vdwg.mxu0
    %v6116 = vand.u32 %v2745, 4294901760
    %v6117 = vsub.f32 %v2745, %v6116
    %v6118 = vand.u32 %v6117, 4294901760
    %6119 = vmatprep.subr.mxu0 %v6118
    %v6120 = vand.u32 %v2744, 4294901760
    %v6121 = vsub.f32 %v2744, %v6120
    %v6122 = vand.u32 %v6121, 4294901760
    %6123 = vmatpush1.msra.mxu0 %v6122
    %v6124 = vand.u32 %v2777, 4294901760
    %v6125 = vsub.f32 %v2777, %v6124
    %v6126 = vand.u32 %v6125, 4294901760
    %6127 = vmatprep.subr.mxu0 %v6126
    %v6128 = vand.u32 %v2776, 4294901760
    %v6129 = vsub.f32 %v2776, %v6128
    %v6130 = vand.u32 %v6129, 4294901760
    %6131 = vmatpush1.msra.mxu0 %v6130
    %v6132 = vand.u32 %v2809, 4294901760
    %v6133 = vsub.f32 %v2809, %v6132
    %v6134 = vand.u32 %v6133, 4294901760
    %6135 = vmatprep.subr.mxu0 %v6134
    %v6136 = vand.u32 %v2808, 4294901760
    %v6137 = vsub.f32 %v2808, %v6136
    %v6138 = vand.u32 %v6137, 4294901760
    %6139 = vmatpush1.msra.mxu0 %v6138
    %v6140 = vand.u32 %v2841, 4294901760
    %v6141 = vsub.f32 %v2841, %v6140
    %v6142 = vand.u32 %v6141, 4294901760
    %6143 = vmatprep.subr.mxu0 %v6142
    %v6144 = vand.u32 %v2840, 4294901760
    %v6145 = vsub.f32 %v2840, %v6144
    %v6146 = vand.u32 %v6145, 4294901760
    %6147 = vmatpush1.msra.mxu0 %v6146
    %6148 = vmatprep.subr.mxu0 0.0
    %6149 = vmatpush1.msra.mxu0 0.0
    %6150 = vmatprep.subr.mxu0 0.0
    %6151 = vmatpush1.msra.mxu0 0.0
    %6152 = vmatprep.subr.mxu0 0.0
    %6153 = vmatpush1.msra.mxu0 0.0
    %6154 = vmatprep.subr.mxu0 0.0
    %6155 = vmatpush1.msra.mxu0 0.0
    %6156 = vmatprep.subr.mxu0 0.0
    %6157 = vmatpush1.msra.mxu0 0.0
    %6158 = vmatprep.subr.mxu0 0.0
    %6159 = vmatpush1.msra.mxu0 0.0
    %6160 = vmatprep.subr.mxu0 0.0
    %6161 = vmatpush1.msra.mxu0 0.0
    %6162 = vmatprep.subr.mxu0 0.0
    %6163 = vmatpush1.msra.mxu0 0.0
    %6164 = vmatprep.subr.mxu0 0.0
    %6165 = vmatpush1.msra.mxu0 0.0
    %6166 = vmatprep.subr.mxu0 0.0
    %6167 = vmatpush1.msra.mxu0 0.0
    %6168 = vmatprep.subr.mxu0 0.0
    %6169 = vmatpush1.msra.mxu0 0.0
    %6170 = vmatprep.subr.mxu0 0.0
    %6171 = vmatpush1.msra.mxu0 0.0
    %6172 = vmatprep.subr.mxu0 0.0
    %6173 = vmatpush1.msra.mxu0 0.0
    %6174 = vmatprep.subr.mxu0 0.0
    %6175 = vmatpush1.msra.mxu0 0.0
    %6176 = vmatprep.subr.mxu0 0.0
    %6177 = vmatpush1.msra.mxu0 0.0
    %6178 = vmatprep.subr.mxu0 0.0
    %6179 = vmatpush1.msra.mxu0 0.0
    %6180 = vmatprep.subr.mxu0 0.0
    %6181 = vmatpush1.msra.mxu0 0.0
    %6182 = vmatprep.subr.mxu0 0.0
    %6183 = vmatpush1.msra.mxu0 0.0
    %6184 = vmatprep.subr.mxu0 0.0
    %6185 = vmatpush1.msra.mxu0 0.0
    %6186 = vmatprep.subr.mxu0 0.0
    %6187 = vmatpush1.msra.mxu0 0.0
    %6188 = vmatprep.subr.mxu0 0.0
    %6189 = vmatpush1.msra.mxu0 0.0
    %6190 = vmatprep.subr.mxu0 0.0
    %6191 = vmatpush1.msra.mxu0 0.0
    %6192 = vmatprep.subr.mxu0 0.0
    %6193 = vmatpush1.msra.mxu0 0.0
    %6194 = vmatprep.subr.mxu0 0.0
    %6195 = vmatpush1.msra.mxu0 0.0
    %6196 = vmatprep.subr.mxu0 0.0
    %6197 = vmatpush1.msra.mxu0 0.0
    %6198 = vmatprep.subr.mxu0 0.0
    %6199 = vmatpush1.msra.mxu0 0.0
    %6200 = vmatprep.subr.mxu0 0.0
    %6201 = vmatpush1.msra.mxu0 0.0
    %6202 = vmatprep.subr.mxu0 0.0
    %6203 = vmatpush1.msra.mxu0 0.0
    %6204 = vmatprep.mubr.f32.mxu0 0.0
    %v6205 = vand.u32 %v3032, 4294901760
    %6206 = vmatmul.mubr.f32.gmra.mrb[0].mxu0 %v6205
    %v6207 = vpop.f32.mrb[0].mxu0
    %v6208 = vadd.f32 %v6112, %v6207
    %v6209 = vpop.f32.mrb[0].mxu0
    %v6210 = vadd.f32 %v6114, %v6209
    %6211 = vdwg.mxu0
    %v6212 = vand.u32 %v2745, 4294901760
    %6213 = vmatprep.subr.mxu0 %v6212
    %v6214 = vand.u32 %v2744, 4294901760
    %6215 = vmatpush1.msra.mxu0 %v6214
    %v6216 = vand.u32 %v2777, 4294901760
    %6217 = vmatprep.subr.mxu0 %v6216
    %v6218 = vand.u32 %v2776, 4294901760
    %6219 = vmatpush1.msra.mxu0 %v6218
    %v6220 = vand.u32 %v2809, 4294901760
    %6221 = vmatprep.subr.mxu0 %v6220
    %v6222 = vand.u32 %v2808, 4294901760
    %6223 = vmatpush1.msra.mxu0 %v6222
    %v6224 = vand.u32 %v2841, 4294901760
    %6225 = vmatprep.subr.mxu0 %v6224
    %v6226 = vand.u32 %v2840, 4294901760
    %6227 = vmatpush1.msra.mxu0 %v6226
    %6228 = vmatprep.subr.mxu0 0.0
    %6229 = vmatpush1.msra.mxu0 0.0
    %6230 = vmatprep.subr.mxu0 0.0
    %6231 = vmatpush1.msra.mxu0 0.0
    %6232 = vmatprep.subr.mxu0 0.0
    %6233 = vmatpush1.msra.mxu0 0.0
    %6234 = vmatprep.subr.mxu0 0.0
    %6235 = vmatpush1.msra.mxu0 0.0
    %6236 = vmatprep.subr.mxu0 0.0
    %6237 = vmatpush1.msra.mxu0 0.0
    %6238 = vmatprep.subr.mxu0 0.0
    %6239 = vmatpush1.msra.mxu0 0.0
    %6240 = vmatprep.subr.mxu0 0.0
    %6241 = vmatpush1.msra.mxu0 0.0
    %6242 = vmatprep.subr.mxu0 0.0
    %6243 = vmatpush1.msra.mxu0 0.0
    %6244 = vmatprep.subr.mxu0 0.0
    %6245 = vmatpush1.msra.mxu0 0.0
    %6246 = vmatprep.subr.mxu0 0.0
    %6247 = vmatpush1.msra.mxu0 0.0
    %6248 = vmatprep.subr.mxu0 0.0
    %6249 = vmatpush1.msra.mxu0 0.0
    %6250 = vmatprep.subr.mxu0 0.0
    %6251 = vmatpush1.msra.mxu0 0.0
    %6252 = vmatprep.subr.mxu0 0.0
    %6253 = vmatpush1.msra.mxu0 0.0
    %6254 = vmatprep.subr.mxu0 0.0
    %6255 = vmatpush1.msra.mxu0 0.0
    %6256 = vmatprep.subr.mxu0 0.0
    %6257 = vmatpush1.msra.mxu0 0.0
    %6258 = vmatprep.subr.mxu0 0.0
    %6259 = vmatpush1.msra.mxu0 0.0
    %6260 = vmatprep.subr.mxu0 0.0
    %6261 = vmatpush1.msra.mxu0 0.0
    %6262 = vmatprep.subr.mxu0 0.0
    %6263 = vmatpush1.msra.mxu0 0.0
    %6264 = vmatprep.subr.mxu0 0.0
    %6265 = vmatpush1.msra.mxu0 0.0
    %6266 = vmatprep.subr.mxu0 0.0
    %6267 = vmatpush1.msra.mxu0 0.0
    %6268 = vmatprep.subr.mxu0 0.0
    %6269 = vmatpush1.msra.mxu0 0.0
    %6270 = vmatprep.subr.mxu0 0.0
    %6271 = vmatpush1.msra.mxu0 0.0
    %6272 = vmatprep.subr.mxu0 0.0
    %6273 = vmatpush1.msra.mxu0 0.0
    %6274 = vmatprep.subr.mxu0 0.0
    %6275 = vmatpush1.msra.mxu0 0.0
    %6276 = vmatprep.subr.mxu0 0.0
    %6277 = vmatpush1.msra.mxu0 0.0
    %6278 = vmatprep.subr.mxu0 0.0
    %6279 = vmatpush1.msra.mxu0 0.0
    %6280 = vmatprep.subr.mxu0 0.0
    %6281 = vmatpush1.msra.mxu0 0.0
    %6282 = vmatprep.subr.mxu0 0.0
    %6283 = vmatpush1.msra.mxu0 0.0
    %6284 = vmatprep.mubr.f32.mxu0 0.0
    %v6285 = vand.u32 %v3032, 4294901760
    %6286 = vmatmul.mubr.f32.gmra.mrb[0].mxu0 %v6285
    %v6287 = vpop.f32.mrb[0].mxu0
    %v6288 = vadd.f32 %v6208, %v6287
    %v6289 = vpop.f32.mrb[0].mxu0
    %v6290 = vadd.f32 %v6210, %v6289
    %6291 = vdwg.mxu0
    %v6292 = vand.u32 %v2747, 4294901760
    %6293 = vmatprep.subr.mxu0 %v6292
    %v6294 = vand.u32 %v2746, 4294901760
    %6295 = vmatpush1.msra.mxu0 %v6294
    %v6296 = vand.u32 %v2779, 4294901760
    %6297 = vmatprep.subr.mxu0 %v6296
    %v6298 = vand.u32 %v2778, 4294901760
    %6299 = vmatpush1.msra.mxu0 %v6298
    %v6300 = vand.u32 %v2811, 4294901760
    %6301 = vmatprep.subr.mxu0 %v6300
    %v6302 = vand.u32 %v2810, 4294901760
    %6303 = vmatpush1.msra.mxu0 %v6302
    %v6304 = vand.u32 %v2843, 4294901760
    %6305 = vmatprep.subr.mxu0 %v6304
    %v6306 = vand.u32 %v2842, 4294901760
    %6307 = vmatpush1.msra.mxu0 %v6306
    %6308 = vmatprep.subr.mxu0 0.0
    %6309 = vmatpush1.msra.mxu0 0.0
    %6310 = vmatprep.subr.mxu0 0.0
    %6311 = vmatpush1.msra.mxu0 0.0
    %6312 = vmatprep.subr.mxu0 0.0
    %6313 = vmatpush1.msra.mxu0 0.0
    %6314 = vmatprep.subr.mxu0 0.0
    %6315 = vmatpush1.msra.mxu0 0.0
    %6316 = vmatprep.subr.mxu0 0.0
    %6317 = vmatpush1.msra.mxu0 0.0
    %6318 = vmatprep.subr.mxu0 0.0
    %6319 = vmatpush1.msra.mxu0 0.0
    %6320 = vmatprep.subr.mxu0 0.0
    %6321 = vmatpush1.msra.mxu0 0.0
    %6322 = vmatprep.subr.mxu0 0.0
    %6323 = vmatpush1.msra.mxu0 0.0
    %6324 = vmatprep.subr.mxu0 0.0
    %6325 = vmatpush1.msra.mxu0 0.0
    %6326 = vmatprep.subr.mxu0 0.0
    %6327 = vmatpush1.msra.mxu0 0.0
    %6328 = vmatprep.subr.mxu0 0.0
    %6329 = vmatpush1.msra.mxu0 0.0
    %6330 = vmatprep.subr.mxu0 0.0
    %6331 = vmatpush1.msra.mxu0 0.0
    %6332 = vmatprep.subr.mxu0 0.0
    %6333 = vmatpush1.msra.mxu0 0.0
    %6334 = vmatprep.subr.mxu0 0.0
    %6335 = vmatpush1.msra.mxu0 0.0
    %6336 = vmatprep.subr.mxu0 0.0
    %6337 = vmatpush1.msra.mxu0 0.0
    %6338 = vmatprep.subr.mxu0 0.0
    %6339 = vmatpush1.msra.mxu0 0.0
    %6340 = vmatprep.subr.mxu0 0.0
    %6341 = vmatpush1.msra.mxu0 0.0
    %6342 = vmatprep.subr.mxu0 0.0
    %6343 = vmatpush1.msra.mxu0 0.0
    %6344 = vmatprep.subr.mxu0 0.0
    %6345 = vmatpush1.msra.mxu0 0.0
    %6346 = vmatprep.subr.mxu0 0.0
    %6347 = vmatpush1.msra.mxu0 0.0
    %6348 = vmatprep.subr.mxu0 0.0
    %6349 = vmatpush1.msra.mxu0 0.0
    %6350 = vmatprep.subr.mxu0 0.0
    %6351 = vmatpush1.msra.mxu0 0.0
    %6352 = vmatprep.subr.mxu0 0.0
    %6353 = vmatpush1.msra.mxu0 0.0
    %6354 = vmatprep.subr.mxu0 0.0
    %6355 = vmatpush1.msra.mxu0 0.0
    %6356 = vmatprep.subr.mxu0 0.0
    %6357 = vmatpush1.msra.mxu0 0.0
    %6358 = vmatprep.subr.mxu0 0.0
    %6359 = vmatpush1.msra.mxu0 0.0
    %6360 = vmatprep.subr.mxu0 0.0
    %6361 = vmatpush1.msra.mxu0 0.0
    %6362 = vmatprep.subr.mxu0 0.0
    %6363 = vmatpush1.msra.mxu0 0.0
    %6364 = vmatprep.mubr.f32.mxu0 0.0
    %v6365 = vand.u32 %v3032, 4294901760
    %v6366 = vsub.f32 %v3032, %v6365
    %v6367 = vand.u32 %v6366, 4294901760
    %v6368 = vsub.f32 %v6366, %v6367
    %v6369 = vand.u32 %v6368, 4294901760
    %6370 = vmatmul.mubr.f32.gmra.mrb[0].mxu0 %v6369
    %v6371 = vpop.f32.mrb[0].mxu0
    %v6372 = vadd.f32 %v2921, %v6371
    %v6373 = vpop.f32.mrb[0].mxu0
    %v6374 = vadd.f32 %v2925, %v6373
    %6375 = vdwg.mxu0
    %v6376 = vand.u32 %v2747, 4294901760
    %v6377 = vsub.f32 %v2747, %v6376
    %v6378 = vand.u32 %v6377, 4294901760
    %v6379 = vsub.f32 %v6377, %v6378
    %v6380 = vand.u32 %v6379, 4294901760
    %6381 = vmatprep.subr.mxu0 %v6380
    %v6382 = vand.u32 %v2746, 4294901760
    %v6383 = vsub.f32 %v2746, %v6382
    %v6384 = vand.u32 %v6383, 4294901760
    %v6385 = vsub.f32 %v6383, %v6384
    %v6386 = vand.u32 %v6385, 4294901760
    %6387 = vmatpush1.msra.mxu0 %v6386
    %v6388 = vand.u32 %v2779, 4294901760
    %v6389 = vsub.f32 %v2779, %v6388
    %v6390 = vand.u32 %v6389, 4294901760
    %v6391 = vsub.f32 %v6389, %v6390
    %v6392 = vand.u32 %v6391, 4294901760
    %6393 = vmatprep.subr.mxu0 %v6392
    %v6394 = vand.u32 %v2778, 4294901760
    %v6395 = vsub.f32 %v2778, %v6394
    %v6396 = vand.u32 %v6395, 4294901760
    %v6397 = vsub.f32 %v6395, %v6396
    %v6398 = vand.u32 %v6397, 4294901760
    %6399 = vmatpush1.msra.mxu0 %v6398
    %v6400 = vand.u32 %v2811, 4294901760
    %v6401 = vsub.f32 %v2811, %v6400
    %v6402 = vand.u32 %v6401, 4294901760
    %v6403 = vsub.f32 %v6401, %v6402
    %v6404 = vand.u32 %v6403, 4294901760
    %6405 = vmatprep.subr.mxu0 %v6404
    %v6406 = vand.u32 %v2810, 4294901760
    %v6407 = vsub.f32 %v2810, %v6406
    %v6408 = vand.u32 %v6407, 4294901760
    %v6409 = vsub.f32 %v6407, %v6408
    %v6410 = vand.u32 %v6409, 4294901760
    %6411 = vmatpush1.msra.mxu0 %v6410
    %v6412 = vand.u32 %v2843, 4294901760
    %v6413 = vsub.f32 %v2843, %v6412
    %v6414 = vand.u32 %v6413, 4294901760
    %v6415 = vsub.f32 %v6413, %v6414
    %v6416 = vand.u32 %v6415, 4294901760
    %6417 = vmatprep.subr.mxu0 %v6416
    %v6418 = vand.u32 %v2842, 4294901760
    %v6419 = vsub.f32 %v2842, %v6418
    %v6420 = vand.u32 %v6419, 4294901760
    %v6421 = vsub.f32 %v6419, %v6420
    %v6422 = vand.u32 %v6421, 4294901760
    %6423 = vmatpush1.msra.mxu0 %v6422
    %6424 = vmatprep.subr.mxu0 0.0
    %6425 = vmatpush1.msra.mxu0 0.0
    %6426 = vmatprep.subr.mxu0 0.0
    %6427 = vmatpush1.msra.mxu0 0.0
    %6428 = vmatprep.subr.mxu0 0.0
    %6429 = vmatpush1.msra.mxu0 0.0
    %6430 = vmatprep.subr.mxu0 0.0
    %6431 = vmatpush1.msra.mxu0 0.0
    %6432 = vmatprep.subr.mxu0 0.0
    %6433 = vmatpush1.msra.mxu0 0.0
    %6434 = vmatprep.subr.mxu0 0.0
    %6435 = vmatpush1.msra.mxu0 0.0
    %6436 = vmatprep.subr.mxu0 0.0
    %6437 = vmatpush1.msra.mxu0 0.0
    %6438 = vmatprep.subr.mxu0 0.0
    %6439 = vmatpush1.msra.mxu0 0.0
    %6440 = vmatprep.subr.mxu0 0.0
    %6441 = vmatpush1.msra.mxu0 0.0
    %6442 = vmatprep.subr.mxu0 0.0
    %6443 = vmatpush1.msra.mxu0 0.0
    %6444 = vmatprep.subr.mxu0 0.0
    %6445 = vmatpush1.msra.mxu0 0.0
    %6446 = vmatprep.subr.mxu0 0.0
    %6447 = vmatpush1.msra.mxu0 0.0
    %6448 = vmatprep.subr.mxu0 0.0
    %6449 = vmatpush1.msra.mxu0 0.0
    %6450 = vmatprep.subr.mxu0 0.0
    %6451 = vmatpush1.msra.mxu0 0.0
    %6452 = vmatprep.subr.mxu0 0.0
    %6453 = vmatpush1.msra.mxu0 0.0
    %6454 = vmatprep.subr.mxu0 0.0
    %6455 = vmatpush1.msra.mxu0 0.0
    %6456 = vmatprep.subr.mxu0 0.0
    %6457 = vmatpush1.msra.mxu0 0.0
    %6458 = vmatprep.subr.mxu0 0.0
    %6459 = vmatpush1.msra.mxu0 0.0
    %6460 = vmatprep.subr.mxu0 0.0
    %6461 = vmatpush1.msra.mxu0 0.0
    %6462 = vmatprep.subr.mxu0 0.0
    %6463 = vmatpush1.msra.mxu0 0.0
    %6464 = vmatprep.subr.mxu0 0.0
    %6465 = vmatpush1.msra.mxu0 0.0
    %6466 = vmatprep.subr.mxu0 0.0
    %6467 = vmatpush1.msra.mxu0 0.0
    %6468 = vmatprep.subr.mxu0 0.0
    %6469 = vmatpush1.msra.mxu0 0.0
    %6470 = vmatprep.subr.mxu0 0.0
    %6471 = vmatpush1.msra.mxu0 0.0
    %6472 = vmatprep.subr.mxu0 0.0
    %6473 = vmatpush1.msra.mxu0 0.0
    %6474 = vmatprep.subr.mxu0 0.0
    %6475 = vmatpush1.msra.mxu0 0.0
    %6476 = vmatprep.subr.mxu0 0.0
    %6477 = vmatpush1.msra.mxu0 0.0
    %6478 = vmatprep.subr.mxu0 0.0
    %6479 = vmatpush1.msra.mxu0 0.0
    %6480 = vmatprep.mubr.f32.mxu0 0.0
    %v6481 = vand.u32 %v3032, 4294901760
    %6482 = vmatmul.mubr.f32.gmra.mrb[0].mxu0 %v6481
    %v6483 = vpop.f32.mrb[0].mxu0
    %v6484 = vadd.f32 %v6372, %v6483
    %v6485 = vpop.f32.mrb[0].mxu0
    %v6486 = vadd.f32 %v6374, %v6485
    %6487 = vdwg.mxu0
    %v6488 = vand.u32 %v2747, 4294901760
    %v6489 = vsub.f32 %v2747, %v6488
    %6490 = vmatprep.subr.mxu0 %v6489
    %v6491 = vand.u32 %v2746, 4294901760
    %v6492 = vsub.f32 %v2746, %v6491
    %6493 = vmatpush1.msra.mxu0 %v6492
    %v6494 = vand.u32 %v2779, 4294901760
    %v6495 = vsub.f32 %v2779, %v6494
    %6496 = vmatprep.subr.mxu0 %v6495
    %v6497 = vand.u32 %v2778, 4294901760
    %v6498 = vsub.f32 %v2778, %v6497
    %6499 = vmatpush1.msra.mxu0 %v6498
    %v6500 = vand.u32 %v2811, 4294901760
    %v6501 = vsub.f32 %v2811, %v6500
    %6502 = vmatprep.subr.mxu0 %v6501
    %v6503 = vand.u32 %v2810, 4294901760
    %v6504 = vsub.f32 %v2810, %v6503
    %6505 = vmatpush1.msra.mxu0 %v6504
    %v6506 = vand.u32 %v2843, 4294901760
    %v6507 = vsub.f32 %v2843, %v6506
    %6508 = vmatprep.subr.mxu0 %v6507
    %v6509 = vand.u32 %v2842, 4294901760
    %v6510 = vsub.f32 %v2842, %v6509
    %6511 = vmatpush1.msra.mxu0 %v6510
    %6512 = vmatprep.subr.mxu0 0.0
    %6513 = vmatpush1.msra.mxu0 0.0
    %6514 = vmatprep.subr.mxu0 0.0
    %6515 = vmatpush1.msra.mxu0 0.0
    %6516 = vmatprep.subr.mxu0 0.0
    %6517 = vmatpush1.msra.mxu0 0.0
    %6518 = vmatprep.subr.mxu0 0.0
    %6519 = vmatpush1.msra.mxu0 0.0
    %6520 = vmatprep.subr.mxu0 0.0
    %6521 = vmatpush1.msra.mxu0 0.0
    %6522 = vmatprep.subr.mxu0 0.0
    %6523 = vmatpush1.msra.mxu0 0.0
    %6524 = vmatprep.subr.mxu0 0.0
    %6525 = vmatpush1.msra.mxu0 0.0
    %6526 = vmatprep.subr.mxu0 0.0
    %6527 = vmatpush1.msra.mxu0 0.0
    %6528 = vmatprep.subr.mxu0 0.0
    %6529 = vmatpush1.msra.mxu0 0.0
    %6530 = vmatprep.subr.mxu0 0.0
    %6531 = vmatpush1.msra.mxu0 0.0
    %6532 = vmatprep.subr.mxu0 0.0
    %6533 = vmatpush1.msra.mxu0 0.0
    %6534 = vmatprep.subr.mxu0 0.0
    %6535 = vmatpush1.msra.mxu0 0.0
    %6536 = vmatprep.subr.mxu0 0.0
    %6537 = vmatpush1.msra.mxu0 0.0
    %6538 = vmatprep.subr.mxu0 0.0
    %6539 = vmatpush1.msra.mxu0 0.0
    %6540 = vmatprep.subr.mxu0 0.0
    %6541 = vmatpush1.msra.mxu0 0.0
    %6542 = vmatprep.subr.mxu0 0.0
    %6543 = vmatpush1.msra.mxu0 0.0
    %6544 = vmatprep.subr.mxu0 0.0
    %6545 = vmatpush1.msra.mxu0 0.0
    %6546 = vmatprep.subr.mxu0 0.0
    %6547 = vmatpush1.msra.mxu0 0.0
    %6548 = vmatprep.subr.mxu0 0.0
    %6549 = vmatpush1.msra.mxu0 0.0
    %6550 = vmatprep.subr.mxu0 0.0
    %6551 = vmatpush1.msra.mxu0 0.0
    %6552 = vmatprep.subr.mxu0 0.0
    %6553 = vmatpush1.msra.mxu0 0.0
    %6554 = vmatprep.subr.mxu0 0.0
    %6555 = vmatpush1.msra.mxu0 0.0
    %6556 = vmatprep.subr.mxu0 0.0
    %6557 = vmatpush1.msra.mxu0 0.0
    %6558 = vmatprep.subr.mxu0 0.0
    %6559 = vmatpush1.msra.mxu0 0.0
    %6560 = vmatprep.subr.mxu0 0.0
    %6561 = vmatpush1.msra.mxu0 0.0
    %6562 = vmatprep.subr.mxu0 0.0
    %6563 = vmatpush1.msra.mxu0 0.0
    %6564 = vmatprep.subr.mxu0 0.0
    %6565 = vmatpush1.msra.mxu0 0.0
    %6566 = vmatprep.subr.mxu0 0.0
    %6567 = vmatpush1.msra.mxu0 0.0
    %6568 = vmatprep.mubr.f32.mxu0 0.0
    %v6569 = vand.u32 %v3032, 4294901760
    %v6570 = vsub.f32 %v3032, %v6569
    %6571 = vmatmul.mubr.f32.gmra.mrb[0].mxu0 %v6570
    %v6572 = vpop.f32.mrb[0].mxu0
    %v6573 = vadd.f32 %v6484, %v6572
    %v6574 = vpop.f32.mrb[0].mxu0
    %v6575 = vadd.f32 %v6486, %v6574
    %6576 = vdwg.mxu0
    %v6577 = vand.u32 %v2747, 4294901760
    %6578 = vmatprep.subr.mxu0 %v6577
    %v6579 = vand.u32 %v2746, 4294901760
    %6580 = vmatpush1.msra.mxu0 %v6579
    %v6581 = vand.u32 %v2779, 4294901760
    %6582 = vmatprep.subr.mxu0 %v6581
    %v6583 = vand.u32 %v2778, 4294901760
    %6584 = vmatpush1.msra.mxu0 %v6583
    %v6585 = vand.u32 %v2811, 4294901760
    %6586 = vmatprep.subr.mxu0 %v6585
    %v6587 = vand.u32 %v2810, 4294901760
    %6588 = vmatpush1.msra.mxu0 %v6587
    %v6589 = vand.u32 %v2843, 4294901760
    %6590 = vmatprep.subr.mxu0 %v6589
    %v6591 = vand.u32 %v2842, 4294901760
    %6592 = vmatpush1.msra.mxu0 %v6591
    %6593 = vmatprep.subr.mxu0 0.0
    %6594 = vmatpush1.msra.mxu0 0.0
    %6595 = vmatprep.subr.mxu0 0.0
    %6596 = vmatpush1.msra.mxu0 0.0
    %6597 = vmatprep.subr.mxu0 0.0
    %6598 = vmatpush1.msra.mxu0 0.0
    %6599 = vmatprep.subr.mxu0 0.0
    %6600 = vmatpush1.msra.mxu0 0.0
    %6601 = vmatprep.subr.mxu0 0.0
    %6602 = vmatpush1.msra.mxu0 0.0
    %6603 = vmatprep.subr.mxu0 0.0
    %6604 = vmatpush1.msra.mxu0 0.0
    %6605 = vmatprep.subr.mxu0 0.0
    %6606 = vmatpush1.msra.mxu0 0.0
    %6607 = vmatprep.subr.mxu0 0.0
    %6608 = vmatpush1.msra.mxu0 0.0
    %6609 = vmatprep.subr.mxu0 0.0
    %6610 = vmatpush1.msra.mxu0 0.0
    %6611 = vmatprep.subr.mxu0 0.0
    %6612 = vmatpush1.msra.mxu0 0.0
    %6613 = vmatprep.subr.mxu0 0.0
    %6614 = vmatpush1.msra.mxu0 0.0
    %6615 = vmatprep.subr.mxu0 0.0
    %6616 = vmatpush1.msra.mxu0 0.0
    %6617 = vmatprep.subr.mxu0 0.0
    %6618 = vmatpush1.msra.mxu0 0.0
    %6619 = vmatprep.subr.mxu0 0.0
    %6620 = vmatpush1.msra.mxu0 0.0
    %6621 = vmatprep.subr.mxu0 0.0
    %6622 = vmatpush1.msra.mxu0 0.0
    %6623 = vmatprep.subr.mxu0 0.0
    %6624 = vmatpush1.msra.mxu0 0.0
    %6625 = vmatprep.subr.mxu0 0.0
    %6626 = vmatpush1.msra.mxu0 0.0
    %6627 = vmatprep.subr.mxu0 0.0
    %6628 = vmatpush1.msra.mxu0 0.0
    %6629 = vmatprep.subr.mxu0 0.0
    %6630 = vmatpush1.msra.mxu0 0.0
    %6631 = vmatprep.subr.mxu0 0.0
    %6632 = vmatpush1.msra.mxu0 0.0
    %6633 = vmatprep.subr.mxu0 0.0
    %6634 = vmatpush1.msra.mxu0 0.0
    %6635 = vmatprep.subr.mxu0 0.0
    %6636 = vmatpush1.msra.mxu0 0.0
    %6637 = vmatprep.subr.mxu0 0.0
    %6638 = vmatpush1.msra.mxu0 0.0
    %6639 = vmatprep.subr.mxu0 0.0
    %6640 = vmatpush1.msra.mxu0 0.0
    %6641 = vmatprep.subr.mxu0 0.0
    %6642 = vmatpush1.msra.mxu0 0.0
    %6643 = vmatprep.subr.mxu0 0.0
    %6644 = vmatpush1.msra.mxu0 0.0
    %6645 = vmatprep.subr.mxu0 0.0
    %6646 = vmatpush1.msra.mxu0 0.0
    %6647 = vmatprep.subr.mxu0 0.0
    %6648 = vmatpush1.msra.mxu0 0.0
    %6649 = vmatprep.mubr.f32.mxu0 0.0
    %v6650 = vand.u32 %v3032, 4294901760
    %v6651 = vsub.f32 %v3032, %v6650
    %v6652 = vand.u32 %v6651, 4294901760
    %6653 = vmatmul.mubr.f32.gmra.mrb[0].mxu0 %v6652
    %v6654 = vpop.f32.mrb[0].mxu0
    %v6655 = vadd.f32 %v6573, %v6654
    %v6656 = vpop.f32.mrb[0].mxu0
    %v6657 = vadd.f32 %v6575, %v6656
    %6658 = vdwg.mxu0
    %v6659 = vand.u32 %v2747, 4294901760
    %v6660 = vsub.f32 %v2747, %v6659
    %v6661 = vand.u32 %v6660, 4294901760
    %6662 = vmatprep.subr.mxu0 %v6661
    %v6663 = vand.u32 %v2746, 4294901760
    %v6664 = vsub.f32 %v2746, %v6663
    %v6665 = vand.u32 %v6664, 4294901760
    %6666 = vmatpush1.msra.mxu0 %v6665
    %v6667 = vand.u32 %v2779, 4294901760
    %v6668 = vsub.f32 %v2779, %v6667
    %v6669 = vand.u32 %v6668, 4294901760
    %6670 = vmatprep.subr.mxu0 %v6669
    %v6671 = vand.u32 %v2778, 4294901760
    %v6672 = vsub.f32 %v2778, %v6671
    %v6673 = vand.u32 %v6672, 4294901760
    %6674 = vmatpush1.msra.mxu0 %v6673
    %v6675 = vand.u32 %v2811, 4294901760
    %v6676 = vsub.f32 %v2811, %v6675
    %v6677 = vand.u32 %v6676, 4294901760
    %6678 = vmatprep.subr.mxu0 %v6677
    %v6679 = vand.u32 %v2810, 4294901760
    %v6680 = vsub.f32 %v2810, %v6679
    %v6681 = vand.u32 %v6680, 4294901760
    %6682 = vmatpush1.msra.mxu0 %v6681
    %v6683 = vand.u32 %v2843, 4294901760
    %v6684 = vsub.f32 %v2843, %v6683
    %v6685 = vand.u32 %v6684, 4294901760
    %6686 = vmatprep.subr.mxu0 %v6685
    %v6687 = vand.u32 %v2842, 4294901760
    %v6688 = vsub.f32 %v2842, %v6687
    %v6689 = vand.u32 %v6688, 4294901760
    %6690 = vmatpush1.msra.mxu0 %v6689
    %6691 = vmatprep.subr.mxu0 0.0
    %6692 = vmatpush1.msra.mxu0 0.0
    %6693 = vmatprep.subr.mxu0 0.0
    %6694 = vmatpush1.msra.mxu0 0.0
    %6695 = vmatprep.subr.mxu0 0.0
    %6696 = vmatpush1.msra.mxu0 0.0
    %6697 = vmatprep.subr.mxu0 0.0
    %6698 = vmatpush1.msra.mxu0 0.0
    %6699 = vmatprep.subr.mxu0 0.0
    %6700 = vmatpush1.msra.mxu0 0.0
    %6701 = vmatprep.subr.mxu0 0.0
    %6702 = vmatpush1.msra.mxu0 0.0
    %6703 = vmatprep.subr.mxu0 0.0
    %6704 = vmatpush1.msra.mxu0 0.0
    %6705 = vmatprep.subr.mxu0 0.0
    %6706 = vmatpush1.msra.mxu0 0.0
    %6707 = vmatprep.subr.mxu0 0.0
    %6708 = vmatpush1.msra.mxu0 0.0
    %6709 = vmatprep.subr.mxu0 0.0
    %6710 = vmatpush1.msra.mxu0 0.0
    %6711 = vmatprep.subr.mxu0 0.0
    %6712 = vmatpush1.msra.mxu0 0.0
    %6713 = vmatprep.subr.mxu0 0.0
    %6714 = vmatpush1.msra.mxu0 0.0
    %6715 = vmatprep.subr.mxu0 0.0
    %6716 = vmatpush1.msra.mxu0 0.0
    %6717 = vmatprep.subr.mxu0 0.0
    %6718 = vmatpush1.msra.mxu0 0.0
    %6719 = vmatprep.subr.mxu0 0.0
    %6720 = vmatpush1.msra.mxu0 0.0
    %6721 = vmatprep.subr.mxu0 0.0
    %6722 = vmatpush1.msra.mxu0 0.0
    %6723 = vmatprep.subr.mxu0 0.0
    %6724 = vmatpush1.msra.mxu0 0.0
    %6725 = vmatprep.subr.mxu0 0.0
    %6726 = vmatpush1.msra.mxu0 0.0
    %6727 = vmatprep.subr.mxu0 0.0
    %6728 = vmatpush1.msra.mxu0 0.0
    %6729 = vmatprep.subr.mxu0 0.0
    %6730 = vmatpush1.msra.mxu0 0.0
    %6731 = vmatprep.subr.mxu0 0.0
    %6732 = vmatpush1.msra.mxu0 0.0
    %6733 = vmatprep.subr.mxu0 0.0
    %6734 = vmatpush1.msra.mxu0 0.0
    %6735 = vmatprep.subr.mxu0 0.0
    %6736 = vmatpush1.msra.mxu0 0.0
    %6737 = vmatprep.subr.mxu0 0.0
    %6738 = vmatpush1.msra.mxu0 0.0
    %6739 = vmatprep.subr.mxu0 0.0
    %6740 = vmatpush1.msra.mxu0 0.0
    %6741 = vmatprep.subr.mxu0 0.0
    %6742 = vmatpush1.msra.mxu0 0.0
    %6743 = vmatprep.subr.mxu0 0.0
    %6744 = vmatpush1.msra.mxu0 0.0
    %6745 = vmatprep.subr.mxu0 0.0
    %6746 = vmatpush1.msra.mxu0 0.0
    %6747 = vmatprep.mubr.f32.mxu0 0.0
    %v6748 = vand.u32 %v3032, 4294901760
    %6749 = vmatmul.mubr.f32.gmra.mrb[0].mxu0 %v6748
    %v6750 = vpop.f32.mrb[0].mxu0
    %v6751 = vadd.f32 %v6655, %v6750
    %v6752 = vpop.f32.mrb[0].mxu0
    %v6753 = vadd.f32 %v6657, %v6752
    %6754 = vdwg.mxu0
    %v6755 = vand.u32 %v2747, 4294901760
    %6756 = vmatprep.subr.mxu0 %v6755
    %v6757 = vand.u32 %v2746, 4294901760
    %6758 = vmatpush1.msra.mxu0 %v6757
    %v6759 = vand.u32 %v2779, 4294901760
    %6760 = vmatprep.subr.mxu0 %v6759
    %v6761 = vand.u32 %v2778, 4294901760
    %6762 = vmatpush1.msra.mxu0 %v6761
    %v6763 = vand.u32 %v2811, 4294901760
    %6764 = vmatprep.subr.mxu0 %v6763
    %v6765 = vand.u32 %v2810, 4294901760
    %6766 = vmatpush1.msra.mxu0 %v6765
    %v6767 = vand.u32 %v2843, 4294901760
    %6768 = vmatprep.subr.mxu0 %v6767
    %v6769 = vand.u32 %v2842, 4294901760
    %6770 = vmatpush1.msra.mxu0 %v6769
    %6771 = vmatprep.subr.mxu0 0.0
    %6772 = vmatpush1.msra.mxu0 0.0
    %6773 = vmatprep.subr.mxu0 0.0
    %6774 = vmatpush1.msra.mxu0 0.0
    %6775 = vmatprep.subr.mxu0 0.0
    %6776 = vmatpush1.msra.mxu0 0.0
    %6777 = vmatprep.subr.mxu0 0.0
    %6778 = vmatpush1.msra.mxu0 0.0
    %6779 = vmatprep.subr.mxu0 0.0
    %6780 = vmatpush1.msra.mxu0 0.0
    %6781 = vmatprep.subr.mxu0 0.0
    %6782 = vmatpush1.msra.mxu0 0.0
    %6783 = vmatprep.subr.mxu0 0.0
    %6784 = vmatpush1.msra.mxu0 0.0
    %6785 = vmatprep.subr.mxu0 0.0
    %6786 = vmatpush1.msra.mxu0 0.0
    %6787 = vmatprep.subr.mxu0 0.0
    %6788 = vmatpush1.msra.mxu0 0.0
    %6789 = vmatprep.subr.mxu0 0.0
    %6790 = vmatpush1.msra.mxu0 0.0
    %6791 = vmatprep.subr.mxu0 0.0
    %6792 = vmatpush1.msra.mxu0 0.0
    %6793 = vmatprep.subr.mxu0 0.0
    %6794 = vmatpush1.msra.mxu0 0.0
    %6795 = vmatprep.subr.mxu0 0.0
    %6796 = vmatpush1.msra.mxu0 0.0
    %6797 = vmatprep.subr.mxu0 0.0
    %6798 = vmatpush1.msra.mxu0 0.0
    %6799 = vmatprep.subr.mxu0 0.0
    %6800 = vmatpush1.msra.mxu0 0.0
    %6801 = vmatprep.subr.mxu0 0.0
    %6802 = vmatpush1.msra.mxu0 0.0
    %6803 = vmatprep.subr.mxu0 0.0
    %6804 = vmatpush1.msra.mxu0 0.0
    %6805 = vmatprep.subr.mxu0 0.0
    %6806 = vmatpush1.msra.mxu0 0.0
    %6807 = vmatprep.subr.mxu0 0.0
    %6808 = vmatpush1.msra.mxu0 0.0
    %6809 = vmatprep.subr.mxu0 0.0
    %6810 = vmatpush1.msra.mxu0 0.0
    %6811 = vmatprep.subr.mxu0 0.0
    %6812 = vmatpush1.msra.mxu0 0.0
    %6813 = vmatprep.subr.mxu0 0.0
    %6814 = vmatpush1.msra.mxu0 0.0
    %6815 = vmatprep.subr.mxu0 0.0
    %6816 = vmatpush1.msra.mxu0 0.0
    %6817 = vmatprep.subr.mxu0 0.0
    %6818 = vmatpush1.msra.mxu0 0.0
    %6819 = vmatprep.subr.mxu0 0.0
    %6820 = vmatpush1.msra.mxu0 0.0
    %6821 = vmatprep.subr.mxu0 0.0
    %6822 = vmatpush1.msra.mxu0 0.0
    %6823 = vmatprep.subr.mxu0 0.0
    %6824 = vmatpush1.msra.mxu0 0.0
    %6825 = vmatprep.subr.mxu0 0.0
    %6826 = vmatpush1.msra.mxu0 0.0
    %6827 = vmatprep.mubr.f32.mxu0 0.0
    %v6828 = vand.u32 %v3032, 4294901760
    %6829 = vmatmul.mubr.f32.gmra.mrb[0].mxu0 %v6828
    %v6830 = vpop.f32.mrb[0].mxu0
    %v6831 = vadd.f32 %v6751, %v6830
    %v6832 = vpop.f32.mrb[0].mxu0
    %v6833 = vadd.f32 %v6753, %v6832
    %6834 = vdwg.mxu0
    %v6835 = vand.u32 %v2749, 4294901760
    %6836 = vmatprep.subr.mxu0 %v6835
    %v6837 = vand.u32 %v2748, 4294901760
    %6838 = vmatpush1.msra.mxu0 %v6837
    %v6839 = vand.u32 %v2781, 4294901760
    %6840 = vmatprep.subr.mxu0 %v6839
    %v6841 = vand.u32 %v2780, 4294901760
    %6842 = vmatpush1.msra.mxu0 %v6841
    %v6843 = vand.u32 %v2813, 4294901760
    %6844 = vmatprep.subr.mxu0 %v6843
    %v6845 = vand.u32 %v2812, 4294901760
    %6846 = vmatpush1.msra.mxu0 %v6845
    %v6847 = vand.u32 %v2845, 4294901760
    %6848 = vmatprep.subr.mxu0 %v6847
    %v6849 = vand.u32 %v2844, 4294901760
    %6850 = vmatpush1.msra.mxu0 %v6849
    %6851 = vmatprep.subr.mxu0 0.0
    %6852 = vmatpush1.msra.mxu0 0.0
    %6853 = vmatprep.subr.mxu0 0.0
    %6854 = vmatpush1.msra.mxu0 0.0
    %6855 = vmatprep.subr.mxu0 0.0
    %6856 = vmatpush1.msra.mxu0 0.0
    %6857 = vmatprep.subr.mxu0 0.0
    %6858 = vmatpush1.msra.mxu0 0.0
    %6859 = vmatprep.subr.mxu0 0.0
    %6860 = vmatpush1.msra.mxu0 0.0
    %6861 = vmatprep.subr.mxu0 0.0
    %6862 = vmatpush1.msra.mxu0 0.0
    %6863 = vmatprep.subr.mxu0 0.0
    %6864 = vmatpush1.msra.mxu0 0.0
    %6865 = vmatprep.subr.mxu0 0.0
    %6866 = vmatpush1.msra.mxu0 0.0
    %6867 = vmatprep.subr.mxu0 0.0
    %6868 = vmatpush1.msra.mxu0 0.0
    %6869 = vmatprep.subr.mxu0 0.0
    %6870 = vmatpush1.msra.mxu0 0.0
    %6871 = vmatprep.subr.mxu0 0.0
    %6872 = vmatpush1.msra.mxu0 0.0
    %6873 = vmatprep.subr.mxu0 0.0
    %6874 = vmatpush1.msra.mxu0 0.0
    %6875 = vmatprep.subr.mxu0 0.0
    %6876 = vmatpush1.msra.mxu0 0.0
    %6877 = vmatprep.subr.mxu0 0.0
    %6878 = vmatpush1.msra.mxu0 0.0
    %6879 = vmatprep.subr.mxu0 0.0
    %6880 = vmatpush1.msra.mxu0 0.0
    %6881 = vmatprep.subr.mxu0 0.0
    %6882 = vmatpush1.msra.mxu0 0.0
    %6883 = vmatprep.subr.mxu0 0.0
    %6884 = vmatpush1.msra.mxu0 0.0
    %6885 = vmatprep.subr.mxu0 0.0
    %6886 = vmatpush1.msra.mxu0 0.0
    %6887 = vmatprep.subr.mxu0 0.0
    %6888 = vmatpush1.msra.mxu0 0.0
    %6889 = vmatprep.subr.mxu0 0.0
    %6890 = vmatpush1.msra.mxu0 0.0
    %6891 = vmatprep.subr.mxu0 0.0
    %6892 = vmatpush1.msra.mxu0 0.0
    %6893 = vmatprep.subr.mxu0 0.0
    %6894 = vmatpush1.msra.mxu0 0.0
    %6895 = vmatprep.subr.mxu0 0.0
    %6896 = vmatpush1.msra.mxu0 0.0
    %6897 = vmatprep.subr.mxu0 0.0
    %6898 = vmatpush1.msra.mxu0 0.0
    %6899 = vmatprep.subr.mxu0 0.0
    %6900 = vmatpush1.msra.mxu0 0.0
    %6901 = vmatprep.subr.mxu0 0.0
    %6902 = vmatpush1.msra.mxu0 0.0
    %6903 = vmatprep.subr.mxu0 0.0
    %6904 = vmatpush1.msra.mxu0 0.0
    %6905 = vmatprep.subr.mxu0 0.0
    %6906 = vmatpush1.msra.mxu0 0.0
    %6907 = vmatprep.mubr.f32.mxu0 0.0
    %v6908 = vand.u32 %v3032, 4294901760
    %v6909 = vsub.f32 %v3032, %v6908
    %v6910 = vand.u32 %v6909, 4294901760
    %v6911 = vsub.f32 %v6909, %v6910
    %v6912 = vand.u32 %v6911, 4294901760
    %6913 = vmatmul.mubr.f32.gmra.mrb[0].mxu0 %v6912
    %v6914 = vpop.f32.mrb[0].mxu0
    %v6915 = vadd.f32 %v2929, %v6914
    %v6916 = vpop.f32.mrb[0].mxu0
    %v6917 = vadd.f32 %v2933, %v6916
    %6918 = vdwg.mxu0
    %v6919 = vand.u32 %v2749, 4294901760
    %v6920 = vsub.f32 %v2749, %v6919
    %v6921 = vand.u32 %v6920, 4294901760
    %v6922 = vsub.f32 %v6920, %v6921
    %v6923 = vand.u32 %v6922, 4294901760
    %6924 = vmatprep.subr.mxu0 %v6923
    %v6925 = vand.u32 %v2748, 4294901760
    %v6926 = vsub.f32 %v2748, %v6925
    %v6927 = vand.u32 %v6926, 4294901760
    %v6928 = vsub.f32 %v6926, %v6927
    %v6929 = vand.u32 %v6928, 4294901760
    %6930 = vmatpush1.msra.mxu0 %v6929
    %v6931 = vand.u32 %v2781, 4294901760
    %v6932 = vsub.f32 %v2781, %v6931
    %v6933 = vand.u32 %v6932, 4294901760
    %v6934 = vsub.f32 %v6932, %v6933
    %v6935 = vand.u32 %v6934, 4294901760
    %6936 = vmatprep.subr.mxu0 %v6935
    %v6937 = vand.u32 %v2780, 4294901760
    %v6938 = vsub.f32 %v2780, %v6937
    %v6939 = vand.u32 %v6938, 4294901760
    %v6940 = vsub.f32 %v6938, %v6939
    %v6941 = vand.u32 %v6940, 4294901760
    %6942 = vmatpush1.msra.mxu0 %v6941
    %v6943 = vand.u32 %v2813, 4294901760
    %v6944 = vsub.f32 %v2813, %v6943
    %v6945 = vand.u32 %v6944, 4294901760
    %v6946 = vsub.f32 %v6944, %v6945
    %v6947 = vand.u32 %v6946, 4294901760
    %6948 = vmatprep.subr.mxu0 %v6947
    %v6949 = vand.u32 %v2812, 4294901760
    %v6950 = vsub.f32 %v2812, %v6949
    %v6951 = vand.u32 %v6950, 4294901760
    %v6952 = vsub.f32 %v6950, %v6951
    %v6953 = vand.u32 %v6952, 4294901760
    %6954 = vmatpush1.msra.mxu0 %v6953
    %v6955 = vand.u32 %v2845, 4294901760
    %v6956 = vsub.f32 %v2845, %v6955
    %v6957 = vand.u32 %v6956, 4294901760
    %v6958 = vsub.f32 %v6956, %v6957
    %v6959 = vand.u32 %v6958, 4294901760
    %6960 = vmatprep.subr.mxu0 %v6959
    %v6961 = vand.u32 %v2844, 4294901760
    %v6962 = vsub.f32 %v2844, %v6961
    %v6963 = vand.u32 %v6962, 4294901760
    %v6964 = vsub.f32 %v6962, %v6963
    %v6965 = vand.u32 %v6964, 4294901760
    %6966 = vmatpush1.msra.mxu0 %v6965
    %6967 = vmatprep.subr.mxu0 0.0
    %6968 = vmatpush1.msra.mxu0 0.0
    %6969 = vmatprep.subr.mxu0 0.0
    %6970 = vmatpush1.msra.mxu0 0.0
    %6971 = vmatprep.subr.mxu0 0.0
    %6972 = vmatpush1.msra.mxu0 0.0
    %6973 = vmatprep.subr.mxu0 0.0
    %6974 = vmatpush1.msra.mxu0 0.0
    %6975 = vmatprep.subr.mxu0 0.0
    %6976 = vmatpush1.msra.mxu0 0.0
    %6977 = vmatprep.subr.mxu0 0.0
    %6978 = vmatpush1.msra.mxu0 0.0
    %6979 = vmatprep.subr.mxu0 0.0
    %6980 = vmatpush1.msra.mxu0 0.0
    %6981 = vmatprep.subr.mxu0 0.0
    %6982 = vmatpush1.msra.mxu0 0.0
    %6983 = vmatprep.subr.mxu0 0.0
    %6984 = vmatpush1.msra.mxu0 0.0
    %6985 = vmatprep.subr.mxu0 0.0
    %6986 = vmatpush1.msra.mxu0 0.0
    %6987 = vmatprep.subr.mxu0 0.0
    %6988 = vmatpush1.msra.mxu0 0.0
    %6989 = vmatprep.subr.mxu0 0.0
    %6990 = vmatpush1.msra.mxu0 0.0
    %6991 = vmatprep.subr.mxu0 0.0
    %6992 = vmatpush1.msra.mxu0 0.0
    %6993 = vmatprep.subr.mxu0 0.0
    %6994 = vmatpush1.msra.mxu0 0.0
    %6995 = vmatprep.subr.mxu0 0.0
    %6996 = vmatpush1.msra.mxu0 0.0
    %6997 = vmatprep.subr.mxu0 0.0
    %6998 = vmatpush1.msra.mxu0 0.0
    %6999 = vmatprep.subr.mxu0 0.0
    %7000 = vmatpush1.msra.mxu0 0.0
    %7001 = vmatprep.subr.mxu0 0.0
    %7002 = vmatpush1.msra.mxu0 0.0
    %7003 = vmatprep.subr.mxu0 0.0
    %7004 = vmatpush1.msra.mxu0 0.0
    %7005 = vmatprep.subr.mxu0 0.0
    %7006 = vmatpush1.msra.mxu0 0.0
    %7007 = vmatprep.subr.mxu0 0.0
    %7008 = vmatpush1.msra.mxu0 0.0
    %7009 = vmatprep.subr.mxu0 0.0
    %7010 = vmatpush1.msra.mxu0 0.0
    %7011 = vmatprep.subr.mxu0 0.0
    %7012 = vmatpush1.msra.mxu0 0.0
    %7013 = vmatprep.subr.mxu0 0.0
    %7014 = vmatpush1.msra.mxu0 0.0
    %7015 = vmatprep.subr.mxu0 0.0
    %7016 = vmatpush1.msra.mxu0 0.0
    %7017 = vmatprep.subr.mxu0 0.0
    %7018 = vmatpush1.msra.mxu0 0.0
    %7019 = vmatprep.subr.mxu0 0.0
    %7020 = vmatpush1.msra.mxu0 0.0
    %7021 = vmatprep.subr.mxu0 0.0
    %7022 = vmatpush1.msra.mxu0 0.0
    %7023 = vmatprep.mubr.f32.mxu0 0.0
    %v7024 = vand.u32 %v3032, 4294901760
    %7025 = vmatmul.mubr.f32.gmra.mrb[0].mxu0 %v7024
    %v7026 = vpop.f32.mrb[0].mxu0
    %v7027 = vadd.f32 %v6915, %v7026
    %v7028 = vpop.f32.mrb[0].mxu0
    %v7029 = vadd.f32 %v6917, %v7028
    %7030 = vdwg.mxu0
    %v7031 = vand.u32 %v2749, 4294901760
    %v7032 = vsub.f32 %v2749, %v7031
    %7033 = vmatprep.subr.mxu0 %v7032
    %v7034 = vand.u32 %v2748, 4294901760
    %v7035 = vsub.f32 %v2748, %v7034
    %7036 = vmatpush1.msra.mxu0 %v7035
    %v7037 = vand.u32 %v2781, 4294901760
    %v7038 = vsub.f32 %v2781, %v7037
    %7039 = vmatprep.subr.mxu0 %v7038
    %v7040 = vand.u32 %v2780, 4294901760
    %v7041 = vsub.f32 %v2780, %v7040
    %7042 = vmatpush1.msra.mxu0 %v7041
    %v7043 = vand.u32 %v2813, 4294901760
    %v7044 = vsub.f32 %v2813, %v7043
    %7045 = vmatprep.subr.mxu0 %v7044
    %v7046 = vand.u32 %v2812, 4294901760
    %v7047 = vsub.f32 %v2812, %v7046
    %7048 = vmatpush1.msra.mxu0 %v7047
    %v7049 = vand.u32 %v2845, 4294901760
    %v7050 = vsub.f32 %v2845, %v7049
    %7051 = vmatprep.subr.mxu0 %v7050
    %v7052 = vand.u32 %v2844, 4294901760
    %v7053 = vsub.f32 %v2844, %v7052
    %7054 = vmatpush1.msra.mxu0 %v7053
    %7055 = vmatprep.subr.mxu0 0.0
    %7056 = vmatpush1.msra.mxu0 0.0
    %7057 = vmatprep.subr.mxu0 0.0
    %7058 = vmatpush1.msra.mxu0 0.0
    %7059 = vmatprep.subr.mxu0 0.0
    %7060 = vmatpush1.msra.mxu0 0.0
    %7061 = vmatprep.subr.mxu0 0.0
    %7062 = vmatpush1.msra.mxu0 0.0
    %7063 = vmatprep.subr.mxu0 0.0
    %7064 = vmatpush1.msra.mxu0 0.0
    %7065 = vmatprep.subr.mxu0 0.0
    %7066 = vmatpush1.msra.mxu0 0.0
    %7067 = vmatprep.subr.mxu0 0.0
    %7068 = vmatpush1.msra.mxu0 0.0
    %7069 = vmatprep.subr.mxu0 0.0
    %7070 = vmatpush1.msra.mxu0 0.0
    %7071 = vmatprep.subr.mxu0 0.0
    %7072 = vmatpush1.msra.mxu0 0.0
    %7073 = vmatprep.subr.mxu0 0.0
    %7074 = vmatpush1.msra.mxu0 0.0
    %7075 = vmatprep.subr.mxu0 0.0
    %7076 = vmatpush1.msra.mxu0 0.0
    %7077 = vmatprep.subr.mxu0 0.0
    %7078 = vmatpush1.msra.mxu0 0.0
    %7079 = vmatprep.subr.mxu0 0.0
    %7080 = vmatpush1.msra.mxu0 0.0
    %7081 = vmatprep.subr.mxu0 0.0
    %7082 = vmatpush1.msra.mxu0 0.0
    %7083 = vmatprep.subr.mxu0 0.0
    %7084 = vmatpush1.msra.mxu0 0.0
    %7085 = vmatprep.subr.mxu0 0.0
    %7086 = vmatpush1.msra.mxu0 0.0
    %7087 = vmatprep.subr.mxu0 0.0
    %7088 = vmatpush1.msra.mxu0 0.0
    %7089 = vmatprep.subr.mxu0 0.0
    %7090 = vmatpush1.msra.mxu0 0.0
    %7091 = vmatprep.subr.mxu0 0.0
    %7092 = vmatpush1.msra.mxu0 0.0
    %7093 = vmatprep.subr.mxu0 0.0
    %7094 = vmatpush1.msra.mxu0 0.0
    %7095 = vmatprep.subr.mxu0 0.0
    %7096 = vmatpush1.msra.mxu0 0.0
    %7097 = vmatprep.subr.mxu0 0.0
    %7098 = vmatpush1.msra.mxu0 0.0
    %7099 = vmatprep.subr.mxu0 0.0
    %7100 = vmatpush1.msra.mxu0 0.0
    %7101 = vmatprep.subr.mxu0 0.0
    %7102 = vmatpush1.msra.mxu0 0.0
    %7103 = vmatprep.subr.mxu0 0.0
    %7104 = vmatpush1.msra.mxu0 0.0
    %7105 = vmatprep.subr.mxu0 0.0
    %7106 = vmatpush1.msra.mxu0 0.0
    %7107 = vmatprep.subr.mxu0 0.0
    %7108 = vmatpush1.msra.mxu0 0.0
    %7109 = vmatprep.subr.mxu0 0.0
    %7110 = vmatpush1.msra.mxu0 0.0
    %7111 = vmatprep.mubr.f32.mxu0 0.0
    %v7112 = vand.u32 %v3032, 4294901760
    %v7113 = vsub.f32 %v3032, %v7112
    %7114 = vmatmul.mubr.f32.gmra.mrb[0].mxu0 %v7113
    %v7115 = vpop.f32.mrb[0].mxu0
    %v7116 = vadd.f32 %v7027, %v7115
    %v7117 = vpop.f32.mrb[0].mxu0
    %v7118 = vadd.f32 %v7029, %v7117
    %7119 = vdwg.mxu0
    %v7120 = vand.u32 %v2749, 4294901760
    %7121 = vmatprep.subr.mxu0 %v7120
    %v7122 = vand.u32 %v2748, 4294901760
    %7123 = vmatpush1.msra.mxu0 %v7122
    %v7124 = vand.u32 %v2781, 4294901760
    %7125 = vmatprep.subr.mxu0 %v7124
    %v7126 = vand.u32 %v2780, 4294901760
    %7127 = vmatpush1.msra.mxu0 %v7126
    %v7128 = vand.u32 %v2813, 4294901760
    %7129 = vmatprep.subr.mxu0 %v7128
    %v7130 = vand.u32 %v2812, 4294901760
    %7131 = vmatpush1.msra.mxu0 %v7130
    %v7132 = vand.u32 %v2845, 4294901760
    %7133 = vmatprep.subr.mxu0 %v7132
    %v7134 = vand.u32 %v2844, 4294901760
    %7135 = vmatpush1.msra.mxu0 %v7134
    %7136 = vmatprep.subr.mxu0 0.0
    %7137 = vmatpush1.msra.mxu0 0.0
    %7138 = vmatprep.subr.mxu0 0.0
    %7139 = vmatpush1.msra.mxu0 0.0
    %7140 = vmatprep.subr.mxu0 0.0
    %7141 = vmatpush1.msra.mxu0 0.0
    %7142 = vmatprep.subr.mxu0 0.0
    %7143 = vmatpush1.msra.mxu0 0.0
    %7144 = vmatprep.subr.mxu0 0.0
    %7145 = vmatpush1.msra.mxu0 0.0
    %7146 = vmatprep.subr.mxu0 0.0
    %7147 = vmatpush1.msra.mxu0 0.0
    %7148 = vmatprep.subr.mxu0 0.0
    %7149 = vmatpush1.msra.mxu0 0.0
    %7150 = vmatprep.subr.mxu0 0.0
    %7151 = vmatpush1.msra.mxu0 0.0
    %7152 = vmatprep.subr.mxu0 0.0
    %7153 = vmatpush1.msra.mxu0 0.0
    %7154 = vmatprep.subr.mxu0 0.0
    %7155 = vmatpush1.msra.mxu0 0.0
    %7156 = vmatprep.subr.mxu0 0.0
    %7157 = vmatpush1.msra.mxu0 0.0
    %7158 = vmatprep.subr.mxu0 0.0
    %7159 = vmatpush1.msra.mxu0 0.0
    %7160 = vmatprep.subr.mxu0 0.0
    %7161 = vmatpush1.msra.mxu0 0.0
    %7162 = vmatprep.subr.mxu0 0.0
    %7163 = vmatpush1.msra.mxu0 0.0
    %7164 = vmatprep.subr.mxu0 0.0
    %7165 = vmatpush1.msra.mxu0 0.0
    %7166 = vmatprep.subr.mxu0 0.0
    %7167 = vmatpush1.msra.mxu0 0.0
    %7168 = vmatprep.subr.mxu0 0.0
    %7169 = vmatpush1.msra.mxu0 0.0
    %7170 = vmatprep.subr.mxu0 0.0
    %7171 = vmatpush1.msra.mxu0 0.0
    %7172 = vmatprep.subr.mxu0 0.0
    %7173 = vmatpush1.msra.mxu0 0.0
    %7174 = vmatprep.subr.mxu0 0.0
    %7175 = vmatpush1.msra.mxu0 0.0
    %7176 = vmatprep.subr.mxu0 0.0
    %7177 = vmatpush1.msra.mxu0 0.0
    %7178 = vmatprep.subr.mxu0 0.0
    %7179 = vmatpush1.msra.mxu0 0.0
    %7180 = vmatprep.subr.mxu0 0.0
    %7181 = vmatpush1.msra.mxu0 0.0
    %7182 = vmatprep.subr.mxu0 0.0
    %7183 = vmatpush1.msra.mxu0 0.0
    %7184 = vmatprep.subr.mxu0 0.0
    %7185 = vmatpush1.msra.mxu0 0.0
    %7186 = vmatprep.subr.mxu0 0.0
    %7187 = vmatpush1.msra.mxu0 0.0
    %7188 = vmatprep.subr.mxu0 0.0
    %7189 = vmatpush1.msra.mxu0 0.0
    %7190 = vmatprep.subr.mxu0 0.0
    %7191 = vmatpush1.msra.mxu0 0.0
    %7192 = vmatprep.mubr.f32.mxu0 0.0
    %v7193 = vand.u32 %v3032, 4294901760
    %v7194 = vsub.f32 %v3032, %v7193
    %v7195 = vand.u32 %v7194, 4294901760
    %7196 = vmatmul.mubr.f32.gmra.mrb[0].mxu0 %v7195
    %v7197 = vpop.f32.mrb[0].mxu0
    %v7198 = vadd.f32 %v7116, %v7197
    %v7199 = vpop.f32.mrb[0].mxu0
    %v7200 = vadd.f32 %v7118, %v7199
    %7201 = vdwg.mxu0
    %v7202 = vand.u32 %v2749, 4294901760
    %v7203 = vsub.f32 %v2749, %v7202
    %v7204 = vand.u32 %v7203, 4294901760
    %7205 = vmatprep.subr.mxu0 %v7204
    %v7206 = vand.u32 %v2748, 4294901760
    %v7207 = vsub.f32 %v2748, %v7206
    %v7208 = vand.u32 %v7207, 4294901760
    %7209 = vmatpush1.msra.mxu0 %v7208
    %v7210 = vand.u32 %v2781, 4294901760
    %v7211 = vsub.f32 %v2781, %v7210
    %v7212 = vand.u32 %v7211, 4294901760
    %7213 = vmatprep.subr.mxu0 %v7212
    %v7214 = vand.u32 %v2780, 4294901760
    %v7215 = vsub.f32 %v2780, %v7214
    %v7216 = vand.u32 %v7215, 4294901760
    %7217 = vmatpush1.msra.mxu0 %v7216
    %v7218 = vand.u32 %v2813, 4294901760
    %v7219 = vsub.f32 %v2813, %v7218
    %v7220 = vand.u32 %v7219, 4294901760
    %7221 = vmatprep.subr.mxu0 %v7220
    %v7222 = vand.u32 %v2812, 4294901760
    %v7223 = vsub.f32 %v2812, %v7222
    %v7224 = vand.u32 %v7223, 4294901760
    %7225 = vmatpush1.msra.mxu0 %v7224
    %v7226 = vand.u32 %v2845, 4294901760
    %v7227 = vsub.f32 %v2845, %v7226
    %v7228 = vand.u32 %v7227, 4294901760
    %7229 = vmatprep.subr.mxu0 %v7228
    %v7230 = vand.u32 %v2844, 4294901760
    %v7231 = vsub.f32 %v2844, %v7230
    %v7232 = vand.u32 %v7231, 4294901760
    %7233 = vmatpush1.msra.mxu0 %v7232
    %7234 = vmatprep.subr.mxu0 0.0
    %7235 = vmatpush1.msra.mxu0 0.0
    %7236 = vmatprep.subr.mxu0 0.0
    %7237 = vmatpush1.msra.mxu0 0.0
    %7238 = vmatprep.subr.mxu0 0.0
    %7239 = vmatpush1.msra.mxu0 0.0
    %7240 = vmatprep.subr.mxu0 0.0
    %7241 = vmatpush1.msra.mxu0 0.0
    %7242 = vmatprep.subr.mxu0 0.0
    %7243 = vmatpush1.msra.mxu0 0.0
    %7244 = vmatprep.subr.mxu0 0.0
    %7245 = vmatpush1.msra.mxu0 0.0
    %7246 = vmatprep.subr.mxu0 0.0
    %7247 = vmatpush1.msra.mxu0 0.0
    %7248 = vmatprep.subr.mxu0 0.0
    %7249 = vmatpush1.msra.mxu0 0.0
    %7250 = vmatprep.subr.mxu0 0.0
    %7251 = vmatpush1.msra.mxu0 0.0
    %7252 = vmatprep.subr.mxu0 0.0
    %7253 = vmatpush1.msra.mxu0 0.0
    %7254 = vmatprep.subr.mxu0 0.0
    %7255 = vmatpush1.msra.mxu0 0.0
    %7256 = vmatprep.subr.mxu0 0.0
    %7257 = vmatpush1.msra.mxu0 0.0
    %7258 = vmatprep.subr.mxu0 0.0
    %7259 = vmatpush1.msra.mxu0 0.0
    %7260 = vmatprep.subr.mxu0 0.0
    %7261 = vmatpush1.msra.mxu0 0.0
    %7262 = vmatprep.subr.mxu0 0.0
    %7263 = vmatpush1.msra.mxu0 0.0
    %7264 = vmatprep.subr.mxu0 0.0
    %7265 = vmatpush1.msra.mxu0 0.0
    %7266 = vmatprep.subr.mxu0 0.0
    %7267 = vmatpush1.msra.mxu0 0.0
    %7268 = vmatprep.subr.mxu0 0.0
    %7269 = vmatpush1.msra.mxu0 0.0
    %7270 = vmatprep.subr.mxu0 0.0
    %7271 = vmatpush1.msra.mxu0 0.0
    %7272 = vmatprep.subr.mxu0 0.0
    %7273 = vmatpush1.msra.mxu0 0.0
    %7274 = vmatprep.subr.mxu0 0.0
    %7275 = vmatpush1.msra.mxu0 0.0
    %7276 = vmatprep.subr.mxu0 0.0
    %7277 = vmatpush1.msra.mxu0 0.0
    %7278 = vmatprep.subr.mxu0 0.0
    %7279 = vmatpush1.msra.mxu0 0.0
    %7280 = vmatprep.subr.mxu0 0.0
    %7281 = vmatpush1.msra.mxu0 0.0
    %7282 = vmatprep.subr.mxu0 0.0
    %7283 = vmatpush1.msra.mxu0 0.0
    %7284 = vmatprep.subr.mxu0 0.0
    %7285 = vmatpush1.msra.mxu0 0.0
    %7286 = vmatprep.subr.mxu0 0.0
    %7287 = vmatpush1.msra.mxu0 0.0
    %7288 = vmatprep.subr.mxu0 0.0
    %7289 = vmatpush1.msra.mxu0 0.0
    %7290 = vmatprep.mubr.f32.mxu0 0.0
    %v7291 = vand.u32 %v3032, 4294901760
    %7292 = vmatmul.mubr.f32.gmra.mrb[0].mxu0 %v7291
    %v7293 = vpop.f32.mrb[0].mxu0
    %v7294 = vadd.f32 %v7198, %v7293
    %v7295 = vpop.f32.mrb[0].mxu0
    %v7296 = vadd.f32 %v7200, %v7295
    %7297 = vdwg.mxu0
    %v7298 = vand.u32 %v2749, 4294901760
    %7299 = vmatprep.subr.mxu0 %v7298
    %v7300 = vand.u32 %v2748, 4294901760
    %7301 = vmatpush1.msra.mxu0 %v7300
    %v7302 = vand.u32 %v2781, 4294901760
    %7303 = vmatprep.subr.mxu0 %v7302
    %v7304 = vand.u32 %v2780, 4294901760
    %7305 = vmatpush1.msra.mxu0 %v7304
    %v7306 = vand.u32 %v2813, 4294901760
    %7307 = vmatprep.subr.mxu0 %v7306
    %v7308 = vand.u32 %v2812, 4294901760
    %7309 = vmatpush1.msra.mxu0 %v7308
    %v7310 = vand.u32 %v2845, 4294901760
    %7311 = vmatprep.subr.mxu0 %v7310
    %v7312 = vand.u32 %v2844, 4294901760
    %7313 = vmatpush1.msra.mxu0 %v7312
    %7314 = vmatprep.subr.mxu0 0.0
    %7315 = vmatpush1.msra.mxu0 0.0
    %7316 = vmatprep.subr.mxu0 0.0
    %7317 = vmatpush1.msra.mxu0 0.0
    %7318 = vmatprep.subr.mxu0 0.0
    %7319 = vmatpush1.msra.mxu0 0.0
    %7320 = vmatprep.subr.mxu0 0.0
    %7321 = vmatpush1.msra.mxu0 0.0
    %7322 = vmatprep.subr.mxu0 0.0
    %7323 = vmatpush1.msra.mxu0 0.0
    %7324 = vmatprep.subr.mxu0 0.0
    %7325 = vmatpush1.msra.mxu0 0.0
    %7326 = vmatprep.subr.mxu0 0.0
    %7327 = vmatpush1.msra.mxu0 0.0
    %7328 = vmatprep.subr.mxu0 0.0
    %7329 = vmatpush1.msra.mxu0 0.0
    %7330 = vmatprep.subr.mxu0 0.0
    %7331 = vmatpush1.msra.mxu0 0.0
    %7332 = vmatprep.subr.mxu0 0.0
    %7333 = vmatpush1.msra.mxu0 0.0
    %7334 = vmatprep.subr.mxu0 0.0
    %7335 = vmatpush1.msra.mxu0 0.0
    %7336 = vmatprep.subr.mxu0 0.0
    %7337 = vmatpush1.msra.mxu0 0.0
    %7338 = vmatprep.subr.mxu0 0.0
    %7339 = vmatpush1.msra.mxu0 0.0
    %7340 = vmatprep.subr.mxu0 0.0
    %7341 = vmatpush1.msra.mxu0 0.0
    %7342 = vmatprep.subr.mxu0 0.0
    %7343 = vmatpush1.msra.mxu0 0.0
    %7344 = vmatprep.subr.mxu0 0.0
    %7345 = vmatpush1.msra.mxu0 0.0
    %7346 = vmatprep.subr.mxu0 0.0
    %7347 = vmatpush1.msra.mxu0 0.0
    %7348 = vmatprep.subr.mxu0 0.0
    %7349 = vmatpush1.msra.mxu0 0.0
    %7350 = vmatprep.subr.mxu0 0.0
    %7351 = vmatpush1.msra.mxu0 0.0
    %7352 = vmatprep.subr.mxu0 0.0
    %7353 = vmatpush1.msra.mxu0 0.0
    %7354 = vmatprep.subr.mxu0 0.0
    %7355 = vmatpush1.msra.mxu0 0.0
    %7356 = vmatprep.subr.mxu0 0.0
    %7357 = vmatpush1.msra.mxu0 0.0
    %7358 = vmatprep.subr.mxu0 0.0
    %7359 = vmatpush1.msra.mxu0 0.0
    %7360 = vmatprep.subr.mxu0 0.0
    %7361 = vmatpush1.msra.mxu0 0.0
    %7362 = vmatprep.subr.mxu0 0.0
    %7363 = vmatpush1.msra.mxu0 0.0
    %7364 = vmatprep.subr.mxu0 0.0
    %7365 = vmatpush1.msra.mxu0 0.0
    %7366 = vmatprep.subr.mxu0 0.0
    %7367 = vmatpush1.msra.mxu0 0.0
    %7368 = vmatprep.subr.mxu0 0.0
    %7369 = vmatpush1.msra.mxu0 0.0
    %7370 = vmatprep.mubr.f32.mxu0 0.0
    %v7371 = vand.u32 %v3032, 4294901760
    %7372 = vmatmul.mubr.f32.gmra.mrb[0].mxu0 %v7371
    %v7373 = vpop.f32.mrb[0].mxu0
    %v7374 = vadd.f32 %v7294, %v7373
    %v7375 = vpop.f32.mrb[0].mxu0
    %v7376 = vadd.f32 %v7296, %v7375
    %7377 = vdwg.mxu0
    %v7378 = vand.u32 %v2751, 4294901760
    %7379 = vmatprep.subr.mxu0 %v7378
    %v7380 = vand.u32 %v2750, 4294901760
    %7381 = vmatpush1.msra.mxu0 %v7380
    %v7382 = vand.u32 %v2783, 4294901760
    %7383 = vmatprep.subr.mxu0 %v7382
    %v7384 = vand.u32 %v2782, 4294901760
    %7385 = vmatpush1.msra.mxu0 %v7384
    %v7386 = vand.u32 %v2815, 4294901760
    %7387 = vmatprep.subr.mxu0 %v7386
    %v7388 = vand.u32 %v2814, 4294901760
    %7389 = vmatpush1.msra.mxu0 %v7388
    %v7390 = vand.u32 %v2847, 4294901760
    %7391 = vmatprep.subr.mxu0 %v7390
    %v7392 = vand.u32 %v2846, 4294901760
    %7393 = vmatpush1.msra.mxu0 %v7392
    %7394 = vmatprep.subr.mxu0 0.0
    %7395 = vmatpush1.msra.mxu0 0.0
    %7396 = vmatprep.subr.mxu0 0.0
    %7397 = vmatpush1.msra.mxu0 0.0
    %7398 = vmatprep.subr.mxu0 0.0
    %7399 = vmatpush1.msra.mxu0 0.0
    %7400 = vmatprep.subr.mxu0 0.0
    %7401 = vmatpush1.msra.mxu0 0.0
    %7402 = vmatprep.subr.mxu0 0.0
    %7403 = vmatpush1.msra.mxu0 0.0
    %7404 = vmatprep.subr.mxu0 0.0
    %7405 = vmatpush1.msra.mxu0 0.0
    %7406 = vmatprep.subr.mxu0 0.0
    %7407 = vmatpush1.msra.mxu0 0.0
    %7408 = vmatprep.subr.mxu0 0.0
    %7409 = vmatpush1.msra.mxu0 0.0
    %7410 = vmatprep.subr.mxu0 0.0
    %7411 = vmatpush1.msra.mxu0 0.0
    %7412 = vmatprep.subr.mxu0 0.0
    %7413 = vmatpush1.msra.mxu0 0.0
    %7414 = vmatprep.subr.mxu0 0.0
    %7415 = vmatpush1.msra.mxu0 0.0
    %7416 = vmatprep.subr.mxu0 0.0
    %7417 = vmatpush1.msra.mxu0 0.0
    %7418 = vmatprep.subr.mxu0 0.0
    %7419 = vmatpush1.msra.mxu0 0.0
    %7420 = vmatprep.subr.mxu0 0.0
    %7421 = vmatpush1.msra.mxu0 0.0
    %7422 = vmatprep.subr.mxu0 0.0
    %7423 = vmatpush1.msra.mxu0 0.0
    %7424 = vmatprep.subr.mxu0 0.0
    %7425 = vmatpush1.msra.mxu0 0.0
    %7426 = vmatprep.subr.mxu0 0.0
    %7427 = vmatpush1.msra.mxu0 0.0
    %7428 = vmatprep.subr.mxu0 0.0
    %7429 = vmatpush1.msra.mxu0 0.0
    %7430 = vmatprep.subr.mxu0 0.0
    %7431 = vmatpush1.msra.mxu0 0.0
    %7432 = vmatprep.subr.mxu0 0.0
    %7433 = vmatpush1.msra.mxu0 0.0
    %7434 = vmatprep.subr.mxu0 0.0
    %7435 = vmatpush1.msra.mxu0 0.0
    %7436 = vmatprep.subr.mxu0 0.0
    %7437 = vmatpush1.msra.mxu0 0.0
    %7438 = vmatprep.subr.mxu0 0.0
    %7439 = vmatpush1.msra.mxu0 0.0
    %7440 = vmatprep.subr.mxu0 0.0
    %7441 = vmatpush1.msra.mxu0 0.0
    %7442 = vmatprep.subr.mxu0 0.0
    %7443 = vmatpush1.msra.mxu0 0.0
    %7444 = vmatprep.subr.mxu0 0.0
    %7445 = vmatpush1.msra.mxu0 0.0
    %7446 = vmatprep.subr.mxu0 0.0
    %7447 = vmatpush1.msra.mxu0 0.0
    %7448 = vmatprep.subr.mxu0 0.0
    %7449 = vmatpush1.msra.mxu0 0.0
    %7450 = vmatprep.mubr.f32.mxu0 0.0
    %v7451 = vand.u32 %v3032, 4294901760
    %v7452 = vsub.f32 %v3032, %v7451
    %v7453 = vand.u32 %v7452, 4294901760
    %v7454 = vsub.f32 %v7452, %v7453
    %v7455 = vand.u32 %v7454, 4294901760
    %7456 = vmatmul.mubr.f32.gmra.mrb[0].mxu0 %v7455
    %v7457 = vpop.f32.mrb[0].mxu0
    %v7458 = vadd.f32 %v2937, %v7457
    %v7459 = vpop.f32.mrb[0].mxu0
    %v7460 = vadd.f32 %v2941, %v7459
    %7461 = vdwg.mxu0
    %v7462 = vand.u32 %v2751, 4294901760
    %v7463 = vsub.f32 %v2751, %v7462
    %v7464 = vand.u32 %v7463, 4294901760
    %v7465 = vsub.f32 %v7463, %v7464
    %v7466 = vand.u32 %v7465, 4294901760
    %7467 = vmatprep.subr.mxu0 %v7466
    %v7468 = vand.u32 %v2750, 4294901760
    %v7469 = vsub.f32 %v2750, %v7468
    %v7470 = vand.u32 %v7469, 4294901760
    %v7471 = vsub.f32 %v7469, %v7470
    %v7472 = vand.u32 %v7471, 4294901760
    %7473 = vmatpush1.msra.mxu0 %v7472
    %v7474 = vand.u32 %v2783, 4294901760
    %v7475 = vsub.f32 %v2783, %v7474
    %v7476 = vand.u32 %v7475, 4294901760
    %v7477 = vsub.f32 %v7475, %v7476
    %v7478 = vand.u32 %v7477, 4294901760
    %7479 = vmatprep.subr.mxu0 %v7478
    %v7480 = vand.u32 %v2782, 4294901760
    %v7481 = vsub.f32 %v2782, %v7480
    %v7482 = vand.u32 %v7481, 4294901760
    %v7483 = vsub.f32 %v7481, %v7482
    %v7484 = vand.u32 %v7483, 4294901760
    %7485 = vmatpush1.msra.mxu0 %v7484
    %v7486 = vand.u32 %v2815, 4294901760
    %v7487 = vsub.f32 %v2815, %v7486
    %v7488 = vand.u32 %v7487, 4294901760
    %v7489 = vsub.f32 %v7487, %v7488
    %v7490 = vand.u32 %v7489, 4294901760
    %7491 = vmatprep.subr.mxu0 %v7490
    %v7492 = vand.u32 %v2814, 4294901760
    %v7493 = vsub.f32 %v2814, %v7492
    %v7494 = vand.u32 %v7493, 4294901760
    %v7495 = vsub.f32 %v7493, %v7494
    %v7496 = vand.u32 %v7495, 4294901760
    %7497 = vmatpush1.msra.mxu0 %v7496
    %v7498 = vand.u32 %v2847, 4294901760
    %v7499 = vsub.f32 %v2847, %v7498
    %v7500 = vand.u32 %v7499, 4294901760
    %v7501 = vsub.f32 %v7499, %v7500
    %v7502 = vand.u32 %v7501, 4294901760
    %7503 = vmatprep.subr.mxu0 %v7502
    %v7504 = vand.u32 %v2846, 4294901760
    %v7505 = vsub.f32 %v2846, %v7504
    %v7506 = vand.u32 %v7505, 4294901760
    %v7507 = vsub.f32 %v7505, %v7506
    %v7508 = vand.u32 %v7507, 4294901760
    %7509 = vmatpush1.msra.mxu0 %v7508
    %7510 = vmatprep.subr.mxu0 0.0
    %7511 = vmatpush1.msra.mxu0 0.0
    %7512 = vmatprep.subr.mxu0 0.0
    %7513 = vmatpush1.msra.mxu0 0.0
    %7514 = vmatprep.subr.mxu0 0.0
    %7515 = vmatpush1.msra.mxu0 0.0
    %7516 = vmatprep.subr.mxu0 0.0
    %7517 = vmatpush1.msra.mxu0 0.0
    %7518 = vmatprep.subr.mxu0 0.0
    %7519 = vmatpush1.msra.mxu0 0.0
    %7520 = vmatprep.subr.mxu0 0.0
    %7521 = vmatpush1.msra.mxu0 0.0
    %7522 = vmatprep.subr.mxu0 0.0
    %7523 = vmatpush1.msra.mxu0 0.0
    %7524 = vmatprep.subr.mxu0 0.0
    %7525 = vmatpush1.msra.mxu0 0.0
    %7526 = vmatprep.subr.mxu0 0.0
    %7527 = vmatpush1.msra.mxu0 0.0
    %7528 = vmatprep.subr.mxu0 0.0
    %7529 = vmatpush1.msra.mxu0 0.0
    %7530 = vmatprep.subr.mxu0 0.0
    %7531 = vmatpush1.msra.mxu0 0.0
    %7532 = vmatprep.subr.mxu0 0.0
    %7533 = vmatpush1.msra.mxu0 0.0
    %7534 = vmatprep.subr.mxu0 0.0
    %7535 = vmatpush1.msra.mxu0 0.0
    %7536 = vmatprep.subr.mxu0 0.0
    %7537 = vmatpush1.msra.mxu0 0.0
    %7538 = vmatprep.subr.mxu0 0.0
    %7539 = vmatpush1.msra.mxu0 0.0
    %7540 = vmatprep.subr.mxu0 0.0
    %7541 = vmatpush1.msra.mxu0 0.0
    %7542 = vmatprep.subr.mxu0 0.0
    %7543 = vmatpush1.msra.mxu0 0.0
    %7544 = vmatprep.subr.mxu0 0.0
    %7545 = vmatpush1.msra.mxu0 0.0
    %7546 = vmatprep.subr.mxu0 0.0
    %7547 = vmatpush1.msra.mxu0 0.0
    %7548 = vmatprep.subr.mxu0 0.0
    %7549 = vmatpush1.msra.mxu0 0.0
    %7550 = vmatprep.subr.mxu0 0.0
    %7551 = vmatpush1.msra.mxu0 0.0
    %7552 = vmatprep.subr.mxu0 0.0
    %7553 = vmatpush1.msra.mxu0 0.0
    %7554 = vmatprep.subr.mxu0 0.0
    %7555 = vmatpush1.msra.mxu0 0.0
    %7556 = vmatprep.subr.mxu0 0.0
    %7557 = vmatpush1.msra.mxu0 0.0
    %7558 = vmatprep.subr.mxu0 0.0
    %7559 = vmatpush1.msra.mxu0 0.0
    %7560 = vmatprep.subr.mxu0 0.0
    %7561 = vmatpush1.msra.mxu0 0.0
    %7562 = vmatprep.subr.mxu0 0.0
    %7563 = vmatpush1.msra.mxu0 0.0
    %7564 = vmatprep.subr.mxu0 0.0
    %7565 = vmatpush1.msra.mxu0 0.0
    %7566 = vmatprep.mubr.f32.mxu0 0.0
    %v7567 = vand.u32 %v3032, 4294901760
    %7568 = vmatmul.mubr.f32.gmra.mrb[0].mxu0 %v7567
    %v7569 = vpop.f32.mrb[0].mxu0
    %v7570 = vadd.f32 %v7458, %v7569
    %v7571 = vpop.f32.mrb[0].mxu0
    %v7572 = vadd.f32 %v7460, %v7571
    %7573 = vdwg.mxu0
    %v7574 = vand.u32 %v2751, 4294901760
    %v7575 = vsub.f32 %v2751, %v7574
    %7576 = vmatprep.subr.mxu0 %v7575
    %v7577 = vand.u32 %v2750, 4294901760
    %v7578 = vsub.f32 %v2750, %v7577
    %7579 = vmatpush1.msra.mxu0 %v7578
    %v7580 = vand.u32 %v2783, 4294901760
    %v7581 = vsub.f32 %v2783, %v7580
    %7582 = vmatprep.subr.mxu0 %v7581
    %v7583 = vand.u32 %v2782, 4294901760
    %v7584 = vsub.f32 %v2782, %v7583
    %7585 = vmatpush1.msra.mxu0 %v7584
    %v7586 = vand.u32 %v2815, 4294901760
    %v7587 = vsub.f32 %v2815, %v7586
    %7588 = vmatprep.subr.mxu0 %v7587
    %v7589 = vand.u32 %v2814, 4294901760
    %v7590 = vsub.f32 %v2814, %v7589
    %7591 = vmatpush1.msra.mxu0 %v7590
    %v7592 = vand.u32 %v2847, 4294901760
    %v7593 = vsub.f32 %v2847, %v7592
    %7594 = vmatprep.subr.mxu0 %v7593
    %v7595 = vand.u32 %v2846, 4294901760
    %v7596 = vsub.f32 %v2846, %v7595
    %7597 = vmatpush1.msra.mxu0 %v7596
    %7598 = vmatprep.subr.mxu0 0.0
    %7599 = vmatpush1.msra.mxu0 0.0
    %7600 = vmatprep.subr.mxu0 0.0
    %7601 = vmatpush1.msra.mxu0 0.0
    %7602 = vmatprep.subr.mxu0 0.0
    %7603 = vmatpush1.msra.mxu0 0.0
    %7604 = vmatprep.subr.mxu0 0.0
    %7605 = vmatpush1.msra.mxu0 0.0
    %7606 = vmatprep.subr.mxu0 0.0
    %7607 = vmatpush1.msra.mxu0 0.0
    %7608 = vmatprep.subr.mxu0 0.0
    %7609 = vmatpush1.msra.mxu0 0.0
    %7610 = vmatprep.subr.mxu0 0.0
    %7611 = vmatpush1.msra.mxu0 0.0
    %7612 = vmatprep.subr.mxu0 0.0
    %7613 = vmatpush1.msra.mxu0 0.0
    %7614 = vmatprep.subr.mxu0 0.0
    %7615 = vmatpush1.msra.mxu0 0.0
    %7616 = vmatprep.subr.mxu0 0.0
    %7617 = vmatpush1.msra.mxu0 0.0
    %7618 = vmatprep.subr.mxu0 0.0
    %7619 = vmatpush1.msra.mxu0 0.0
    %7620 = vmatprep.subr.mxu0 0.0
    %7621 = vmatpush1.msra.mxu0 0.0
    %7622 = vmatprep.subr.mxu0 0.0
    %7623 = vmatpush1.msra.mxu0 0.0
    %7624 = vmatprep.subr.mxu0 0.0
    %7625 = vmatpush1.msra.mxu0 0.0
    %7626 = vmatprep.subr.mxu0 0.0
    %7627 = vmatpush1.msra.mxu0 0.0
    %7628 = vmatprep.subr.mxu0 0.0
    %7629 = vmatpush1.msra.mxu0 0.0
    %7630 = vmatprep.subr.mxu0 0.0
    %7631 = vmatpush1.msra.mxu0 0.0
    %7632 = vmatprep.subr.mxu0 0.0
    %7633 = vmatpush1.msra.mxu0 0.0
    %7634 = vmatprep.subr.mxu0 0.0
    %7635 = vmatpush1.msra.mxu0 0.0
    %7636 = vmatprep.subr.mxu0 0.0
    %7637 = vmatpush1.msra.mxu0 0.0
    %7638 = vmatprep.subr.mxu0 0.0
    %7639 = vmatpush1.msra.mxu0 0.0
    %7640 = vmatprep.subr.mxu0 0.0
    %7641 = vmatpush1.msra.mxu0 0.0
    %7642 = vmatprep.subr.mxu0 0.0
    %7643 = vmatpush1.msra.mxu0 0.0
    %7644 = vmatprep.subr.mxu0 0.0
    %7645 = vmatpush1.msra.mxu0 0.0
    %7646 = vmatprep.subr.mxu0 0.0
    %7647 = vmatpush1.msra.mxu0 0.0
    %7648 = vmatprep.subr.mxu0 0.0
    %7649 = vmatpush1.msra.mxu0 0.0
    %7650 = vmatprep.subr.mxu0 0.0
    %7651 = vmatpush1.msra.mxu0 0.0
    %7652 = vmatprep.subr.mxu0 0.0
    %7653 = vmatpush1.msra.mxu0 0.0
    %7654 = vmatprep.mubr.f32.mxu0 0.0
    %v7655 = vand.u32 %v3032, 4294901760
    %v7656 = vsub.f32 %v3032, %v7655
    %7657 = vmatmul.mubr.f32.gmra.mrb[0].mxu0 %v7656
    %v7658 = vpop.f32.mrb[0].mxu0
    %v7659 = vadd.f32 %v7570, %v7658
    %v7660 = vpop.f32.mrb[0].mxu0
    %v7661 = vadd.f32 %v7572, %v7660
    %7662 = vdwg.mxu0
    %v7663 = vand.u32 %v2751, 4294901760
    %7664 = vmatprep.subr.mxu0 %v7663
    %v7665 = vand.u32 %v2750, 4294901760
    %7666 = vmatpush1.msra.mxu0 %v7665
    %v7667 = vand.u32 %v2783, 4294901760
    %7668 = vmatprep.subr.mxu0 %v7667
    %v7669 = vand.u32 %v2782, 4294901760
    %7670 = vmatpush1.msra.mxu0 %v7669
    %v7671 = vand.u32 %v2815, 4294901760
    %7672 = vmatprep.subr.mxu0 %v7671
    %v7673 = vand.u32 %v2814, 4294901760
    %7674 = vmatpush1.msra.mxu0 %v7673
    %v7675 = vand.u32 %v2847, 4294901760
    %7676 = vmatprep.subr.mxu0 %v7675
    %v7677 = vand.u32 %v2846, 4294901760
    %7678 = vmatpush1.msra.mxu0 %v7677
    %7679 = vmatprep.subr.mxu0 0.0
    %7680 = vmatpush1.msra.mxu0 0.0
    %7681 = vmatprep.subr.mxu0 0.0
    %7682 = vmatpush1.msra.mxu0 0.0
    %7683 = vmatprep.subr.mxu0 0.0
    %7684 = vmatpush1.msra.mxu0 0.0
    %7685 = vmatprep.subr.mxu0 0.0
    %7686 = vmatpush1.msra.mxu0 0.0
    %7687 = vmatprep.subr.mxu0 0.0
    %7688 = vmatpush1.msra.mxu0 0.0
    %7689 = vmatprep.subr.mxu0 0.0
    %7690 = vmatpush1.msra.mxu0 0.0
    %7691 = vmatprep.subr.mxu0 0.0
    %7692 = vmatpush1.msra.mxu0 0.0
    %7693 = vmatprep.subr.mxu0 0.0
    %7694 = vmatpush1.msra.mxu0 0.0
    %7695 = vmatprep.subr.mxu0 0.0
    %7696 = vmatpush1.msra.mxu0 0.0
    %7697 = vmatprep.subr.mxu0 0.0
    %7698 = vmatpush1.msra.mxu0 0.0
    %7699 = vmatprep.subr.mxu0 0.0
    %7700 = vmatpush1.msra.mxu0 0.0
    %7701 = vmatprep.subr.mxu0 0.0
    %7702 = vmatpush1.msra.mxu0 0.0
    %7703 = vmatprep.subr.mxu0 0.0
    %7704 = vmatpush1.msra.mxu0 0.0
    %7705 = vmatprep.subr.mxu0 0.0
    %7706 = vmatpush1.msra.mxu0 0.0
    %7707 = vmatprep.subr.mxu0 0.0
    %7708 = vmatpush1.msra.mxu0 0.0
    %7709 = vmatprep.subr.mxu0 0.0
    %7710 = vmatpush1.msra.mxu0 0.0
    %7711 = vmatprep.subr.mxu0 0.0
    %7712 = vmatpush1.msra.mxu0 0.0
    %7713 = vmatprep.subr.mxu0 0.0
    %7714 = vmatpush1.msra.mxu0 0.0
    %7715 = vmatprep.subr.mxu0 0.0
    %7716 = vmatpush1.msra.mxu0 0.0
    %7717 = vmatprep.subr.mxu0 0.0
    %7718 = vmatpush1.msra.mxu0 0.0
    %7719 = vmatprep.subr.mxu0 0.0
    %7720 = vmatpush1.msra.mxu0 0.0
    %7721 = vmatprep.subr.mxu0 0.0
    %7722 = vmatpush1.msra.mxu0 0.0
    %7723 = vmatprep.subr.mxu0 0.0
    %7724 = vmatpush1.msra.mxu0 0.0
    %7725 = vmatprep.subr.mxu0 0.0
    %7726 = vmatpush1.msra.mxu0 0.0
    %7727 = vmatprep.subr.mxu0 0.0
    %7728 = vmatpush1.msra.mxu0 0.0
    %7729 = vmatprep.subr.mxu0 0.0
    %7730 = vmatpush1.msra.mxu0 0.0
    %7731 = vmatprep.subr.mxu0 0.0
    %7732 = vmatpush1.msra.mxu0 0.0
    %7733 = vmatprep.subr.mxu0 0.0
    %7734 = vmatpush1.msra.mxu0 0.0
    %7735 = vmatprep.mubr.f32.mxu0 0.0
    %v7736 = vand.u32 %v3032, 4294901760
    %v7737 = vsub.f32 %v3032, %v7736
    %v7738 = vand.u32 %v7737, 4294901760
    %7739 = vmatmul.mubr.f32.gmra.mrb[0].mxu0 %v7738
    %v7740 = vpop.f32.mrb[0].mxu0
    %v7741 = vadd.f32 %v7659, %v7740
    %v7742 = vpop.f32.mrb[0].mxu0
    %v7743 = vadd.f32 %v7661, %v7742
    %7744 = vdwg.mxu0
    %v7745 = vand.u32 %v2751, 4294901760
    %v7746 = vsub.f32 %v2751, %v7745
    %v7747 = vand.u32 %v7746, 4294901760
    %7748 = vmatprep.subr.mxu0 %v7747
    %v7749 = vand.u32 %v2750, 4294901760
    %v7750 = vsub.f32 %v2750, %v7749
    %v7751 = vand.u32 %v7750, 4294901760
    %7752 = vmatpush1.msra.mxu0 %v7751
    %v7753 = vand.u32 %v2783, 4294901760
    %v7754 = vsub.f32 %v2783, %v7753
    %v7755 = vand.u32 %v7754, 4294901760
    %7756 = vmatprep.subr.mxu0 %v7755
    %v7757 = vand.u32 %v2782, 4294901760
    %v7758 = vsub.f32 %v2782, %v7757
    %v7759 = vand.u32 %v7758, 4294901760
    %7760 = vmatpush1.msra.mxu0 %v7759
    %v7761 = vand.u32 %v2815, 4294901760
    %v7762 = vsub.f32 %v2815, %v7761
    %v7763 = vand.u32 %v7762, 4294901760
    %7764 = vmatprep.subr.mxu0 %v7763
    %v7765 = vand.u32 %v2814, 4294901760
    %v7766 = vsub.f32 %v2814, %v7765
    %v7767 = vand.u32 %v7766, 4294901760
    %7768 = vmatpush1.msra.mxu0 %v7767
    %v7769 = vand.u32 %v2847, 4294901760
    %v7770 = vsub.f32 %v2847, %v7769
    %v7771 = vand.u32 %v7770, 4294901760
    %7772 = vmatprep.subr.mxu0 %v7771
    %v7773 = vand.u32 %v2846, 4294901760
    %v7774 = vsub.f32 %v2846, %v7773
    %v7775 = vand.u32 %v7774, 4294901760
    %7776 = vmatpush1.msra.mxu0 %v7775
    %7777 = vmatprep.subr.mxu0 0.0
    %7778 = vmatpush1.msra.mxu0 0.0
    %7779 = vmatprep.subr.mxu0 0.0
    %7780 = vmatpush1.msra.mxu0 0.0
    %7781 = vmatprep.subr.mxu0 0.0
    %7782 = vmatpush1.msra.mxu0 0.0
    %7783 = vmatprep.subr.mxu0 0.0
    %7784 = vmatpush1.msra.mxu0 0.0
    %7785 = vmatprep.subr.mxu0 0.0
    %7786 = vmatpush1.msra.mxu0 0.0
    %7787 = vmatprep.subr.mxu0 0.0
    %7788 = vmatpush1.msra.mxu0 0.0
    %7789 = vmatprep.subr.mxu0 0.0
    %7790 = vmatpush1.msra.mxu0 0.0
    %7791 = vmatprep.subr.mxu0 0.0
    %7792 = vmatpush1.msra.mxu0 0.0
    %7793 = vmatprep.subr.mxu0 0.0
    %7794 = vmatpush1.msra.mxu0 0.0
    %7795 = vmatprep.subr.mxu0 0.0
    %7796 = vmatpush1.msra.mxu0 0.0
    %7797 = vmatprep.subr.mxu0 0.0
    %7798 = vmatpush1.msra.mxu0 0.0
    %7799 = vmatprep.subr.mxu0 0.0
    %7800 = vmatpush1.msra.mxu0 0.0
    %7801 = vmatprep.subr.mxu0 0.0
    %7802 = vmatpush1.msra.mxu0 0.0
    %7803 = vmatprep.subr.mxu0 0.0
    %7804 = vmatpush1.msra.mxu0 0.0
    %7805 = vmatprep.subr.mxu0 0.0
    %7806 = vmatpush1.msra.mxu0 0.0
    %7807 = vmatprep.subr.mxu0 0.0
    %7808 = vmatpush1.msra.mxu0 0.0
    %7809 = vmatprep.subr.mxu0 0.0
    %7810 = vmatpush1.msra.mxu0 0.0
    %7811 = vmatprep.subr.mxu0 0.0
    %7812 = vmatpush1.msra.mxu0 0.0
    %7813 = vmatprep.subr.mxu0 0.0
    %7814 = vmatpush1.msra.mxu0 0.0
    %7815 = vmatprep.subr.mxu0 0.0
    %7816 = vmatpush1.msra.mxu0 0.0
    %7817 = vmatprep.subr.mxu0 0.0
    %7818 = vmatpush1.msra.mxu0 0.0
    %7819 = vmatprep.subr.mxu0 0.0
    %7820 = vmatpush1.msra.mxu0 0.0
    %7821 = vmatprep.subr.mxu0 0.0
    %7822 = vmatpush1.msra.mxu0 0.0
    %7823 = vmatprep.subr.mxu0 0.0
    %7824 = vmatpush1.msra.mxu0 0.0
    %7825 = vmatprep.subr.mxu0 0.0
    %7826 = vmatpush1.msra.mxu0 0.0
    %7827 = vmatprep.subr.mxu0 0.0
    %7828 = vmatpush1.msra.mxu0 0.0
    %7829 = vmatprep.subr.mxu0 0.0
    %7830 = vmatpush1.msra.mxu0 0.0
    %7831 = vmatprep.subr.mxu0 0.0
    %7832 = vmatpush1.msra.mxu0 0.0
    %7833 = vmatprep.mubr.f32.mxu0 0.0
    %v7834 = vand.u32 %v3032, 4294901760
    %7835 = vmatmul.mubr.f32.gmra.mrb[0].mxu0 %v7834
    %v7836 = vpop.f32.mrb[0].mxu0
    %v7837 = vadd.f32 %v7741, %v7836
    %v7838 = vpop.f32.mrb[0].mxu0
    %v7839 = vadd.f32 %v7743, %v7838
    %7840 = vdwg.mxu0
    %v7841 = vand.u32 %v2751, 4294901760
    %7842 = vmatprep.subr.mxu0 %v7841
    %v7843 = vand.u32 %v2750, 4294901760
    %7844 = vmatpush1.msra.mxu0 %v7843
    %v7845 = vand.u32 %v2783, 4294901760
    %7846 = vmatprep.subr.mxu0 %v7845
    %v7847 = vand.u32 %v2782, 4294901760
    %7848 = vmatpush1.msra.mxu0 %v7847
    %v7849 = vand.u32 %v2815, 4294901760
    %7850 = vmatprep.subr.mxu0 %v7849
    %v7851 = vand.u32 %v2814, 4294901760
    %7852 = vmatpush1.msra.mxu0 %v7851
    %v7853 = vand.u32 %v2847, 4294901760
    %7854 = vmatprep.subr.mxu0 %v7853
    %v7855 = vand.u32 %v2846, 4294901760
    %7856 = vmatpush1.msra.mxu0 %v7855
    %7857 = vmatprep.subr.mxu0 0.0
    %7858 = vmatpush1.msra.mxu0 0.0
    %7859 = vmatprep.subr.mxu0 0.0
    %7860 = vmatpush1.msra.mxu0 0.0
    %7861 = vmatprep.subr.mxu0 0.0
    %7862 = vmatpush1.msra.mxu0 0.0
    %7863 = vmatprep.subr.mxu0 0.0
    %7864 = vmatpush1.msra.mxu0 0.0
    %7865 = vmatprep.subr.mxu0 0.0
    %7866 = vmatpush1.msra.mxu0 0.0
    %7867 = vmatprep.subr.mxu0 0.0
    %7868 = vmatpush1.msra.mxu0 0.0
    %7869 = vmatprep.subr.mxu0 0.0
    %7870 = vmatpush1.msra.mxu0 0.0
    %7871 = vmatprep.subr.mxu0 0.0
    %7872 = vmatpush1.msra.mxu0 0.0
    %7873 = vmatprep.subr.mxu0 0.0
    %7874 = vmatpush1.msra.mxu0 0.0
    %7875 = vmatprep.subr.mxu0 0.0
    %7876 = vmatpush1.msra.mxu0 0.0
    %7877 = vmatprep.subr.mxu0 0.0
    %7878 = vmatpush1.msra.mxu0 0.0
    %7879 = vmatprep.subr.mxu0 0.0
    %7880 = vmatpush1.msra.mxu0 0.0
    %7881 = vmatprep.subr.mxu0 0.0
    %7882 = vmatpush1.msra.mxu0 0.0
    %7883 = vmatprep.subr.mxu0 0.0
    %7884 = vmatpush1.msra.mxu0 0.0
    %7885 = vmatprep.subr.mxu0 0.0
    %7886 = vmatpush1.msra.mxu0 0.0
    %7887 = vmatprep.subr.mxu0 0.0
    %7888 = vmatpush1.msra.mxu0 0.0
    %7889 = vmatprep.subr.mxu0 0.0
    %7890 = vmatpush1.msra.mxu0 0.0
    %7891 = vmatprep.subr.mxu0 0.0
    %7892 = vmatpush1.msra.mxu0 0.0
    %7893 = vmatprep.subr.mxu0 0.0
    %7894 = vmatpush1.msra.mxu0 0.0
    %7895 = vmatprep.subr.mxu0 0.0
    %7896 = vmatpush1.msra.mxu0 0.0
    %7897 = vmatprep.subr.mxu0 0.0
    %7898 = vmatpush1.msra.mxu0 0.0
    %7899 = vmatprep.subr.mxu0 0.0
    %7900 = vmatpush1.msra.mxu0 0.0
    %7901 = vmatprep.subr.mxu0 0.0
    %7902 = vmatpush1.msra.mxu0 0.0
    %7903 = vmatprep.subr.mxu0 0.0
    %7904 = vmatpush1.msra.mxu0 0.0
    %7905 = vmatprep.subr.mxu0 0.0
    %7906 = vmatpush1.msra.mxu0 0.0
    %7907 = vmatprep.subr.mxu0 0.0
    %7908 = vmatpush1.msra.mxu0 0.0
    %7909 = vmatprep.subr.mxu0 0.0
    %7910 = vmatpush1.msra.mxu0 0.0
    %7911 = vmatprep.subr.mxu0 0.0
    %7912 = vmatpush1.msra.mxu0 0.0
    %7913 = vmatprep.mubr.f32.mxu0 0.0
    %v7914 = vand.u32 %v3032, 4294901760
    %7915 = vmatmul.mubr.f32.gmra.mrb[0].mxu0 %v7914
    %v7916 = vpop.f32.mrb[0].mxu0
    %v7917 = vadd.f32 %v7837, %v7916
    %v7918 = vpop.f32.mrb[0].mxu0
    %v7919 = vadd.f32 %v7839, %v7918
    %7920 = vdwg.mxu0
    %v7921 = vand.u32 %v2753, 4294901760
    %7922 = vmatprep.subr.mxu0 %v7921
    %v7923 = vand.u32 %v2752, 4294901760
    %7924 = vmatpush1.msra.mxu0 %v7923
    %v7925 = vand.u32 %v2785, 4294901760
    %7926 = vmatprep.subr.mxu0 %v7925
    %v7927 = vand.u32 %v2784, 4294901760
    %7928 = vmatpush1.msra.mxu0 %v7927
    %v7929 = vand.u32 %v2817, 4294901760
    %7930 = vmatprep.subr.mxu0 %v7929
    %v7931 = vand.u32 %v2816, 4294901760
    %7932 = vmatpush1.msra.mxu0 %v7931
    %v7933 = vand.u32 %v2849, 4294901760
    %7934 = vmatprep.subr.mxu0 %v7933
    %v7935 = vand.u32 %v2848, 4294901760
    %7936 = vmatpush1.msra.mxu0 %v7935
    %7937 = vmatprep.subr.mxu0 0.0
    %7938 = vmatpush1.msra.mxu0 0.0
    %7939 = vmatprep.subr.mxu0 0.0
    %7940 = vmatpush1.msra.mxu0 0.0
    %7941 = vmatprep.subr.mxu0 0.0
    %7942 = vmatpush1.msra.mxu0 0.0
    %7943 = vmatprep.subr.mxu0 0.0
    %7944 = vmatpush1.msra.mxu0 0.0
    %7945 = vmatprep.subr.mxu0 0.0
    %7946 = vmatpush1.msra.mxu0 0.0
    %7947 = vmatprep.subr.mxu0 0.0
    %7948 = vmatpush1.msra.mxu0 0.0
    %7949 = vmatprep.subr.mxu0 0.0
    %7950 = vmatpush1.msra.mxu0 0.0
    %7951 = vmatprep.subr.mxu0 0.0
    %7952 = vmatpush1.msra.mxu0 0.0
    %7953 = vmatprep.subr.mxu0 0.0
    %7954 = vmatpush1.msra.mxu0 0.0
    %7955 = vmatprep.subr.mxu0 0.0
    %7956 = vmatpush1.msra.mxu0 0.0
    %7957 = vmatprep.subr.mxu0 0.0
    %7958 = vmatpush1.msra.mxu0 0.0
    %7959 = vmatprep.subr.mxu0 0.0
    %7960 = vmatpush1.msra.mxu0 0.0
    %7961 = vmatprep.subr.mxu0 0.0
    %7962 = vmatpush1.msra.mxu0 0.0
    %7963 = vmatprep.subr.mxu0 0.0
    %7964 = vmatpush1.msra.mxu0 0.0
    %7965 = vmatprep.subr.mxu0 0.0
    %7966 = vmatpush1.msra.mxu0 0.0
    %7967 = vmatprep.subr.mxu0 0.0
    %7968 = vmatpush1.msra.mxu0 0.0
    %7969 = vmatprep.subr.mxu0 0.0
    %7970 = vmatpush1.msra.mxu0 0.0
    %7971 = vmatprep.subr.mxu0 0.0
    %7972 = vmatpush1.msra.mxu0 0.0
    %7973 = vmatprep.subr.mxu0 0.0
    %7974 = vmatpush1.msra.mxu0 0.0
    %7975 = vmatprep.subr.mxu0 0.0
    %7976 = vmatpush1.msra.mxu0 0.0
    %7977 = vmatprep.subr.mxu0 0.0
    %7978 = vmatpush1.msra.mxu0 0.0
    %7979 = vmatprep.subr.mxu0 0.0
    %7980 = vmatpush1.msra.mxu0 0.0
    %7981 = vmatprep.subr.mxu0 0.0
    %7982 = vmatpush1.msra.mxu0 0.0
    %7983 = vmatprep.subr.mxu0 0.0
    %7984 = vmatpush1.msra.mxu0 0.0
    %7985 = vmatprep.subr.mxu0 0.0
    %7986 = vmatpush1.msra.mxu0 0.0
    %7987 = vmatprep.subr.mxu0 0.0
    %7988 = vmatpush1.msra.mxu0 0.0
    %7989 = vmatprep.subr.mxu0 0.0
    %7990 = vmatpush1.msra.mxu0 0.0
    %7991 = vmatprep.subr.mxu0 0.0
    %7992 = vmatpush1.msra.mxu0 0.0
    %7993 = vmatprep.mubr.f32.mxu0 0.0
    %v7994 = vand.u32 %v3032, 4294901760
    %v7995 = vsub.f32 %v3032, %v7994
    %v7996 = vand.u32 %v7995, 4294901760
    %v7997 = vsub.f32 %v7995, %v7996
    %v7998 = vand.u32 %v7997, 4294901760
    %7999 = vmatmul.mubr.f32.gmra.mrb[0].mxu0 %v7998
    %v8000 = vpop.f32.mrb[0].mxu0
    %v8001 = vadd.f32 %v2945, %v8000
    %v8002 = vpop.f32.mrb[0].mxu0
    %v8003 = vadd.f32 %v2949, %v8002
    %8004 = vdwg.mxu0
    %v8005 = vand.u32 %v2753, 4294901760
    %v8006 = vsub.f32 %v2753, %v8005
    %v8007 = vand.u32 %v8006, 4294901760
    %v8008 = vsub.f32 %v8006, %v8007
    %v8009 = vand.u32 %v8008, 4294901760
    %8010 = vmatprep.subr.mxu0 %v8009
    %v8011 = vand.u32 %v2752, 4294901760
    %v8012 = vsub.f32 %v2752, %v8011
    %v8013 = vand.u32 %v8012, 4294901760
    %v8014 = vsub.f32 %v8012, %v8013
    %v8015 = vand.u32 %v8014, 4294901760
    %8016 = vmatpush1.msra.mxu0 %v8015
    %v8017 = vand.u32 %v2785, 4294901760
    %v8018 = vsub.f32 %v2785, %v8017
    %v8019 = vand.u32 %v8018, 4294901760
    %v8020 = vsub.f32 %v8018, %v8019
    %v8021 = vand.u32 %v8020, 4294901760
    %8022 = vmatprep.subr.mxu0 %v8021
    %v8023 = vand.u32 %v2784, 4294901760
    %v8024 = vsub.f32 %v2784, %v8023
    %v8025 = vand.u32 %v8024, 4294901760
    %v8026 = vsub.f32 %v8024, %v8025
    %v8027 = vand.u32 %v8026, 4294901760
    %8028 = vmatpush1.msra.mxu0 %v8027
    %v8029 = vand.u32 %v2817, 4294901760
    %v8030 = vsub.f32 %v2817, %v8029
    %v8031 = vand.u32 %v8030, 4294901760
    %v8032 = vsub.f32 %v8030, %v8031
    %v8033 = vand.u32 %v8032, 4294901760
    %8034 = vmatprep.subr.mxu0 %v8033
    %v8035 = vand.u32 %v2816, 4294901760
    %v8036 = vsub.f32 %v2816, %v8035
    %v8037 = vand.u32 %v8036, 4294901760
    %v8038 = vsub.f32 %v8036, %v8037
    %v8039 = vand.u32 %v8038, 4294901760
    %8040 = vmatpush1.msra.mxu0 %v8039
    %v8041 = vand.u32 %v2849, 4294901760
    %v8042 = vsub.f32 %v2849, %v8041
    %v8043 = vand.u32 %v8042, 4294901760
    %v8044 = vsub.f32 %v8042, %v8043
    %v8045 = vand.u32 %v8044, 4294901760
    %8046 = vmatprep.subr.mxu0 %v8045
    %v8047 = vand.u32 %v2848, 4294901760
    %v8048 = vsub.f32 %v2848, %v8047
    %v8049 = vand.u32 %v8048, 4294901760
    %v8050 = vsub.f32 %v8048, %v8049
    %v8051 = vand.u32 %v8050, 4294901760
    %8052 = vmatpush1.msra.mxu0 %v8051
    %8053 = vmatprep.subr.mxu0 0.0
    %8054 = vmatpush1.msra.mxu0 0.0
    %8055 = vmatprep.subr.mxu0 0.0
    %8056 = vmatpush1.msra.mxu0 0.0
    %8057 = vmatprep.subr.mxu0 0.0
    %8058 = vmatpush1.msra.mxu0 0.0
    %8059 = vmatprep.subr.mxu0 0.0
    %8060 = vmatpush1.msra.mxu0 0.0
    %8061 = vmatprep.subr.mxu0 0.0
    %8062 = vmatpush1.msra.mxu0 0.0
    %8063 = vmatprep.subr.mxu0 0.0
    %8064 = vmatpush1.msra.mxu0 0.0
    %8065 = vmatprep.subr.mxu0 0.0
    %8066 = vmatpush1.msra.mxu0 0.0
    %8067 = vmatprep.subr.mxu0 0.0
    %8068 = vmatpush1.msra.mxu0 0.0
    %8069 = vmatprep.subr.mxu0 0.0
    %8070 = vmatpush1.msra.mxu0 0.0
    %8071 = vmatprep.subr.mxu0 0.0
    %8072 = vmatpush1.msra.mxu0 0.0
    %8073 = vmatprep.subr.mxu0 0.0
    %8074 = vmatpush1.msra.mxu0 0.0
    %8075 = vmatprep.subr.mxu0 0.0
    %8076 = vmatpush1.msra.mxu0 0.0
    %8077 = vmatprep.subr.mxu0 0.0
    %8078 = vmatpush1.msra.mxu0 0.0
    %8079 = vmatprep.subr.mxu0 0.0
    %8080 = vmatpush1.msra.mxu0 0.0
    %8081 = vmatprep.subr.mxu0 0.0
    %8082 = vmatpush1.msra.mxu0 0.0
    %8083 = vmatprep.subr.mxu0 0.0
    %8084 = vmatpush1.msra.mxu0 0.0
    %8085 = vmatprep.subr.mxu0 0.0
    %8086 = vmatpush1.msra.mxu0 0.0
    %8087 = vmatprep.subr.mxu0 0.0
    %8088 = vmatpush1.msra.mxu0 0.0
    %8089 = vmatprep.subr.mxu0 0.0
    %8090 = vmatpush1.msra.mxu0 0.0
    %8091 = vmatprep.subr.mxu0 0.0
    %8092 = vmatpush1.msra.mxu0 0.0
    %8093 = vmatprep.subr.mxu0 0.0
    %8094 = vmatpush1.msra.mxu0 0.0
    %8095 = vmatprep.subr.mxu0 0.0
    %8096 = vmatpush1.msra.mxu0 0.0
    %8097 = vmatprep.subr.mxu0 0.0
    %8098 = vmatpush1.msra.mxu0 0.0
    %8099 = vmatprep.subr.mxu0 0.0
    %8100 = vmatpush1.msra.mxu0 0.0
    %8101 = vmatprep.subr.mxu0 0.0
    %8102 = vmatpush1.msra.mxu0 0.0
    %8103 = vmatprep.subr.mxu0 0.0
    %8104 = vmatpush1.msra.mxu0 0.0
    %8105 = vmatprep.subr.mxu0 0.0
    %8106 = vmatpush1.msra.mxu0 0.0
    %8107 = vmatprep.subr.mxu0 0.0
    %8108 = vmatpush1.msra.mxu0 0.0
    %8109 = vmatprep.mubr.f32.mxu0 0.0
    %v8110 = vand.u32 %v3032, 4294901760
    %8111 = vmatmul.mubr.f32.gmra.mrb[0].mxu0 %v8110
    %v8112 = vpop.f32.mrb[0].mxu0
    %v8113 = vadd.f32 %v8001, %v8112
    %v8114 = vpop.f32.mrb[0].mxu0
    %v8115 = vadd.f32 %v8003, %v8114
    %8116 = vdwg.mxu0
    %v8117 = vand.u32 %v2753, 4294901760
    %v8118 = vsub.f32 %v2753, %v8117
    %8119 = vmatprep.subr.mxu0 %v8118
    %v8120 = vand.u32 %v2752, 4294901760
    %v8121 = vsub.f32 %v2752, %v8120
    %8122 = vmatpush1.msra.mxu0 %v8121
    %v8123 = vand.u32 %v2785, 4294901760
    %v8124 = vsub.f32 %v2785, %v8123
    %8125 = vmatprep.subr.mxu0 %v8124
    %v8126 = vand.u32 %v2784, 4294901760
    %v8127 = vsub.f32 %v2784, %v8126
    %8128 = vmatpush1.msra.mxu0 %v8127
    %v8129 = vand.u32 %v2817, 4294901760
    %v8130 = vsub.f32 %v2817, %v8129
    %8131 = vmatprep.subr.mxu0 %v8130
    %v8132 = vand.u32 %v2816, 4294901760
    %v8133 = vsub.f32 %v2816, %v8132
    %8134 = vmatpush1.msra.mxu0 %v8133
    %v8135 = vand.u32 %v2849, 4294901760
    %v8136 = vsub.f32 %v2849, %v8135
    %8137 = vmatprep.subr.mxu0 %v8136
    %v8138 = vand.u32 %v2848, 4294901760
    %v8139 = vsub.f32 %v2848, %v8138
    %8140 = vmatpush1.msra.mxu0 %v8139
    %8141 = vmatprep.subr.mxu0 0.0
    %8142 = vmatpush1.msra.mxu0 0.0
    %8143 = vmatprep.subr.mxu0 0.0
    %8144 = vmatpush1.msra.mxu0 0.0
    %8145 = vmatprep.subr.mxu0 0.0
    %8146 = vmatpush1.msra.mxu0 0.0
    %8147 = vmatprep.subr.mxu0 0.0
    %8148 = vmatpush1.msra.mxu0 0.0
    %8149 = vmatprep.subr.mxu0 0.0
    %8150 = vmatpush1.msra.mxu0 0.0
    %8151 = vmatprep.subr.mxu0 0.0
    %8152 = vmatpush1.msra.mxu0 0.0
    %8153 = vmatprep.subr.mxu0 0.0
    %8154 = vmatpush1.msra.mxu0 0.0
    %8155 = vmatprep.subr.mxu0 0.0
    %8156 = vmatpush1.msra.mxu0 0.0
    %8157 = vmatprep.subr.mxu0 0.0
    %8158 = vmatpush1.msra.mxu0 0.0
    %8159 = vmatprep.subr.mxu0 0.0
    %8160 = vmatpush1.msra.mxu0 0.0
    %8161 = vmatprep.subr.mxu0 0.0
    %8162 = vmatpush1.msra.mxu0 0.0
    %8163 = vmatprep.subr.mxu0 0.0
    %8164 = vmatpush1.msra.mxu0 0.0
    %8165 = vmatprep.subr.mxu0 0.0
    %8166 = vmatpush1.msra.mxu0 0.0
    %8167 = vmatprep.subr.mxu0 0.0
    %8168 = vmatpush1.msra.mxu0 0.0
    %8169 = vmatprep.subr.mxu0 0.0
    %8170 = vmatpush1.msra.mxu0 0.0
    %8171 = vmatprep.subr.mxu0 0.0
    %8172 = vmatpush1.msra.mxu0 0.0
    %8173 = vmatprep.subr.mxu0 0.0
    %8174 = vmatpush1.msra.mxu0 0.0
    %8175 = vmatprep.subr.mxu0 0.0
    %8176 = vmatpush1.msra.mxu0 0.0
    %8177 = vmatprep.subr.mxu0 0.0
    %8178 = vmatpush1.msra.mxu0 0.0
    %8179 = vmatprep.subr.mxu0 0.0
    %8180 = vmatpush1.msra.mxu0 0.0
    %8181 = vmatprep.subr.mxu0 0.0
    %8182 = vmatpush1.msra.mxu0 0.0
    %8183 = vmatprep.subr.mxu0 0.0
    %8184 = vmatpush1.msra.mxu0 0.0
    %8185 = vmatprep.subr.mxu0 0.0
    %8186 = vmatpush1.msra.mxu0 0.0
    %8187 = vmatprep.subr.mxu0 0.0
    %8188 = vmatpush1.msra.mxu0 0.0
    %8189 = vmatprep.subr.mxu0 0.0
    %8190 = vmatpush1.msra.mxu0 0.0
    %8191 = vmatprep.subr.mxu0 0.0
    %8192 = vmatpush1.msra.mxu0 0.0
    %8193 = vmatprep.subr.mxu0 0.0
    %8194 = vmatpush1.msra.mxu0 0.0
    %8195 = vmatprep.subr.mxu0 0.0
    %8196 = vmatpush1.msra.mxu0 0.0
    %8197 = vmatprep.mubr.f32.mxu0 0.0
    %v8198 = vand.u32 %v3032, 4294901760
    %v8199 = vsub.f32 %v3032, %v8198
    %8200 = vmatmul.mubr.f32.gmra.mrb[0].mxu0 %v8199
    %v8201 = vpop.f32.mrb[0].mxu0
    %v8202 = vadd.f32 %v8113, %v8201
    %v8203 = vpop.f32.mrb[0].mxu0
    %v8204 = vadd.f32 %v8115, %v8203
    %8205 = vdwg.mxu0
    %v8206 = vand.u32 %v2753, 4294901760
    %8207 = vmatprep.subr.mxu0 %v8206
    %v8208 = vand.u32 %v2752, 4294901760
    %8209 = vmatpush1.msra.mxu0 %v8208
    %v8210 = vand.u32 %v2785, 4294901760
    %8211 = vmatprep.subr.mxu0 %v8210
    %v8212 = vand.u32 %v2784, 4294901760
    %8213 = vmatpush1.msra.mxu0 %v8212
    %v8214 = vand.u32 %v2817, 4294901760
    %8215 = vmatprep.subr.mxu0 %v8214
    %v8216 = vand.u32 %v2816, 4294901760
    %8217 = vmatpush1.msra.mxu0 %v8216
    %v8218 = vand.u32 %v2849, 4294901760
    %8219 = vmatprep.subr.mxu0 %v8218
    %v8220 = vand.u32 %v2848, 4294901760
    %8221 = vmatpush1.msra.mxu0 %v8220
    %8222 = vmatprep.subr.mxu0 0.0
    %8223 = vmatpush1.msra.mxu0 0.0
    %8224 = vmatprep.subr.mxu0 0.0
    %8225 = vmatpush1.msra.mxu0 0.0
    %8226 = vmatprep.subr.mxu0 0.0
    %8227 = vmatpush1.msra.mxu0 0.0
    %8228 = vmatprep.subr.mxu0 0.0
    %8229 = vmatpush1.msra.mxu0 0.0
    %8230 = vmatprep.subr.mxu0 0.0
    %8231 = vmatpush1.msra.mxu0 0.0
    %8232 = vmatprep.subr.mxu0 0.0
    %8233 = vmatpush1.msra.mxu0 0.0
    %8234 = vmatprep.subr.mxu0 0.0
    %8235 = vmatpush1.msra.mxu0 0.0
    %8236 = vmatprep.subr.mxu0 0.0
    %8237 = vmatpush1.msra.mxu0 0.0
    %8238 = vmatprep.subr.mxu0 0.0
    %8239 = vmatpush1.msra.mxu0 0.0
    %8240 = vmatprep.subr.mxu0 0.0
    %8241 = vmatpush1.msra.mxu0 0.0
    %8242 = vmatprep.subr.mxu0 0.0
    %8243 = vmatpush1.msra.mxu0 0.0
    %8244 = vmatprep.subr.mxu0 0.0
    %8245 = vmatpush1.msra.mxu0 0.0
    %8246 = vmatprep.subr.mxu0 0.0
    %8247 = vmatpush1.msra.mxu0 0.0
    %8248 = vmatprep.subr.mxu0 0.0
    %8249 = vmatpush1.msra.mxu0 0.0
    %8250 = vmatprep.subr.mxu0 0.0
    %8251 = vmatpush1.msra.mxu0 0.0
    %8252 = vmatprep.subr.mxu0 0.0
    %8253 = vmatpush1.msra.mxu0 0.0
    %8254 = vmatprep.subr.mxu0 0.0
    %8255 = vmatpush1.msra.mxu0 0.0
    %8256 = vmatprep.subr.mxu0 0.0
    %8257 = vmatpush1.msra.mxu0 0.0
    %8258 = vmatprep.subr.mxu0 0.0
    %8259 = vmatpush1.msra.mxu0 0.0
    %8260 = vmatprep.subr.mxu0 0.0
    %8261 = vmatpush1.msra.mxu0 0.0
    %8262 = vmatprep.subr.mxu0 0.0
    %8263 = vmatpush1.msra.mxu0 0.0
    %8264 = vmatprep.subr.mxu0 0.0
    %8265 = vmatpush1.msra.mxu0 0.0
    %8266 = vmatprep.subr.mxu0 0.0
    %8267 = vmatpush1.msra.mxu0 0.0
    %8268 = vmatprep.subr.mxu0 0.0
    %8269 = vmatpush1.msra.mxu0 0.0
    %8270 = vmatprep.subr.mxu0 0.0
    %8271 = vmatpush1.msra.mxu0 0.0
    %8272 = vmatprep.subr.mxu0 0.0
    %8273 = vmatpush1.msra.mxu0 0.0
    %8274 = vmatprep.subr.mxu0 0.0
    %8275 = vmatpush1.msra.mxu0 0.0
    %8276 = vmatprep.subr.mxu0 0.0
    %8277 = vmatpush1.msra.mxu0 0.0
    %8278 = vmatprep.mubr.f32.mxu0 0.0
    %v8279 = vand.u32 %v3032, 4294901760
    %v8280 = vsub.f32 %v3032, %v8279
    %v8281 = vand.u32 %v8280, 4294901760
    %8282 = vmatmul.mubr.f32.gmra.mrb[0].mxu0 %v8281
    %v8283 = vpop.f32.mrb[0].mxu0
    %v8284 = vadd.f32 %v8202, %v8283
    %v8285 = vpop.f32.mrb[0].mxu0
    %v8286 = vadd.f32 %v8204, %v8285
    %8287 = vdwg.mxu0
    %v8288 = vand.u32 %v2753, 4294901760
    %v8289 = vsub.f32 %v2753, %v8288
    %v8290 = vand.u32 %v8289, 4294901760
    %8291 = vmatprep.subr.mxu0 %v8290
    %v8292 = vand.u32 %v2752, 4294901760
    %v8293 = vsub.f32 %v2752, %v8292
    %v8294 = vand.u32 %v8293, 4294901760
    %8295 = vmatpush1.msra.mxu0 %v8294
    %v8296 = vand.u32 %v2785, 4294901760
    %v8297 = vsub.f32 %v2785, %v8296
    %v8298 = vand.u32 %v8297, 4294901760
    %8299 = vmatprep.subr.mxu0 %v8298
    %v8300 = vand.u32 %v2784, 4294901760
    %v8301 = vsub.f32 %v2784, %v8300
    %v8302 = vand.u32 %v8301, 4294901760
    %8303 = vmatpush1.msra.mxu0 %v8302
    %v8304 = vand.u32 %v2817, 4294901760
    %v8305 = vsub.f32 %v2817, %v8304
    %v8306 = vand.u32 %v8305, 4294901760
    %8307 = vmatprep.subr.mxu0 %v8306
    %v8308 = vand.u32 %v2816, 4294901760
    %v8309 = vsub.f32 %v2816, %v8308
    %v8310 = vand.u32 %v8309, 4294901760
    %8311 = vmatpush1.msra.mxu0 %v8310
    %v8312 = vand.u32 %v2849, 4294901760
    %v8313 = vsub.f32 %v2849, %v8312
    %v8314 = vand.u32 %v8313, 4294901760
    %8315 = vmatprep.subr.mxu0 %v8314
    %v8316 = vand.u32 %v2848, 4294901760
    %v8317 = vsub.f32 %v2848, %v8316
    %v8318 = vand.u32 %v8317, 4294901760
    %8319 = vmatpush1.msra.mxu0 %v8318
    %8320 = vmatprep.subr.mxu0 0.0
    %8321 = vmatpush1.msra.mxu0 0.0
    %8322 = vmatprep.subr.mxu0 0.0
    %8323 = vmatpush1.msra.mxu0 0.0
    %8324 = vmatprep.subr.mxu0 0.0
    %8325 = vmatpush1.msra.mxu0 0.0
    %8326 = vmatprep.subr.mxu0 0.0
    %8327 = vmatpush1.msra.mxu0 0.0
    %8328 = vmatprep.subr.mxu0 0.0
    %8329 = vmatpush1.msra.mxu0 0.0
    %8330 = vmatprep.subr.mxu0 0.0
    %8331 = vmatpush1.msra.mxu0 0.0
    %8332 = vmatprep.subr.mxu0 0.0
    %8333 = vmatpush1.msra.mxu0 0.0
    %8334 = vmatprep.subr.mxu0 0.0
    %8335 = vmatpush1.msra.mxu0 0.0
    %8336 = vmatprep.subr.mxu0 0.0
    %8337 = vmatpush1.msra.mxu0 0.0
    %8338 = vmatprep.subr.mxu0 0.0
    %8339 = vmatpush1.msra.mxu0 0.0
    %8340 = vmatprep.subr.mxu0 0.0
    %8341 = vmatpush1.msra.mxu0 0.0
    %8342 = vmatprep.subr.mxu0 0.0
    %8343 = vmatpush1.msra.mxu0 0.0
    %8344 = vmatprep.subr.mxu0 0.0
    %8345 = vmatpush1.msra.mxu0 0.0
    %8346 = vmatprep.subr.mxu0 0.0
    %8347 = vmatpush1.msra.mxu0 0.0
    %8348 = vmatprep.subr.mxu0 0.0
    %8349 = vmatpush1.msra.mxu0 0.0
    %8350 = vmatprep.subr.mxu0 0.0
    %8351 = vmatpush1.msra.mxu0 0.0
    %8352 = vmatprep.subr.mxu0 0.0
    %8353 = vmatpush1.msra.mxu0 0.0
    %8354 = vmatprep.subr.mxu0 0.0
    %8355 = vmatpush1.msra.mxu0 0.0
    %8356 = vmatprep.subr.mxu0 0.0
    %8357 = vmatpush1.msra.mxu0 0.0
    %8358 = vmatprep.subr.mxu0 0.0
    %8359 = vmatpush1.msra.mxu0 0.0
    %8360 = vmatprep.subr.mxu0 0.0
    %8361 = vmatpush1.msra.mxu0 0.0
    %8362 = vmatprep.subr.mxu0 0.0
    %8363 = vmatpush1.msra.mxu0 0.0
    %8364 = vmatprep.subr.mxu0 0.0
    %8365 = vmatpush1.msra.mxu0 0.0
    %8366 = vmatprep.subr.mxu0 0.0
    %8367 = vmatpush1.msra.mxu0 0.0
    %8368 = vmatprep.subr.mxu0 0.0
    %8369 = vmatpush1.msra.mxu0 0.0
    %8370 = vmatprep.subr.mxu0 0.0
    %8371 = vmatpush1.msra.mxu0 0.0
    %8372 = vmatprep.subr.mxu0 0.0
    %8373 = vmatpush1.msra.mxu0 0.0
    %8374 = vmatprep.subr.mxu0 0.0
    %8375 = vmatpush1.msra.mxu0 0.0
    %8376 = vmatprep.mubr.f32.mxu0 0.0
    %v8377 = vand.u32 %v3032, 4294901760
    %8378 = vmatmul.mubr.f32.gmra.mrb[0].mxu0 %v8377
    %v8379 = vpop.f32.mrb[0].mxu0
    %v8380 = vadd.f32 %v8284, %v8379
    %v8381 = vpop.f32.mrb[0].mxu0
    %v8382 = vadd.f32 %v8286, %v8381
    %8383 = vdwg.mxu0
    %v8384 = vand.u32 %v2753, 4294901760
    %8385 = vmatprep.subr.mxu0 %v8384
    %v8386 = vand.u32 %v2752, 4294901760
    %8387 = vmatpush1.msra.mxu0 %v8386
    %v8388 = vand.u32 %v2785, 4294901760
    %8389 = vmatprep.subr.mxu0 %v8388
    %v8390 = vand.u32 %v2784, 4294901760
    %8391 = vmatpush1.msra.mxu0 %v8390
    %v8392 = vand.u32 %v2817, 4294901760
    %8393 = vmatprep.subr.mxu0 %v8392
    %v8394 = vand.u32 %v2816, 4294901760
    %8395 = vmatpush1.msra.mxu0 %v8394
    %v8396 = vand.u32 %v2849, 4294901760
    %8397 = vmatprep.subr.mxu0 %v8396
    %v8398 = vand.u32 %v2848, 4294901760
    %8399 = vmatpush1.msra.mxu0 %v8398
    %8400 = vmatprep.subr.mxu0 0.0
    %8401 = vmatpush1.msra.mxu0 0.0
    %8402 = vmatprep.subr.mxu0 0.0
    %8403 = vmatpush1.msra.mxu0 0.0
    %8404 = vmatprep.subr.mxu0 0.0
    %8405 = vmatpush1.msra.mxu0 0.0
    %8406 = vmatprep.subr.mxu0 0.0
    %8407 = vmatpush1.msra.mxu0 0.0
    %8408 = vmatprep.subr.mxu0 0.0
    %8409 = vmatpush1.msra.mxu0 0.0
    %8410 = vmatprep.subr.mxu0 0.0
    %8411 = vmatpush1.msra.mxu0 0.0
    %8412 = vmatprep.subr.mxu0 0.0
    %8413 = vmatpush1.msra.mxu0 0.0
    %8414 = vmatprep.subr.mxu0 0.0
    %8415 = vmatpush1.msra.mxu0 0.0
    %8416 = vmatprep.subr.mxu0 0.0
    %8417 = vmatpush1.msra.mxu0 0.0
    %8418 = vmatprep.subr.mxu0 0.0
    %8419 = vmatpush1.msra.mxu0 0.0
    %8420 = vmatprep.subr.mxu0 0.0
    %8421 = vmatpush1.msra.mxu0 0.0
    %8422 = vmatprep.subr.mxu0 0.0
    %8423 = vmatpush1.msra.mxu0 0.0
    %8424 = vmatprep.subr.mxu0 0.0
    %8425 = vmatpush1.msra.mxu0 0.0
    %8426 = vmatprep.subr.mxu0 0.0
    %8427 = vmatpush1.msra.mxu0 0.0
    %8428 = vmatprep.subr.mxu0 0.0
    %8429 = vmatpush1.msra.mxu0 0.0
    %8430 = vmatprep.subr.mxu0 0.0
    %8431 = vmatpush1.msra.mxu0 0.0
    %8432 = vmatprep.subr.mxu0 0.0
    %8433 = vmatpush1.msra.mxu0 0.0
    %8434 = vmatprep.subr.mxu0 0.0
    %8435 = vmatpush1.msra.mxu0 0.0
    %8436 = vmatprep.subr.mxu0 0.0
    %8437 = vmatpush1.msra.mxu0 0.0
    %8438 = vmatprep.subr.mxu0 0.0
    %8439 = vmatpush1.msra.mxu0 0.0
    %8440 = vmatprep.subr.mxu0 0.0
    %8441 = vmatpush1.msra.mxu0 0.0
    %8442 = vmatprep.subr.mxu0 0.0
    %8443 = vmatpush1.msra.mxu0 0.0
    %8444 = vmatprep.subr.mxu0 0.0
    %8445 = vmatpush1.msra.mxu0 0.0
    %8446 = vmatprep.subr.mxu0 0.0
    %8447 = vmatpush1.msra.mxu0 0.0
    %8448 = vmatprep.subr.mxu0 0.0
    %8449 = vmatpush1.msra.mxu0 0.0
    %8450 = vmatprep.subr.mxu0 0.0
    %8451 = vmatpush1.msra.mxu0 0.0
    %8452 = vmatprep.subr.mxu0 0.0
    %8453 = vmatpush1.msra.mxu0 0.0
    %8454 = vmatprep.subr.mxu0 0.0
    %8455 = vmatpush1.msra.mxu0 0.0
    %8456 = vmatprep.mubr.f32.mxu0 0.0
    %v8457 = vand.u32 %v3032, 4294901760
    %8458 = vmatmul.mubr.f32.gmra.mrb[0].mxu0 %v8457
    %v8459 = vpop.f32.mrb[0].mxu0
    %v8460 = vadd.f32 %v8380, %v8459
    %v8461 = vpop.f32.mrb[0].mxu0
    %v8462 = vadd.f32 %v8382, %v8461
    %8463 = vdwg.mxu0
    %v8464 = vand.u32 %v2755, 4294901760
    %8465 = vmatprep.subr.mxu0 %v8464
    %v8466 = vand.u32 %v2754, 4294901760
    %8467 = vmatpush1.msra.mxu0 %v8466
    %v8468 = vand.u32 %v2787, 4294901760
    %8469 = vmatprep.subr.mxu0 %v8468
    %v8470 = vand.u32 %v2786, 4294901760
    %8471 = vmatpush1.msra.mxu0 %v8470
    %v8472 = vand.u32 %v2819, 4294901760
    %8473 = vmatprep.subr.mxu0 %v8472
    %v8474 = vand.u32 %v2818, 4294901760
    %8475 = vmatpush1.msra.mxu0 %v8474
    %v8476 = vand.u32 %v2851, 4294901760
    %8477 = vmatprep.subr.mxu0 %v8476
    %v8478 = vand.u32 %v2850, 4294901760
    %8479 = vmatpush1.msra.mxu0 %v8478
    %8480 = vmatprep.subr.mxu0 0.0
    %8481 = vmatpush1.msra.mxu0 0.0
    %8482 = vmatprep.subr.mxu0 0.0
    %8483 = vmatpush1.msra.mxu0 0.0
    %8484 = vmatprep.subr.mxu0 0.0
    %8485 = vmatpush1.msra.mxu0 0.0
    %8486 = vmatprep.subr.mxu0 0.0
    %8487 = vmatpush1.msra.mxu0 0.0
    %8488 = vmatprep.subr.mxu0 0.0
    %8489 = vmatpush1.msra.mxu0 0.0
    %8490 = vmatprep.subr.mxu0 0.0
    %8491 = vmatpush1.msra.mxu0 0.0
    %8492 = vmatprep.subr.mxu0 0.0
    %8493 = vmatpush1.msra.mxu0 0.0
    %8494 = vmatprep.subr.mxu0 0.0
    %8495 = vmatpush1.msra.mxu0 0.0
    %8496 = vmatprep.subr.mxu0 0.0
    %8497 = vmatpush1.msra.mxu0 0.0
    %8498 = vmatprep.subr.mxu0 0.0
    %8499 = vmatpush1.msra.mxu0 0.0
    %8500 = vmatprep.subr.mxu0 0.0
    %8501 = vmatpush1.msra.mxu0 0.0
    %8502 = vmatprep.subr.mxu0 0.0
    %8503 = vmatpush1.msra.mxu0 0.0
    %8504 = vmatprep.subr.mxu0 0.0
    %8505 = vmatpush1.msra.mxu0 0.0
    %8506 = vmatprep.subr.mxu0 0.0
    %8507 = vmatpush1.msra.mxu0 0.0
    %8508 = vmatprep.subr.mxu0 0.0
    %8509 = vmatpush1.msra.mxu0 0.0
    %8510 = vmatprep.subr.mxu0 0.0
    %8511 = vmatpush1.msra.mxu0 0.0
    %8512 = vmatprep.subr.mxu0 0.0
    %8513 = vmatpush1.msra.mxu0 0.0
    %8514 = vmatprep.subr.mxu0 0.0
    %8515 = vmatpush1.msra.mxu0 0.0
    %8516 = vmatprep.subr.mxu0 0.0
    %8517 = vmatpush1.msra.mxu0 0.0
    %8518 = vmatprep.subr.mxu0 0.0
    %8519 = vmatpush1.msra.mxu0 0.0
    %8520 = vmatprep.subr.mxu0 0.0
    %8521 = vmatpush1.msra.mxu0 0.0
    %8522 = vmatprep.subr.mxu0 0.0
    %8523 = vmatpush1.msra.mxu0 0.0
    %8524 = vmatprep.subr.mxu0 0.0
    %8525 = vmatpush1.msra.mxu0 0.0
    %8526 = vmatprep.subr.mxu0 0.0
    %8527 = vmatpush1.msra.mxu0 0.0
    %8528 = vmatprep.subr.mxu0 0.0
    %8529 = vmatpush1.msra.mxu0 0.0
    %8530 = vmatprep.subr.mxu0 0.0
    %8531 = vmatpush1.msra.mxu0 0.0
    %8532 = vmatprep.subr.mxu0 0.0
    %8533 = vmatpush1.msra.mxu0 0.0
    %8534 = vmatprep.subr.mxu0 0.0
    %8535 = vmatpush1.msra.mxu0 0.0
    %8536 = vmatprep.mubr.f32.mxu0 0.0
    %v8537 = vand.u32 %v3032, 4294901760
    %v8538 = vsub.f32 %v3032, %v8537
    %v8539 = vand.u32 %v8538, 4294901760
    %v8540 = vsub.f32 %v8538, %v8539
    %v8541 = vand.u32 %v8540, 4294901760
    %8542 = vmatmul.mubr.f32.gmra.mrb[0].mxu0 %v8541
    %v8543 = vpop.f32.mrb[0].mxu0
    %v8544 = vadd.f32 %v2953, %v8543
    %v8545 = vpop.f32.mrb[0].mxu0
    %v8546 = vadd.f32 %v2957, %v8545
    %8547 = vdwg.mxu0
    %v8548 = vand.u32 %v2755, 4294901760
    %v8549 = vsub.f32 %v2755, %v8548
    %v8550 = vand.u32 %v8549, 4294901760
    %v8551 = vsub.f32 %v8549, %v8550
    %v8552 = vand.u32 %v8551, 4294901760
    %8553 = vmatprep.subr.mxu0 %v8552
    %v8554 = vand.u32 %v2754, 4294901760
    %v8555 = vsub.f32 %v2754, %v8554
    %v8556 = vand.u32 %v8555, 4294901760
    %v8557 = vsub.f32 %v8555, %v8556
    %v8558 = vand.u32 %v8557, 4294901760
    %8559 = vmatpush1.msra.mxu0 %v8558
    %v8560 = vand.u32 %v2787, 4294901760
    %v8561 = vsub.f32 %v2787, %v8560
    %v8562 = vand.u32 %v8561, 4294901760
    %v8563 = vsub.f32 %v8561, %v8562
    %v8564 = vand.u32 %v8563, 4294901760
    %8565 = vmatprep.subr.mxu0 %v8564
    %v8566 = vand.u32 %v2786, 4294901760
    %v8567 = vsub.f32 %v2786, %v8566
    %v8568 = vand.u32 %v8567, 4294901760
    %v8569 = vsub.f32 %v8567, %v8568
    %v8570 = vand.u32 %v8569, 4294901760
    %8571 = vmatpush1.msra.mxu0 %v8570
    %v8572 = vand.u32 %v2819, 4294901760
    %v8573 = vsub.f32 %v2819, %v8572
    %v8574 = vand.u32 %v8573, 4294901760
    %v8575 = vsub.f32 %v8573, %v8574
    %v8576 = vand.u32 %v8575, 4294901760
    %8577 = vmatprep.subr.mxu0 %v8576
    %v8578 = vand.u32 %v2818, 4294901760
    %v8579 = vsub.f32 %v2818, %v8578
    %v8580 = vand.u32 %v8579, 4294901760
    %v8581 = vsub.f32 %v8579, %v8580
    %v8582 = vand.u32 %v8581, 4294901760
    %8583 = vmatpush1.msra.mxu0 %v8582
    %v8584 = vand.u32 %v2851, 4294901760
    %v8585 = vsub.f32 %v2851, %v8584
    %v8586 = vand.u32 %v8585, 4294901760
    %v8587 = vsub.f32 %v8585, %v8586
    %v8588 = vand.u32 %v8587, 4294901760
    %8589 = vmatprep.subr.mxu0 %v8588
    %v8590 = vand.u32 %v2850, 4294901760
    %v8591 = vsub.f32 %v2850, %v8590
    %v8592 = vand.u32 %v8591, 4294901760
    %v8593 = vsub.f32 %v8591, %v8592
    %v8594 = vand.u32 %v8593, 4294901760
    %8595 = vmatpush1.msra.mxu0 %v8594
    %8596 = vmatprep.subr.mxu0 0.0
    %8597 = vmatpush1.msra.mxu0 0.0
    %8598 = vmatprep.subr.mxu0 0.0
    %8599 = vmatpush1.msra.mxu0 0.0
    %8600 = vmatprep.subr.mxu0 0.0
    %8601 = vmatpush1.msra.mxu0 0.0
    %8602 = vmatprep.subr.mxu0 0.0
    %8603 = vmatpush1.msra.mxu0 0.0
    %8604 = vmatprep.subr.mxu0 0.0
    %8605 = vmatpush1.msra.mxu0 0.0
    %8606 = vmatprep.subr.mxu0 0.0
    %8607 = vmatpush1.msra.mxu0 0.0
    %8608 = vmatprep.subr.mxu0 0.0
    %8609 = vmatpush1.msra.mxu0 0.0
    %8610 = vmatprep.subr.mxu0 0.0
    %8611 = vmatpush1.msra.mxu0 0.0
    %8612 = vmatprep.subr.mxu0 0.0
    %8613 = vmatpush1.msra.mxu0 0.0
    %8614 = vmatprep.subr.mxu0 0.0
    %8615 = vmatpush1.msra.mxu0 0.0
    %8616 = vmatprep.subr.mxu0 0.0
    %8617 = vmatpush1.msra.mxu0 0.0
    %8618 = vmatprep.subr.mxu0 0.0
    %8619 = vmatpush1.msra.mxu0 0.0
    %8620 = vmatprep.subr.mxu0 0.0
    %8621 = vmatpush1.msra.mxu0 0.0
    %8622 = vmatprep.subr.mxu0 0.0
    %8623 = vmatpush1.msra.mxu0 0.0
    %8624 = vmatprep.subr.mxu0 0.0
    %8625 = vmatpush1.msra.mxu0 0.0
    %8626 = vmatprep.subr.mxu0 0.0
    %8627 = vmatpush1.msra.mxu0 0.0
    %8628 = vmatprep.subr.mxu0 0.0
    %8629 = vmatpush1.msra.mxu0 0.0
    %8630 = vmatprep.subr.mxu0 0.0
    %8631 = vmatpush1.msra.mxu0 0.0
    %8632 = vmatprep.subr.mxu0 0.0
    %8633 = vmatpush1.msra.mxu0 0.0
    %8634 = vmatprep.subr.mxu0 0.0
    %8635 = vmatpush1.msra.mxu0 0.0
    %8636 = vmatprep.subr.mxu0 0.0
    %8637 = vmatpush1.msra.mxu0 0.0
    %8638 = vmatprep.subr.mxu0 0.0
    %8639 = vmatpush1.msra.mxu0 0.0
    %8640 = vmatprep.subr.mxu0 0.0
    %8641 = vmatpush1.msra.mxu0 0.0
    %8642 = vmatprep.subr.mxu0 0.0
    %8643 = vmatpush1.msra.mxu0 0.0
    %8644 = vmatprep.subr.mxu0 0.0
    %8645 = vmatpush1.msra.mxu0 0.0
    %8646 = vmatprep.subr.mxu0 0.0
    %8647 = vmatpush1.msra.mxu0 0.0
    %8648 = vmatprep.subr.mxu0 0.0
    %8649 = vmatpush1.msra.mxu0 0.0
    %8650 = vmatprep.subr.mxu0 0.0
    %8651 = vmatpush1.msra.mxu0 0.0
    %8652 = vmatprep.mubr.f32.mxu0 0.0
    %v8653 = vand.u32 %v3032, 4294901760
    %8654 = vmatmul.mubr.f32.gmra.mrb[0].mxu0 %v8653
    %v8655 = vpop.f32.mrb[0].mxu0
    %v8656 = vadd.f32 %v8544, %v8655
    %v8657 = vpop.f32.mrb[0].mxu0
    %v8658 = vadd.f32 %v8546, %v8657
    %8659 = vdwg.mxu0
    %v8660 = vand.u32 %v2755, 4294901760
    %v8661 = vsub.f32 %v2755, %v8660
    %8662 = vmatprep.subr.mxu0 %v8661
    %v8663 = vand.u32 %v2754, 4294901760
    %v8664 = vsub.f32 %v2754, %v8663
    %8665 = vmatpush1.msra.mxu0 %v8664
    %v8666 = vand.u32 %v2787, 4294901760
    %v8667 = vsub.f32 %v2787, %v8666
    %8668 = vmatprep.subr.mxu0 %v8667
    %v8669 = vand.u32 %v2786, 4294901760
    %v8670 = vsub.f32 %v2786, %v8669
    %8671 = vmatpush1.msra.mxu0 %v8670
    %v8672 = vand.u32 %v2819, 4294901760
    %v8673 = vsub.f32 %v2819, %v8672
    %8674 = vmatprep.subr.mxu0 %v8673
    %v8675 = vand.u32 %v2818, 4294901760
    %v8676 = vsub.f32 %v2818, %v8675
    %8677 = vmatpush1.msra.mxu0 %v8676
    %v8678 = vand.u32 %v2851, 4294901760
    %v8679 = vsub.f32 %v2851, %v8678
    %8680 = vmatprep.subr.mxu0 %v8679
    %v8681 = vand.u32 %v2850, 4294901760
    %v8682 = vsub.f32 %v2850, %v8681
    %8683 = vmatpush1.msra.mxu0 %v8682
    %8684 = vmatprep.subr.mxu0 0.0
    %8685 = vmatpush1.msra.mxu0 0.0
    %8686 = vmatprep.subr.mxu0 0.0
    %8687 = vmatpush1.msra.mxu0 0.0
    %8688 = vmatprep.subr.mxu0 0.0
    %8689 = vmatpush1.msra.mxu0 0.0
    %8690 = vmatprep.subr.mxu0 0.0
    %8691 = vmatpush1.msra.mxu0 0.0
    %8692 = vmatprep.subr.mxu0 0.0
    %8693 = vmatpush1.msra.mxu0 0.0
    %8694 = vmatprep.subr.mxu0 0.0
    %8695 = vmatpush1.msra.mxu0 0.0
    %8696 = vmatprep.subr.mxu0 0.0
    %8697 = vmatpush1.msra.mxu0 0.0
    %8698 = vmatprep.subr.mxu0 0.0
    %8699 = vmatpush1.msra.mxu0 0.0
    %8700 = vmatprep.subr.mxu0 0.0
    %8701 = vmatpush1.msra.mxu0 0.0
    %8702 = vmatprep.subr.mxu0 0.0
    %8703 = vmatpush1.msra.mxu0 0.0
    %8704 = vmatprep.subr.mxu0 0.0
    %8705 = vmatpush1.msra.mxu0 0.0
    %8706 = vmatprep.subr.mxu0 0.0
    %8707 = vmatpush1.msra.mxu0 0.0
    %8708 = vmatprep.subr.mxu0 0.0
    %8709 = vmatpush1.msra.mxu0 0.0
    %8710 = vmatprep.subr.mxu0 0.0
    %8711 = vmatpush1.msra.mxu0 0.0
    %8712 = vmatprep.subr.mxu0 0.0
    %8713 = vmatpush1.msra.mxu0 0.0
    %8714 = vmatprep.subr.mxu0 0.0
    %8715 = vmatpush1.msra.mxu0 0.0
    %8716 = vmatprep.subr.mxu0 0.0
    %8717 = vmatpush1.msra.mxu0 0.0
    %8718 = vmatprep.subr.mxu0 0.0
    %8719 = vmatpush1.msra.mxu0 0.0
    %8720 = vmatprep.subr.mxu0 0.0
    %8721 = vmatpush1.msra.mxu0 0.0
    %8722 = vmatprep.subr.mxu0 0.0
    %8723 = vmatpush1.msra.mxu0 0.0
    %8724 = vmatprep.subr.mxu0 0.0
    %8725 = vmatpush1.msra.mxu0 0.0
    %8726 = vmatprep.subr.mxu0 0.0
    %8727 = vmatpush1.msra.mxu0 0.0
    %8728 = vmatprep.subr.mxu0 0.0
    %8729 = vmatpush1.msra.mxu0 0.0
    %8730 = vmatprep.subr.mxu0 0.0
    %8731 = vmatpush1.msra.mxu0 0.0
    %8732 = vmatprep.subr.mxu0 0.0
    %8733 = vmatpush1.msra.mxu0 0.0
    %8734 = vmatprep.subr.mxu0 0.0
    %8735 = vmatpush1.msra.mxu0 0.0
    %8736 = vmatprep.subr.mxu0 0.0
    %8737 = vmatpush1.msra.mxu0 0.0
    %8738 = vmatprep.subr.mxu0 0.0
    %8739 = vmatpush1.msra.mxu0 0.0
    %8740 = vmatprep.mubr.f32.mxu0 0.0
    %v8741 = vand.u32 %v3032, 4294901760
    %v8742 = vsub.f32 %v3032, %v8741
    %8743 = vmatmul.mubr.f32.gmra.mrb[0].mxu0 %v8742
    %v8744 = vpop.f32.mrb[0].mxu0
    %v8745 = vadd.f32 %v8656, %v8744
    %v8746 = vpop.f32.mrb[0].mxu0
    %v8747 = vadd.f32 %v8658, %v8746
    %8748 = vdwg.mxu0
    %v8749 = vand.u32 %v2755, 4294901760
    %8750 = vmatprep.subr.mxu0 %v8749
    %v8751 = vand.u32 %v2754, 4294901760
    %8752 = vmatpush1.msra.mxu0 %v8751
    %v8753 = vand.u32 %v2787, 4294901760
    %8754 = vmatprep.subr.mxu0 %v8753
    %v8755 = vand.u32 %v2786, 4294901760
    %8756 = vmatpush1.msra.mxu0 %v8755
    %v8757 = vand.u32 %v2819, 4294901760
    %8758 = vmatprep.subr.mxu0 %v8757
    %v8759 = vand.u32 %v2818, 4294901760
    %8760 = vmatpush1.msra.mxu0 %v8759
    %v8761 = vand.u32 %v2851, 4294901760
    %8762 = vmatprep.subr.mxu0 %v8761
    %v8763 = vand.u32 %v2850, 4294901760
    %8764 = vmatpush1.msra.mxu0 %v8763
    %8765 = vmatprep.subr.mxu0 0.0
    %8766 = vmatpush1.msra.mxu0 0.0
    %8767 = vmatprep.subr.mxu0 0.0
    %8768 = vmatpush1.msra.mxu0 0.0
    %8769 = vmatprep.subr.mxu0 0.0
    %8770 = vmatpush1.msra.mxu0 0.0
    %8771 = vmatprep.subr.mxu0 0.0
    %8772 = vmatpush1.msra.mxu0 0.0
    %8773 = vmatprep.subr.mxu0 0.0
    %8774 = vmatpush1.msra.mxu0 0.0
    %8775 = vmatprep.subr.mxu0 0.0
    %8776 = vmatpush1.msra.mxu0 0.0
    %8777 = vmatprep.subr.mxu0 0.0
    %8778 = vmatpush1.msra.mxu0 0.0
    %8779 = vmatprep.subr.mxu0 0.0
    %8780 = vmatpush1.msra.mxu0 0.0
    %8781 = vmatprep.subr.mxu0 0.0
    %8782 = vmatpush1.msra.mxu0 0.0
    %8783 = vmatprep.subr.mxu0 0.0
    %8784 = vmatpush1.msra.mxu0 0.0
    %8785 = vmatprep.subr.mxu0 0.0
    %8786 = vmatpush1.msra.mxu0 0.0
    %8787 = vmatprep.subr.mxu0 0.0
    %8788 = vmatpush1.msra.mxu0 0.0
    %8789 = vmatprep.subr.mxu0 0.0
    %8790 = vmatpush1.msra.mxu0 0.0
    %8791 = vmatprep.subr.mxu0 0.0
    %8792 = vmatpush1.msra.mxu0 0.0
    %8793 = vmatprep.subr.mxu0 0.0
    %8794 = vmatpush1.msra.mxu0 0.0
    %8795 = vmatprep.subr.mxu0 0.0
    %8796 = vmatpush1.msra.mxu0 0.0
    %8797 = vmatprep.subr.mxu0 0.0
    %8798 = vmatpush1.msra.mxu0 0.0
    %8799 = vmatprep.subr.mxu0 0.0
    %8800 = vmatpush1.msra.mxu0 0.0
    %8801 = vmatprep.subr.mxu0 0.0
    %8802 = vmatpush1.msra.mxu0 0.0
    %8803 = vmatprep.subr.mxu0 0.0
    %8804 = vmatpush1.msra.mxu0 0.0
    %8805 = vmatprep.subr.mxu0 0.0
    %8806 = vmatpush1.msra.mxu0 0.0
    %8807 = vmatprep.subr.mxu0 0.0
    %8808 = vmatpush1.msra.mxu0 0.0
    %8809 = vmatprep.subr.mxu0 0.0
    %8810 = vmatpush1.msra.mxu0 0.0
    %8811 = vmatprep.subr.mxu0 0.0
    %8812 = vmatpush1.msra.mxu0 0.0
    %8813 = vmatprep.subr.mxu0 0.0
    %8814 = vmatpush1.msra.mxu0 0.0
    %8815 = vmatprep.subr.mxu0 0.0
    %8816 = vmatpush1.msra.mxu0 0.0
    %8817 = vmatprep.subr.mxu0 0.0
    %8818 = vmatpush1.msra.mxu0 0.0
    %8819 = vmatprep.subr.mxu0 0.0
    %8820 = vmatpush1.msra.mxu0 0.0
    %8821 = vmatprep.mubr.f32.mxu0 0.0
    %v8822 = vand.u32 %v3032, 4294901760
    %v8823 = vsub.f32 %v3032, %v8822
    %v8824 = vand.u32 %v8823, 4294901760
    %8825 = vmatmul.mubr.f32.gmra.mrb[0].mxu0 %v8824
    %v8826 = vpop.f32.mrb[0].mxu0
    %v8827 = vadd.f32 %v8745, %v8826
    %v8828 = vpop.f32.mrb[0].mxu0
    %v8829 = vadd.f32 %v8747, %v8828
    %8830 = vdwg.mxu0
    %v8831 = vand.u32 %v2755, 4294901760
    %v8832 = vsub.f32 %v2755, %v8831
    %v8833 = vand.u32 %v8832, 4294901760
    %8834 = vmatprep.subr.mxu0 %v8833
    %v8835 = vand.u32 %v2754, 4294901760
    %v8836 = vsub.f32 %v2754, %v8835
    %v8837 = vand.u32 %v8836, 4294901760
    %8838 = vmatpush1.msra.mxu0 %v8837
    %v8839 = vand.u32 %v2787, 4294901760
    %v8840 = vsub.f32 %v2787, %v8839
    %v8841 = vand.u32 %v8840, 4294901760
    %8842 = vmatprep.subr.mxu0 %v8841
    %v8843 = vand.u32 %v2786, 4294901760
    %v8844 = vsub.f32 %v2786, %v8843
    %v8845 = vand.u32 %v8844, 4294901760
    %8846 = vmatpush1.msra.mxu0 %v8845
    %v8847 = vand.u32 %v2819, 4294901760
    %v8848 = vsub.f32 %v2819, %v8847
    %v8849 = vand.u32 %v8848, 4294901760
    %8850 = vmatprep.subr.mxu0 %v8849
    %v8851 = vand.u32 %v2818, 4294901760
    %v8852 = vsub.f32 %v2818, %v8851
    %v8853 = vand.u32 %v8852, 4294901760
    %8854 = vmatpush1.msra.mxu0 %v8853
    %v8855 = vand.u32 %v2851, 4294901760
    %v8856 = vsub.f32 %v2851, %v8855
    %v8857 = vand.u32 %v8856, 4294901760
    %8858 = vmatprep.subr.mxu0 %v8857
    %v8859 = vand.u32 %v2850, 4294901760
    %v8860 = vsub.f32 %v2850, %v8859
    %v8861 = vand.u32 %v8860, 4294901760
    %8862 = vmatpush1.msra.mxu0 %v8861
    %8863 = vmatprep.subr.mxu0 0.0
    %8864 = vmatpush1.msra.mxu0 0.0
    %8865 = vmatprep.subr.mxu0 0.0
    %8866 = vmatpush1.msra.mxu0 0.0
    %8867 = vmatprep.subr.mxu0 0.0
    %8868 = vmatpush1.msra.mxu0 0.0
    %8869 = vmatprep.subr.mxu0 0.0
    %8870 = vmatpush1.msra.mxu0 0.0
    %8871 = vmatprep.subr.mxu0 0.0
    %8872 = vmatpush1.msra.mxu0 0.0
    %8873 = vmatprep.subr.mxu0 0.0
    %8874 = vmatpush1.msra.mxu0 0.0
    %8875 = vmatprep.subr.mxu0 0.0
    %8876 = vmatpush1.msra.mxu0 0.0
    %8877 = vmatprep.subr.mxu0 0.0
    %8878 = vmatpush1.msra.mxu0 0.0
    %8879 = vmatprep.subr.mxu0 0.0
    %8880 = vmatpush1.msra.mxu0 0.0
    %8881 = vmatprep.subr.mxu0 0.0
    %8882 = vmatpush1.msra.mxu0 0.0
    %8883 = vmatprep.subr.mxu0 0.0
    %8884 = vmatpush1.msra.mxu0 0.0
    %8885 = vmatprep.subr.mxu0 0.0
    %8886 = vmatpush1.msra.mxu0 0.0
    %8887 = vmatprep.subr.mxu0 0.0
    %8888 = vmatpush1.msra.mxu0 0.0
    %8889 = vmatprep.subr.mxu0 0.0
    %8890 = vmatpush1.msra.mxu0 0.0
    %8891 = vmatprep.subr.mxu0 0.0
    %8892 = vmatpush1.msra.mxu0 0.0
    %8893 = vmatprep.subr.mxu0 0.0
    %8894 = vmatpush1.msra.mxu0 0.0
    %8895 = vmatprep.subr.mxu0 0.0
    %8896 = vmatpush1.msra.mxu0 0.0
    %8897 = vmatprep.subr.mxu0 0.0
    %8898 = vmatpush1.msra.mxu0 0.0
    %8899 = vmatprep.subr.mxu0 0.0
    %8900 = vmatpush1.msra.mxu0 0.0
    %8901 = vmatprep.subr.mxu0 0.0
    %8902 = vmatpush1.msra.mxu0 0.0
    %8903 = vmatprep.subr.mxu0 0.0
    %8904 = vmatpush1.msra.mxu0 0.0
    %8905 = vmatprep.subr.mxu0 0.0
    %8906 = vmatpush1.msra.mxu0 0.0
    %8907 = vmatprep.subr.mxu0 0.0
    %8908 = vmatpush1.msra.mxu0 0.0
    %8909 = vmatprep.subr.mxu0 0.0
    %8910 = vmatpush1.msra.mxu0 0.0
    %8911 = vmatprep.subr.mxu0 0.0
    %8912 = vmatpush1.msra.mxu0 0.0
    %8913 = vmatprep.subr.mxu0 0.0
    %8914 = vmatpush1.msra.mxu0 0.0
    %8915 = vmatprep.subr.mxu0 0.0
    %8916 = vmatpush1.msra.mxu0 0.0
    %8917 = vmatprep.subr.mxu0 0.0
    %8918 = vmatpush1.msra.mxu0 0.0
    %8919 = vmatprep.mubr.f32.mxu0 0.0
    %v8920 = vand.u32 %v3032, 4294901760
    %8921 = vmatmul.mubr.f32.gmra.mrb[0].mxu0 %v8920
    %v8922 = vpop.f32.mrb[0].mxu0
    %v8923 = vadd.f32 %v8827, %v8922
    %v8924 = vpop.f32.mrb[0].mxu0
    %v8925 = vadd.f32 %v8829, %v8924
    %8926 = vdwg.mxu0
    %v8927 = vand.u32 %v2755, 4294901760
    %8928 = vmatprep.subr.mxu0 %v8927
    %v8929 = vand.u32 %v2754, 4294901760
    %8930 = vmatpush1.msra.mxu0 %v8929
    %v8931 = vand.u32 %v2787, 4294901760
    %8932 = vmatprep.subr.mxu0 %v8931
    %v8933 = vand.u32 %v2786, 4294901760
    %8934 = vmatpush1.msra.mxu0 %v8933
    %v8935 = vand.u32 %v2819, 4294901760
    %8936 = vmatprep.subr.mxu0 %v8935
    %v8937 = vand.u32 %v2818, 4294901760
    %8938 = vmatpush1.msra.mxu0 %v8937
    %v8939 = vand.u32 %v2851, 4294901760
    %8940 = vmatprep.subr.mxu0 %v8939
    %v8941 = vand.u32 %v2850, 4294901760
    %8942 = vmatpush1.msra.mxu0 %v8941
    %8943 = vmatprep.subr.mxu0 0.0
    %8944 = vmatpush1.msra.mxu0 0.0
    %8945 = vmatprep.subr.mxu0 0.0
    %8946 = vmatpush1.msra.mxu0 0.0
    %8947 = vmatprep.subr.mxu0 0.0
    %8948 = vmatpush1.msra.mxu0 0.0
    %8949 = vmatprep.subr.mxu0 0.0
    %8950 = vmatpush1.msra.mxu0 0.0
    %8951 = vmatprep.subr.mxu0 0.0
    %8952 = vmatpush1.msra.mxu0 0.0
    %8953 = vmatprep.subr.mxu0 0.0
    %8954 = vmatpush1.msra.mxu0 0.0
    %8955 = vmatprep.subr.mxu0 0.0
    %8956 = vmatpush1.msra.mxu0 0.0
    %8957 = vmatprep.subr.mxu0 0.0
    %8958 = vmatpush1.msra.mxu0 0.0
    %8959 = vmatprep.subr.mxu0 0.0
    %8960 = vmatpush1.msra.mxu0 0.0
    %8961 = vmatprep.subr.mxu0 0.0
    %8962 = vmatpush1.msra.mxu0 0.0
    %8963 = vmatprep.subr.mxu0 0.0
    %8964 = vmatpush1.msra.mxu0 0.0
    %8965 = vmatprep.subr.mxu0 0.0
    %8966 = vmatpush1.msra.mxu0 0.0
    %8967 = vmatprep.subr.mxu0 0.0
    %8968 = vmatpush1.msra.mxu0 0.0
    %8969 = vmatprep.subr.mxu0 0.0
    %8970 = vmatpush1.msra.mxu0 0.0
    %8971 = vmatprep.subr.mxu0 0.0
    %8972 = vmatpush1.msra.mxu0 0.0
    %8973 = vmatprep.subr.mxu0 0.0
    %8974 = vmatpush1.msra.mxu0 0.0
    %8975 = vmatprep.subr.mxu0 0.0
    %8976 = vmatpush1.msra.mxu0 0.0
    %8977 = vmatprep.subr.mxu0 0.0
    %8978 = vmatpush1.msra.mxu0 0.0
    %8979 = vmatprep.subr.mxu0 0.0
    %8980 = vmatpush1.msra.mxu0 0.0
    %8981 = vmatprep.subr.mxu0 0.0
    %8982 = vmatpush1.msra.mxu0 0.0
    %8983 = vmatprep.subr.mxu0 0.0
    %8984 = vmatpush1.msra.mxu0 0.0
    %8985 = vmatprep.subr.mxu0 0.0
    %8986 = vmatpush1.msra.mxu0 0.0
    %8987 = vmatprep.subr.mxu0 0.0
    %8988 = vmatpush1.msra.mxu0 0.0
    %8989 = vmatprep.subr.mxu0 0.0
    %8990 = vmatpush1.msra.mxu0 0.0
    %8991 = vmatprep.subr.mxu0 0.0
    %8992 = vmatpush1.msra.mxu0 0.0
    %8993 = vmatprep.subr.mxu0 0.0
    %8994 = vmatpush1.msra.mxu0 0.0
    %8995 = vmatprep.subr.mxu0 0.0
    %8996 = vmatpush1.msra.mxu0 0.0
    %8997 = vmatprep.subr.mxu0 0.0
    %8998 = vmatpush1.msra.mxu0 0.0
    %8999 = vmatprep.mubr.f32.mxu0 0.0
    %v9000 = vand.u32 %v3032, 4294901760
    %9001 = vmatmul.mubr.f32.gmra.mrb[0].mxu0 %v9000
    %v9002 = vpop.f32.mrb[0].mxu0
    %v9003 = vadd.f32 %v8923, %v9002
    %v9004 = vpop.f32.mrb[0].mxu0
    %v9005 = vadd.f32 %v8925, %v9004
    %9006 = vdwg.mxu0
    %v9007 = vand.u32 %v2757, 4294901760
    %9008 = vmatprep.subr.mxu0 %v9007
    %v9009 = vand.u32 %v2756, 4294901760
    %9010 = vmatpush1.msra.mxu0 %v9009
    %v9011 = vand.u32 %v2789, 4294901760
    %9012 = vmatprep.subr.mxu0 %v9011
    %v9013 = vand.u32 %v2788, 4294901760
    %9014 = vmatpush1.msra.mxu0 %v9013
    %v9015 = vand.u32 %v2821, 4294901760
    %9016 = vmatprep.subr.mxu0 %v9015
    %v9017 = vand.u32 %v2820, 4294901760
    %9018 = vmatpush1.msra.mxu0 %v9017
    %v9019 = vand.u32 %v2853, 4294901760
    %9020 = vmatprep.subr.mxu0 %v9019
    %v9021 = vand.u32 %v2852, 4294901760
    %9022 = vmatpush1.msra.mxu0 %v9021
    %9023 = vmatprep.subr.mxu0 0.0
    %9024 = vmatpush1.msra.mxu0 0.0
    %9025 = vmatprep.subr.mxu0 0.0
    %9026 = vmatpush1.msra.mxu0 0.0
    %9027 = vmatprep.subr.mxu0 0.0
    %9028 = vmatpush1.msra.mxu0 0.0
    %9029 = vmatprep.subr.mxu0 0.0
    %9030 = vmatpush1.msra.mxu0 0.0
    %9031 = vmatprep.subr.mxu0 0.0
    %9032 = vmatpush1.msra.mxu0 0.0
    %9033 = vmatprep.subr.mxu0 0.0
    %9034 = vmatpush1.msra.mxu0 0.0
    %9035 = vmatprep.subr.mxu0 0.0
    %9036 = vmatpush1.msra.mxu0 0.0
    %9037 = vmatprep.subr.mxu0 0.0
    %9038 = vmatpush1.msra.mxu0 0.0
    %9039 = vmatprep.subr.mxu0 0.0
    %9040 = vmatpush1.msra.mxu0 0.0
    %9041 = vmatprep.subr.mxu0 0.0
    %9042 = vmatpush1.msra.mxu0 0.0
    %9043 = vmatprep.subr.mxu0 0.0
    %9044 = vmatpush1.msra.mxu0 0.0
    %9045 = vmatprep.subr.mxu0 0.0
    %9046 = vmatpush1.msra.mxu0 0.0
    %9047 = vmatprep.subr.mxu0 0.0
    %9048 = vmatpush1.msra.mxu0 0.0
    %9049 = vmatprep.subr.mxu0 0.0
    %9050 = vmatpush1.msra.mxu0 0.0
    %9051 = vmatprep.subr.mxu0 0.0
    %9052 = vmatpush1.msra.mxu0 0.0
    %9053 = vmatprep.subr.mxu0 0.0
    %9054 = vmatpush1.msra.mxu0 0.0
    %9055 = vmatprep.subr.mxu0 0.0
    %9056 = vmatpush1.msra.mxu0 0.0
    %9057 = vmatprep.subr.mxu0 0.0
    %9058 = vmatpush1.msra.mxu0 0.0
    %9059 = vmatprep.subr.mxu0 0.0
    %9060 = vmatpush1.msra.mxu0 0.0
    %9061 = vmatprep.subr.mxu0 0.0
    %9062 = vmatpush1.msra.mxu0 0.0
    %9063 = vmatprep.subr.mxu0 0.0
    %9064 = vmatpush1.msra.mxu0 0.0
    %9065 = vmatprep.subr.mxu0 0.0
    %9066 = vmatpush1.msra.mxu0 0.0
    %9067 = vmatprep.subr.mxu0 0.0
    %9068 = vmatpush1.msra.mxu0 0.0
    %9069 = vmatprep.subr.mxu0 0.0
    %9070 = vmatpush1.msra.mxu0 0.0
    %9071 = vmatprep.subr.mxu0 0.0
    %9072 = vmatpush1.msra.mxu0 0.0
    %9073 = vmatprep.subr.mxu0 0.0
    %9074 = vmatpush1.msra.mxu0 0.0
    %9075 = vmatprep.subr.mxu0 0.0
    %9076 = vmatpush1.msra.mxu0 0.0
    %9077 = vmatprep.subr.mxu0 0.0
    %9078 = vmatpush1.msra.mxu0 0.0
    %9079 = vmatprep.mubr.f32.mxu0 0.0
    %v9080 = vand.u32 %v3032, 4294901760
    %v9081 = vsub.f32 %v3032, %v9080
    %v9082 = vand.u32 %v9081, 4294901760
    %v9083 = vsub.f32 %v9081, %v9082
    %v9084 = vand.u32 %v9083, 4294901760
    %9085 = vmatmul.mubr.f32.gmra.mrb[0].mxu0 %v9084
    %v9086 = vpop.f32.mrb[0].mxu0
    %v9087 = vadd.f32 %v2961, %v9086
    %v9088 = vpop.f32.mrb[0].mxu0
    %v9089 = vadd.f32 %v2965, %v9088
    %9090 = vdwg.mxu0
    %v9091 = vand.u32 %v2757, 4294901760
    %v9092 = vsub.f32 %v2757, %v9091
    %v9093 = vand.u32 %v9092, 4294901760
    %v9094 = vsub.f32 %v9092, %v9093
    %v9095 = vand.u32 %v9094, 4294901760
    %9096 = vmatprep.subr.mxu0 %v9095
    %v9097 = vand.u32 %v2756, 4294901760
    %v9098 = vsub.f32 %v2756, %v9097
    %v9099 = vand.u32 %v9098, 4294901760
    %v9100 = vsub.f32 %v9098, %v9099
    %v9101 = vand.u32 %v9100, 4294901760
    %9102 = vmatpush1.msra.mxu0 %v9101
    %v9103 = vand.u32 %v2789, 4294901760
    %v9104 = vsub.f32 %v2789, %v9103
    %v9105 = vand.u32 %v9104, 4294901760
    %v9106 = vsub.f32 %v9104, %v9105
    %v9107 = vand.u32 %v9106, 4294901760
    %9108 = vmatprep.subr.mxu0 %v9107
    %v9109 = vand.u32 %v2788, 4294901760
    %v9110 = vsub.f32 %v2788, %v9109
    %v9111 = vand.u32 %v9110, 4294901760
    %v9112 = vsub.f32 %v9110, %v9111
    %v9113 = vand.u32 %v9112, 4294901760
    %9114 = vmatpush1.msra.mxu0 %v9113
    %v9115 = vand.u32 %v2821, 4294901760
    %v9116 = vsub.f32 %v2821, %v9115
    %v9117 = vand.u32 %v9116, 4294901760
    %v9118 = vsub.f32 %v9116, %v9117
    %v9119 = vand.u32 %v9118, 4294901760
    %9120 = vmatprep.subr.mxu0 %v9119
    %v9121 = vand.u32 %v2820, 4294901760
    %v9122 = vsub.f32 %v2820, %v9121
    %v9123 = vand.u32 %v9122, 4294901760
    %v9124 = vsub.f32 %v9122, %v9123
    %v9125 = vand.u32 %v9124, 4294901760
    %9126 = vmatpush1.msra.mxu0 %v9125
    %v9127 = vand.u32 %v2853, 4294901760
    %v9128 = vsub.f32 %v2853, %v9127
    %v9129 = vand.u32 %v9128, 4294901760
    %v9130 = vsub.f32 %v9128, %v9129
    %v9131 = vand.u32 %v9130, 4294901760
    %9132 = vmatprep.subr.mxu0 %v9131
    %v9133 = vand.u32 %v2852, 4294901760
    %v9134 = vsub.f32 %v2852, %v9133
    %v9135 = vand.u32 %v9134, 4294901760
    %v9136 = vsub.f32 %v9134, %v9135
    %v9137 = vand.u32 %v9136, 4294901760
    %9138 = vmatpush1.msra.mxu0 %v9137
    %9139 = vmatprep.subr.mxu0 0.0
    %9140 = vmatpush1.msra.mxu0 0.0
    %9141 = vmatprep.subr.mxu0 0.0
    %9142 = vmatpush1.msra.mxu0 0.0
    %9143 = vmatprep.subr.mxu0 0.0
    %9144 = vmatpush1.msra.mxu0 0.0
    %9145 = vmatprep.subr.mxu0 0.0
    %9146 = vmatpush1.msra.mxu0 0.0
    %9147 = vmatprep.subr.mxu0 0.0
    %9148 = vmatpush1.msra.mxu0 0.0
    %9149 = vmatprep.subr.mxu0 0.0
    %9150 = vmatpush1.msra.mxu0 0.0
    %9151 = vmatprep.subr.mxu0 0.0
    %9152 = vmatpush1.msra.mxu0 0.0
    %9153 = vmatprep.subr.mxu0 0.0
    %9154 = vmatpush1.msra.mxu0 0.0
    %9155 = vmatprep.subr.mxu0 0.0
    %9156 = vmatpush1.msra.mxu0 0.0
    %9157 = vmatprep.subr.mxu0 0.0
    %9158 = vmatpush1.msra.mxu0 0.0
    %9159 = vmatprep.subr.mxu0 0.0
    %9160 = vmatpush1.msra.mxu0 0.0
    %9161 = vmatprep.subr.mxu0 0.0
    %9162 = vmatpush1.msra.mxu0 0.0
    %9163 = vmatprep.subr.mxu0 0.0
    %9164 = vmatpush1.msra.mxu0 0.0
    %9165 = vmatprep.subr.mxu0 0.0
    %9166 = vmatpush1.msra.mxu0 0.0
    %9167 = vmatprep.subr.mxu0 0.0
    %9168 = vmatpush1.msra.mxu0 0.0
    %9169 = vmatprep.subr.mxu0 0.0
    %9170 = vmatpush1.msra.mxu0 0.0
    %9171 = vmatprep.subr.mxu0 0.0
    %9172 = vmatpush1.msra.mxu0 0.0
    %9173 = vmatprep.subr.mxu0 0.0
    %9174 = vmatpush1.msra.mxu0 0.0
    %9175 = vmatprep.subr.mxu0 0.0
    %9176 = vmatpush1.msra.mxu0 0.0
    %9177 = vmatprep.subr.mxu0 0.0
    %9178 = vmatpush1.msra.mxu0 0.0
    %9179 = vmatprep.subr.mxu0 0.0
    %9180 = vmatpush1.msra.mxu0 0.0
    %9181 = vmatprep.subr.mxu0 0.0
    %9182 = vmatpush1.msra.mxu0 0.0
    %9183 = vmatprep.subr.mxu0 0.0
    %9184 = vmatpush1.msra.mxu0 0.0
    %9185 = vmatprep.subr.mxu0 0.0
    %9186 = vmatpush1.msra.mxu0 0.0
    %9187 = vmatprep.subr.mxu0 0.0
    %9188 = vmatpush1.msra.mxu0 0.0
    %9189 = vmatprep.subr.mxu0 0.0
    %9190 = vmatpush1.msra.mxu0 0.0
    %9191 = vmatprep.subr.mxu0 0.0
    %9192 = vmatpush1.msra.mxu0 0.0
    %9193 = vmatprep.subr.mxu0 0.0
    %9194 = vmatpush1.msra.mxu0 0.0
    %9195 = vmatprep.mubr.f32.mxu0 0.0
    %v9196 = vand.u32 %v3032, 4294901760
    %9197 = vmatmul.mubr.f32.gmra.mrb[0].mxu0 %v9196
    %v9198 = vpop.f32.mrb[0].mxu0
    %v9199 = vadd.f32 %v9087, %v9198
    %v9200 = vpop.f32.mrb[0].mxu0
    %v9201 = vadd.f32 %v9089, %v9200
    %9202 = vdwg.mxu0
    %v9203 = vand.u32 %v2757, 4294901760
    %v9204 = vsub.f32 %v2757, %v9203
    %9205 = vmatprep.subr.mxu0 %v9204
    %v9206 = vand.u32 %v2756, 4294901760
    %v9207 = vsub.f32 %v2756, %v9206
    %9208 = vmatpush1.msra.mxu0 %v9207
    %v9209 = vand.u32 %v2789, 4294901760
    %v9210 = vsub.f32 %v2789, %v9209
    %9211 = vmatprep.subr.mxu0 %v9210
    %v9212 = vand.u32 %v2788, 4294901760
    %v9213 = vsub.f32 %v2788, %v9212
    %9214 = vmatpush1.msra.mxu0 %v9213
    %v9215 = vand.u32 %v2821, 4294901760
    %v9216 = vsub.f32 %v2821, %v9215
    %9217 = vmatprep.subr.mxu0 %v9216
    %v9218 = vand.u32 %v2820, 4294901760
    %v9219 = vsub.f32 %v2820, %v9218
    %9220 = vmatpush1.msra.mxu0 %v9219
    %v9221 = vand.u32 %v2853, 4294901760
    %v9222 = vsub.f32 %v2853, %v9221
    %9223 = vmatprep.subr.mxu0 %v9222
    %v9224 = vand.u32 %v2852, 4294901760
    %v9225 = vsub.f32 %v2852, %v9224
    %9226 = vmatpush1.msra.mxu0 %v9225
    %9227 = vmatprep.subr.mxu0 0.0
    %9228 = vmatpush1.msra.mxu0 0.0
    %9229 = vmatprep.subr.mxu0 0.0
    %9230 = vmatpush1.msra.mxu0 0.0
    %9231 = vmatprep.subr.mxu0 0.0
    %9232 = vmatpush1.msra.mxu0 0.0
    %9233 = vmatprep.subr.mxu0 0.0
    %9234 = vmatpush1.msra.mxu0 0.0
    %9235 = vmatprep.subr.mxu0 0.0
    %9236 = vmatpush1.msra.mxu0 0.0
    %9237 = vmatprep.subr.mxu0 0.0
    %9238 = vmatpush1.msra.mxu0 0.0
    %9239 = vmatprep.subr.mxu0 0.0
    %9240 = vmatpush1.msra.mxu0 0.0
    %9241 = vmatprep.subr.mxu0 0.0
    %9242 = vmatpush1.msra.mxu0 0.0
    %9243 = vmatprep.subr.mxu0 0.0
    %9244 = vmatpush1.msra.mxu0 0.0
    %9245 = vmatprep.subr.mxu0 0.0
    %9246 = vmatpush1.msra.mxu0 0.0
    %9247 = vmatprep.subr.mxu0 0.0
    %9248 = vmatpush1.msra.mxu0 0.0
    %9249 = vmatprep.subr.mxu0 0.0
    %9250 = vmatpush1.msra.mxu0 0.0
    %9251 = vmatprep.subr.mxu0 0.0
    %9252 = vmatpush1.msra.mxu0 0.0
    %9253 = vmatprep.subr.mxu0 0.0
    %9254 = vmatpush1.msra.mxu0 0.0
    %9255 = vmatprep.subr.mxu0 0.0
    %9256 = vmatpush1.msra.mxu0 0.0
    %9257 = vmatprep.subr.mxu0 0.0
    %9258 = vmatpush1.msra.mxu0 0.0
    %9259 = vmatprep.subr.mxu0 0.0
    %9260 = vmatpush1.msra.mxu0 0.0
    %9261 = vmatprep.subr.mxu0 0.0
    %9262 = vmatpush1.msra.mxu0 0.0
    %9263 = vmatprep.subr.mxu0 0.0
    %9264 = vmatpush1.msra.mxu0 0.0
    %9265 = vmatprep.subr.mxu0 0.0
    %9266 = vmatpush1.msra.mxu0 0.0
    %9267 = vmatprep.subr.mxu0 0.0
    %9268 = vmatpush1.msra.mxu0 0.0
    %9269 = vmatprep.subr.mxu0 0.0
    %9270 = vmatpush1.msra.mxu0 0.0
    %9271 = vmatprep.subr.mxu0 0.0
    %9272 = vmatpush1.msra.mxu0 0.0
    %9273 = vmatprep.subr.mxu0 0.0
    %9274 = vmatpush1.msra.mxu0 0.0
    %9275 = vmatprep.subr.mxu0 0.0
    %9276 = vmatpush1.msra.mxu0 0.0
    %9277 = vmatprep.subr.mxu0 0.0
    %9278 = vmatpush1.msra.mxu0 0.0
    %9279 = vmatprep.subr.mxu0 0.0
    %9280 = vmatpush1.msra.mxu0 0.0
    %9281 = vmatprep.subr.mxu0 0.0
    %9282 = vmatpush1.msra.mxu0 0.0
    %9283 = vmatprep.mubr.f32.mxu0 0.0
    %v9284 = vand.u32 %v3032, 4294901760
    %v9285 = vsub.f32 %v3032, %v9284
    %9286 = vmatmul.mubr.f32.gmra.mrb[0].mxu0 %v9285
    %v9287 = vpop.f32.mrb[0].mxu0
    %v9288 = vadd.f32 %v9199, %v9287
    %v9289 = vpop.f32.mrb[0].mxu0
    %v9290 = vadd.f32 %v9201, %v9289
    %9291 = vdwg.mxu0
    %v9292 = vand.u32 %v2757, 4294901760
    %9293 = vmatprep.subr.mxu0 %v9292
    %v9294 = vand.u32 %v2756, 4294901760
    %9295 = vmatpush1.msra.mxu0 %v9294
    %v9296 = vand.u32 %v2789, 4294901760
    %9297 = vmatprep.subr.mxu0 %v9296
    %v9298 = vand.u32 %v2788, 4294901760
    %9299 = vmatpush1.msra.mxu0 %v9298
    %v9300 = vand.u32 %v2821, 4294901760
    %9301 = vmatprep.subr.mxu0 %v9300
    %v9302 = vand.u32 %v2820, 4294901760
    %9303 = vmatpush1.msra.mxu0 %v9302
    %v9304 = vand.u32 %v2853, 4294901760
    %9305 = vmatprep.subr.mxu0 %v9304
    %v9306 = vand.u32 %v2852, 4294901760
    %9307 = vmatpush1.msra.mxu0 %v9306
    %9308 = vmatprep.subr.mxu0 0.0
    %9309 = vmatpush1.msra.mxu0 0.0
    %9310 = vmatprep.subr.mxu0 0.0
    %9311 = vmatpush1.msra.mxu0 0.0
    %9312 = vmatprep.subr.mxu0 0.0
    %9313 = vmatpush1.msra.mxu0 0.0
    %9314 = vmatprep.subr.mxu0 0.0
    %9315 = vmatpush1.msra.mxu0 0.0
    %9316 = vmatprep.subr.mxu0 0.0
    %9317 = vmatpush1.msra.mxu0 0.0
    %9318 = vmatprep.subr.mxu0 0.0
    %9319 = vmatpush1.msra.mxu0 0.0
    %9320 = vmatprep.subr.mxu0 0.0
    %9321 = vmatpush1.msra.mxu0 0.0
    %9322 = vmatprep.subr.mxu0 0.0
    %9323 = vmatpush1.msra.mxu0 0.0
    %9324 = vmatprep.subr.mxu0 0.0
    %9325 = vmatpush1.msra.mxu0 0.0
    %9326 = vmatprep.subr.mxu0 0.0
    %9327 = vmatpush1.msra.mxu0 0.0
    %9328 = vmatprep.subr.mxu0 0.0
    %9329 = vmatpush1.msra.mxu0 0.0
    %9330 = vmatprep.subr.mxu0 0.0
    %9331 = vmatpush1.msra.mxu0 0.0
    %9332 = vmatprep.subr.mxu0 0.0
    %9333 = vmatpush1.msra.mxu0 0.0
    %9334 = vmatprep.subr.mxu0 0.0
    %9335 = vmatpush1.msra.mxu0 0.0
    %9336 = vmatprep.subr.mxu0 0.0
    %9337 = vmatpush1.msra.mxu0 0.0
    %9338 = vmatprep.subr.mxu0 0.0
    %9339 = vmatpush1.msra.mxu0 0.0
    %9340 = vmatprep.subr.mxu0 0.0
    %9341 = vmatpush1.msra.mxu0 0.0
    %9342 = vmatprep.subr.mxu0 0.0
    %9343 = vmatpush1.msra.mxu0 0.0
    %9344 = vmatprep.subr.mxu0 0.0
    %9345 = vmatpush1.msra.mxu0 0.0
    %9346 = vmatprep.subr.mxu0 0.0
    %9347 = vmatpush1.msra.mxu0 0.0
    %9348 = vmatprep.subr.mxu0 0.0
    %9349 = vmatpush1.msra.mxu0 0.0
    %9350 = vmatprep.subr.mxu0 0.0
    %9351 = vmatpush1.msra.mxu0 0.0
    %9352 = vmatprep.subr.mxu0 0.0
    %9353 = vmatpush1.msra.mxu0 0.0
    %9354 = vmatprep.subr.mxu0 0.0
    %9355 = vmatpush1.msra.mxu0 0.0
    %9356 = vmatprep.subr.mxu0 0.0
    %9357 = vmatpush1.msra.mxu0 0.0
    %9358 = vmatprep.subr.mxu0 0.0
    %9359 = vmatpush1.msra.mxu0 0.0
    %9360 = vmatprep.subr.mxu0 0.0
    %9361 = vmatpush1.msra.mxu0 0.0
    %9362 = vmatprep.subr.mxu0 0.0
    %9363 = vmatpush1.msra.mxu0 0.0
    %9364 = vmatprep.mubr.f32.mxu0 0.0
    %v9365 = vand.u32 %v3032, 4294901760
    %v9366 = vsub.f32 %v3032, %v9365
    %v9367 = vand.u32 %v9366, 4294901760
    %9368 = vmatmul.mubr.f32.gmra.mrb[0].mxu0 %v9367
    %v9369 = vpop.f32.mrb[0].mxu0
    %v9370 = vadd.f32 %v9288, %v9369
    %v9371 = vpop.f32.mrb[0].mxu0
    %v9372 = vadd.f32 %v9290, %v9371
    %9373 = vdwg.mxu0
    %v9374 = vand.u32 %v2757, 4294901760
    %v9375 = vsub.f32 %v2757, %v9374
    %v9376 = vand.u32 %v9375, 4294901760
    %9377 = vmatprep.subr.mxu0 %v9376
    %v9378 = vand.u32 %v2756, 4294901760
    %v9379 = vsub.f32 %v2756, %v9378
    %v9380 = vand.u32 %v9379, 4294901760
    %9381 = vmatpush1.msra.mxu0 %v9380
    %v9382 = vand.u32 %v2789, 4294901760
    %v9383 = vsub.f32 %v2789, %v9382
    %v9384 = vand.u32 %v9383, 4294901760
    %9385 = vmatprep.subr.mxu0 %v9384
    %v9386 = vand.u32 %v2788, 4294901760
    %v9387 = vsub.f32 %v2788, %v9386
    %v9388 = vand.u32 %v9387, 4294901760
    %9389 = vmatpush1.msra.mxu0 %v9388
    %v9390 = vand.u32 %v2821, 4294901760
    %v9391 = vsub.f32 %v2821, %v9390
    %v9392 = vand.u32 %v9391, 4294901760
    %9393 = vmatprep.subr.mxu0 %v9392
    %v9394 = vand.u32 %v2820, 4294901760
    %v9395 = vsub.f32 %v2820, %v9394
    %v9396 = vand.u32 %v9395, 4294901760
    %9397 = vmatpush1.msra.mxu0 %v9396
    %v9398 = vand.u32 %v2853, 4294901760
    %v9399 = vsub.f32 %v2853, %v9398
    %v9400 = vand.u32 %v9399, 4294901760
    %9401 = vmatprep.subr.mxu0 %v9400
    %v9402 = vand.u32 %v2852, 4294901760
    %v9403 = vsub.f32 %v2852, %v9402
    %v9404 = vand.u32 %v9403, 4294901760
    %9405 = vmatpush1.msra.mxu0 %v9404
    %9406 = vmatprep.subr.mxu0 0.0
    %9407 = vmatpush1.msra.mxu0 0.0
    %9408 = vmatprep.subr.mxu0 0.0
    %9409 = vmatpush1.msra.mxu0 0.0
    %9410 = vmatprep.subr.mxu0 0.0
    %9411 = vmatpush1.msra.mxu0 0.0
    %9412 = vmatprep.subr.mxu0 0.0
    %9413 = vmatpush1.msra.mxu0 0.0
    %9414 = vmatprep.subr.mxu0 0.0
    %9415 = vmatpush1.msra.mxu0 0.0
    %9416 = vmatprep.subr.mxu0 0.0
    %9417 = vmatpush1.msra.mxu0 0.0
    %9418 = vmatprep.subr.mxu0 0.0
    %9419 = vmatpush1.msra.mxu0 0.0
    %9420 = vmatprep.subr.mxu0 0.0
    %9421 = vmatpush1.msra.mxu0 0.0
    %9422 = vmatprep.subr.mxu0 0.0
    %9423 = vmatpush1.msra.mxu0 0.0
    %9424 = vmatprep.subr.mxu0 0.0
    %9425 = vmatpush1.msra.mxu0 0.0
    %9426 = vmatprep.subr.mxu0 0.0
    %9427 = vmatpush1.msra.mxu0 0.0
    %9428 = vmatprep.subr.mxu0 0.0
    %9429 = vmatpush1.msra.mxu0 0.0
    %9430 = vmatprep.subr.mxu0 0.0
    %9431 = vmatpush1.msra.mxu0 0.0
    %9432 = vmatprep.subr.mxu0 0.0
    %9433 = vmatpush1.msra.mxu0 0.0
    %9434 = vmatprep.subr.mxu0 0.0
    %9435 = vmatpush1.msra.mxu0 0.0
    %9436 = vmatprep.subr.mxu0 0.0
    %9437 = vmatpush1.msra.mxu0 0.0
    %9438 = vmatprep.subr.mxu0 0.0
    %9439 = vmatpush1.msra.mxu0 0.0
    %9440 = vmatprep.subr.mxu0 0.0
    %9441 = vmatpush1.msra.mxu0 0.0
    %9442 = vmatprep.subr.mxu0 0.0
    %9443 = vmatpush1.msra.mxu0 0.0
    %9444 = vmatprep.subr.mxu0 0.0
    %9445 = vmatpush1.msra.mxu0 0.0
    %9446 = vmatprep.subr.mxu0 0.0
    %9447 = vmatpush1.msra.mxu0 0.0
    %9448 = vmatprep.subr.mxu0 0.0
    %9449 = vmatpush1.msra.mxu0 0.0
    %9450 = vmatprep.subr.mxu0 0.0
    %9451 = vmatpush1.msra.mxu0 0.0
    %9452 = vmatprep.subr.mxu0 0.0
    %9453 = vmatpush1.msra.mxu0 0.0
    %9454 = vmatprep.subr.mxu0 0.0
    %9455 = vmatpush1.msra.mxu0 0.0
    %9456 = vmatprep.subr.mxu0 0.0
    %9457 = vmatpush1.msra.mxu0 0.0
    %9458 = vmatprep.subr.mxu0 0.0
    %9459 = vmatpush1.msra.mxu0 0.0
    %9460 = vmatprep.subr.mxu0 0.0
    %9461 = vmatpush1.msra.mxu0 0.0
    %9462 = vmatprep.mubr.f32.mxu0 0.0
    %v9463 = vand.u32 %v3032, 4294901760
    %9464 = vmatmul.mubr.f32.gmra.mrb[0].mxu0 %v9463
    %v9465 = vpop.f32.mrb[0].mxu0
    %v9466 = vadd.f32 %v9370, %v9465
    %v9467 = vpop.f32.mrb[0].mxu0
    %v9468 = vadd.f32 %v9372, %v9467
    %9469 = vdwg.mxu0
    %v9470 = vand.u32 %v2757, 4294901760
    %9471 = vmatprep.subr.mxu0 %v9470
    %v9472 = vand.u32 %v2756, 4294901760
    %9473 = vmatpush1.msra.mxu0 %v9472
    %v9474 = vand.u32 %v2789, 4294901760
    %9475 = vmatprep.subr.mxu0 %v9474
    %v9476 = vand.u32 %v2788, 4294901760
    %9477 = vmatpush1.msra.mxu0 %v9476
    %v9478 = vand.u32 %v2821, 4294901760
    %9479 = vmatprep.subr.mxu0 %v9478
    %v9480 = vand.u32 %v2820, 4294901760
    %9481 = vmatpush1.msra.mxu0 %v9480
    %v9482 = vand.u32 %v2853, 4294901760
    %9483 = vmatprep.subr.mxu0 %v9482
    %v9484 = vand.u32 %v2852, 4294901760
    %9485 = vmatpush1.msra.mxu0 %v9484
    %9486 = vmatprep.subr.mxu0 0.0
    %9487 = vmatpush1.msra.mxu0 0.0
    %9488 = vmatprep.subr.mxu0 0.0
    %9489 = vmatpush1.msra.mxu0 0.0
    %9490 = vmatprep.subr.mxu0 0.0
    %9491 = vmatpush1.msra.mxu0 0.0
    %9492 = vmatprep.subr.mxu0 0.0
    %9493 = vmatpush1.msra.mxu0 0.0
    %9494 = vmatprep.subr.mxu0 0.0
    %9495 = vmatpush1.msra.mxu0 0.0
    %9496 = vmatprep.subr.mxu0 0.0
    %9497 = vmatpush1.msra.mxu0 0.0
    %9498 = vmatprep.subr.mxu0 0.0
    %9499 = vmatpush1.msra.mxu0 0.0
    %9500 = vmatprep.subr.mxu0 0.0
    %9501 = vmatpush1.msra.mxu0 0.0
    %9502 = vmatprep.subr.mxu0 0.0
    %9503 = vmatpush1.msra.mxu0 0.0
    %9504 = vmatprep.subr.mxu0 0.0
    %9505 = vmatpush1.msra.mxu0 0.0
    %9506 = vmatprep.subr.mxu0 0.0
    %9507 = vmatpush1.msra.mxu0 0.0
    %9508 = vmatprep.subr.mxu0 0.0
    %9509 = vmatpush1.msra.mxu0 0.0
    %9510 = vmatprep.subr.mxu0 0.0
    %9511 = vmatpush1.msra.mxu0 0.0
    %9512 = vmatprep.subr.mxu0 0.0
    %9513 = vmatpush1.msra.mxu0 0.0
    %9514 = vmatprep.subr.mxu0 0.0
    %9515 = vmatpush1.msra.mxu0 0.0
    %9516 = vmatprep.subr.mxu0 0.0
    %9517 = vmatpush1.msra.mxu0 0.0
    %9518 = vmatprep.subr.mxu0 0.0
    %9519 = vmatpush1.msra.mxu0 0.0
    %9520 = vmatprep.subr.mxu0 0.0
    %9521 = vmatpush1.msra.mxu0 0.0
    %9522 = vmatprep.subr.mxu0 0.0
    %9523 = vmatpush1.msra.mxu0 0.0
    %9524 = vmatprep.subr.mxu0 0.0
    %9525 = vmatpush1.msra.mxu0 0.0
    %9526 = vmatprep.subr.mxu0 0.0
    %9527 = vmatpush1.msra.mxu0 0.0
    %9528 = vmatprep.subr.mxu0 0.0
    %9529 = vmatpush1.msra.mxu0 0.0
    %9530 = vmatprep.subr.mxu0 0.0
    %9531 = vmatpush1.msra.mxu0 0.0
    %9532 = vmatprep.subr.mxu0 0.0
    %9533 = vmatpush1.msra.mxu0 0.0
    %9534 = vmatprep.subr.mxu0 0.0
    %9535 = vmatpush1.msra.mxu0 0.0
    %9536 = vmatprep.subr.mxu0 0.0
    %9537 = vmatpush1.msra.mxu0 0.0
    %9538 = vmatprep.subr.mxu0 0.0
    %9539 = vmatpush1.msra.mxu0 0.0
    %9540 = vmatprep.subr.mxu0 0.0
    %9541 = vmatpush1.msra.mxu0 0.0
    %9542 = vmatprep.mubr.f32.mxu0 0.0
    %v9543 = vand.u32 %v3032, 4294901760
    %9544 = vmatmul.mubr.f32.gmra.mrb[0].mxu0 %v9543
    %v9545 = vpop.f32.mrb[0].mxu0
    %v9546 = vadd.f32 %v9466, %v9545
    %v9547 = vpop.f32.mrb[0].mxu0
    %v9548 = vadd.f32 %v9468, %v9547
    %9549 = vdwg.mxu0
    %v9550 = vand.u32 %v2759, 4294901760
    %9551 = vmatprep.subr.mxu0 %v9550
    %v9552 = vand.u32 %v2758, 4294901760
    %9553 = vmatpush1.msra.mxu0 %v9552
    %v9554 = vand.u32 %v2791, 4294901760
    %9555 = vmatprep.subr.mxu0 %v9554
    %v9556 = vand.u32 %v2790, 4294901760
    %9557 = vmatpush1.msra.mxu0 %v9556
    %v9558 = vand.u32 %v2823, 4294901760
    %9559 = vmatprep.subr.mxu0 %v9558
    %v9560 = vand.u32 %v2822, 4294901760
    %9561 = vmatpush1.msra.mxu0 %v9560
    %v9562 = vand.u32 %v2855, 4294901760
    %9563 = vmatprep.subr.mxu0 %v9562
    %v9564 = vand.u32 %v2854, 4294901760
    %9565 = vmatpush1.msra.mxu0 %v9564
    %9566 = vmatprep.subr.mxu0 0.0
    %9567 = vmatpush1.msra.mxu0 0.0
    %9568 = vmatprep.subr.mxu0 0.0
    %9569 = vmatpush1.msra.mxu0 0.0
    %9570 = vmatprep.subr.mxu0 0.0
    %9571 = vmatpush1.msra.mxu0 0.0
    %9572 = vmatprep.subr.mxu0 0.0
    %9573 = vmatpush1.msra.mxu0 0.0
    %9574 = vmatprep.subr.mxu0 0.0
    %9575 = vmatpush1.msra.mxu0 0.0
    %9576 = vmatprep.subr.mxu0 0.0
    %9577 = vmatpush1.msra.mxu0 0.0
    %9578 = vmatprep.subr.mxu0 0.0
    %9579 = vmatpush1.msra.mxu0 0.0
    %9580 = vmatprep.subr.mxu0 0.0
    %9581 = vmatpush1.msra.mxu0 0.0
    %9582 = vmatprep.subr.mxu0 0.0
    %9583 = vmatpush1.msra.mxu0 0.0
    %9584 = vmatprep.subr.mxu0 0.0
    %9585 = vmatpush1.msra.mxu0 0.0
    %9586 = vmatprep.subr.mxu0 0.0
    %9587 = vmatpush1.msra.mxu0 0.0
    %9588 = vmatprep.subr.mxu0 0.0
    %9589 = vmatpush1.msra.mxu0 0.0
    %9590 = vmatprep.subr.mxu0 0.0
    %9591 = vmatpush1.msra.mxu0 0.0
    %9592 = vmatprep.subr.mxu0 0.0
    %9593 = vmatpush1.msra.mxu0 0.0
    %9594 = vmatprep.subr.mxu0 0.0
    %9595 = vmatpush1.msra.mxu0 0.0
    %9596 = vmatprep.subr.mxu0 0.0
    %9597 = vmatpush1.msra.mxu0 0.0
    %9598 = vmatprep.subr.mxu0 0.0
    %9599 = vmatpush1.msra.mxu0 0.0
    %9600 = vmatprep.subr.mxu0 0.0
    %9601 = vmatpush1.msra.mxu0 0.0
    %9602 = vmatprep.subr.mxu0 0.0
    %9603 = vmatpush1.msra.mxu0 0.0
    %9604 = vmatprep.subr.mxu0 0.0
    %9605 = vmatpush1.msra.mxu0 0.0
    %9606 = vmatprep.subr.mxu0 0.0
    %9607 = vmatpush1.msra.mxu0 0.0
    %9608 = vmatprep.subr.mxu0 0.0
    %9609 = vmatpush1.msra.mxu0 0.0
    %9610 = vmatprep.subr.mxu0 0.0
    %9611 = vmatpush1.msra.mxu0 0.0
    %9612 = vmatprep.subr.mxu0 0.0
    %9613 = vmatpush1.msra.mxu0 0.0
    %9614 = vmatprep.subr.mxu0 0.0
    %9615 = vmatpush1.msra.mxu0 0.0
    %9616 = vmatprep.subr.mxu0 0.0
    %9617 = vmatpush1.msra.mxu0 0.0
    %9618 = vmatprep.subr.mxu0 0.0
    %9619 = vmatpush1.msra.mxu0 0.0
    %9620 = vmatprep.subr.mxu0 0.0
    %9621 = vmatpush1.msra.mxu0 0.0
    %9622 = vmatprep.mubr.f32.mxu0 0.0
    %v9623 = vand.u32 %v3032, 4294901760
    %v9624 = vsub.f32 %v3032, %v9623
    %v9625 = vand.u32 %v9624, 4294901760
    %v9626 = vsub.f32 %v9624, %v9625
    %v9627 = vand.u32 %v9626, 4294901760
    %9628 = vmatmul.mubr.f32.gmra.mrb[0].mxu0 %v9627
    %v9629 = vpop.f32.mrb[0].mxu0
    %v9630 = vadd.f32 %v2969, %v9629
    %v9631 = vpop.f32.mrb[0].mxu0
    %v9632 = vadd.f32 %v2973, %v9631
    %9633 = vdwg.mxu0
    %v9634 = vand.u32 %v2759, 4294901760
    %v9635 = vsub.f32 %v2759, %v9634
    %v9636 = vand.u32 %v9635, 4294901760
    %v9637 = vsub.f32 %v9635, %v9636
    %v9638 = vand.u32 %v9637, 4294901760
    %9639 = vmatprep.subr.mxu0 %v9638
    %v9640 = vand.u32 %v2758, 4294901760
    %v9641 = vsub.f32 %v2758, %v9640
    %v9642 = vand.u32 %v9641, 4294901760
    %v9643 = vsub.f32 %v9641, %v9642
    %v9644 = vand.u32 %v9643, 4294901760
    %9645 = vmatpush1.msra.mxu0 %v9644
    %v9646 = vand.u32 %v2791, 4294901760
    %v9647 = vsub.f32 %v2791, %v9646
    %v9648 = vand.u32 %v9647, 4294901760
    %v9649 = vsub.f32 %v9647, %v9648
    %v9650 = vand.u32 %v9649, 4294901760
    %9651 = vmatprep.subr.mxu0 %v9650
    %v9652 = vand.u32 %v2790, 4294901760
    %v9653 = vsub.f32 %v2790, %v9652
    %v9654 = vand.u32 %v9653, 4294901760
    %v9655 = vsub.f32 %v9653, %v9654
    %v9656 = vand.u32 %v9655, 4294901760
    %9657 = vmatpush1.msra.mxu0 %v9656
    %v9658 = vand.u32 %v2823, 4294901760
    %v9659 = vsub.f32 %v2823, %v9658
    %v9660 = vand.u32 %v9659, 4294901760
    %v9661 = vsub.f32 %v9659, %v9660
    %v9662 = vand.u32 %v9661, 4294901760
    %9663 = vmatprep.subr.mxu0 %v9662
    %v9664 = vand.u32 %v2822, 4294901760
    %v9665 = vsub.f32 %v2822, %v9664
    %v9666 = vand.u32 %v9665, 4294901760
    %v9667 = vsub.f32 %v9665, %v9666
    %v9668 = vand.u32 %v9667, 4294901760
    %9669 = vmatpush1.msra.mxu0 %v9668
    %v9670 = vand.u32 %v2855, 4294901760
    %v9671 = vsub.f32 %v2855, %v9670
    %v9672 = vand.u32 %v9671, 4294901760
    %v9673 = vsub.f32 %v9671, %v9672
    %v9674 = vand.u32 %v9673, 4294901760
    %9675 = vmatprep.subr.mxu0 %v9674
    %v9676 = vand.u32 %v2854, 4294901760
    %v9677 = vsub.f32 %v2854, %v9676
    %v9678 = vand.u32 %v9677, 4294901760
    %v9679 = vsub.f32 %v9677, %v9678
    %v9680 = vand.u32 %v9679, 4294901760
    %9681 = vmatpush1.msra.mxu0 %v9680
    %9682 = vmatprep.subr.mxu0 0.0
    %9683 = vmatpush1.msra.mxu0 0.0
    %9684 = vmatprep.subr.mxu0 0.0
    %9685 = vmatpush1.msra.mxu0 0.0
    %9686 = vmatprep.subr.mxu0 0.0
    %9687 = vmatpush1.msra.mxu0 0.0
    %9688 = vmatprep.subr.mxu0 0.0
    %9689 = vmatpush1.msra.mxu0 0.0
    %9690 = vmatprep.subr.mxu0 0.0
    %9691 = vmatpush1.msra.mxu0 0.0
    %9692 = vmatprep.subr.mxu0 0.0
    %9693 = vmatpush1.msra.mxu0 0.0
    %9694 = vmatprep.subr.mxu0 0.0
    %9695 = vmatpush1.msra.mxu0 0.0
    %9696 = vmatprep.subr.mxu0 0.0
    %9697 = vmatpush1.msra.mxu0 0.0
    %9698 = vmatprep.subr.mxu0 0.0
    %9699 = vmatpush1.msra.mxu0 0.0
    %9700 = vmatprep.subr.mxu0 0.0
    %9701 = vmatpush1.msra.mxu0 0.0
    %9702 = vmatprep.subr.mxu0 0.0
    %9703 = vmatpush1.msra.mxu0 0.0
    %9704 = vmatprep.subr.mxu0 0.0
    %9705 = vmatpush1.msra.mxu0 0.0
    %9706 = vmatprep.subr.mxu0 0.0
    %9707 = vmatpush1.msra.mxu0 0.0
    %9708 = vmatprep.subr.mxu0 0.0
    %9709 = vmatpush1.msra.mxu0 0.0
    %9710 = vmatprep.subr.mxu0 0.0
    %9711 = vmatpush1.msra.mxu0 0.0
    %9712 = vmatprep.subr.mxu0 0.0
    %9713 = vmatpush1.msra.mxu0 0.0
    %9714 = vmatprep.subr.mxu0 0.0
    %9715 = vmatpush1.msra.mxu0 0.0
    %9716 = vmatprep.subr.mxu0 0.0
    %9717 = vmatpush1.msra.mxu0 0.0
    %9718 = vmatprep.subr.mxu0 0.0
    %9719 = vmatpush1.msra.mxu0 0.0
    %9720 = vmatprep.subr.mxu0 0.0
    %9721 = vmatpush1.msra.mxu0 0.0
    %9722 = vmatprep.subr.mxu0 0.0
    %9723 = vmatpush1.msra.mxu0 0.0
    %9724 = vmatprep.subr.mxu0 0.0
    %9725 = vmatpush1.msra.mxu0 0.0
    %9726 = vmatprep.subr.mxu0 0.0
    %9727 = vmatpush1.msra.mxu0 0.0
    %9728 = vmatprep.subr.mxu0 0.0
    %9729 = vmatpush1.msra.mxu0 0.0
    %9730 = vmatprep.subr.mxu0 0.0
    %9731 = vmatpush1.msra.mxu0 0.0
    %9732 = vmatprep.subr.mxu0 0.0
    %9733 = vmatpush1.msra.mxu0 0.0
    %9734 = vmatprep.subr.mxu0 0.0
    %9735 = vmatpush1.msra.mxu0 0.0
    %9736 = vmatprep.subr.mxu0 0.0
    %9737 = vmatpush1.msra.mxu0 0.0
    %9738 = vmatprep.mubr.f32.mxu0 0.0
    %v9739 = vand.u32 %v3032, 4294901760
    %9740 = vmatmul.mubr.f32.gmra.mrb[0].mxu0 %v9739
    %v9741 = vpop.f32.mrb[0].mxu0
    %v9742 = vadd.f32 %v9630, %v9741
    %v9743 = vpop.f32.mrb[0].mxu0
    %v9744 = vadd.f32 %v9632, %v9743
    %9745 = vdwg.mxu0
    %v9746 = vand.u32 %v2759, 4294901760
    %v9747 = vsub.f32 %v2759, %v9746
    %9748 = vmatprep.subr.mxu0 %v9747
    %v9749 = vand.u32 %v2758, 4294901760
    %v9750 = vsub.f32 %v2758, %v9749
    %9751 = vmatpush1.msra.mxu0 %v9750
    %v9752 = vand.u32 %v2791, 4294901760
    %v9753 = vsub.f32 %v2791, %v9752
    %9754 = vmatprep.subr.mxu0 %v9753
    %v9755 = vand.u32 %v2790, 4294901760
    %v9756 = vsub.f32 %v2790, %v9755
    %9757 = vmatpush1.msra.mxu0 %v9756
    %v9758 = vand.u32 %v2823, 4294901760
    %v9759 = vsub.f32 %v2823, %v9758
    %9760 = vmatprep.subr.mxu0 %v9759
    %v9761 = vand.u32 %v2822, 4294901760
    %v9762 = vsub.f32 %v2822, %v9761
    %9763 = vmatpush1.msra.mxu0 %v9762
    %v9764 = vand.u32 %v2855, 4294901760
    %v9765 = vsub.f32 %v2855, %v9764
    %9766 = vmatprep.subr.mxu0 %v9765
    %v9767 = vand.u32 %v2854, 4294901760
    %v9768 = vsub.f32 %v2854, %v9767
    %9769 = vmatpush1.msra.mxu0 %v9768
    %9770 = vmatprep.subr.mxu0 0.0
    %9771 = vmatpush1.msra.mxu0 0.0
    %9772 = vmatprep.subr.mxu0 0.0
    %9773 = vmatpush1.msra.mxu0 0.0
    %9774 = vmatprep.subr.mxu0 0.0
    %9775 = vmatpush1.msra.mxu0 0.0
    %9776 = vmatprep.subr.mxu0 0.0
    %9777 = vmatpush1.msra.mxu0 0.0
    %9778 = vmatprep.subr.mxu0 0.0
    %9779 = vmatpush1.msra.mxu0 0.0
    %9780 = vmatprep.subr.mxu0 0.0
    %9781 = vmatpush1.msra.mxu0 0.0
    %9782 = vmatprep.subr.mxu0 0.0
    %9783 = vmatpush1.msra.mxu0 0.0
    %9784 = vmatprep.subr.mxu0 0.0
    %9785 = vmatpush1.msra.mxu0 0.0
    %9786 = vmatprep.subr.mxu0 0.0
    %9787 = vmatpush1.msra.mxu0 0.0
    %9788 = vmatprep.subr.mxu0 0.0
    %9789 = vmatpush1.msra.mxu0 0.0
    %9790 = vmatprep.subr.mxu0 0.0
    %9791 = vmatpush1.msra.mxu0 0.0
    %9792 = vmatprep.subr.mxu0 0.0
    %9793 = vmatpush1.msra.mxu0 0.0
    %9794 = vmatprep.subr.mxu0 0.0
    %9795 = vmatpush1.msra.mxu0 0.0
    %9796 = vmatprep.subr.mxu0 0.0
    %9797 = vmatpush1.msra.mxu0 0.0
    %9798 = vmatprep.subr.mxu0 0.0
    %9799 = vmatpush1.msra.mxu0 0.0
    %9800 = vmatprep.subr.mxu0 0.0
    %9801 = vmatpush1.msra.mxu0 0.0
    %9802 = vmatprep.subr.mxu0 0.0
    %9803 = vmatpush1.msra.mxu0 0.0
    %9804 = vmatprep.subr.mxu0 0.0
    %9805 = vmatpush1.msra.mxu0 0.0
    %9806 = vmatprep.subr.mxu0 0.0
    %9807 = vmatpush1.msra.mxu0 0.0
    %9808 = vmatprep.subr.mxu0 0.0
    %9809 = vmatpush1.msra.mxu0 0.0
    %9810 = vmatprep.subr.mxu0 0.0
    %9811 = vmatpush1.msra.mxu0 0.0
    %9812 = vmatprep.subr.mxu0 0.0
    %9813 = vmatpush1.msra.mxu0 0.0
    %9814 = vmatprep.subr.mxu0 0.0
    %9815 = vmatpush1.msra.mxu0 0.0
    %9816 = vmatprep.subr.mxu0 0.0
    %9817 = vmatpush1.msra.mxu0 0.0
    %9818 = vmatprep.subr.mxu0 0.0
    %9819 = vmatpush1.msra.mxu0 0.0
    %9820 = vmatprep.subr.mxu0 0.0
    %9821 = vmatpush1.msra.mxu0 0.0
    %9822 = vmatprep.subr.mxu0 0.0
    %9823 = vmatpush1.msra.mxu0 0.0
    %9824 = vmatprep.subr.mxu0 0.0
    %9825 = vmatpush1.msra.mxu0 0.0
    %9826 = vmatprep.mubr.f32.mxu0 0.0
    %v9827 = vand.u32 %v3032, 4294901760
    %v9828 = vsub.f32 %v3032, %v9827
    %9829 = vmatmul.mubr.f32.gmra.mrb[0].mxu0 %v9828
    %v9830 = vpop.f32.mrb[0].mxu0
    %v9831 = vadd.f32 %v9742, %v9830
    %v9832 = vpop.f32.mrb[0].mxu0
    %v9833 = vadd.f32 %v9744, %v9832
    %9834 = vdwg.mxu0
    %v9835 = vand.u32 %v2759, 4294901760
    %9836 = vmatprep.subr.mxu0 %v9835
    %v9837 = vand.u32 %v2758, 4294901760
    %9838 = vmatpush1.msra.mxu0 %v9837
    %v9839 = vand.u32 %v2791, 4294901760
    %9840 = vmatprep.subr.mxu0 %v9839
    %v9841 = vand.u32 %v2790, 4294901760
    %9842 = vmatpush1.msra.mxu0 %v9841
    %v9843 = vand.u32 %v2823, 4294901760
    %9844 = vmatprep.subr.mxu0 %v9843
    %v9845 = vand.u32 %v2822, 4294901760
    %9846 = vmatpush1.msra.mxu0 %v9845
    %v9847 = vand.u32 %v2855, 4294901760
    %9848 = vmatprep.subr.mxu0 %v9847
    %v9849 = vand.u32 %v2854, 4294901760
    %9850 = vmatpush1.msra.mxu0 %v9849
    %9851 = vmatprep.subr.mxu0 0.0
    %9852 = vmatpush1.msra.mxu0 0.0
    %9853 = vmatprep.subr.mxu0 0.0
    %9854 = vmatpush1.msra.mxu0 0.0
    %9855 = vmatprep.subr.mxu0 0.0
    %9856 = vmatpush1.msra.mxu0 0.0
    %9857 = vmatprep.subr.mxu0 0.0
    %9858 = vmatpush1.msra.mxu0 0.0
    %9859 = vmatprep.subr.mxu0 0.0
    %9860 = vmatpush1.msra.mxu0 0.0
    %9861 = vmatprep.subr.mxu0 0.0
    %9862 = vmatpush1.msra.mxu0 0.0
    %9863 = vmatprep.subr.mxu0 0.0
    %9864 = vmatpush1.msra.mxu0 0.0
    %9865 = vmatprep.subr.mxu0 0.0
    %9866 = vmatpush1.msra.mxu0 0.0
    %9867 = vmatprep.subr.mxu0 0.0
    %9868 = vmatpush1.msra.mxu0 0.0
    %9869 = vmatprep.subr.mxu0 0.0
    %9870 = vmatpush1.msra.mxu0 0.0
    %9871 = vmatprep.subr.mxu0 0.0
    %9872 = vmatpush1.msra.mxu0 0.0
    %9873 = vmatprep.subr.mxu0 0.0
    %9874 = vmatpush1.msra.mxu0 0.0
    %9875 = vmatprep.subr.mxu0 0.0
    %9876 = vmatpush1.msra.mxu0 0.0
    %9877 = vmatprep.subr.mxu0 0.0
    %9878 = vmatpush1.msra.mxu0 0.0
    %9879 = vmatprep.subr.mxu0 0.0
    %9880 = vmatpush1.msra.mxu0 0.0
    %9881 = vmatprep.subr.mxu0 0.0
    %9882 = vmatpush1.msra.mxu0 0.0
    %9883 = vmatprep.subr.mxu0 0.0
    %9884 = vmatpush1.msra.mxu0 0.0
    %9885 = vmatprep.subr.mxu0 0.0
    %9886 = vmatpush1.msra.mxu0 0.0
    %9887 = vmatprep.subr.mxu0 0.0
    %9888 = vmatpush1.msra.mxu0 0.0
    %9889 = vmatprep.subr.mxu0 0.0
    %9890 = vmatpush1.msra.mxu0 0.0
    %9891 = vmatprep.subr.mxu0 0.0
    %9892 = vmatpush1.msra.mxu0 0.0
    %9893 = vmatprep.subr.mxu0 0.0
    %9894 = vmatpush1.msra.mxu0 0.0
    %9895 = vmatprep.subr.mxu0 0.0
    %9896 = vmatpush1.msra.mxu0 0.0
    %9897 = vmatprep.subr.mxu0 0.0
    %9898 = vmatpush1.msra.mxu0 0.0
    %9899 = vmatprep.subr.mxu0 0.0
    %9900 = vmatpush1.msra.mxu0 0.0
    %9901 = vmatprep.subr.mxu0 0.0
    %9902 = vmatpush1.msra.mxu0 0.0
    %9903 = vmatprep.subr.mxu0 0.0
    %9904 = vmatpush1.msra.mxu0 0.0
    %9905 = vmatprep.subr.mxu0 0.0
    %9906 = vmatpush1.msra.mxu0 0.0
    %9907 = vmatprep.mubr.f32.mxu0 0.0
    %v9908 = vand.u32 %v3032, 4294901760
    %v9909 = vsub.f32 %v3032, %v9908
    %v9910 = vand.u32 %v9909, 4294901760
    %9911 = vmatmul.mubr.f32.gmra.mrb[0].mxu0 %v9910
    %v9912 = vpop.f32.mrb[0].mxu0
    %v9913 = vadd.f32 %v9831, %v9912
    %v9914 = vpop.f32.mrb[0].mxu0
    %v9915 = vadd.f32 %v9833, %v9914
    %9916 = vdwg.mxu0
    %v9917 = vand.u32 %v2759, 4294901760
    %v9918 = vsub.f32 %v2759, %v9917
    %v9919 = vand.u32 %v9918, 4294901760
    %9920 = vmatprep.subr.mxu0 %v9919
    %v9921 = vand.u32 %v2758, 4294901760
    %v9922 = vsub.f32 %v2758, %v9921
    %v9923 = vand.u32 %v9922, 4294901760
    %9924 = vmatpush1.msra.mxu0 %v9923
    %v9925 = vand.u32 %v2791, 4294901760
    %v9926 = vsub.f32 %v2791, %v9925
    %v9927 = vand.u32 %v9926, 4294901760
    %9928 = vmatprep.subr.mxu0 %v9927
    %v9929 = vand.u32 %v2790, 4294901760
    %v9930 = vsub.f32 %v2790, %v9929
    %v9931 = vand.u32 %v9930, 4294901760
    %9932 = vmatpush1.msra.mxu0 %v9931
    %v9933 = vand.u32 %v2823, 4294901760
    %v9934 = vsub.f32 %v2823, %v9933
    %v9935 = vand.u32 %v9934, 4294901760
    %9936 = vmatprep.subr.mxu0 %v9935
    %v9937 = vand.u32 %v2822, 4294901760
    %v9938 = vsub.f32 %v2822, %v9937
    %v9939 = vand.u32 %v9938, 4294901760
    %9940 = vmatpush1.msra.mxu0 %v9939
    %v9941 = vand.u32 %v2855, 4294901760
    %v9942 = vsub.f32 %v2855, %v9941
    %v9943 = vand.u32 %v9942, 4294901760
    %9944 = vmatprep.subr.mxu0 %v9943
    %v9945 = vand.u32 %v2854, 4294901760
    %v9946 = vsub.f32 %v2854, %v9945
    %v9947 = vand.u32 %v9946, 4294901760
    %9948 = vmatpush1.msra.mxu0 %v9947
    %9949 = vmatprep.subr.mxu0 0.0
    %9950 = vmatpush1.msra.mxu0 0.0
    %9951 = vmatprep.subr.mxu0 0.0
    %9952 = vmatpush1.msra.mxu0 0.0
    %9953 = vmatprep.subr.mxu0 0.0
    %9954 = vmatpush1.msra.mxu0 0.0
    %9955 = vmatprep.subr.mxu0 0.0
    %9956 = vmatpush1.msra.mxu0 0.0
    %9957 = vmatprep.subr.mxu0 0.0
    %9958 = vmatpush1.msra.mxu0 0.0
    %9959 = vmatprep.subr.mxu0 0.0
    %9960 = vmatpush1.msra.mxu0 0.0
    %9961 = vmatprep.subr.mxu0 0.0
    %9962 = vmatpush1.msra.mxu0 0.0
    %9963 = vmatprep.subr.mxu0 0.0
    %9964 = vmatpush1.msra.mxu0 0.0
    %9965 = vmatprep.subr.mxu0 0.0
    %9966 = vmatpush1.msra.mxu0 0.0
    %9967 = vmatprep.subr.mxu0 0.0
    %9968 = vmatpush1.msra.mxu0 0.0
    %9969 = vmatprep.subr.mxu0 0.0
    %9970 = vmatpush1.msra.mxu0 0.0
    %9971 = vmatprep.subr.mxu0 0.0
    %9972 = vmatpush1.msra.mxu0 0.0
    %9973 = vmatprep.subr.mxu0 0.0
    %9974 = vmatpush1.msra.mxu0 0.0
    %9975 = vmatprep.subr.mxu0 0.0
    %9976 = vmatpush1.msra.mxu0 0.0
    %9977 = vmatprep.subr.mxu0 0.0
    %9978 = vmatpush1.msra.mxu0 0.0
    %9979 = vmatprep.subr.mxu0 0.0
    %9980 = vmatpush1.msra.mxu0 0.0
    %9981 = vmatprep.subr.mxu0 0.0
    %9982 = vmatpush1.msra.mxu0 0.0
    %9983 = vmatprep.subr.mxu0 0.0
    %9984 = vmatpush1.msra.mxu0 0.0
    %9985 = vmatprep.subr.mxu0 0.0
    %9986 = vmatpush1.msra.mxu0 0.0
    %9987 = vmatprep.subr.mxu0 0.0
    %9988 = vmatpush1.msra.mxu0 0.0
    %9989 = vmatprep.subr.mxu0 0.0
    %9990 = vmatpush1.msra.mxu0 0.0
    %9991 = vmatprep.subr.mxu0 0.0
    %9992 = vmatpush1.msra.mxu0 0.0
    %9993 = vmatprep.subr.mxu0 0.0
    %9994 = vmatpush1.msra.mxu0 0.0
    %9995 = vmatprep.subr.mxu0 0.0
    %9996 = vmatpush1.msra.mxu0 0.0
    %9997 = vmatprep.subr.mxu0 0.0
    %9998 = vmatpush1.msra.mxu0 0.0
    %9999 = vmatprep.subr.mxu0 0.0
    %10000 = vmatpush1.msra.mxu0 0.0
    %10001 = vmatprep.subr.mxu0 0.0
    %10002 = vmatpush1.msra.mxu0 0.0
    %10003 = vmatprep.subr.mxu0 0.0
    %10004 = vmatpush1.msra.mxu0 0.0
    %10005 = vmatprep.mubr.f32.mxu0 0.0
    %v10006 = vand.u32 %v3032, 4294901760
    %10007 = vmatmul.mubr.f32.gmra.mrb[0].mxu0 %v10006
    %v10008 = vpop.f32.mrb[0].mxu0
    %v10009 = vadd.f32 %v9913, %v10008
    %v10010 = vpop.f32.mrb[0].mxu0
    %v10011 = vadd.f32 %v9915, %v10010
    %10012 = vdwg.mxu0
    %v10013 = vand.u32 %v2759, 4294901760
    %10014 = vmatprep.subr.mxu0 %v10013
    %v10015 = vand.u32 %v2758, 4294901760
    %10016 = vmatpush1.msra.mxu0 %v10015
    %v10017 = vand.u32 %v2791, 4294901760
    %10018 = vmatprep.subr.mxu0 %v10017
    %v10019 = vand.u32 %v2790, 4294901760
    %10020 = vmatpush1.msra.mxu0 %v10019
    %v10021 = vand.u32 %v2823, 4294901760
    %10022 = vmatprep.subr.mxu0 %v10021
    %v10023 = vand.u32 %v2822, 4294901760
    %10024 = vmatpush1.msra.mxu0 %v10023
    %v10025 = vand.u32 %v2855, 4294901760
    %10026 = vmatprep.subr.mxu0 %v10025
    %v10027 = vand.u32 %v2854, 4294901760
    %10028 = vmatpush1.msra.mxu0 %v10027
    %10029 = vmatprep.subr.mxu0 0.0
    %10030 = vmatpush1.msra.mxu0 0.0
    %10031 = vmatprep.subr.mxu0 0.0
    %10032 = vmatpush1.msra.mxu0 0.0
    %10033 = vmatprep.subr.mxu0 0.0
    %10034 = vmatpush1.msra.mxu0 0.0
    %10035 = vmatprep.subr.mxu0 0.0
    %10036 = vmatpush1.msra.mxu0 0.0
    %10037 = vmatprep.subr.mxu0 0.0
    %10038 = vmatpush1.msra.mxu0 0.0
    %10039 = vmatprep.subr.mxu0 0.0
    %10040 = vmatpush1.msra.mxu0 0.0
    %10041 = vmatprep.subr.mxu0 0.0
    %10042 = vmatpush1.msra.mxu0 0.0
    %10043 = vmatprep.subr.mxu0 0.0
    %10044 = vmatpush1.msra.mxu0 0.0
    %10045 = vmatprep.subr.mxu0 0.0
    %10046 = vmatpush1.msra.mxu0 0.0
    %10047 = vmatprep.subr.mxu0 0.0
    %10048 = vmatpush1.msra.mxu0 0.0
    %10049 = vmatprep.subr.mxu0 0.0
    %10050 = vmatpush1.msra.mxu0 0.0
    %10051 = vmatprep.subr.mxu0 0.0
    %10052 = vmatpush1.msra.mxu0 0.0
    %10053 = vmatprep.subr.mxu0 0.0
    %10054 = vmatpush1.msra.mxu0 0.0
    %10055 = vmatprep.subr.mxu0 0.0
    %10056 = vmatpush1.msra.mxu0 0.0
    %10057 = vmatprep.subr.mxu0 0.0
    %10058 = vmatpush1.msra.mxu0 0.0
    %10059 = vmatprep.subr.mxu0 0.0
    %10060 = vmatpush1.msra.mxu0 0.0
    %10061 = vmatprep.subr.mxu0 0.0
    %10062 = vmatpush1.msra.mxu0 0.0
    %10063 = vmatprep.subr.mxu0 0.0
    %10064 = vmatpush1.msra.mxu0 0.0
    %10065 = vmatprep.subr.mxu0 0.0
    %10066 = vmatpush1.msra.mxu0 0.0
    %10067 = vmatprep.subr.mxu0 0.0
    %10068 = vmatpush1.msra.mxu0 0.0
    %10069 = vmatprep.subr.mxu0 0.0
    %10070 = vmatpush1.msra.mxu0 0.0
    %10071 = vmatprep.subr.mxu0 0.0
    %10072 = vmatpush1.msra.mxu0 0.0
    %10073 = vmatprep.subr.mxu0 0.0
    %10074 = vmatpush1.msra.mxu0 0.0
    %10075 = vmatprep.subr.mxu0 0.0
    %10076 = vmatpush1.msra.mxu0 0.0
    %10077 = vmatprep.subr.mxu0 0.0
    %10078 = vmatpush1.msra.mxu0 0.0
    %10079 = vmatprep.subr.mxu0 0.0
    %10080 = vmatpush1.msra.mxu0 0.0
    %10081 = vmatprep.subr.mxu0 0.0
    %10082 = vmatpush1.msra.mxu0 0.0
    %10083 = vmatprep.subr.mxu0 0.0
    %10084 = vmatpush1.msra.mxu0 0.0
    %10085 = vmatprep.mubr.f32.mxu0 0.0
    %v10086 = vand.u32 %v3032, 4294901760
    %10087 = vmatmul.mubr.f32.gmra.mrb[0].mxu0 %v10086
    %v10088 = vpop.f32.mrb[0].mxu0
    %v10089 = vadd.f32 %v10009, %v10088
    %v10090 = vpop.f32.mrb[0].mxu0
    %v10091 = vadd.f32 %v10011, %v10090
    %10092 = vdwg.mxu0
    %v10093 = vand.u32 %v2761, 4294901760
    %10094 = vmatprep.subr.mxu0 %v10093
    %v10095 = vand.u32 %v2760, 4294901760
    %10096 = vmatpush1.msra.mxu0 %v10095
    %v10097 = vand.u32 %v2793, 4294901760
    %10098 = vmatprep.subr.mxu0 %v10097
    %v10099 = vand.u32 %v2792, 4294901760
    %10100 = vmatpush1.msra.mxu0 %v10099
    %v10101 = vand.u32 %v2825, 4294901760
    %10102 = vmatprep.subr.mxu0 %v10101
    %v10103 = vand.u32 %v2824, 4294901760
    %10104 = vmatpush1.msra.mxu0 %v10103
    %v10105 = vand.u32 %v2857, 4294901760
    %10106 = vmatprep.subr.mxu0 %v10105
    %v10107 = vand.u32 %v2856, 4294901760
    %10108 = vmatpush1.msra.mxu0 %v10107
    %10109 = vmatprep.subr.mxu0 0.0
    %10110 = vmatpush1.msra.mxu0 0.0
    %10111 = vmatprep.subr.mxu0 0.0
    %10112 = vmatpush1.msra.mxu0 0.0
    %10113 = vmatprep.subr.mxu0 0.0
    %10114 = vmatpush1.msra.mxu0 0.0
    %10115 = vmatprep.subr.mxu0 0.0
    %10116 = vmatpush1.msra.mxu0 0.0
    %10117 = vmatprep.subr.mxu0 0.0
    %10118 = vmatpush1.msra.mxu0 0.0
    %10119 = vmatprep.subr.mxu0 0.0
    %10120 = vmatpush1.msra.mxu0 0.0
    %10121 = vmatprep.subr.mxu0 0.0
    %10122 = vmatpush1.msra.mxu0 0.0
    %10123 = vmatprep.subr.mxu0 0.0
    %10124 = vmatpush1.msra.mxu0 0.0
    %10125 = vmatprep.subr.mxu0 0.0
    %10126 = vmatpush1.msra.mxu0 0.0
    %10127 = vmatprep.subr.mxu0 0.0
    %10128 = vmatpush1.msra.mxu0 0.0
    %10129 = vmatprep.subr.mxu0 0.0
    %10130 = vmatpush1.msra.mxu0 0.0
    %10131 = vmatprep.subr.mxu0 0.0
    %10132 = vmatpush1.msra.mxu0 0.0
    %10133 = vmatprep.subr.mxu0 0.0
    %10134 = vmatpush1.msra.mxu0 0.0
    %10135 = vmatprep.subr.mxu0 0.0
    %10136 = vmatpush1.msra.mxu0 0.0
    %10137 = vmatprep.subr.mxu0 0.0
    %10138 = vmatpush1.msra.mxu0 0.0
    %10139 = vmatprep.subr.mxu0 0.0
    %10140 = vmatpush1.msra.mxu0 0.0
    %10141 = vmatprep.subr.mxu0 0.0
    %10142 = vmatpush1.msra.mxu0 0.0
    %10143 = vmatprep.subr.mxu0 0.0
    %10144 = vmatpush1.msra.mxu0 0.0
    %10145 = vmatprep.subr.mxu0 0.0
    %10146 = vmatpush1.msra.mxu0 0.0
    %10147 = vmatprep.subr.mxu0 0.0
    %10148 = vmatpush1.msra.mxu0 0.0
    %10149 = vmatprep.subr.mxu0 0.0
    %10150 = vmatpush1.msra.mxu0 0.0
    %10151 = vmatprep.subr.mxu0 0.0
    %10152 = vmatpush1.msra.mxu0 0.0
    %10153 = vmatprep.subr.mxu0 0.0
    %10154 = vmatpush1.msra.mxu0 0.0
    %10155 = vmatprep.subr.mxu0 0.0
    %10156 = vmatpush1.msra.mxu0 0.0
    %10157 = vmatprep.subr.mxu0 0.0
    %10158 = vmatpush1.msra.mxu0 0.0
    %10159 = vmatprep.subr.mxu0 0.0
    %10160 = vmatpush1.msra.mxu0 0.0
    %10161 = vmatprep.subr.mxu0 0.0
    %10162 = vmatpush1.msra.mxu0 0.0
    %10163 = vmatprep.subr.mxu0 0.0
    %10164 = vmatpush1.msra.mxu0 0.0
    %10165 = vmatprep.mubr.f32.mxu0 0.0
    %v10166 = vand.u32 %v3032, 4294901760
    %v10167 = vsub.f32 %v3032, %v10166
    %v10168 = vand.u32 %v10167, 4294901760
    %v10169 = vsub.f32 %v10167, %v10168
    %v10170 = vand.u32 %v10169, 4294901760
    %10171 = vmatmul.mubr.f32.gmra.mrb[0].mxu0 %v10170
    %v10172 = vpop.f32.mrb[0].mxu0
    %v10173 = vadd.f32 %v2977, %v10172
    %v10174 = vpop.f32.mrb[0].mxu0
    %v10175 = vadd.f32 %v2981, %v10174
    %10176 = vdwg.mxu0
    %v10177 = vand.u32 %v2761, 4294901760
    %v10178 = vsub.f32 %v2761, %v10177
    %v10179 = vand.u32 %v10178, 4294901760
    %v10180 = vsub.f32 %v10178, %v10179
    %v10181 = vand.u32 %v10180, 4294901760
    %10182 = vmatprep.subr.mxu0 %v10181
    %v10183 = vand.u32 %v2760, 4294901760
    %v10184 = vsub.f32 %v2760, %v10183
    %v10185 = vand.u32 %v10184, 4294901760
    %v10186 = vsub.f32 %v10184, %v10185
    %v10187 = vand.u32 %v10186, 4294901760
    %10188 = vmatpush1.msra.mxu0 %v10187
    %v10189 = vand.u32 %v2793, 4294901760
    %v10190 = vsub.f32 %v2793, %v10189
    %v10191 = vand.u32 %v10190, 4294901760
    %v10192 = vsub.f32 %v10190, %v10191
    %v10193 = vand.u32 %v10192, 4294901760
    %10194 = vmatprep.subr.mxu0 %v10193
    %v10195 = vand.u32 %v2792, 4294901760
    %v10196 = vsub.f32 %v2792, %v10195
    %v10197 = vand.u32 %v10196, 4294901760
    %v10198 = vsub.f32 %v10196, %v10197
    %v10199 = vand.u32 %v10198, 4294901760
    %10200 = vmatpush1.msra.mxu0 %v10199
    %v10201 = vand.u32 %v2825, 4294901760
    %v10202 = vsub.f32 %v2825, %v10201
    %v10203 = vand.u32 %v10202, 4294901760
    %v10204 = vsub.f32 %v10202, %v10203
    %v10205 = vand.u32 %v10204, 4294901760
    %10206 = vmatprep.subr.mxu0 %v10205
    %v10207 = vand.u32 %v2824, 4294901760
    %v10208 = vsub.f32 %v2824, %v10207
    %v10209 = vand.u32 %v10208, 4294901760
    %v10210 = vsub.f32 %v10208, %v10209
    %v10211 = vand.u32 %v10210, 4294901760
    %10212 = vmatpush1.msra.mxu0 %v10211
    %v10213 = vand.u32 %v2857, 4294901760
    %v10214 = vsub.f32 %v2857, %v10213
    %v10215 = vand.u32 %v10214, 4294901760
    %v10216 = vsub.f32 %v10214, %v10215
    %v10217 = vand.u32 %v10216, 4294901760
    %10218 = vmatprep.subr.mxu0 %v10217
    %v10219 = vand.u32 %v2856, 4294901760
    %v10220 = vsub.f32 %v2856, %v10219
    %v10221 = vand.u32 %v10220, 4294901760
    %v10222 = vsub.f32 %v10220, %v10221
    %v10223 = vand.u32 %v10222, 4294901760
    %10224 = vmatpush1.msra.mxu0 %v10223
    %10225 = vmatprep.subr.mxu0 0.0
    %10226 = vmatpush1.msra.mxu0 0.0
    %10227 = vmatprep.subr.mxu0 0.0
    %10228 = vmatpush1.msra.mxu0 0.0
    %10229 = vmatprep.subr.mxu0 0.0
    %10230 = vmatpush1.msra.mxu0 0.0
    %10231 = vmatprep.subr.mxu0 0.0
    %10232 = vmatpush1.msra.mxu0 0.0
    %10233 = vmatprep.subr.mxu0 0.0
    %10234 = vmatpush1.msra.mxu0 0.0
    %10235 = vmatprep.subr.mxu0 0.0
    %10236 = vmatpush1.msra.mxu0 0.0
    %10237 = vmatprep.subr.mxu0 0.0
    %10238 = vmatpush1.msra.mxu0 0.0
    %10239 = vmatprep.subr.mxu0 0.0
    %10240 = vmatpush1.msra.mxu0 0.0
    %10241 = vmatprep.subr.mxu0 0.0
    %10242 = vmatpush1.msra.mxu0 0.0
    %10243 = vmatprep.subr.mxu0 0.0
    %10244 = vmatpush1.msra.mxu0 0.0
    %10245 = vmatprep.subr.mxu0 0.0
    %10246 = vmatpush1.msra.mxu0 0.0
    %10247 = vmatprep.subr.mxu0 0.0
    %10248 = vmatpush1.msra.mxu0 0.0
    %10249 = vmatprep.subr.mxu0 0.0
    %10250 = vmatpush1.msra.mxu0 0.0
    %10251 = vmatprep.subr.mxu0 0.0
    %10252 = vmatpush1.msra.mxu0 0.0
    %10253 = vmatprep.subr.mxu0 0.0
    %10254 = vmatpush1.msra.mxu0 0.0
    %10255 = vmatprep.subr.mxu0 0.0
    %10256 = vmatpush1.msra.mxu0 0.0
    %10257 = vmatprep.subr.mxu0 0.0
    %10258 = vmatpush1.msra.mxu0 0.0
    %10259 = vmatprep.subr.mxu0 0.0
    %10260 = vmatpush1.msra.mxu0 0.0
    %10261 = vmatprep.subr.mxu0 0.0
    %10262 = vmatpush1.msra.mxu0 0.0
    %10263 = vmatprep.subr.mxu0 0.0
    %10264 = vmatpush1.msra.mxu0 0.0
    %10265 = vmatprep.subr.mxu0 0.0
    %10266 = vmatpush1.msra.mxu0 0.0
    %10267 = vmatprep.subr.mxu0 0.0
    %10268 = vmatpush1.msra.mxu0 0.0
    %10269 = vmatprep.subr.mxu0 0.0
    %10270 = vmatpush1.msra.mxu0 0.0
    %10271 = vmatprep.subr.mxu0 0.0
    %10272 = vmatpush1.msra.mxu0 0.0
    %10273 = vmatprep.subr.mxu0 0.0
    %10274 = vmatpush1.msra.mxu0 0.0
    %10275 = vmatprep.subr.mxu0 0.0
    %10276 = vmatpush1.msra.mxu0 0.0
    %10277 = vmatprep.subr.mxu0 0.0
    %10278 = vmatpush1.msra.mxu0 0.0
    %10279 = vmatprep.subr.mxu0 0.0
    %10280 = vmatpush1.msra.mxu0 0.0
    %10281 = vmatprep.mubr.f32.mxu0 0.0
    %v10282 = vand.u32 %v3032, 4294901760
    %10283 = vmatmul.mubr.f32.gmra.mrb[0].mxu0 %v10282
    %v10284 = vpop.f32.mrb[0].mxu0
    %v10285 = vadd.f32 %v10173, %v10284
    %v10286 = vpop.f32.mrb[0].mxu0
    %v10287 = vadd.f32 %v10175, %v10286
    %10288 = vdwg.mxu0
    %v10289 = vand.u32 %v2761, 4294901760
    %v10290 = vsub.f32 %v2761, %v10289
    %10291 = vmatprep.subr.mxu0 %v10290
    %v10292 = vand.u32 %v2760, 4294901760
    %v10293 = vsub.f32 %v2760, %v10292
    %10294 = vmatpush1.msra.mxu0 %v10293
    %v10295 = vand.u32 %v2793, 4294901760
    %v10296 = vsub.f32 %v2793, %v10295
    %10297 = vmatprep.subr.mxu0 %v10296
    %v10298 = vand.u32 %v2792, 4294901760
    %v10299 = vsub.f32 %v2792, %v10298
    %10300 = vmatpush1.msra.mxu0 %v10299
    %v10301 = vand.u32 %v2825, 4294901760
    %v10302 = vsub.f32 %v2825, %v10301
    %10303 = vmatprep.subr.mxu0 %v10302
    %v10304 = vand.u32 %v2824, 4294901760
    %v10305 = vsub.f32 %v2824, %v10304
    %10306 = vmatpush1.msra.mxu0 %v10305
    %v10307 = vand.u32 %v2857, 4294901760
    %v10308 = vsub.f32 %v2857, %v10307
    %10309 = vmatprep.subr.mxu0 %v10308
    %v10310 = vand.u32 %v2856, 4294901760
    %v10311 = vsub.f32 %v2856, %v10310
    %10312 = vmatpush1.msra.mxu0 %v10311
    %10313 = vmatprep.subr.mxu0 0.0
    %10314 = vmatpush1.msra.mxu0 0.0
    %10315 = vmatprep.subr.mxu0 0.0
    %10316 = vmatpush1.msra.mxu0 0.0
    %10317 = vmatprep.subr.mxu0 0.0
    %10318 = vmatpush1.msra.mxu0 0.0
    %10319 = vmatprep.subr.mxu0 0.0
    %10320 = vmatpush1.msra.mxu0 0.0
    %10321 = vmatprep.subr.mxu0 0.0
    %10322 = vmatpush1.msra.mxu0 0.0
    %10323 = vmatprep.subr.mxu0 0.0
    %10324 = vmatpush1.msra.mxu0 0.0
    %10325 = vmatprep.subr.mxu0 0.0
    %10326 = vmatpush1.msra.mxu0 0.0
    %10327 = vmatprep.subr.mxu0 0.0
    %10328 = vmatpush1.msra.mxu0 0.0
    %10329 = vmatprep.subr.mxu0 0.0
    %10330 = vmatpush1.msra.mxu0 0.0
    %10331 = vmatprep.subr.mxu0 0.0
    %10332 = vmatpush1.msra.mxu0 0.0
    %10333 = vmatprep.subr.mxu0 0.0
    %10334 = vmatpush1.msra.mxu0 0.0
    %10335 = vmatprep.subr.mxu0 0.0
    %10336 = vmatpush1.msra.mxu0 0.0
    %10337 = vmatprep.subr.mxu0 0.0
    %10338 = vmatpush1.msra.mxu0 0.0
    %10339 = vmatprep.subr.mxu0 0.0
    %10340 = vmatpush1.msra.mxu0 0.0
    %10341 = vmatprep.subr.mxu0 0.0
    %10342 = vmatpush1.msra.mxu0 0.0
    %10343 = vmatprep.subr.mxu0 0.0
    %10344 = vmatpush1.msra.mxu0 0.0
    %10345 = vmatprep.subr.mxu0 0.0
    %10346 = vmatpush1.msra.mxu0 0.0
    %10347 = vmatprep.subr.mxu0 0.0
    %10348 = vmatpush1.msra.mxu0 0.0
    %10349 = vmatprep.subr.mxu0 0.0
    %10350 = vmatpush1.msra.mxu0 0.0
    %10351 = vmatprep.subr.mxu0 0.0
    %10352 = vmatpush1.msra.mxu0 0.0
    %10353 = vmatprep.subr.mxu0 0.0
    %10354 = vmatpush1.msra.mxu0 0.0
    %10355 = vmatprep.subr.mxu0 0.0
    %10356 = vmatpush1.msra.mxu0 0.0
    %10357 = vmatprep.subr.mxu0 0.0
    %10358 = vmatpush1.msra.mxu0 0.0
    %10359 = vmatprep.subr.mxu0 0.0
    %10360 = vmatpush1.msra.mxu0 0.0
    %10361 = vmatprep.subr.mxu0 0.0
    %10362 = vmatpush1.msra.mxu0 0.0
    %10363 = vmatprep.subr.mxu0 0.0
    %10364 = vmatpush1.msra.mxu0 0.0
    %10365 = vmatprep.subr.mxu0 0.0
    %10366 = vmatpush1.msra.mxu0 0.0
    %10367 = vmatprep.subr.mxu0 0.0
    %10368 = vmatpush1.msra.mxu0 0.0
    %10369 = vmatprep.mubr.f32.mxu0 0.0
    %v10370 = vand.u32 %v3032, 4294901760
    %v10371 = vsub.f32 %v3032, %v10370
    %10372 = vmatmul.mubr.f32.gmra.mrb[0].mxu0 %v10371
    %v10373 = vpop.f32.mrb[0].mxu0
    %v10374 = vadd.f32 %v10285, %v10373
    %v10375 = vpop.f32.mrb[0].mxu0
    %v10376 = vadd.f32 %v10287, %v10375
    %10377 = vdwg.mxu0
    %v10378 = vand.u32 %v2761, 4294901760
    %10379 = vmatprep.subr.mxu0 %v10378
    %v10380 = vand.u32 %v2760, 4294901760
    %10381 = vmatpush1.msra.mxu0 %v10380
    %v10382 = vand.u32 %v2793, 4294901760
    %10383 = vmatprep.subr.mxu0 %v10382
    %v10384 = vand.u32 %v2792, 4294901760
    %10385 = vmatpush1.msra.mxu0 %v10384
    %v10386 = vand.u32 %v2825, 4294901760
    %10387 = vmatprep.subr.mxu0 %v10386
    %v10388 = vand.u32 %v2824, 4294901760
    %10389 = vmatpush1.msra.mxu0 %v10388
    %v10390 = vand.u32 %v2857, 4294901760
    %10391 = vmatprep.subr.mxu0 %v10390
    %v10392 = vand.u32 %v2856, 4294901760
    %10393 = vmatpush1.msra.mxu0 %v10392
    %10394 = vmatprep.subr.mxu0 0.0
    %10395 = vmatpush1.msra.mxu0 0.0
    %10396 = vmatprep.subr.mxu0 0.0
    %10397 = vmatpush1.msra.mxu0 0.0
    %10398 = vmatprep.subr.mxu0 0.0
    %10399 = vmatpush1.msra.mxu0 0.0
    %10400 = vmatprep.subr.mxu0 0.0
    %10401 = vmatpush1.msra.mxu0 0.0
    %10402 = vmatprep.subr.mxu0 0.0
    %10403 = vmatpush1.msra.mxu0 0.0
    %10404 = vmatprep.subr.mxu0 0.0
    %10405 = vmatpush1.msra.mxu0 0.0
    %10406 = vmatprep.subr.mxu0 0.0
    %10407 = vmatpush1.msra.mxu0 0.0
    %10408 = vmatprep.subr.mxu0 0.0
    %10409 = vmatpush1.msra.mxu0 0.0
    %10410 = vmatprep.subr.mxu0 0.0
    %10411 = vmatpush1.msra.mxu0 0.0
    %10412 = vmatprep.subr.mxu0 0.0
    %10413 = vmatpush1.msra.mxu0 0.0
    %10414 = vmatprep.subr.mxu0 0.0
    %10415 = vmatpush1.msra.mxu0 0.0
    %10416 = vmatprep.subr.mxu0 0.0
    %10417 = vmatpush1.msra.mxu0 0.0
    %10418 = vmatprep.subr.mxu0 0.0
    %10419 = vmatpush1.msra.mxu0 0.0
    %10420 = vmatprep.subr.mxu0 0.0
    %10421 = vmatpush1.msra.mxu0 0.0
    %10422 = vmatprep.subr.mxu0 0.0
    %10423 = vmatpush1.msra.mxu0 0.0
    %10424 = vmatprep.subr.mxu0 0.0
    %10425 = vmatpush1.msra.mxu0 0.0
    %10426 = vmatprep.subr.mxu0 0.0
    %10427 = vmatpush1.msra.mxu0 0.0
    %10428 = vmatprep.subr.mxu0 0.0
    %10429 = vmatpush1.msra.mxu0 0.0
    %10430 = vmatprep.subr.mxu0 0.0
    %10431 = vmatpush1.msra.mxu0 0.0
    %10432 = vmatprep.subr.mxu0 0.0
    %10433 = vmatpush1.msra.mxu0 0.0
    %10434 = vmatprep.subr.mxu0 0.0
    %10435 = vmatpush1.msra.mxu0 0.0
    %10436 = vmatprep.subr.mxu0 0.0
    %10437 = vmatpush1.msra.mxu0 0.0
    %10438 = vmatprep.subr.mxu0 0.0
    %10439 = vmatpush1.msra.mxu0 0.0
    %10440 = vmatprep.subr.mxu0 0.0
    %10441 = vmatpush1.msra.mxu0 0.0
    %10442 = vmatprep.subr.mxu0 0.0
    %10443 = vmatpush1.msra.mxu0 0.0
    %10444 = vmatprep.subr.mxu0 0.0
    %10445 = vmatpush1.msra.mxu0 0.0
    %10446 = vmatprep.subr.mxu0 0.0
    %10447 = vmatpush1.msra.mxu0 0.0
    %10448 = vmatprep.subr.mxu0 0.0
    %10449 = vmatpush1.msra.mxu0 0.0
    %10450 = vmatprep.mubr.f32.mxu0 0.0
    %v10451 = vand.u32 %v3032, 4294901760
    %v10452 = vsub.f32 %v3032, %v10451
    %v10453 = vand.u32 %v10452, 4294901760
    %10454 = vmatmul.mubr.f32.gmra.mrb[0].mxu0 %v10453
    %v10455 = vpop.f32.mrb[0].mxu0
    %v10456 = vadd.f32 %v10374, %v10455
    %v10457 = vpop.f32.mrb[0].mxu0
    %v10458 = vadd.f32 %v10376, %v10457
    %10459 = vdwg.mxu0
    %v10460 = vand.u32 %v2761, 4294901760
    %v10461 = vsub.f32 %v2761, %v10460
    %v10462 = vand.u32 %v10461, 4294901760
    %10463 = vmatprep.subr.mxu0 %v10462
    %v10464 = vand.u32 %v2760, 4294901760
    %v10465 = vsub.f32 %v2760, %v10464
    %v10466 = vand.u32 %v10465, 4294901760
    %10467 = vmatpush1.msra.mxu0 %v10466
    %v10468 = vand.u32 %v2793, 4294901760
    %v10469 = vsub.f32 %v2793, %v10468
    %v10470 = vand.u32 %v10469, 4294901760
    %10471 = vmatprep.subr.mxu0 %v10470
    %v10472 = vand.u32 %v2792, 4294901760
    %v10473 = vsub.f32 %v2792, %v10472
    %v10474 = vand.u32 %v10473, 4294901760
    %10475 = vmatpush1.msra.mxu0 %v10474
    %v10476 = vand.u32 %v2825, 4294901760
    %v10477 = vsub.f32 %v2825, %v10476
    %v10478 = vand.u32 %v10477, 4294901760
    %10479 = vmatprep.subr.mxu0 %v10478
    %v10480 = vand.u32 %v2824, 4294901760
    %v10481 = vsub.f32 %v2824, %v10480
    %v10482 = vand.u32 %v10481, 4294901760
    %10483 = vmatpush1.msra.mxu0 %v10482
    %v10484 = vand.u32 %v2857, 4294901760
    %v10485 = vsub.f32 %v2857, %v10484
    %v10486 = vand.u32 %v10485, 4294901760
    %10487 = vmatprep.subr.mxu0 %v10486
    %v10488 = vand.u32 %v2856, 4294901760
    %v10489 = vsub.f32 %v2856, %v10488
    %v10490 = vand.u32 %v10489, 4294901760
    %10491 = vmatpush1.msra.mxu0 %v10490
    %10492 = vmatprep.subr.mxu0 0.0
    %10493 = vmatpush1.msra.mxu0 0.0
    %10494 = vmatprep.subr.mxu0 0.0
    %10495 = vmatpush1.msra.mxu0 0.0
    %10496 = vmatprep.subr.mxu0 0.0
    %10497 = vmatpush1.msra.mxu0 0.0
    %10498 = vmatprep.subr.mxu0 0.0
    %10499 = vmatpush1.msra.mxu0 0.0
    %10500 = vmatprep.subr.mxu0 0.0
    %10501 = vmatpush1.msra.mxu0 0.0
    %10502 = vmatprep.subr.mxu0 0.0
    %10503 = vmatpush1.msra.mxu0 0.0
    %10504 = vmatprep.subr.mxu0 0.0
    %10505 = vmatpush1.msra.mxu0 0.0
    %10506 = vmatprep.subr.mxu0 0.0
    %10507 = vmatpush1.msra.mxu0 0.0
    %10508 = vmatprep.subr.mxu0 0.0
    %10509 = vmatpush1.msra.mxu0 0.0
    %10510 = vmatprep.subr.mxu0 0.0
    %10511 = vmatpush1.msra.mxu0 0.0
    %10512 = vmatprep.subr.mxu0 0.0
    %10513 = vmatpush1.msra.mxu0 0.0
    %10514 = vmatprep.subr.mxu0 0.0
    %10515 = vmatpush1.msra.mxu0 0.0
    %10516 = vmatprep.subr.mxu0 0.0
    %10517 = vmatpush1.msra.mxu0 0.0
    %10518 = vmatprep.subr.mxu0 0.0
    %10519 = vmatpush1.msra.mxu0 0.0
    %10520 = vmatprep.subr.mxu0 0.0
    %10521 = vmatpush1.msra.mxu0 0.0
    %10522 = vmatprep.subr.mxu0 0.0
    %10523 = vmatpush1.msra.mxu0 0.0
    %10524 = vmatprep.subr.mxu0 0.0
    %10525 = vmatpush1.msra.mxu0 0.0
    %10526 = vmatprep.subr.mxu0 0.0
    %10527 = vmatpush1.msra.mxu0 0.0
    %10528 = vmatprep.subr.mxu0 0.0
    %10529 = vmatpush1.msra.mxu0 0.0
    %10530 = vmatprep.subr.mxu0 0.0
    %10531 = vmatpush1.msra.mxu0 0.0
    %10532 = vmatprep.subr.mxu0 0.0
    %10533 = vmatpush1.msra.mxu0 0.0
    %10534 = vmatprep.subr.mxu0 0.0
    %10535 = vmatpush1.msra.mxu0 0.0
    %10536 = vmatprep.subr.mxu0 0.0
    %10537 = vmatpush1.msra.mxu0 0.0
    %10538 = vmatprep.subr.mxu0 0.0
    %10539 = vmatpush1.msra.mxu0 0.0
    %10540 = vmatprep.subr.mxu0 0.0
    %10541 = vmatpush1.msra.mxu0 0.0
    %10542 = vmatprep.subr.mxu0 0.0
    %10543 = vmatpush1.msra.mxu0 0.0
    %10544 = vmatprep.subr.mxu0 0.0
    %10545 = vmatpush1.msra.mxu0 0.0
    %10546 = vmatprep.subr.mxu0 0.0
    %10547 = vmatpush1.msra.mxu0 0.0
    %10548 = vmatprep.mubr.f32.mxu0 0.0
    %v10549 = vand.u32 %v3032, 4294901760
    %10550 = vmatmul.mubr.f32.gmra.mrb[0].mxu0 %v10549
    %v10551 = vpop.f32.mrb[0].mxu0
    %v10552 = vadd.f32 %v10456, %v10551
    %v10553 = vpop.f32.mrb[0].mxu0
    %v10554 = vadd.f32 %v10458, %v10553
    %10555 = vdwg.mxu0
    %v10556 = vand.u32 %v2761, 4294901760
    %10557 = vmatprep.subr.mxu0 %v10556
    %v10558 = vand.u32 %v2760, 4294901760
    %10559 = vmatpush1.msra.mxu0 %v10558
    %v10560 = vand.u32 %v2793, 4294901760
    %10561 = vmatprep.subr.mxu0 %v10560
    %v10562 = vand.u32 %v2792, 4294901760
    %10563 = vmatpush1.msra.mxu0 %v10562
    %v10564 = vand.u32 %v2825, 4294901760
    %10565 = vmatprep.subr.mxu0 %v10564
    %v10566 = vand.u32 %v2824, 4294901760
    %10567 = vmatpush1.msra.mxu0 %v10566
    %v10568 = vand.u32 %v2857, 4294901760
    %10569 = vmatprep.subr.mxu0 %v10568
    %v10570 = vand.u32 %v2856, 4294901760
    %10571 = vmatpush1.msra.mxu0 %v10570
    %10572 = vmatprep.subr.mxu0 0.0
    %10573 = vmatpush1.msra.mxu0 0.0
    %10574 = vmatprep.subr.mxu0 0.0
    %10575 = vmatpush1.msra.mxu0 0.0
    %10576 = vmatprep.subr.mxu0 0.0
    %10577 = vmatpush1.msra.mxu0 0.0
    %10578 = vmatprep.subr.mxu0 0.0
    %10579 = vmatpush1.msra.mxu0 0.0
    %10580 = vmatprep.subr.mxu0 0.0
    %10581 = vmatpush1.msra.mxu0 0.0
    %10582 = vmatprep.subr.mxu0 0.0
    %10583 = vmatpush1.msra.mxu0 0.0
    %10584 = vmatprep.subr.mxu0 0.0
    %10585 = vmatpush1.msra.mxu0 0.0
    %10586 = vmatprep.subr.mxu0 0.0
    %10587 = vmatpush1.msra.mxu0 0.0
    %10588 = vmatprep.subr.mxu0 0.0
    %10589 = vmatpush1.msra.mxu0 0.0
    %10590 = vmatprep.subr.mxu0 0.0
    %10591 = vmatpush1.msra.mxu0 0.0
    %10592 = vmatprep.subr.mxu0 0.0
    %10593 = vmatpush1.msra.mxu0 0.0
    %10594 = vmatprep.subr.mxu0 0.0
    %10595 = vmatpush1.msra.mxu0 0.0
    %10596 = vmatprep.subr.mxu0 0.0
    %10597 = vmatpush1.msra.mxu0 0.0
    %10598 = vmatprep.subr.mxu0 0.0
    %10599 = vmatpush1.msra.mxu0 0.0
    %10600 = vmatprep.subr.mxu0 0.0
    %10601 = vmatpush1.msra.mxu0 0.0
    %10602 = vmatprep.subr.mxu0 0.0
    %10603 = vmatpush1.msra.mxu0 0.0
    %10604 = vmatprep.subr.mxu0 0.0
    %10605 = vmatpush1.msra.mxu0 0.0
    %10606 = vmatprep.subr.mxu0 0.0
    %10607 = vmatpush1.msra.mxu0 0.0
    %10608 = vmatprep.subr.mxu0 0.0
    %10609 = vmatpush1.msra.mxu0 0.0
    %10610 = vmatprep.subr.mxu0 0.0
    %10611 = vmatpush1.msra.mxu0 0.0
    %10612 = vmatprep.subr.mxu0 0.0
    %10613 = vmatpush1.msra.mxu0 0.0
    %10614 = vmatprep.subr.mxu0 0.0
    %10615 = vmatpush1.msra.mxu0 0.0
    %10616 = vmatprep.subr.mxu0 0.0
    %10617 = vmatpush1.msra.mxu0 0.0
    %10618 = vmatprep.subr.mxu0 0.0
    %10619 = vmatpush1.msra.mxu0 0.0
    %10620 = vmatprep.subr.mxu0 0.0
    %10621 = vmatpush1.msra.mxu0 0.0
    %10622 = vmatprep.subr.mxu0 0.0
    %10623 = vmatpush1.msra.mxu0 0.0
    %10624 = vmatprep.subr.mxu0 0.0
    %10625 = vmatpush1.msra.mxu0 0.0
    %10626 = vmatprep.subr.mxu0 0.0
    %10627 = vmatpush1.msra.mxu0 0.0
    %10628 = vmatprep.mubr.f32.mxu0 0.0
    %v10629 = vand.u32 %v3032, 4294901760
    %10630 = vmatmul.mubr.f32.gmra.mrb[0].mxu0 %v10629
    %v10631 = vpop.f32.mrb[0].mxu0
    %v10632 = vadd.f32 %v10552, %v10631
    %v10633 = vpop.f32.mrb[0].mxu0
    %v10634 = vadd.f32 %v10554, %v10633
    %10635 = vdwg.mxu0
    %v10636 = vand.u32 %v2763, 4294901760
    %10637 = vmatprep.subr.mxu0 %v10636
    %v10638 = vand.u32 %v2762, 4294901760
    %10639 = vmatpush1.msra.mxu0 %v10638
    %v10640 = vand.u32 %v2795, 4294901760
    %10641 = vmatprep.subr.mxu0 %v10640
    %v10642 = vand.u32 %v2794, 4294901760
    %10643 = vmatpush1.msra.mxu0 %v10642
    %v10644 = vand.u32 %v2827, 4294901760
    %10645 = vmatprep.subr.mxu0 %v10644
    %v10646 = vand.u32 %v2826, 4294901760
    %10647 = vmatpush1.msra.mxu0 %v10646
    %v10648 = vand.u32 %v2859, 4294901760
    %10649 = vmatprep.subr.mxu0 %v10648
    %v10650 = vand.u32 %v2858, 4294901760
    %10651 = vmatpush1.msra.mxu0 %v10650
    %10652 = vmatprep.subr.mxu0 0.0
    %10653 = vmatpush1.msra.mxu0 0.0
    %10654 = vmatprep.subr.mxu0 0.0
    %10655 = vmatpush1.msra.mxu0 0.0
    %10656 = vmatprep.subr.mxu0 0.0
    %10657 = vmatpush1.msra.mxu0 0.0
    %10658 = vmatprep.subr.mxu0 0.0
    %10659 = vmatpush1.msra.mxu0 0.0
    %10660 = vmatprep.subr.mxu0 0.0
    %10661 = vmatpush1.msra.mxu0 0.0
    %10662 = vmatprep.subr.mxu0 0.0
    %10663 = vmatpush1.msra.mxu0 0.0
    %10664 = vmatprep.subr.mxu0 0.0
    %10665 = vmatpush1.msra.mxu0 0.0
    %10666 = vmatprep.subr.mxu0 0.0
    %10667 = vmatpush1.msra.mxu0 0.0
    %10668 = vmatprep.subr.mxu0 0.0
    %10669 = vmatpush1.msra.mxu0 0.0
    %10670 = vmatprep.subr.mxu0 0.0
    %10671 = vmatpush1.msra.mxu0 0.0
    %10672 = vmatprep.subr.mxu0 0.0
    %10673 = vmatpush1.msra.mxu0 0.0
    %10674 = vmatprep.subr.mxu0 0.0
    %10675 = vmatpush1.msra.mxu0 0.0
    %10676 = vmatprep.subr.mxu0 0.0
    %10677 = vmatpush1.msra.mxu0 0.0
    %10678 = vmatprep.subr.mxu0 0.0
    %10679 = vmatpush1.msra.mxu0 0.0
    %10680 = vmatprep.subr.mxu0 0.0
    %10681 = vmatpush1.msra.mxu0 0.0
    %10682 = vmatprep.subr.mxu0 0.0
    %10683 = vmatpush1.msra.mxu0 0.0
    %10684 = vmatprep.subr.mxu0 0.0
    %10685 = vmatpush1.msra.mxu0 0.0
    %10686 = vmatprep.subr.mxu0 0.0
    %10687 = vmatpush1.msra.mxu0 0.0
    %10688 = vmatprep.subr.mxu0 0.0
    %10689 = vmatpush1.msra.mxu0 0.0
    %10690 = vmatprep.subr.mxu0 0.0
    %10691 = vmatpush1.msra.mxu0 0.0
    %10692 = vmatprep.subr.mxu0 0.0
    %10693 = vmatpush1.msra.mxu0 0.0
    %10694 = vmatprep.subr.mxu0 0.0
    %10695 = vmatpush1.msra.mxu0 0.0
    %10696 = vmatprep.subr.mxu0 0.0
    %10697 = vmatpush1.msra.mxu0 0.0
    %10698 = vmatprep.subr.mxu0 0.0
    %10699 = vmatpush1.msra.mxu0 0.0
    %10700 = vmatprep.subr.mxu0 0.0
    %10701 = vmatpush1.msra.mxu0 0.0
    %10702 = vmatprep.subr.mxu0 0.0
    %10703 = vmatpush1.msra.mxu0 0.0
    %10704 = vmatprep.subr.mxu0 0.0
    %10705 = vmatpush1.msra.mxu0 0.0
    %10706 = vmatprep.subr.mxu0 0.0
    %10707 = vmatpush1.msra.mxu0 0.0
    %10708 = vmatprep.mubr.f32.mxu0 0.0
    %v10709 = vand.u32 %v3032, 4294901760
    %v10710 = vsub.f32 %v3032, %v10709
    %v10711 = vand.u32 %v10710, 4294901760
    %v10712 = vsub.f32 %v10710, %v10711
    %v10713 = vand.u32 %v10712, 4294901760
    %10714 = vmatmul.mubr.f32.gmra.mrb[0].mxu0 %v10713
    %v10715 = vpop.f32.mrb[0].mxu0
    %v10716 = vadd.f32 %v2985, %v10715
    %v10717 = vpop.f32.mrb[0].mxu0
    %v10718 = vadd.f32 %v2989, %v10717
    %10719 = vdwg.mxu0
    %v10720 = vand.u32 %v2763, 4294901760
    %v10721 = vsub.f32 %v2763, %v10720
    %v10722 = vand.u32 %v10721, 4294901760
    %v10723 = vsub.f32 %v10721, %v10722
    %v10724 = vand.u32 %v10723, 4294901760
    %10725 = vmatprep.subr.mxu0 %v10724
    %v10726 = vand.u32 %v2762, 4294901760
    %v10727 = vsub.f32 %v2762, %v10726
    %v10728 = vand.u32 %v10727, 4294901760
    %v10729 = vsub.f32 %v10727, %v10728
    %v10730 = vand.u32 %v10729, 4294901760
    %10731 = vmatpush1.msra.mxu0 %v10730
    %v10732 = vand.u32 %v2795, 4294901760
    %v10733 = vsub.f32 %v2795, %v10732
    %v10734 = vand.u32 %v10733, 4294901760
    %v10735 = vsub.f32 %v10733, %v10734
    %v10736 = vand.u32 %v10735, 4294901760
    %10737 = vmatprep.subr.mxu0 %v10736
    %v10738 = vand.u32 %v2794, 4294901760
    %v10739 = vsub.f32 %v2794, %v10738
    %v10740 = vand.u32 %v10739, 4294901760
    %v10741 = vsub.f32 %v10739, %v10740
    %v10742 = vand.u32 %v10741, 4294901760
    %10743 = vmatpush1.msra.mxu0 %v10742
    %v10744 = vand.u32 %v2827, 4294901760
    %v10745 = vsub.f32 %v2827, %v10744
    %v10746 = vand.u32 %v10745, 4294901760
    %v10747 = vsub.f32 %v10745, %v10746
    %v10748 = vand.u32 %v10747, 4294901760
    %10749 = vmatprep.subr.mxu0 %v10748
    %v10750 = vand.u32 %v2826, 4294901760
    %v10751 = vsub.f32 %v2826, %v10750
    %v10752 = vand.u32 %v10751, 4294901760
    %v10753 = vsub.f32 %v10751, %v10752
    %v10754 = vand.u32 %v10753, 4294901760
    %10755 = vmatpush1.msra.mxu0 %v10754
    %v10756 = vand.u32 %v2859, 4294901760
    %v10757 = vsub.f32 %v2859, %v10756
    %v10758 = vand.u32 %v10757, 4294901760
    %v10759 = vsub.f32 %v10757, %v10758
    %v10760 = vand.u32 %v10759, 4294901760
    %10761 = vmatprep.subr.mxu0 %v10760
    %v10762 = vand.u32 %v2858, 4294901760
    %v10763 = vsub.f32 %v2858, %v10762
    %v10764 = vand.u32 %v10763, 4294901760
    %v10765 = vsub.f32 %v10763, %v10764
    %v10766 = vand.u32 %v10765, 4294901760
    %10767 = vmatpush1.msra.mxu0 %v10766
    %10768 = vmatprep.subr.mxu0 0.0
    %10769 = vmatpush1.msra.mxu0 0.0
    %10770 = vmatprep.subr.mxu0 0.0
    %10771 = vmatpush1.msra.mxu0 0.0
    %10772 = vmatprep.subr.mxu0 0.0
    %10773 = vmatpush1.msra.mxu0 0.0
    %10774 = vmatprep.subr.mxu0 0.0
    %10775 = vmatpush1.msra.mxu0 0.0
    %10776 = vmatprep.subr.mxu0 0.0
    %10777 = vmatpush1.msra.mxu0 0.0
    %10778 = vmatprep.subr.mxu0 0.0
    %10779 = vmatpush1.msra.mxu0 0.0
    %10780 = vmatprep.subr.mxu0 0.0
    %10781 = vmatpush1.msra.mxu0 0.0
    %10782 = vmatprep.subr.mxu0 0.0
    %10783 = vmatpush1.msra.mxu0 0.0
    %10784 = vmatprep.subr.mxu0 0.0
    %10785 = vmatpush1.msra.mxu0 0.0
    %10786 = vmatprep.subr.mxu0 0.0
    %10787 = vmatpush1.msra.mxu0 0.0
    %10788 = vmatprep.subr.mxu0 0.0
    %10789 = vmatpush1.msra.mxu0 0.0
    %10790 = vmatprep.subr.mxu0 0.0
    %10791 = vmatpush1.msra.mxu0 0.0
    %10792 = vmatprep.subr.mxu0 0.0
    %10793 = vmatpush1.msra.mxu0 0.0
    %10794 = vmatprep.subr.mxu0 0.0
    %10795 = vmatpush1.msra.mxu0 0.0
    %10796 = vmatprep.subr.mxu0 0.0
    %10797 = vmatpush1.msra.mxu0 0.0
    %10798 = vmatprep.subr.mxu0 0.0
    %10799 = vmatpush1.msra.mxu0 0.0
    %10800 = vmatprep.subr.mxu0 0.0
    %10801 = vmatpush1.msra.mxu0 0.0
    %10802 = vmatprep.subr.mxu0 0.0
    %10803 = vmatpush1.msra.mxu0 0.0
    %10804 = vmatprep.subr.mxu0 0.0
    %10805 = vmatpush1.msra.mxu0 0.0
    %10806 = vmatprep.subr.mxu0 0.0
    %10807 = vmatpush1.msra.mxu0 0.0
    %10808 = vmatprep.subr.mxu0 0.0
    %10809 = vmatpush1.msra.mxu0 0.0
    %10810 = vmatprep.subr.mxu0 0.0
    %10811 = vmatpush1.msra.mxu0 0.0
    %10812 = vmatprep.subr.mxu0 0.0
    %10813 = vmatpush1.msra.mxu0 0.0
    %10814 = vmatprep.subr.mxu0 0.0
    %10815 = vmatpush1.msra.mxu0 0.0
    %10816 = vmatprep.subr.mxu0 0.0
    %10817 = vmatpush1.msra.mxu0 0.0
    %10818 = vmatprep.subr.mxu0 0.0
    %10819 = vmatpush1.msra.mxu0 0.0
    %10820 = vmatprep.subr.mxu0 0.0
    %10821 = vmatpush1.msra.mxu0 0.0
    %10822 = vmatprep.subr.mxu0 0.0
    %10823 = vmatpush1.msra.mxu0 0.0
    %10824 = vmatprep.mubr.f32.mxu0 0.0
    %v10825 = vand.u32 %v3032, 4294901760
    %10826 = vmatmul.mubr.f32.gmra.mrb[0].mxu0 %v10825
    %v10827 = vpop.f32.mrb[0].mxu0
    %v10828 = vadd.f32 %v10716, %v10827
    %v10829 = vpop.f32.mrb[0].mxu0
    %v10830 = vadd.f32 %v10718, %v10829
    %10831 = vdwg.mxu0
    %v10832 = vand.u32 %v2763, 4294901760
    %v10833 = vsub.f32 %v2763, %v10832
    %10834 = vmatprep.subr.mxu0 %v10833
    %v10835 = vand.u32 %v2762, 4294901760
    %v10836 = vsub.f32 %v2762, %v10835
    %10837 = vmatpush1.msra.mxu0 %v10836
    %v10838 = vand.u32 %v2795, 4294901760
    %v10839 = vsub.f32 %v2795, %v10838
    %10840 = vmatprep.subr.mxu0 %v10839
    %v10841 = vand.u32 %v2794, 4294901760
    %v10842 = vsub.f32 %v2794, %v10841
    %10843 = vmatpush1.msra.mxu0 %v10842
    %v10844 = vand.u32 %v2827, 4294901760
    %v10845 = vsub.f32 %v2827, %v10844
    %10846 = vmatprep.subr.mxu0 %v10845
    %v10847 = vand.u32 %v2826, 4294901760
    %v10848 = vsub.f32 %v2826, %v10847
    %10849 = vmatpush1.msra.mxu0 %v10848
    %v10850 = vand.u32 %v2859, 4294901760
    %v10851 = vsub.f32 %v2859, %v10850
    %10852 = vmatprep.subr.mxu0 %v10851
    %v10853 = vand.u32 %v2858, 4294901760
    %v10854 = vsub.f32 %v2858, %v10853
    %10855 = vmatpush1.msra.mxu0 %v10854
    %10856 = vmatprep.subr.mxu0 0.0
    %10857 = vmatpush1.msra.mxu0 0.0
    %10858 = vmatprep.subr.mxu0 0.0
    %10859 = vmatpush1.msra.mxu0 0.0
    %10860 = vmatprep.subr.mxu0 0.0
    %10861 = vmatpush1.msra.mxu0 0.0
    %10862 = vmatprep.subr.mxu0 0.0
    %10863 = vmatpush1.msra.mxu0 0.0
    %10864 = vmatprep.subr.mxu0 0.0
    %10865 = vmatpush1.msra.mxu0 0.0
    %10866 = vmatprep.subr.mxu0 0.0
    %10867 = vmatpush1.msra.mxu0 0.0
    %10868 = vmatprep.subr.mxu0 0.0
    %10869 = vmatpush1.msra.mxu0 0.0
    %10870 = vmatprep.subr.mxu0 0.0
    %10871 = vmatpush1.msra.mxu0 0.0
    %10872 = vmatprep.subr.mxu0 0.0
    %10873 = vmatpush1.msra.mxu0 0.0
    %10874 = vmatprep.subr.mxu0 0.0
    %10875 = vmatpush1.msra.mxu0 0.0
    %10876 = vmatprep.subr.mxu0 0.0
    %10877 = vmatpush1.msra.mxu0 0.0
    %10878 = vmatprep.subr.mxu0 0.0
    %10879 = vmatpush1.msra.mxu0 0.0
    %10880 = vmatprep.subr.mxu0 0.0
    %10881 = vmatpush1.msra.mxu0 0.0
    %10882 = vmatprep.subr.mxu0 0.0
    %10883 = vmatpush1.msra.mxu0 0.0
    %10884 = vmatprep.subr.mxu0 0.0
    %10885 = vmatpush1.msra.mxu0 0.0
    %10886 = vmatprep.subr.mxu0 0.0
    %10887 = vmatpush1.msra.mxu0 0.0
    %10888 = vmatprep.subr.mxu0 0.0
    %10889 = vmatpush1.msra.mxu0 0.0
    %10890 = vmatprep.subr.mxu0 0.0
    %10891 = vmatpush1.msra.mxu0 0.0
    %10892 = vmatprep.subr.mxu0 0.0
    %10893 = vmatpush1.msra.mxu0 0.0
    %10894 = vmatprep.subr.mxu0 0.0
    %10895 = vmatpush1.msra.mxu0 0.0
    %10896 = vmatprep.subr.mxu0 0.0
    %10897 = vmatpush1.msra.mxu0 0.0
    %10898 = vmatprep.subr.mxu0 0.0
    %10899 = vmatpush1.msra.mxu0 0.0
    %10900 = vmatprep.subr.mxu0 0.0
    %10901 = vmatpush1.msra.mxu0 0.0
    %10902 = vmatprep.subr.mxu0 0.0
    %10903 = vmatpush1.msra.mxu0 0.0
    %10904 = vmatprep.subr.mxu0 0.0
    %10905 = vmatpush1.msra.mxu0 0.0
    %10906 = vmatprep.subr.mxu0 0.0
    %10907 = vmatpush1.msra.mxu0 0.0
    %10908 = vmatprep.subr.mxu0 0.0
    %10909 = vmatpush1.msra.mxu0 0.0
    %10910 = vmatprep.subr.mxu0 0.0
    %10911 = vmatpush1.msra.mxu0 0.0
    %10912 = vmatprep.mubr.f32.mxu0 0.0
    %v10913 = vand.u32 %v3032, 4294901760
    %v10914 = vsub.f32 %v3032, %v10913
    %10915 = vmatmul.mubr.f32.gmra.mrb[0].mxu0 %v10914
    %v10916 = vpop.f32.mrb[0].mxu0
    %v10917 = vadd.f32 %v10828, %v10916
    %v10918 = vpop.f32.mrb[0].mxu0
    %v10919 = vadd.f32 %v10830, %v10918
    %10920 = vdwg.mxu0
    %v10921 = vand.u32 %v2763, 4294901760
    %10922 = vmatprep.subr.mxu0 %v10921
    %v10923 = vand.u32 %v2762, 4294901760
    %10924 = vmatpush1.msra.mxu0 %v10923
    %v10925 = vand.u32 %v2795, 4294901760
    %10926 = vmatprep.subr.mxu0 %v10925
    %v10927 = vand.u32 %v2794, 4294901760
    %10928 = vmatpush1.msra.mxu0 %v10927
    %v10929 = vand.u32 %v2827, 4294901760
    %10930 = vmatprep.subr.mxu0 %v10929
    %v10931 = vand.u32 %v2826, 4294901760
    %10932 = vmatpush1.msra.mxu0 %v10931
    %v10933 = vand.u32 %v2859, 4294901760
    %10934 = vmatprep.subr.mxu0 %v10933
    %v10935 = vand.u32 %v2858, 4294901760
    %10936 = vmatpush1.msra.mxu0 %v10935
    %10937 = vmatprep.subr.mxu0 0.0
    %10938 = vmatpush1.msra.mxu0 0.0
    %10939 = vmatprep.subr.mxu0 0.0
    %10940 = vmatpush1.msra.mxu0 0.0
    %10941 = vmatprep.subr.mxu0 0.0
    %10942 = vmatpush1.msra.mxu0 0.0
    %10943 = vmatprep.subr.mxu0 0.0
    %10944 = vmatpush1.msra.mxu0 0.0
    %10945 = vmatprep.subr.mxu0 0.0
    %10946 = vmatpush1.msra.mxu0 0.0
    %10947 = vmatprep.subr.mxu0 0.0
    %10948 = vmatpush1.msra.mxu0 0.0
    %10949 = vmatprep.subr.mxu0 0.0
    %10950 = vmatpush1.msra.mxu0 0.0
    %10951 = vmatprep.subr.mxu0 0.0
    %10952 = vmatpush1.msra.mxu0 0.0
    %10953 = vmatprep.subr.mxu0 0.0
    %10954 = vmatpush1.msra.mxu0 0.0
    %10955 = vmatprep.subr.mxu0 0.0
    %10956 = vmatpush1.msra.mxu0 0.0
    %10957 = vmatprep.subr.mxu0 0.0
    %10958 = vmatpush1.msra.mxu0 0.0
    %10959 = vmatprep.subr.mxu0 0.0
    %10960 = vmatpush1.msra.mxu0 0.0
    %10961 = vmatprep.subr.mxu0 0.0
    %10962 = vmatpush1.msra.mxu0 0.0
    %10963 = vmatprep.subr.mxu0 0.0
    %10964 = vmatpush1.msra.mxu0 0.0
    %10965 = vmatprep.subr.mxu0 0.0
    %10966 = vmatpush1.msra.mxu0 0.0
    %10967 = vmatprep.subr.mxu0 0.0
    %10968 = vmatpush1.msra.mxu0 0.0
    %10969 = vmatprep.subr.mxu0 0.0
    %10970 = vmatpush1.msra.mxu0 0.0
    %10971 = vmatprep.subr.mxu0 0.0
    %10972 = vmatpush1.msra.mxu0 0.0
    %10973 = vmatprep.subr.mxu0 0.0
    %10974 = vmatpush1.msra.mxu0 0.0
    %10975 = vmatprep.subr.mxu0 0.0
    %10976 = vmatpush1.msra.mxu0 0.0
    %10977 = vmatprep.subr.mxu0 0.0
    %10978 = vmatpush1.msra.mxu0 0.0
    %10979 = vmatprep.subr.mxu0 0.0
    %10980 = vmatpush1.msra.mxu0 0.0
    %10981 = vmatprep.subr.mxu0 0.0
    %10982 = vmatpush1.msra.mxu0 0.0
    %10983 = vmatprep.subr.mxu0 0.0
    %10984 = vmatpush1.msra.mxu0 0.0
    %10985 = vmatprep.subr.mxu0 0.0
    %10986 = vmatpush1.msra.mxu0 0.0
    %10987 = vmatprep.subr.mxu0 0.0
    %10988 = vmatpush1.msra.mxu0 0.0
    %10989 = vmatprep.subr.mxu0 0.0
    %10990 = vmatpush1.msra.mxu0 0.0
    %10991 = vmatprep.subr.mxu0 0.0
    %10992 = vmatpush1.msra.mxu0 0.0
    %10993 = vmatprep.mubr.f32.mxu0 0.0
    %v10994 = vand.u32 %v3032, 4294901760
    %v10995 = vsub.f32 %v3032, %v10994
    %v10996 = vand.u32 %v10995, 4294901760
    %10997 = vmatmul.mubr.f32.gmra.mrb[0].mxu0 %v10996
    %v10998 = vpop.f32.mrb[0].mxu0
    %v10999 = vadd.f32 %v10917, %v10998
    %v11000 = vpop.f32.mrb[0].mxu0
    %v11001 = vadd.f32 %v10919, %v11000
    %11002 = vdwg.mxu0
    %v11003 = vand.u32 %v2763, 4294901760
    %v11004 = vsub.f32 %v2763, %v11003
    %v11005 = vand.u32 %v11004, 4294901760
    %11006 = vmatprep.subr.mxu0 %v11005
    %v11007 = vand.u32 %v2762, 4294901760
    %v11008 = vsub.f32 %v2762, %v11007
    %v11009 = vand.u32 %v11008, 4294901760
    %11010 = vmatpush1.msra.mxu0 %v11009
    %v11011 = vand.u32 %v2795, 4294901760
    %v11012 = vsub.f32 %v2795, %v11011
    %v11013 = vand.u32 %v11012, 4294901760
    %11014 = vmatprep.subr.mxu0 %v11013
    %v11015 = vand.u32 %v2794, 4294901760
    %v11016 = vsub.f32 %v2794, %v11015
    %v11017 = vand.u32 %v11016, 4294901760
    %11018 = vmatpush1.msra.mxu0 %v11017
    %v11019 = vand.u32 %v2827, 4294901760
    %v11020 = vsub.f32 %v2827, %v11019
    %v11021 = vand.u32 %v11020, 4294901760
    %11022 = vmatprep.subr.mxu0 %v11021
    %v11023 = vand.u32 %v2826, 4294901760
    %v11024 = vsub.f32 %v2826, %v11023
    %v11025 = vand.u32 %v11024, 4294901760
    %11026 = vmatpush1.msra.mxu0 %v11025
    %v11027 = vand.u32 %v2859, 4294901760
    %v11028 = vsub.f32 %v2859, %v11027
    %v11029 = vand.u32 %v11028, 4294901760
    %11030 = vmatprep.subr.mxu0 %v11029
    %v11031 = vand.u32 %v2858, 4294901760
    %v11032 = vsub.f32 %v2858, %v11031
    %v11033 = vand.u32 %v11032, 4294901760
    %11034 = vmatpush1.msra.mxu0 %v11033
    %11035 = vmatprep.subr.mxu0 0.0
    %11036 = vmatpush1.msra.mxu0 0.0
    %11037 = vmatprep.subr.mxu0 0.0
    %11038 = vmatpush1.msra.mxu0 0.0
    %11039 = vmatprep.subr.mxu0 0.0
    %11040 = vmatpush1.msra.mxu0 0.0
    %11041 = vmatprep.subr.mxu0 0.0
    %11042 = vmatpush1.msra.mxu0 0.0
    %11043 = vmatprep.subr.mxu0 0.0
    %11044 = vmatpush1.msra.mxu0 0.0
    %11045 = vmatprep.subr.mxu0 0.0
    %11046 = vmatpush1.msra.mxu0 0.0
    %11047 = vmatprep.subr.mxu0 0.0
    %11048 = vmatpush1.msra.mxu0 0.0
    %11049 = vmatprep.subr.mxu0 0.0
    %11050 = vmatpush1.msra.mxu0 0.0
    %11051 = vmatprep.subr.mxu0 0.0
    %11052 = vmatpush1.msra.mxu0 0.0
    %11053 = vmatprep.subr.mxu0 0.0
    %11054 = vmatpush1.msra.mxu0 0.0
    %11055 = vmatprep.subr.mxu0 0.0
    %11056 = vmatpush1.msra.mxu0 0.0
    %11057 = vmatprep.subr.mxu0 0.0
    %11058 = vmatpush1.msra.mxu0 0.0
    %11059 = vmatprep.subr.mxu0 0.0
    %11060 = vmatpush1.msra.mxu0 0.0
    %11061 = vmatprep.subr.mxu0 0.0
    %11062 = vmatpush1.msra.mxu0 0.0
    %11063 = vmatprep.subr.mxu0 0.0
    %11064 = vmatpush1.msra.mxu0 0.0
    %11065 = vmatprep.subr.mxu0 0.0
    %11066 = vmatpush1.msra.mxu0 0.0
    %11067 = vmatprep.subr.mxu0 0.0
    %11068 = vmatpush1.msra.mxu0 0.0
    %11069 = vmatprep.subr.mxu0 0.0
    %11070 = vmatpush1.msra.mxu0 0.0
    %11071 = vmatprep.subr.mxu0 0.0
    %11072 = vmatpush1.msra.mxu0 0.0
    %11073 = vmatprep.subr.mxu0 0.0
    %11074 = vmatpush1.msra.mxu0 0.0
    %11075 = vmatprep.subr.mxu0 0.0
    %11076 = vmatpush1.msra.mxu0 0.0
    %11077 = vmatprep.subr.mxu0 0.0
    %11078 = vmatpush1.msra.mxu0 0.0
    %11079 = vmatprep.subr.mxu0 0.0
    %11080 = vmatpush1.msra.mxu0 0.0
    %11081 = vmatprep.subr.mxu0 0.0
    %11082 = vmatpush1.msra.mxu0 0.0
    %11083 = vmatprep.subr.mxu0 0.0
    %11084 = vmatpush1.msra.mxu0 0.0
    %11085 = vmatprep.subr.mxu0 0.0
    %11086 = vmatpush1.msra.mxu0 0.0
    %11087 = vmatprep.subr.mxu0 0.0
    %11088 = vmatpush1.msra.mxu0 0.0
    %11089 = vmatprep.subr.mxu0 0.0
    %11090 = vmatpush1.msra.mxu0 0.0
    %11091 = vmatprep.mubr.f32.mxu0 0.0
    %v11092 = vand.u32 %v3032, 4294901760
    %11093 = vmatmul.mubr.f32.gmra.mrb[0].mxu0 %v11092
    %v11094 = vpop.f32.mrb[0].mxu0
    %v11095 = vadd.f32 %v10999, %v11094
    %v11096 = vpop.f32.mrb[0].mxu0
    %v11097 = vadd.f32 %v11001, %v11096
    %11098 = vdwg.mxu0
    %v11099 = vand.u32 %v2763, 4294901760
    %11100 = vmatprep.subr.mxu0 %v11099
    %v11101 = vand.u32 %v2762, 4294901760
    %11102 = vmatpush1.msra.mxu0 %v11101
    %v11103 = vand.u32 %v2795, 4294901760
    %11104 = vmatprep.subr.mxu0 %v11103
    %v11105 = vand.u32 %v2794, 4294901760
    %11106 = vmatpush1.msra.mxu0 %v11105
    %v11107 = vand.u32 %v2827, 4294901760
    %11108 = vmatprep.subr.mxu0 %v11107
    %v11109 = vand.u32 %v2826, 4294901760
    %11110 = vmatpush1.msra.mxu0 %v11109
    %v11111 = vand.u32 %v2859, 4294901760
    %11112 = vmatprep.subr.mxu0 %v11111
    %v11113 = vand.u32 %v2858, 4294901760
    %11114 = vmatpush1.msra.mxu0 %v11113
    %11115 = vmatprep.subr.mxu0 0.0
    %11116 = vmatpush1.msra.mxu0 0.0
    %11117 = vmatprep.subr.mxu0 0.0
    %11118 = vmatpush1.msra.mxu0 0.0
    %11119 = vmatprep.subr.mxu0 0.0
    %11120 = vmatpush1.msra.mxu0 0.0
    %11121 = vmatprep.subr.mxu0 0.0
    %11122 = vmatpush1.msra.mxu0 0.0
    %11123 = vmatprep.subr.mxu0 0.0
    %11124 = vmatpush1.msra.mxu0 0.0
    %11125 = vmatprep.subr.mxu0 0.0
    %11126 = vmatpush1.msra.mxu0 0.0
    %11127 = vmatprep.subr.mxu0 0.0
    %11128 = vmatpush1.msra.mxu0 0.0
    %11129 = vmatprep.subr.mxu0 0.0
    %11130 = vmatpush1.msra.mxu0 0.0
    %11131 = vmatprep.subr.mxu0 0.0
    %11132 = vmatpush1.msra.mxu0 0.0
    %11133 = vmatprep.subr.mxu0 0.0
    %11134 = vmatpush1.msra.mxu0 0.0
    %11135 = vmatprep.subr.mxu0 0.0
    %11136 = vmatpush1.msra.mxu0 0.0
    %11137 = vmatprep.subr.mxu0 0.0
    %11138 = vmatpush1.msra.mxu0 0.0
    %11139 = vmatprep.subr.mxu0 0.0
    %11140 = vmatpush1.msra.mxu0 0.0
    %11141 = vmatprep.subr.mxu0 0.0
    %11142 = vmatpush1.msra.mxu0 0.0
    %11143 = vmatprep.subr.mxu0 0.0
    %11144 = vmatpush1.msra.mxu0 0.0
    %11145 = vmatprep.subr.mxu0 0.0
    %11146 = vmatpush1.msra.mxu0 0.0
    %11147 = vmatprep.subr.mxu0 0.0
    %11148 = vmatpush1.msra.mxu0 0.0
    %11149 = vmatprep.subr.mxu0 0.0
    %11150 = vmatpush1.msra.mxu0 0.0
    %11151 = vmatprep.subr.mxu0 0.0
    %11152 = vmatpush1.msra.mxu0 0.0
    %11153 = vmatprep.subr.mxu0 0.0
    %11154 = vmatpush1.msra.mxu0 0.0
    %11155 = vmatprep.subr.mxu0 0.0
    %11156 = vmatpush1.msra.mxu0 0.0
    %11157 = vmatprep.subr.mxu0 0.0
    %11158 = vmatpush1.msra.mxu0 0.0
    %11159 = vmatprep.subr.mxu0 0.0
    %11160 = vmatpush1.msra.mxu0 0.0
    %11161 = vmatprep.subr.mxu0 0.0
    %11162 = vmatpush1.msra.mxu0 0.0
    %11163 = vmatprep.subr.mxu0 0.0
    %11164 = vmatpush1.msra.mxu0 0.0
    %11165 = vmatprep.subr.mxu0 0.0
    %11166 = vmatpush1.msra.mxu0 0.0
    %11167 = vmatprep.subr.mxu0 0.0
    %11168 = vmatpush1.msra.mxu0 0.0
    %11169 = vmatprep.subr.mxu0 0.0
    %11170 = vmatpush1.msra.mxu0 0.0
    %11171 = vmatprep.mubr.f32.mxu0 0.0
    %v11172 = vand.u32 %v3032, 4294901760
    %11173 = vmatmul.mubr.f32.gmra.mrb[0].mxu0 %v11172
    %v11174 = vpop.f32.mrb[0].mxu0
    %v11175 = vadd.f32 %v11095, %v11174
    %v11176 = vpop.f32.mrb[0].mxu0
    %v11177 = vadd.f32 %v11097, %v11176
    %11178 = vdwg.mxu0
    %v11179 = vand.u32 %v2765, 4294901760
    %11180 = vmatprep.subr.mxu0 %v11179
    %v11181 = vand.u32 %v2764, 4294901760
    %11182 = vmatpush1.msra.mxu0 %v11181
    %v11183 = vand.u32 %v2797, 4294901760
    %11184 = vmatprep.subr.mxu0 %v11183
    %v11185 = vand.u32 %v2796, 4294901760
    %11186 = vmatpush1.msra.mxu0 %v11185
    %v11187 = vand.u32 %v2829, 4294901760
    %11188 = vmatprep.subr.mxu0 %v11187
    %v11189 = vand.u32 %v2828, 4294901760
    %11190 = vmatpush1.msra.mxu0 %v11189
    %v11191 = vand.u32 %v2861, 4294901760
    %11192 = vmatprep.subr.mxu0 %v11191
    %v11193 = vand.u32 %v2860, 4294901760
    %11194 = vmatpush1.msra.mxu0 %v11193
    %11195 = vmatprep.subr.mxu0 0.0
    %11196 = vmatpush1.msra.mxu0 0.0
    %11197 = vmatprep.subr.mxu0 0.0
    %11198 = vmatpush1.msra.mxu0 0.0
    %11199 = vmatprep.subr.mxu0 0.0
    %11200 = vmatpush1.msra.mxu0 0.0
    %11201 = vmatprep.subr.mxu0 0.0
    %11202 = vmatpush1.msra.mxu0 0.0
    %11203 = vmatprep.subr.mxu0 0.0
    %11204 = vmatpush1.msra.mxu0 0.0
    %11205 = vmatprep.subr.mxu0 0.0
    %11206 = vmatpush1.msra.mxu0 0.0
    %11207 = vmatprep.subr.mxu0 0.0
    %11208 = vmatpush1.msra.mxu0 0.0
    %11209 = vmatprep.subr.mxu0 0.0
    %11210 = vmatpush1.msra.mxu0 0.0
    %11211 = vmatprep.subr.mxu0 0.0
    %11212 = vmatpush1.msra.mxu0 0.0
    %11213 = vmatprep.subr.mxu0 0.0
    %11214 = vmatpush1.msra.mxu0 0.0
    %11215 = vmatprep.subr.mxu0 0.0
    %11216 = vmatpush1.msra.mxu0 0.0
    %11217 = vmatprep.subr.mxu0 0.0
    %11218 = vmatpush1.msra.mxu0 0.0
    %11219 = vmatprep.subr.mxu0 0.0
    %11220 = vmatpush1.msra.mxu0 0.0
    %11221 = vmatprep.subr.mxu0 0.0
    %11222 = vmatpush1.msra.mxu0 0.0
    %11223 = vmatprep.subr.mxu0 0.0
    %11224 = vmatpush1.msra.mxu0 0.0
    %11225 = vmatprep.subr.mxu0 0.0
    %11226 = vmatpush1.msra.mxu0 0.0
    %11227 = vmatprep.subr.mxu0 0.0
    %11228 = vmatpush1.msra.mxu0 0.0
    %11229 = vmatprep.subr.mxu0 0.0
    %11230 = vmatpush1.msra.mxu0 0.0
    %11231 = vmatprep.subr.mxu0 0.0
    %11232 = vmatpush1.msra.mxu0 0.0
    %11233 = vmatprep.subr.mxu0 0.0
    %11234 = vmatpush1.msra.mxu0 0.0
    %11235 = vmatprep.subr.mxu0 0.0
    %11236 = vmatpush1.msra.mxu0 0.0
    %11237 = vmatprep.subr.mxu0 0.0
    %11238 = vmatpush1.msra.mxu0 0.0
    %11239 = vmatprep.subr.mxu0 0.0
    %11240 = vmatpush1.msra.mxu0 0.0
    %11241 = vmatprep.subr.mxu0 0.0
    %11242 = vmatpush1.msra.mxu0 0.0
    %11243 = vmatprep.subr.mxu0 0.0
    %11244 = vmatpush1.msra.mxu0 0.0
    %11245 = vmatprep.subr.mxu0 0.0
    %11246 = vmatpush1.msra.mxu0 0.0
    %11247 = vmatprep.subr.mxu0 0.0
    %11248 = vmatpush1.msra.mxu0 0.0
    %11249 = vmatprep.subr.mxu0 0.0
    %11250 = vmatpush1.msra.mxu0 0.0
    %11251 = vmatprep.mubr.f32.mxu0 0.0
    %v11252 = vand.u32 %v3032, 4294901760
    %v11253 = vsub.f32 %v3032, %v11252
    %v11254 = vand.u32 %v11253, 4294901760
    %v11255 = vsub.f32 %v11253, %v11254
    %v11256 = vand.u32 %v11255, 4294901760
    %11257 = vmatmul.mubr.f32.gmra.mrb[0].mxu0 %v11256
    %v11258 = vpop.f32.mrb[0].mxu0
    %v11259 = vadd.f32 %v2993, %v11258
    %v11260 = vpop.f32.mrb[0].mxu0
    %v11261 = vadd.f32 %v2997, %v11260
    %11262 = vdwg.mxu0
    %v11263 = vand.u32 %v2765, 4294901760
    %v11264 = vsub.f32 %v2765, %v11263
    %v11265 = vand.u32 %v11264, 4294901760
    %v11266 = vsub.f32 %v11264, %v11265
    %v11267 = vand.u32 %v11266, 4294901760
    %11268 = vmatprep.subr.mxu0 %v11267
    %v11269 = vand.u32 %v2764, 4294901760
    %v11270 = vsub.f32 %v2764, %v11269
    %v11271 = vand.u32 %v11270, 4294901760
    %v11272 = vsub.f32 %v11270, %v11271
    %v11273 = vand.u32 %v11272, 4294901760
    %11274 = vmatpush1.msra.mxu0 %v11273
    %v11275 = vand.u32 %v2797, 4294901760
    %v11276 = vsub.f32 %v2797, %v11275
    %v11277 = vand.u32 %v11276, 4294901760
    %v11278 = vsub.f32 %v11276, %v11277
    %v11279 = vand.u32 %v11278, 4294901760
    %11280 = vmatprep.subr.mxu0 %v11279
    %v11281 = vand.u32 %v2796, 4294901760
    %v11282 = vsub.f32 %v2796, %v11281
    %v11283 = vand.u32 %v11282, 4294901760
    %v11284 = vsub.f32 %v11282, %v11283
    %v11285 = vand.u32 %v11284, 4294901760
    %11286 = vmatpush1.msra.mxu0 %v11285
    %v11287 = vand.u32 %v2829, 4294901760
    %v11288 = vsub.f32 %v2829, %v11287
    %v11289 = vand.u32 %v11288, 4294901760
    %v11290 = vsub.f32 %v11288, %v11289
    %v11291 = vand.u32 %v11290, 4294901760
    %11292 = vmatprep.subr.mxu0 %v11291
    %v11293 = vand.u32 %v2828, 4294901760
    %v11294 = vsub.f32 %v2828, %v11293
    %v11295 = vand.u32 %v11294, 4294901760
    %v11296 = vsub.f32 %v11294, %v11295
    %v11297 = vand.u32 %v11296, 4294901760
    %11298 = vmatpush1.msra.mxu0 %v11297
    %v11299 = vand.u32 %v2861, 4294901760
    %v11300 = vsub.f32 %v2861, %v11299
    %v11301 = vand.u32 %v11300, 4294901760
    %v11302 = vsub.f32 %v11300, %v11301
    %v11303 = vand.u32 %v11302, 4294901760
    %11304 = vmatprep.subr.mxu0 %v11303
    %v11305 = vand.u32 %v2860, 4294901760
    %v11306 = vsub.f32 %v2860, %v11305
    %v11307 = vand.u32 %v11306, 4294901760
    %v11308 = vsub.f32 %v11306, %v11307
    %v11309 = vand.u32 %v11308, 4294901760
    %11310 = vmatpush1.msra.mxu0 %v11309
    %11311 = vmatprep.subr.mxu0 0.0
    %11312 = vmatpush1.msra.mxu0 0.0
    %11313 = vmatprep.subr.mxu0 0.0
    %11314 = vmatpush1.msra.mxu0 0.0
    %11315 = vmatprep.subr.mxu0 0.0
    %11316 = vmatpush1.msra.mxu0 0.0
    %11317 = vmatprep.subr.mxu0 0.0
    %11318 = vmatpush1.msra.mxu0 0.0
    %11319 = vmatprep.subr.mxu0 0.0
    %11320 = vmatpush1.msra.mxu0 0.0
    %11321 = vmatprep.subr.mxu0 0.0
    %11322 = vmatpush1.msra.mxu0 0.0
    %11323 = vmatprep.subr.mxu0 0.0
    %11324 = vmatpush1.msra.mxu0 0.0
    %11325 = vmatprep.subr.mxu0 0.0
    %11326 = vmatpush1.msra.mxu0 0.0
    %11327 = vmatprep.subr.mxu0 0.0
    %11328 = vmatpush1.msra.mxu0 0.0
    %11329 = vmatprep.subr.mxu0 0.0
    %11330 = vmatpush1.msra.mxu0 0.0
    %11331 = vmatprep.subr.mxu0 0.0
    %11332 = vmatpush1.msra.mxu0 0.0
    %11333 = vmatprep.subr.mxu0 0.0
    %11334 = vmatpush1.msra.mxu0 0.0
    %11335 = vmatprep.subr.mxu0 0.0
    %11336 = vmatpush1.msra.mxu0 0.0
    %11337 = vmatprep.subr.mxu0 0.0
    %11338 = vmatpush1.msra.mxu0 0.0
    %11339 = vmatprep.subr.mxu0 0.0
    %11340 = vmatpush1.msra.mxu0 0.0
    %11341 = vmatprep.subr.mxu0 0.0
    %11342 = vmatpush1.msra.mxu0 0.0
    %11343 = vmatprep.subr.mxu0 0.0
    %11344 = vmatpush1.msra.mxu0 0.0
    %11345 = vmatprep.subr.mxu0 0.0
    %11346 = vmatpush1.msra.mxu0 0.0
    %11347 = vmatprep.subr.mxu0 0.0
    %11348 = vmatpush1.msra.mxu0 0.0
    %11349 = vmatprep.subr.mxu0 0.0
    %11350 = vmatpush1.msra.mxu0 0.0
    %11351 = vmatprep.subr.mxu0 0.0
    %11352 = vmatpush1.msra.mxu0 0.0
    %11353 = vmatprep.subr.mxu0 0.0
    %11354 = vmatpush1.msra.mxu0 0.0
    %11355 = vmatprep.subr.mxu0 0.0
    %11356 = vmatpush1.msra.mxu0 0.0
    %11357 = vmatprep.subr.mxu0 0.0
    %11358 = vmatpush1.msra.mxu0 0.0
    %11359 = vmatprep.subr.mxu0 0.0
    %11360 = vmatpush1.msra.mxu0 0.0
    %11361 = vmatprep.subr.mxu0 0.0
    %11362 = vmatpush1.msra.mxu0 0.0
    %11363 = vmatprep.subr.mxu0 0.0
    %11364 = vmatpush1.msra.mxu0 0.0
    %11365 = vmatprep.subr.mxu0 0.0
    %11366 = vmatpush1.msra.mxu0 0.0
    %11367 = vmatprep.mubr.f32.mxu0 0.0
    %v11368 = vand.u32 %v3032, 4294901760
    %11369 = vmatmul.mubr.f32.gmra.mrb[0].mxu0 %v11368
    %v11370 = vpop.f32.mrb[0].mxu0
    %v11371 = vadd.f32 %v11259, %v11370
    %v11372 = vpop.f32.mrb[0].mxu0
    %v11373 = vadd.f32 %v11261, %v11372
    %11374 = vdwg.mxu0
    %v11375 = vand.u32 %v2765, 4294901760
    %v11376 = vsub.f32 %v2765, %v11375
    %11377 = vmatprep.subr.mxu0 %v11376
    %v11378 = vand.u32 %v2764, 4294901760
    %v11379 = vsub.f32 %v2764, %v11378
    %11380 = vmatpush1.msra.mxu0 %v11379
    %v11381 = vand.u32 %v2797, 4294901760
    %v11382 = vsub.f32 %v2797, %v11381
    %11383 = vmatprep.subr.mxu0 %v11382
    %v11384 = vand.u32 %v2796, 4294901760
    %v11385 = vsub.f32 %v2796, %v11384
    %11386 = vmatpush1.msra.mxu0 %v11385
    %v11387 = vand.u32 %v2829, 4294901760
    %v11388 = vsub.f32 %v2829, %v11387
    %11389 = vmatprep.subr.mxu0 %v11388
    %v11390 = vand.u32 %v2828, 4294901760
    %v11391 = vsub.f32 %v2828, %v11390
    %11392 = vmatpush1.msra.mxu0 %v11391
    %v11393 = vand.u32 %v2861, 4294901760
    %v11394 = vsub.f32 %v2861, %v11393
    %11395 = vmatprep.subr.mxu0 %v11394
    %v11396 = vand.u32 %v2860, 4294901760
    %v11397 = vsub.f32 %v2860, %v11396
    %11398 = vmatpush1.msra.mxu0 %v11397
    %11399 = vmatprep.subr.mxu0 0.0
    %11400 = vmatpush1.msra.mxu0 0.0
    %11401 = vmatprep.subr.mxu0 0.0
    %11402 = vmatpush1.msra.mxu0 0.0
    %11403 = vmatprep.subr.mxu0 0.0
    %11404 = vmatpush1.msra.mxu0 0.0
    %11405 = vmatprep.subr.mxu0 0.0
    %11406 = vmatpush1.msra.mxu0 0.0
    %11407 = vmatprep.subr.mxu0 0.0
    %11408 = vmatpush1.msra.mxu0 0.0
    %11409 = vmatprep.subr.mxu0 0.0
    %11410 = vmatpush1.msra.mxu0 0.0
    %11411 = vmatprep.subr.mxu0 0.0
    %11412 = vmatpush1.msra.mxu0 0.0
    %11413 = vmatprep.subr.mxu0 0.0
    %11414 = vmatpush1.msra.mxu0 0.0
    %11415 = vmatprep.subr.mxu0 0.0
    %11416 = vmatpush1.msra.mxu0 0.0
    %11417 = vmatprep.subr.mxu0 0.0
    %11418 = vmatpush1.msra.mxu0 0.0
    %11419 = vmatprep.subr.mxu0 0.0
    %11420 = vmatpush1.msra.mxu0 0.0
    %11421 = vmatprep.subr.mxu0 0.0
    %11422 = vmatpush1.msra.mxu0 0.0
    %11423 = vmatprep.subr.mxu0 0.0
    %11424 = vmatpush1.msra.mxu0 0.0
    %11425 = vmatprep.subr.mxu0 0.0
    %11426 = vmatpush1.msra.mxu0 0.0
    %11427 = vmatprep.subr.mxu0 0.0
    %11428 = vmatpush1.msra.mxu0 0.0
    %11429 = vmatprep.subr.mxu0 0.0
    %11430 = vmatpush1.msra.mxu0 0.0
    %11431 = vmatprep.subr.mxu0 0.0
    %11432 = vmatpush1.msra.mxu0 0.0
    %11433 = vmatprep.subr.mxu0 0.0
    %11434 = vmatpush1.msra.mxu0 0.0
    %11435 = vmatprep.subr.mxu0 0.0
    %11436 = vmatpush1.msra.mxu0 0.0
    %11437 = vmatprep.subr.mxu0 0.0
    %11438 = vmatpush1.msra.mxu0 0.0
    %11439 = vmatprep.subr.mxu0 0.0
    %11440 = vmatpush1.msra.mxu0 0.0
    %11441 = vmatprep.subr.mxu0 0.0
    %11442 = vmatpush1.msra.mxu0 0.0
    %11443 = vmatprep.subr.mxu0 0.0
    %11444 = vmatpush1.msra.mxu0 0.0
    %11445 = vmatprep.subr.mxu0 0.0
    %11446 = vmatpush1.msra.mxu0 0.0
    %11447 = vmatprep.subr.mxu0 0.0
    %11448 = vmatpush1.msra.mxu0 0.0
    %11449 = vmatprep.subr.mxu0 0.0
    %11450 = vmatpush1.msra.mxu0 0.0
    %11451 = vmatprep.subr.mxu0 0.0
    %11452 = vmatpush1.msra.mxu0 0.0
    %11453 = vmatprep.subr.mxu0 0.0
    %11454 = vmatpush1.msra.mxu0 0.0
    %11455 = vmatprep.mubr.f32.mxu0 0.0
    %v11456 = vand.u32 %v3032, 4294901760
    %v11457 = vsub.f32 %v3032, %v11456
    %11458 = vmatmul.mubr.f32.gmra.mrb[0].mxu0 %v11457
    %v11459 = vpop.f32.mrb[0].mxu0
    %v11460 = vadd.f32 %v11371, %v11459
    %v11461 = vpop.f32.mrb[0].mxu0
    %v11462 = vadd.f32 %v11373, %v11461
    %11463 = vdwg.mxu0
    %v11464 = vand.u32 %v2765, 4294901760
    %11465 = vmatprep.subr.mxu0 %v11464
    %v11466 = vand.u32 %v2764, 4294901760
    %11467 = vmatpush1.msra.mxu0 %v11466
    %v11468 = vand.u32 %v2797, 4294901760
    %11469 = vmatprep.subr.mxu0 %v11468
    %v11470 = vand.u32 %v2796, 4294901760
    %11471 = vmatpush1.msra.mxu0 %v11470
    %v11472 = vand.u32 %v2829, 4294901760
    %11473 = vmatprep.subr.mxu0 %v11472
    %v11474 = vand.u32 %v2828, 4294901760
    %11475 = vmatpush1.msra.mxu0 %v11474
    %v11476 = vand.u32 %v2861, 4294901760
    %11477 = vmatprep.subr.mxu0 %v11476
    %v11478 = vand.u32 %v2860, 4294901760
    %11479 = vmatpush1.msra.mxu0 %v11478
    %11480 = vmatprep.subr.mxu0 0.0
    %11481 = vmatpush1.msra.mxu0 0.0
    %11482 = vmatprep.subr.mxu0 0.0
    %11483 = vmatpush1.msra.mxu0 0.0
    %11484 = vmatprep.subr.mxu0 0.0
    %11485 = vmatpush1.msra.mxu0 0.0
    %11486 = vmatprep.subr.mxu0 0.0
    %11487 = vmatpush1.msra.mxu0 0.0
    %11488 = vmatprep.subr.mxu0 0.0
    %11489 = vmatpush1.msra.mxu0 0.0
    %11490 = vmatprep.subr.mxu0 0.0
    %11491 = vmatpush1.msra.mxu0 0.0
    %11492 = vmatprep.subr.mxu0 0.0
    %11493 = vmatpush1.msra.mxu0 0.0
    %11494 = vmatprep.subr.mxu0 0.0
    %11495 = vmatpush1.msra.mxu0 0.0
    %11496 = vmatprep.subr.mxu0 0.0
    %11497 = vmatpush1.msra.mxu0 0.0
    %11498 = vmatprep.subr.mxu0 0.0
    %11499 = vmatpush1.msra.mxu0 0.0
    %11500 = vmatprep.subr.mxu0 0.0
    %11501 = vmatpush1.msra.mxu0 0.0
    %11502 = vmatprep.subr.mxu0 0.0
    %11503 = vmatpush1.msra.mxu0 0.0
    %11504 = vmatprep.subr.mxu0 0.0
    %11505 = vmatpush1.msra.mxu0 0.0
    %11506 = vmatprep.subr.mxu0 0.0
    %11507 = vmatpush1.msra.mxu0 0.0
    %11508 = vmatprep.subr.mxu0 0.0
    %11509 = vmatpush1.msra.mxu0 0.0
    %11510 = vmatprep.subr.mxu0 0.0
    %11511 = vmatpush1.msra.mxu0 0.0
    %11512 = vmatprep.subr.mxu0 0.0
    %11513 = vmatpush1.msra.mxu0 0.0
    %11514 = vmatprep.subr.mxu0 0.0
    %11515 = vmatpush1.msra.mxu0 0.0
    %11516 = vmatprep.subr.mxu0 0.0
    %11517 = vmatpush1.msra.mxu0 0.0
    %11518 = vmatprep.subr.mxu0 0.0
    %11519 = vmatpush1.msra.mxu0 0.0
    %11520 = vmatprep.subr.mxu0 0.0
    %11521 = vmatpush1.msra.mxu0 0.0
    %11522 = vmatprep.subr.mxu0 0.0
    %11523 = vmatpush1.msra.mxu0 0.0
    %11524 = vmatprep.subr.mxu0 0.0
    %11525 = vmatpush1.msra.mxu0 0.0
    %11526 = vmatprep.subr.mxu0 0.0
    %11527 = vmatpush1.msra.mxu0 0.0
    %11528 = vmatprep.subr.mxu0 0.0
    %11529 = vmatpush1.msra.mxu0 0.0
    %11530 = vmatprep.subr.mxu0 0.0
    %11531 = vmatpush1.msra.mxu0 0.0
    %11532 = vmatprep.subr.mxu0 0.0
    %11533 = vmatpush1.msra.mxu0 0.0
    %11534 = vmatprep.subr.mxu0 0.0
    %11535 = vmatpush1.msra.mxu0 0.0
    %11536 = vmatprep.mubr.f32.mxu0 0.0
    %v11537 = vand.u32 %v3032, 4294901760
    %v11538 = vsub.f32 %v3032, %v11537
    %v11539 = vand.u32 %v11538, 4294901760
    %11540 = vmatmul.mubr.f32.gmra.mrb[0].mxu0 %v11539
    %v11541 = vpop.f32.mrb[0].mxu0
    %v11542 = vadd.f32 %v11460, %v11541
    %v11543 = vpop.f32.mrb[0].mxu0
    %v11544 = vadd.f32 %v11462, %v11543
    %11545 = vdwg.mxu0
    %v11546 = vand.u32 %v2765, 4294901760
    %v11547 = vsub.f32 %v2765, %v11546
    %v11548 = vand.u32 %v11547, 4294901760
    %11549 = vmatprep.subr.mxu0 %v11548
    %v11550 = vand.u32 %v2764, 4294901760
    %v11551 = vsub.f32 %v2764, %v11550
    %v11552 = vand.u32 %v11551, 4294901760
    %11553 = vmatpush1.msra.mxu0 %v11552
    %v11554 = vand.u32 %v2797, 4294901760
    %v11555 = vsub.f32 %v2797, %v11554
    %v11556 = vand.u32 %v11555, 4294901760
    %11557 = vmatprep.subr.mxu0 %v11556
    %v11558 = vand.u32 %v2796, 4294901760
    %v11559 = vsub.f32 %v2796, %v11558
    %v11560 = vand.u32 %v11559, 4294901760
    %11561 = vmatpush1.msra.mxu0 %v11560
    %v11562 = vand.u32 %v2829, 4294901760
    %v11563 = vsub.f32 %v2829, %v11562
    %v11564 = vand.u32 %v11563, 4294901760
    %11565 = vmatprep.subr.mxu0 %v11564
    %v11566 = vand.u32 %v2828, 4294901760
    %v11567 = vsub.f32 %v2828, %v11566
    %v11568 = vand.u32 %v11567, 4294901760
    %11569 = vmatpush1.msra.mxu0 %v11568
    %v11570 = vand.u32 %v2861, 4294901760
    %v11571 = vsub.f32 %v2861, %v11570
    %v11572 = vand.u32 %v11571, 4294901760
    %11573 = vmatprep.subr.mxu0 %v11572
    %v11574 = vand.u32 %v2860, 4294901760
    %v11575 = vsub.f32 %v2860, %v11574
    %v11576 = vand.u32 %v11575, 4294901760
    %11577 = vmatpush1.msra.mxu0 %v11576
    %11578 = vmatprep.subr.mxu0 0.0
    %11579 = vmatpush1.msra.mxu0 0.0
    %11580 = vmatprep.subr.mxu0 0.0
    %11581 = vmatpush1.msra.mxu0 0.0
    %11582 = vmatprep.subr.mxu0 0.0
    %11583 = vmatpush1.msra.mxu0 0.0
    %11584 = vmatprep.subr.mxu0 0.0
    %11585 = vmatpush1.msra.mxu0 0.0
    %11586 = vmatprep.subr.mxu0 0.0
    %11587 = vmatpush1.msra.mxu0 0.0
    %11588 = vmatprep.subr.mxu0 0.0
    %11589 = vmatpush1.msra.mxu0 0.0
    %11590 = vmatprep.subr.mxu0 0.0
    %11591 = vmatpush1.msra.mxu0 0.0
    %11592 = vmatprep.subr.mxu0 0.0
    %11593 = vmatpush1.msra.mxu0 0.0
    %11594 = vmatprep.subr.mxu0 0.0
    %11595 = vmatpush1.msra.mxu0 0.0
    %11596 = vmatprep.subr.mxu0 0.0
    %11597 = vmatpush1.msra.mxu0 0.0
    %11598 = vmatprep.subr.mxu0 0.0
    %11599 = vmatpush1.msra.mxu0 0.0
    %11600 = vmatprep.subr.mxu0 0.0
    %11601 = vmatpush1.msra.mxu0 0.0
    %11602 = vmatprep.subr.mxu0 0.0
    %11603 = vmatpush1.msra.mxu0 0.0
    %11604 = vmatprep.subr.mxu0 0.0
    %11605 = vmatpush1.msra.mxu0 0.0
    %11606 = vmatprep.subr.mxu0 0.0
    %11607 = vmatpush1.msra.mxu0 0.0
    %11608 = vmatprep.subr.mxu0 0.0
    %11609 = vmatpush1.msra.mxu0 0.0
    %11610 = vmatprep.subr.mxu0 0.0
    %11611 = vmatpush1.msra.mxu0 0.0
    %11612 = vmatprep.subr.mxu0 0.0
    %11613 = vmatpush1.msra.mxu0 0.0
    %11614 = vmatprep.subr.mxu0 0.0
    %11615 = vmatpush1.msra.mxu0 0.0
    %11616 = vmatprep.subr.mxu0 0.0
    %11617 = vmatpush1.msra.mxu0 0.0
    %11618 = vmatprep.subr.mxu0 0.0
    %11619 = vmatpush1.msra.mxu0 0.0
    %11620 = vmatprep.subr.mxu0 0.0
    %11621 = vmatpush1.msra.mxu0 0.0
    %11622 = vmatprep.subr.mxu0 0.0
    %11623 = vmatpush1.msra.mxu0 0.0
    %11624 = vmatprep.subr.mxu0 0.0
    %11625 = vmatpush1.msra.mxu0 0.0
    %11626 = vmatprep.subr.mxu0 0.0
    %11627 = vmatpush1.msra.mxu0 0.0
    %11628 = vmatprep.subr.mxu0 0.0
    %11629 = vmatpush1.msra.mxu0 0.0
    %11630 = vmatprep.subr.mxu0 0.0
    %11631 = vmatpush1.msra.mxu0 0.0
    %11632 = vmatprep.subr.mxu0 0.0
    %11633 = vmatpush1.msra.mxu0 0.0
    %11634 = vmatprep.mubr.f32.mxu0 0.0
    %v11635 = vand.u32 %v3032, 4294901760
    %11636 = vmatmul.mubr.f32.gmra.mrb[0].mxu0 %v11635
    %v11637 = vpop.f32.mrb[0].mxu0
    %v11638 = vadd.f32 %v11542, %v11637
    %v11639 = vpop.f32.mrb[0].mxu0
    %v11640 = vadd.f32 %v11544, %v11639
    %11641 = vdwg.mxu0
    %v11642 = vand.u32 %v2765, 4294901760
    %11643 = vmatprep.subr.mxu0 %v11642
    %v11644 = vand.u32 %v2764, 4294901760
    %11645 = vmatpush1.msra.mxu0 %v11644
    %v11646 = vand.u32 %v2797, 4294901760
    %11647 = vmatprep.subr.mxu0 %v11646
    %v11648 = vand.u32 %v2796, 4294901760
    %11649 = vmatpush1.msra.mxu0 %v11648
    %v11650 = vand.u32 %v2829, 4294901760
    %11651 = vmatprep.subr.mxu0 %v11650
    %v11652 = vand.u32 %v2828, 4294901760
    %11653 = vmatpush1.msra.mxu0 %v11652
    %v11654 = vand.u32 %v2861, 4294901760
    %11655 = vmatprep.subr.mxu0 %v11654
    %v11656 = vand.u32 %v2860, 4294901760
    %11657 = vmatpush1.msra.mxu0 %v11656
    %11658 = vmatprep.subr.mxu0 0.0
    %11659 = vmatpush1.msra.mxu0 0.0
    %11660 = vmatprep.subr.mxu0 0.0
    %11661 = vmatpush1.msra.mxu0 0.0
    %11662 = vmatprep.subr.mxu0 0.0
    %11663 = vmatpush1.msra.mxu0 0.0
    %11664 = vmatprep.subr.mxu0 0.0
    %11665 = vmatpush1.msra.mxu0 0.0
    %11666 = vmatprep.subr.mxu0 0.0
    %11667 = vmatpush1.msra.mxu0 0.0
    %11668 = vmatprep.subr.mxu0 0.0
    %11669 = vmatpush1.msra.mxu0 0.0
    %11670 = vmatprep.subr.mxu0 0.0
    %11671 = vmatpush1.msra.mxu0 0.0
    %11672 = vmatprep.subr.mxu0 0.0
    %11673 = vmatpush1.msra.mxu0 0.0
    %11674 = vmatprep.subr.mxu0 0.0
    %11675 = vmatpush1.msra.mxu0 0.0
    %11676 = vmatprep.subr.mxu0 0.0
    %11677 = vmatpush1.msra.mxu0 0.0
    %11678 = vmatprep.subr.mxu0 0.0
    %11679 = vmatpush1.msra.mxu0 0.0
    %11680 = vmatprep.subr.mxu0 0.0
    %11681 = vmatpush1.msra.mxu0 0.0
    %11682 = vmatprep.subr.mxu0 0.0
    %11683 = vmatpush1.msra.mxu0 0.0
    %11684 = vmatprep.subr.mxu0 0.0
    %11685 = vmatpush1.msra.mxu0 0.0
    %11686 = vmatprep.subr.mxu0 0.0
    %11687 = vmatpush1.msra.mxu0 0.0
    %11688 = vmatprep.subr.mxu0 0.0
    %11689 = vmatpush1.msra.mxu0 0.0
    %11690 = vmatprep.subr.mxu0 0.0
    %11691 = vmatpush1.msra.mxu0 0.0
    %11692 = vmatprep.subr.mxu0 0.0
    %11693 = vmatpush1.msra.mxu0 0.0
    %11694 = vmatprep.subr.mxu0 0.0
    %11695 = vmatpush1.msra.mxu0 0.0
    %11696 = vmatprep.subr.mxu0 0.0
    %11697 = vmatpush1.msra.mxu0 0.0
    %11698 = vmatprep.subr.mxu0 0.0
    %11699 = vmatpush1.msra.mxu0 0.0
    %11700 = vmatprep.subr.mxu0 0.0
    %11701 = vmatpush1.msra.mxu0 0.0
    %11702 = vmatprep.subr.mxu0 0.0
    %11703 = vmatpush1.msra.mxu0 0.0
    %11704 = vmatprep.subr.mxu0 0.0
    %11705 = vmatpush1.msra.mxu0 0.0
    %11706 = vmatprep.subr.mxu0 0.0
    %11707 = vmatpush1.msra.mxu0 0.0
    %11708 = vmatprep.subr.mxu0 0.0
    %11709 = vmatpush1.msra.mxu0 0.0
    %11710 = vmatprep.subr.mxu0 0.0
    %11711 = vmatpush1.msra.mxu0 0.0
    %11712 = vmatprep.subr.mxu0 0.0
    %11713 = vmatpush1.msra.mxu0 0.0
    %11714 = vmatprep.mubr.f32.mxu0 0.0
    %v11715 = vand.u32 %v3032, 4294901760
    %11716 = vmatmul.mubr.f32.gmra.mrb[0].mxu0 %v11715
    %v11717 = vpop.f32.mrb[0].mxu0
    %v11718 = vadd.f32 %v11638, %v11717
    %v11719 = vpop.f32.mrb[0].mxu0
    %v11720 = vadd.f32 %v11640, %v11719
    %11721 = vdwg.mxu0
    %v11722 = vld [vmem:[%s5] sm:$0xff]
    %v11723 = vld [vmem:[%s5 + $0x8] sm:$0xff]
    %v11724 = vld [vmem:[%s5 + $0x10] sm:$0xff]
    %v11725 = vld [vmem:[%s5 + $0x18] sm:$0xff]
    %v11726 = vld [vmem:[%s5 + $0x20] sm:$0xff]
    %v11727 = vld [vmem:[%s5 + $0x28] sm:$0xff]
    %v11728 = vld [vmem:[%s5 + $0x30] sm:$0xff]
    %v11729 = vld [vmem:[%s5 + $0x38] sm:$0xff]
    %v11730 = vld [vmem:[%s5 + $0x40] sm:$0xff]
    %v11731 = vld [vmem:[%s5 + $0x48] sm:$0xff]
    %v11732 = vld [vmem:[%s5 + $0x50] sm:$0xff]
    %v11733 = vld [vmem:[%s5 + $0x58] sm:$0xff]
    %v11734 = vld [vmem:[%s5 + $0x60] sm:$0xff]
    %v11735 = vld [vmem:[%s5 + $0x68] sm:$0xff]
    %v11736 = vld [vmem:[%s5 + $0x70] sm:$0xff]
    %v11737 = vld [vmem:[%s5 + $0x78] sm:$0xff]
    %v11738 = vld [vmem:[%s5 + $0x80] sm:$0xff]
    %v11739 = vld [vmem:[%s5 + $0x88] sm:$0xff]
    %v11740 = vld [vmem:[%s5 + $0x90] sm:$0xff]
    %v11741 = vld [vmem:[%s5 + $0x98] sm:$0xff]
    %v11742 = vld [vmem:[%s5 + $0xa0] sm:$0xff]
    %v11743 = vld [vmem:[%s5 + $0xa8] sm:$0xff]
    %v11744 = vld [vmem:[%s5 + $0xb0] sm:$0xff]
    %v11745 = vld [vmem:[%s5 + $0xb8] sm:$0xff]
    %v11746 = vld [vmem:[%s5 + $0xc0] sm:$0xff]
    %v11747 = vld [vmem:[%s5 + $0xc8] sm:$0xff]
    %v11748 = vld [vmem:[%s5 + $0xd0] sm:$0xff]
    %v11749 = vld [vmem:[%s5 + $0xd8] sm:$0xff]
    %v11750 = vld [vmem:[%s5 + $0xe0] sm:$0xff]
    %v11751 = vld [vmem:[%s5 + $0xe8] sm:$0xff]
    %v11752 = vld [vmem:[%s5 + $0xf0] sm:$0xff]
    %v11753 = vld [vmem:[%s5 + $0xf8] sm:$0xff]
    %vm11754 = vcmp.eq.s32.totalorder %v11722, 1
    %vm11755 = vcmp.eq.s32.totalorder %v11723, 1
    %vm11756 = vcmp.eq.s32.totalorder %v11724, 1
    %vm11757 = vcmp.eq.s32.totalorder %v11725, 1
    %vm11758 = vcmp.eq.s32.totalorder %v11726, 1
    %vm11759 = vcmp.eq.s32.totalorder %v11727, 1
    %vm11760 = vcmp.eq.s32.totalorder %v11728, 1
    %vm11761 = vcmp.eq.s32.totalorder %v11729, 1
    %vm11762 = vcmp.eq.s32.totalorder %v11730, 1
    %vm11763 = vcmp.eq.s32.totalorder %v11731, 1
    %vm11764 = vcmp.eq.s32.totalorder %v11732, 1
    %vm11765 = vcmp.eq.s32.totalorder %v11733, 1
    %vm11766 = vcmp.eq.s32.totalorder %v11734, 1
    %vm11767 = vcmp.eq.s32.totalorder %v11735, 1
    %vm11768 = vcmp.eq.s32.totalorder %v11736, 1
    %vm11769 = vcmp.eq.s32.totalorder %v11737, 1
    %vm11770 = vcmp.eq.s32.totalorder %v11738, 1
    %vm11771 = vcmp.eq.s32.totalorder %v11739, 1
    %vm11772 = vcmp.eq.s32.totalorder %v11740, 1
    %vm11773 = vcmp.eq.s32.totalorder %v11741, 1
    %vm11774 = vcmp.eq.s32.totalorder %v11742, 1
    %vm11775 = vcmp.eq.s32.totalorder %v11743, 1
    %vm11776 = vcmp.eq.s32.totalorder %v11744, 1
    %vm11777 = vcmp.eq.s32.totalorder %v11745, 1
    %vm11778 = vcmp.eq.s32.totalorder %v11746, 1
    %vm11779 = vcmp.eq.s32.totalorder %v11747, 1
    %vm11780 = vcmp.eq.s32.totalorder %v11748, 1
    %vm11781 = vcmp.eq.s32.totalorder %v11749, 1
    %vm11782 = vcmp.eq.s32.totalorder %v11750, 1
    %vm11783 = vcmp.eq.s32.totalorder %v11751, 1
    %vm11784 = vcmp.eq.s32.totalorder %v11752, 1
    %vm11785 = vcmp.eq.s32.totalorder %v11753, 1
    %v11786 = vsel %vm11754, -1000000.0, %v3573
    %v11787 = vsel %vm11755, -1000000.0, %v3575
    %v11788 = vsel %vm11756, -1000000.0, %v4116
    %v11789 = vsel %vm11757, -1000000.0, %v4118
    %v11790 = vsel %vm11758, -1000000.0, %v4659
    %v11791 = vsel %vm11759, -1000000.0, %v4661
    %v11792 = vsel %vm11760, -1000000.0, %v5202
    %v11793 = vsel %vm11761, -1000000.0, %v5204
    %v11794 = vsel %vm11762, -1000000.0, %v5745
    %v11795 = vsel %vm11763, -1000000.0, %v5747
    %v11796 = vsel %vm11764, -1000000.0, %v6288
    %v11797 = vsel %vm11765, -1000000.0, %v6290
    %v11798 = vsel %vm11766, -1000000.0, %v6831
    %v11799 = vsel %vm11767, -1000000.0, %v6833
    %v11800 = vsel %vm11768, -1000000.0, %v7374
    %v11801 = vsel %vm11769, -1000000.0, %v7376
    %v11802 = vsel %vm11770, -1000000.0, %v7917
    %v11803 = vsel %vm11771, -1000000.0, %v7919
    %v11804 = vsel %vm11772, -1000000.0, %v8460
    %v11805 = vsel %vm11773, -1000000.0, %v8462
    %v11806 = vsel %vm11774, -1000000.0, %v9003
    %v11807 = vsel %vm11775, -1000000.0, %v9005
    %v11808 = vsel %vm11776, -1000000.0, %v9546
    %v11809 = vsel %vm11777, -1000000.0, %v9548
    %v11810 = vsel %vm11778, -1000000.0, %v10089
    %v11811 = vsel %vm11779, -1000000.0, %v10091
    %v11812 = vsel %vm11780, -1000000.0, %v10632
    %v11813 = vsel %vm11781, -1000000.0, %v10634
    %v11814 = vsel %vm11782, -1000000.0, %v11175
    %v11815 = vsel %vm11783, -1000000.0, %v11177
    %v11816 = vsel %vm11784, -1000000.0, %v11718
    %v11817 = vsel %vm11785, -1000000.0, %v11720
    %11818 = vst [vmem:[#allocation5] sm:$0xff] %v11786
    %11819 = vst [vmem:[#allocation5 + $0x8] sm:$0xff] %v11787
    %11820 = vst [vmem:[#allocation5 + $0x10] sm:$0xff] %v11788
    %11821 = vst [vmem:[#allocation5 + $0x18] sm:$0xff] %v11789
    %11822 = vst [vmem:[#allocation5 + $0x20] sm:$0xff] %v11790
    %11823 = vst [vmem:[#allocation5 + $0x28] sm:$0xff] %v11791
    %11824 = vst [vmem:[#allocation5 + $0x30] sm:$0xff] %v11792
    %11825 = vst [vmem:[#allocation5 + $0x38] sm:$0xff] %v11793
    %11826 = vst [vmem:[#allocation5 + $0x40] sm:$0xff] %v11794
    %11827 = vst [vmem:[#allocation5 + $0x48] sm:$0xff] %v11795
    %11828 = vst [vmem:[#allocation5 + $0x50] sm:$0xff] %v11796
    %11829 = vst [vmem:[#allocation5 + $0x58] sm:$0xff] %v11797
    %11830 = vst [vmem:[#allocation5 + $0x60] sm:$0xff] %v11798
    %11831 = vst [vmem:[#allocation5 + $0x68] sm:$0xff] %v11799
    %11832 = vst [vmem:[#allocation5 + $0x70] sm:$0xff] %v11800
    %11833 = vst [vmem:[#allocation5 + $0x78] sm:$0xff] %v11801
    %11834 = vst [vmem:[#allocation5 + $0x80] sm:$0xff] %v11802
    %11835 = vst [vmem:[#allocation5 + $0x88] sm:$0xff] %v11803
    %11836 = vst [vmem:[#allocation5 + $0x90] sm:$0xff] %v11804
    %11837 = vst [vmem:[#allocation5 + $0x98] sm:$0xff] %v11805
    %11838 = vst [vmem:[#allocation5 + $0xa0] sm:$0xff] %v11806
    %11839 = vst [vmem:[#allocation5 + $0xa8] sm:$0xff] %v11807
    %11840 = vst [vmem:[#allocation5 + $0xb0] sm:$0xff] %v11808
    %11841 = vst [vmem:[#allocation5 + $0xb8] sm:$0xff] %v11809
    %11842 = vst [vmem:[#allocation5 + $0xc0] sm:$0xff] %v11810
    %11843 = vst [vmem:[#allocation5 + $0xc8] sm:$0xff] %v11811
    %11844 = vst [vmem:[#allocation5 + $0xd0] sm:$0xff] %v11812
    %11845 = vst [vmem:[#allocation5 + $0xd8] sm:$0xff] %v11813
    %11846 = vst [vmem:[#allocation5 + $0xe0] sm:$0xff] %v11814
    %11847 = vst [vmem:[#allocation5 + $0xe8] sm:$0xff] %v11815
    %11848 = vst [vmem:[#allocation5 + $0xf0] sm:$0xff] %v11816
    %11849 = vst [vmem:[#allocation5 + $0xf8] sm:$0xff] %v11817
    // Predicated region
    $region30: #{tpu_custom_call.1} parent=1 // pred_check
      _
    $region31: #{tpu_custom_call.1} parent=1 // pred_check_branch
      %11851 = sbr.rel (0) target = $region33
    $region32: #{tpu_custom_call.1} parent=1 // pred_region
      %s11853 = ssub.s32 4096, 4096
      %11854 = vsyncadd [#allocation4], %s11853
      %s11856 = sshll.u32 [#allocation5], 4
      %s11857 = int_to_ptr.vmem [resolvable:$true] %s11856
      %11859 = dma.vmem_to_hbm [thread:$0]  %s11857, 4096, %s6, [#allocation4]
    $region33: #{tpu_custom_call.1} parent=1 // pred_fallthru
      _
    // Predicated region
    $region34: #{tpu_custom_call.1} parent=1 // pred_check
      _
    $region35: #{tpu_custom_call.1} parent=1 // pred_check_branch
      %11861 = sbr.rel (0) target = $region37
    $region36: #{tpu_custom_call.1} parent=1 // pred_region
      %11862 = dma.done [#allocation4], 4096
    $region37: #{tpu_custom_call.1} parent=1 // pred_fallthru
      _
    %11863 = vsyncpa [#allocation3], 1
    %11864 = vsyncpa [#allocation4], 1

</llo_original>
